<compile_context>
chip_gen: v7x
topology: tpu7x:2x2x1
jax: 0.10.0
libtpu: 0.0.40
codegen_flags: <defaults>
</compile_context>

<pallas_src>
import functools

import numpy as np
import jax
import jax.numpy as jnp
from jax.experimental import pallas as pl
from jax.experimental.pallas import tpu as pltpu

# ----------------------------- configuration ------------------------------
FEATURE_VECTOR_SIZE = 8
D_IN = 3
D_OUT = 1
HIDDEN = [64, 64, 64, 64]
SKIP_IN = (2,)
BIAS = 1.0
DIMS = [D_IN] + HIDDEN + [D_OUT + FEATURE_VECTOR_SIZE]   # [3, 64, 64, 64, 64, 9]
NUM_LAYERS = len(DIMS)                                   # 6 -> 5 linear layers
SKIP_LAYER = 2
H0 = DIMS[1]                                             # 64
D_OUT_TOTAL = D_OUT + FEATURE_VECTOR_SIZE                # 9
INV_SQRT2 = float(1.0 / np.sqrt(2.0))


def softplus_beta100(x):
    # torch.nn.Softplus(beta=100): (1/beta) * log(1 + exp(beta*x)),
    # reverting to identity when beta*x > threshold (default 20).
    # Single beta*x product; no clamp on the exp argument: overflow to inf in
    # the untaken where-branch gives log1p(inf)=inf, which `where` discards —
    # never a NaN.
    bx = x * 100.0
    return jnp.where(bx > 20.0, x, jnp.log1p(jnp.exp(bx)) * 0.01)


# ------------------------------ Pallas kernel ------------------------------
def implicit_mlp_kernel(x_ref, w0, b0, w1, b1, w2a, w2b, b2, w3, b3, w4, b4,
                        o_ref, *, chunk_n, act_dtype):
    mm_dt = w1.dtype                      # matmul operand dtype (64-wide layers)
    n_chunks = x_ref.shape[0] // chunk_n

    # Static Python loop over row chunks: the whole tile's layer chains land in
    # one basic block, so the scheduler can overlap chunk i's softplus
    # (VPU/EUP) with chunk j's matmuls (MXU) instead of serializing the chain.
    for c in range(n_chunks):
        rows = pl.ds(c * chunk_n, chunk_n)
        x_c = x_ref[rows, :]                                   # (chunk, 3) f32

        # layer 0 — K=3 matmul kept in f32 (don't quantize xyz coordinates).
        a = jnp.dot(x_c, w0[...], preferred_element_type=jnp.float32) + b0[...]
        h = softplus_beta100(a.astype(act_dtype))              # (chunk, 64)

        # layer 1 — 61-wide output zero-padded to 64 lanes.  The padded lanes
        # hold softplus(0) ~= 0.00693, which is harmless ONLY because w2a's
        # padded rows are zero; preserve that invariant if the padding changes.
        a = jnp.dot(h.astype(mm_dt), w1[...],
                    preferred_element_type=jnp.float32) + b1[...]
        h = softplus_beta100(a.astype(act_dtype))

        # layer 2 (skip): (cat([h, x], 1) / sqrt(2)) @ W2 + b2
        #              == (h @ W2a + x @ W2b) / sqrt(2) + b2
        # x @ W2b (K=3, ~free) is recomputed here rather than fused with
        # layer 0 — no lane-64 split, no long-lived skip_x scratch.
        a = (jnp.dot(h.astype(mm_dt), w2a[...],
                     preferred_element_type=jnp.float32)
             + jnp.dot(x_c, w2b[...],
                       preferred_element_type=jnp.float32)) * INV_SQRT2 + b2[...]
        h = softplus_beta100(a.astype(act_dtype))

        # layer 3
        a = jnp.dot(h.astype(mm_dt), w3[...],
                    preferred_element_type=jnp.float32) + b3[...]
        h = softplus_beta100(a.astype(act_dtype))

        # layer 4 (last, no activation) — 9-wide f32 output: HBM writeback is
        # 36 B/point instead of a 128-lane padded 512 B/point.
        o_ref[rows, :] = (jnp.dot(h.astype(mm_dt), w4[...],
                                  preferred_element_type=jnp.float32)
                          + b4[...])


# ------------------------------- wrapper -----------------------------------
def implicit_network_forward(x_in, params, *, tile_n=4096, chunk_n=512,
                             matmul_dtype=jnp.bfloat16,
                             act_dtype=jnp.bfloat16):
    """Forward of ImplicitNetwork with deform=False (hypo_params unused).

    matmul_dtype: operand dtype of the four 64-wide hidden matmuls (bf16 is
        MXU-native on v5e/v6e/v7x; the K=3 matmuls on xyz always stay f32;
        accumulation is always f32).
    act_dtype: dtype of the softplus chain.  bf16 doubles VPU/EUP throughput
        on v6e/v7x; pass jnp.float32 on v5e (no bf16 VPU/EUP there).
    """
    N, d = x_in.shape
    assert d == D_IN
    assert chunk_n % 8 == 0 and tile_n % chunk_n == 0

    (w0, b0), (w1, b1), (w2, b2), (w3, b3), (w4, b4) = params

    split = DIMS[SKIP_LAYER] - DIMS[0]                 # 61
    # Skip-layer split: W2 rows [:61] act on h, rows [61:] act on x_deform.
    w2a = w2[:split, :]                                # (61, 64)
    w2b = w2[split:, :]                                # (3, 64)

    # Zero-pad the 61-wide layer-1 output / skip-matmul K to 64 so hidden
    # activations are clean 64-lane slabs (w2a's padded rows are zero, so the
    # softplus(0) values in the padded lanes contribute nothing).
    w1p = jnp.pad(w1, ((0, 0), (0, H0 - split)))       # (64, 64)
    b1p = jnp.pad(b1, ((0, 0), (0, H0 - split)))       # (1, 64)
    w2ap = jnp.pad(w2a, ((0, H0 - split), (0, 0)))     # (64, 64)

    # bf16 operands for the 64-wide matmuls; K=3 weights and biases stay f32.
    mdt = matmul_dtype
    w1p, w2ap, w3m, w4m = (w.astype(mdt) for w in (w1p, w2ap, w3, w4))
    w0f = w0.astype(jnp.float32)
    w2bf = w2b.astype(jnp.float32)

    # Shrink the tile for small N so the 1-D grid has >= 2 steps (v7x has two
    # TensorCores; one giant tile would leave a core idle).
    half = (N + 1) // 2
    two_way = max(chunk_n, -(-half // chunk_n) * chunk_n)
    tile_n = min(tile_n, two_way)

    # Pad N up to a multiple of tile_n; padded rows are sliced off below.
    n_pad = (-N) % tile_n
    x_p = jnp.pad(x_in, ((0, n_pad), (0, 0))) if n_pad else x_in
    n_total = N + n_pad

    flat_params = [w0f, b0, w1p, b1p, w2ap, w2bf, b2, w3m, b3, w4m, b4]
    # Grid-invariant weight blocks (constant index_map).  Total footprint is
    # ~70 KB (~140 KB double-buffered), negligible vs. the 32 MiB budget, so
    # pl.Buffered(1) single-buffering is intentionally not used here.
    param_specs = [pl.BlockSpec(p.shape, lambda i: (0, 0)) for p in flat_params]

    kernel = functools.partial(implicit_mlp_kernel,
                               chunk_n=chunk_n, act_dtype=act_dtype)

    out = pl.pallas_call(
        kernel,
        out_shape=jax.ShapeDtypeStruct((n_total, D_OUT_TOTAL), jnp.float32),
        grid_spec=pltpu.PrefetchScalarGridSpec(
            num_scalar_prefetch=0,
            grid=(n_total // tile_n,),
            in_specs=[pl.BlockSpec((tile_n, D_IN), lambda i: (i, 0))]
                     + param_specs,
            out_specs=pl.BlockSpec((tile_n, D_OUT_TOTAL), lambda i: (i, 0)),
        ),
        compiler_params=pltpu.CompilerParams(
            dimension_semantics=("parallel",),
            # tile_n=4096: ~2 MiB x2 input + ~2 MiB x2 output VMEM buffers
            # (both lane-padded to 128 in VMEM) + weights + per-chunk scratch
            # ~= 13 MiB; 32 MiB is safe on every gen incl. v7x (64 MiB phys).
            vmem_limit_bytes=32 * 1024 * 1024),
    )(x_p, *flat_params)

    # Only a row slice remains (the 9-wide output removed the lane slice).
    return out if n_pad == 0 else out[:N]


# --------------------------- parameter creation -----------------------------
def init_params(key):
    """Deterministic geometric init (weight_norm at init is identity)."""
    params = []
    for l in range(NUM_LAYERS - 1):
        if l + 1 in SKIP_IN:
            out_dim = DIMS[l + 1] - DIMS[0]
        else:
            out_dim = DIMS[l + 1]
        in_dim = DIMS[l]
        key, wk = jax.random.split(key)
        if l == NUM_LAYERS - 2:
            mean = np.sqrt(np.pi) / np.sqrt(DIMS[l])
            W = (mean + 1e-4 * jax.random.normal(wk, (in_dim, out_dim),
                                                 jnp.float32))
            b = jnp.full((1, out_dim), -BIAS, jnp.float32)
        else:
            std = np.sqrt(2.0) / np.sqrt(out_dim)
            W = std * jax.random.normal(wk, (in_dim, out_dim), jnp.float32)
            b = jnp.zeros((1, out_dim), jnp.float32)
        params.append((W, b))
    return params


# --------------------------- pure-JAX reference ------------------------------
def forward_ref(x_in, params):
    x_deform = x_in          # deform=False, multires=0 (no embed_fn)
    x = x_deform
    for l in range(NUM_LAYERS - 1):
        W, b = params[l]
        if l in SKIP_IN:
            x = jnp.concatenate([x, x_deform], axis=1) / np.sqrt(2)
        x = x @ W + b
        if l < NUM_LAYERS - 2:
            x = softplus_beta100(x)
    return x


if __name__ == "__main__":
    key = jax.random.PRNGKey(0)
    kx, kp = jax.random.split(key)

    # Small test shapes; N is intentionally NOT a multiple of the tile so the
    # padding path AND a >=2-step grid are both exercised.
    N = 1000
    x_in = jax.random.normal(kx, (N, D_IN), jnp.float32)
    params = init_params(kp)

    ref = forward_ref(x_in, params)

    # f32 path: exact check against the pure-JAX reference (tile 512, four
    # 128-row chunks per tile, 2 grid steps).
    out_f32 = implicit_network_forward(
        x_in, params, tile_n=512, chunk_n=128,
        matmul_dtype=jnp.float32, act_dtype=jnp.float32)
    out_f32 = jax.block_until_ready(out_f32)
    assert out_f32.shape == (N, D_OUT_TOTAL)
    np.testing.assert_allclose(np.asarray(out_f32), np.asarray(ref),
                               rtol=1e-5, atol=1e-5)

    # Default path: bf16 matmul operands + bf16 softplus chain (f32 acc,
    # f32 K=3 input matmuls).  Tolerance regression test vs. the f32 ref.
    out_bf16 = implicit_network_forward(x_in, params)
    out_bf16 = jax.block_until_ready(out_bf16)
    assert out_bf16.shape == (N, D_OUT_TOTAL)
    assert bool(jnp.all(jnp.isfinite(out_bf16)))
    np.testing.assert_allclose(np.asarray(out_bf16), np.asarray(ref),
                               rtol=5e-2, atol=5e-2)

    print("KERNEL_OK")
</pallas_src>

<mosaic_0001>
module attributes {stable_mosaic.version = 11 : i64} {
  func.func @implicit_mlp_kernel(%arg0: i32, %arg1: memref<512x3xf32, #tpu.memory_space<vmem>>, %arg2: memref<3x64xf32, #tpu.memory_space<vmem>>, %arg3: memref<1x64xf32, #tpu.memory_space<vmem>>, %arg4: memref<64x64xf32, #tpu.memory_space<vmem>>, %arg5: memref<1x64xf32, #tpu.memory_space<vmem>>, %arg6: memref<64x64xf32, #tpu.memory_space<vmem>>, %arg7: memref<3x64xf32, #tpu.memory_space<vmem>>, %arg8: memref<1x64xf32, #tpu.memory_space<vmem>>, %arg9: memref<64x64xf32, #tpu.memory_space<vmem>>, %arg10: memref<1x64xf32, #tpu.memory_space<vmem>>, %arg11: memref<64x9xf32, #tpu.memory_space<vmem>>, %arg12: memref<1x9xf32, #tpu.memory_space<vmem>>, %arg13: memref<512x9xf32, #tpu.memory_space<vmem>>) attributes {dimension_semantics = [#tpu.dimension_semantics<parallel>], iteration_bounds = array<i64: 2>, scalar_prefetch = 0 : i64, scratch_operands = 0 : i64, tpu.core_type = #tpu.core_type<tc>, window_params = [{transform_indices = @transform_0, window_bounds = array<i64: 512, 3>}, {pipeline_mode = #tpu.pipeline_mode<synchronous>, transform_indices = @transform_1, window_bounds = array<i64: 3, 64>}, {pipeline_mode = #tpu.pipeline_mode<synchronous>, transform_indices = @transform_2, window_bounds = array<i64: 1, 64>}, {pipeline_mode = #tpu.pipeline_mode<synchronous>, transform_indices = @transform_3, window_bounds = array<i64: 64, 64>}, {pipeline_mode = #tpu.pipeline_mode<synchronous>, transform_indices = @transform_4, window_bounds = array<i64: 1, 64>}, {pipeline_mode = #tpu.pipeline_mode<synchronous>, transform_indices = @transform_5, window_bounds = array<i64: 64, 64>}, {pipeline_mode = #tpu.pipeline_mode<synchronous>, transform_indices = @transform_6, window_bounds = array<i64: 3, 64>}, {pipeline_mode = #tpu.pipeline_mode<synchronous>, transform_indices = @transform_7, window_bounds = array<i64: 1, 64>}, {pipeline_mode = #tpu.pipeline_mode<synchronous>, transform_indices = @transform_8, window_bounds = array<i64: 64, 64>}, {pipeline_mode = #tpu.pipeline_mode<synchronous>, transform_indices = @transform_9, window_bounds = array<i64: 1, 64>}, {pipeline_mode = #tpu.pipeline_mode<synchronous>, transform_indices = @transform_10, window_bounds = array<i64: 64, 9>}, {pipeline_mode = #tpu.pipeline_mode<synchronous>, transform_indices = @transform_11, window_bounds = array<i64: 1, 9>}, {transform_indices = @transform_12, window_bounds = array<i64: 512, 9>}]} {
    %c0 = arith.constant 0 : index
    %c0_0 = arith.constant 0 : index
    %0 = vector.load %arg1[%c0, %c0_0] : memref<512x3xf32, #tpu.memory_space<vmem>>, vector<128x3xf32>
    %c0_1 = arith.constant 0 : index
    %c0_2 = arith.constant 0 : index
    %1 = vector.load %arg2[%c0_1, %c0_2] : memref<3x64xf32, #tpu.memory_space<vmem>>, vector<3x64xf32>
    %cst = arith.constant dense<0.000000e+00> : vector<128x64xf32>
    %2 = tpu.matmul %0, %1, %cst {dimension_numbers = #tpu.dot_dimension_numbers<[1], [0], [0], [1], [0, 0, 1, 1], [], []>} : vector<128x3xf32>, vector<3x64xf32>, vector<128x64xf32> -> vector<128x64xf32>
    %c0_3 = arith.constant 0 : index
    %c0_4 = arith.constant 0 : index
    %3 = vector.load %arg3[%c0_3, %c0_4] : memref<1x64xf32, #tpu.memory_space<vmem>>, vector<1x64xf32>
    %4 = vector.broadcast %3 : vector<1x64xf32> to vector<128x64xf32>
    %5 = arith.addf %2, %4 : vector<128x64xf32>
    %cst_5 = arith.constant 1.000000e+02 : f32
    %6 = vector.broadcast %cst_5 : f32 to vector<128x64xf32>
    %7 = arith.mulf %5, %6 : vector<128x64xf32>
    %cst_6 = arith.constant 2.000000e+01 : f32
    %8 = vector.broadcast %cst_6 : f32 to vector<128x64xf32>
    %9 = arith.cmpf ogt, %7, %8 : vector<128x64xf32>
    %10 = math.exp %7 : vector<128x64xf32>
    %11 = math.log1p %10 : vector<128x64xf32>
    %cst_7 = arith.constant 0.00999999977 : f32
    %12 = vector.broadcast %cst_7 : f32 to vector<128x64xf32>
    %13 = arith.mulf %11, %12 : vector<128x64xf32>
    %14 = arith.select %9, %5, %13 : vector<128x64xi1>, vector<128x64xf32>
    %c0_8 = arith.constant 0 : index
    %c0_9 = arith.constant 0 : index
    %15 = vector.load %arg4[%c0_8, %c0_9] : memref<64x64xf32, #tpu.memory_space<vmem>>, vector<64x64xf32>
    %cst_10 = arith.constant dense<0.000000e+00> : vector<128x64xf32>
    %16 = tpu.matmul %14, %15, %cst_10 {dimension_numbers = #tpu.dot_dimension_numbers<[1], [0], [0], [1], [0, 0, 1, 1], [], []>} : vector<128x64xf32>, vector<64x64xf32>, vector<128x64xf32> -> vector<128x64xf32>
    %c0_11 = arith.constant 0 : index
    %c0_12 = arith.constant 0 : index
    %17 = vector.load %arg5[%c0_11, %c0_12] : memref<1x64xf32, #tpu.memory_space<vmem>>, vector<1x64xf32>
    %18 = vector.broadcast %17 : vector<1x64xf32> to vector<128x64xf32>
    %19 = arith.addf %16, %18 : vector<128x64xf32>
    %cst_13 = arith.constant 1.000000e+02 : f32
    %20 = vector.broadcast %cst_13 : f32 to vector<128x64xf32>
    %21 = arith.mulf %19, %20 : vector<128x64xf32>
    %cst_14 = arith.constant 2.000000e+01 : f32
    %22 = vector.broadcast %cst_14 : f32 to vector<128x64xf32>
    %23 = arith.cmpf ogt, %21, %22 : vector<128x64xf32>
    %24 = math.exp %21 : vector<128x64xf32>
    %25 = math.log1p %24 : vector<128x64xf32>
    %cst_15 = arith.constant 0.00999999977 : f32
    %26 = vector.broadcast %cst_15 : f32 to vector<128x64xf32>
    %27 = arith.mulf %25, %26 : vector<128x64xf32>
    %28 = arith.select %23, %19, %27 : vector<128x64xi1>, vector<128x64xf32>
    %c0_16 = arith.constant 0 : index
    %c0_17 = arith.constant 0 : index
    %29 = vector.load %arg6[%c0_16, %c0_17] : memref<64x64xf32, #tpu.memory_space<vmem>>, vector<64x64xf32>
    %cst_18 = arith.constant dense<0.000000e+00> : vector<128x64xf32>
    %30 = tpu.matmul %28, %29, %cst_18 {dimension_numbers = #tpu.dot_dimension_numbers<[1], [0], [0], [1], [0, 0, 1, 1], [], []>} : vector<128x64xf32>, vector<64x64xf32>, vector<128x64xf32> -> vector<128x64xf32>
    %c0_19 = arith.constant 0 : index
    %c0_20 = arith.constant 0 : index
    %31 = vector.load %arg7[%c0_19, %c0_20] : memref<3x64xf32, #tpu.memory_space<vmem>>, vector<3x64xf32>
    %cst_21 = arith.constant dense<0.000000e+00> : vector<128x64xf32>
    %32 = tpu.matmul %0, %31, %cst_21 {dimension_numbers = #tpu.dot_dimension_numbers<[1], [0], [0], [1], [0, 0, 1, 1], [], []>} : vector<128x3xf32>, vector<3x64xf32>, vector<128x64xf32> -> vector<128x64xf32>
    %33 = arith.addf %30, %32 : vector<128x64xf32>
    %cst_22 = arith.constant 0.707106769 : f32
    %34 = vector.broadcast %cst_22 : f32 to vector<128x64xf32>
    %35 = arith.mulf %33, %34 : vector<128x64xf32>
    %c0_23 = arith.constant 0 : index
    %c0_24 = arith.constant 0 : index
    %36 = vector.load %arg8[%c0_23, %c0_24] : memref<1x64xf32, #tpu.memory_space<vmem>>, vector<1x64xf32>
    %37 = vector.broadcast %36 : vector<1x64xf32> to vector<128x64xf32>
    %38 = arith.addf %35, %37 : vector<128x64xf32>
    %cst_25 = arith.constant 1.000000e+02 : f32
    %39 = vector.broadcast %cst_25 : f32 to vector<128x64xf32>
    %40 = arith.mulf %38, %39 : vector<128x64xf32>
    %cst_26 = arith.constant 2.000000e+01 : f32
    %41 = vector.broadcast %cst_26 : f32 to vector<128x64xf32>
    %42 = arith.cmpf ogt, %40, %41 : vector<128x64xf32>
    %43 = math.exp %40 : vector<128x64xf32>
    %44 = math.log1p %43 : vector<128x64xf32>
    %cst_27 = arith.constant 0.00999999977 : f32
    %45 = vector.broadcast %cst_27 : f32 to vector<128x64xf32>
    %46 = arith.mulf %44, %45 : vector<128x64xf32>
    %47 = arith.select %42, %38, %46 : vector<128x64xi1>, vector<128x64xf32>
    %c0_28 = arith.constant 0 : index
    %c0_29 = arith.constant 0 : index
    %48 = vector.load %arg9[%c0_28, %c0_29] : memref<64x64xf32, #tpu.memory_space<vmem>>, vector<64x64xf32>
    %cst_30 = arith.constant dense<0.000000e+00> : vector<128x64xf32>
    %49 = tpu.matmul %47, %48, %cst_30 {dimension_numbers = #tpu.dot_dimension_numbers<[1], [0], [0], [1], [0, 0, 1, 1], [], []>} : vector<128x64xf32>, vector<64x64xf32>, vector<128x64xf32> -> vector<128x64xf32>
    %c0_31 = arith.constant 0 : index
    %c0_32 = arith.constant 0 : index
    %50 = vector.load %arg10[%c0_31, %c0_32] : memref<1x64xf32, #tpu.memory_space<vmem>>, vector<1x64xf32>
    %51 = vector.broadcast %50 : vector<1x64xf32> to vector<128x64xf32>
    %52 = arith.addf %49, %51 : vector<128x64xf32>
    %cst_33 = arith.constant 1.000000e+02 : f32
    %53 = vector.broadcast %cst_33 : f32 to vector<128x64xf32>
    %54 = arith.mulf %52, %53 : vector<128x64xf32>
    %cst_34 = arith.constant 2.000000e+01 : f32
    %55 = vector.broadcast %cst_34 : f32 to vector<128x64xf32>
    %56 = arith.cmpf ogt, %54, %55 : vector<128x64xf32>
    %57 = math.exp %54 : vector<128x64xf32>
    %58 = math.log1p %57 : vector<128x64xf32>
    %cst_35 = arith.constant 0.00999999977 : f32
    %59 = vector.broadcast %cst_35 : f32 to vector<128x64xf32>
    %60 = arith.mulf %58, %59 : vector<128x64xf32>
    %61 = arith.select %56, %52, %60 : vector<128x64xi1>, vector<128x64xf32>
    %c0_36 = arith.constant 0 : index
    %c0_37 = arith.constant 0 : index
    %62 = vector.load %arg11[%c0_36, %c0_37] : memref<64x9xf32, #tpu.memory_space<vmem>>, vector<64x9xf32>
    %cst_38 = arith.constant dense<0.000000e+00> : vector<128x9xf32>
    %63 = tpu.matmul %61, %62, %cst_38 {dimension_numbers = #tpu.dot_dimension_numbers<[1], [0], [0], [1], [0, 0, 1, 1], [], []>} : vector<128x64xf32>, vector<64x9xf32>, vector<128x9xf32> -> vector<128x9xf32>
    %c0_39 = arith.constant 0 : index
    %c0_40 = arith.constant 0 : index
    %64 = vector.load %arg12[%c0_39, %c0_40] : memref<1x9xf32, #tpu.memory_space<vmem>>, vector<1x9xf32>
    %65 = vector.broadcast %64 : vector<1x9xf32> to vector<128x9xf32>
    %66 = arith.addf %63, %65 : vector<128x9xf32>
    %c0_41 = arith.constant 0 : index
    %c0_42 = arith.constant 0 : index
    %67 = vector.load %arg13[%c0_41, %c0_42] : memref<512x9xf32, #tpu.memory_space<vmem>>, vector<128x9xf32>
    tpu.vector_store %arg13[%c0_41, %c0_42], %66 {strides = array<i32>} : memref<512x9xf32, #tpu.memory_space<vmem>>, vector<128x9xf32>,
    %c128 = arith.constant 128 : index
    %c0_43 = arith.constant 0 : index
    %68 = vector.load %arg1[%c128, %c0_43] : memref<512x3xf32, #tpu.memory_space<vmem>>, vector<128x3xf32>
    %c0_44 = arith.constant 0 : index
    %c0_45 = arith.constant 0 : index
    %69 = vector.load %arg2[%c0_44, %c0_45] : memref<3x64xf32, #tpu.memory_space<vmem>>, vector<3x64xf32>
    %cst_46 = arith.constant dense<0.000000e+00> : vector<128x64xf32>
    %70 = tpu.matmul %68, %69, %cst_46 {dimension_numbers = #tpu.dot_dimension_numbers<[1], [0], [0], [1], [0, 0, 1, 1], [], []>} : vector<128x3xf32>, vector<3x64xf32>, vector<128x64xf32> -> vector<128x64xf32>
    %c0_47 = arith.constant 0 : index
    %c0_48 = arith.constant 0 : index
    %71 = vector.load %arg3[%c0_47, %c0_48] : memref<1x64xf32, #tpu.memory_space<vmem>>, vector<1x64xf32>
    %72 = vector.broadcast %71 : vector<1x64xf32> to vector<128x64xf32>
    %73 = arith.addf %70, %72 : vector<128x64xf32>
    %cst_49 = arith.constant 1.000000e+02 : f32
    %74 = vector.broadcast %cst_49 : f32 to vector<128x64xf32>
    %75 = arith.mulf %73, %74 : vector<128x64xf32>
    %cst_50 = arith.constant 2.000000e+01 : f32
    %76 = vector.broadcast %cst_50 : f32 to vector<128x64xf32>
    %77 = arith.cmpf ogt, %75, %76 : vector<128x64xf32>
    %78 = math.exp %75 : vector<128x64xf32>
    %79 = math.log1p %78 : vector<128x64xf32>
    %cst_51 = arith.constant 0.00999999977 : f32
    %80 = vector.broadcast %cst_51 : f32 to vector<128x64xf32>
    %81 = arith.mulf %79, %80 : vector<128x64xf32>
    %82 = arith.select %77, %73, %81 : vector<128x64xi1>, vector<128x64xf32>
    %c0_52 = arith.constant 0 : index
    %c0_53 = arith.constant 0 : index
    %83 = vector.load %arg4[%c0_52, %c0_53] : memref<64x64xf32, #tpu.memory_space<vmem>>, vector<64x64xf32>
    %cst_54 = arith.constant dense<0.000000e+00> : vector<128x64xf32>
    %84 = tpu.matmul %82, %83, %cst_54 {dimension_numbers = #tpu.dot_dimension_numbers<[1], [0], [0], [1], [0, 0, 1, 1], [], []>} : vector<128x64xf32>, vector<64x64xf32>, vector<128x64xf32> -> vector<128x64xf32>
    %c0_55 = arith.constant 0 : index
    %c0_56 = arith.constant 0 : index
    %85 = vector.load %arg5[%c0_55, %c0_56] : memref<1x64xf32, #tpu.memory_space<vmem>>, vector<1x64xf32>
    %86 = vector.broadcast %85 : vector<1x64xf32> to vector<128x64xf32>
    %87 = arith.addf %84, %86 : vector<128x64xf32>
    %cst_57 = arith.constant 1.000000e+02 : f32
    %88 = vector.broadcast %cst_57 : f32 to vector<128x64xf32>
    %89 = arith.mulf %87, %88 : vector<128x64xf32>
    %cst_58 = arith.constant 2.000000e+01 : f32
    %90 = vector.broadcast %cst_58 : f32 to vector<128x64xf32>
    %91 = arith.cmpf ogt, %89, %90 : vector<128x64xf32>
    %92 = math.exp %89 : vector<128x64xf32>
    %93 = math.log1p %92 : vector<128x64xf32>
    %cst_59 = arith.constant 0.00999999977 : f32
    %94 = vector.broadcast %cst_59 : f32 to vector<128x64xf32>
    %95 = arith.mulf %93, %94 : vector<128x64xf32>
    %96 = arith.select %91, %87, %95 : vector<128x64xi1>, vector<128x64xf32>
    %c0_60 = arith.constant 0 : index
    %c0_61 = arith.constant 0 : index
    %97 = vector.load %arg6[%c0_60, %c0_61] : memref<64x64xf32, #tpu.memory_space<vmem>>, vector<64x64xf32>
    %cst_62 = arith.constant dense<0.000000e+00> : vector<128x64xf32>
    %98 = tpu.matmul %96, %97, %cst_62 {dimension_numbers = #tpu.dot_dimension_numbers<[1], [0], [0], [1], [0, 0, 1, 1], [], []>} : vector<128x64xf32>, vector<64x64xf32>, vector<128x64xf32> -> vector<128x64xf32>
    %c0_63 = arith.constant 0 : index
    %c0_64 = arith.constant 0 : index
    %99 = vector.load %arg7[%c0_63, %c0_64] : memref<3x64xf32, #tpu.memory_space<vmem>>, vector<3x64xf32>
    %cst_65 = arith.constant dense<0.000000e+00> : vector<128x64xf32>
    %100 = tpu.matmul %68, %99, %cst_65 {dimension_numbers = #tpu.dot_dimension_numbers<[1], [0], [0], [1], [0, 0, 1, 1], [], []>} : vector<128x3xf32>, vector<3x64xf32>, vector<128x64xf32> -> vector<128x64xf32>
    %101 = arith.addf %98, %100 : vector<128x64xf32>
    %cst_66 = arith.constant 0.707106769 : f32
    %102 = vector.broadcast %cst_66 : f32 to vector<128x64xf32>
    %103 = arith.mulf %101, %102 : vector<128x64xf32>
    %c0_67 = arith.constant 0 : index
    %c0_68 = arith.constant 0 : index
    %104 = vector.load %arg8[%c0_67, %c0_68] : memref<1x64xf32, #tpu.memory_space<vmem>>, vector<1x64xf32>
    %105 = vector.broadcast %104 : vector<1x64xf32> to vector<128x64xf32>
    %106 = arith.addf %103, %105 : vector<128x64xf32>
    %cst_69 = arith.constant 1.000000e+02 : f32
    %107 = vector.broadcast %cst_69 : f32 to vector<128x64xf32>
    %108 = arith.mulf %106, %107 : vector<128x64xf32>
    %cst_70 = arith.constant 2.000000e+01 : f32
    %109 = vector.broadcast %cst_70 : f32 to vector<128x64xf32>
    %110 = arith.cmpf ogt, %108, %109 : vector<128x64xf32>
    %111 = math.exp %108 : vector<128x64xf32>
    %112 = math.log1p %111 : vector<128x64xf32>
    %cst_71 = arith.constant 0.00999999977 : f32
    %113 = vector.broadcast %cst_71 : f32 to vector<128x64xf32>
    %114 = arith.mulf %112, %113 : vector<128x64xf32>
    %115 = arith.select %110, %106, %114 : vector<128x64xi1>, vector<128x64xf32>
    %c0_72 = arith.constant 0 : index
    %c0_73 = arith.constant 0 : index
    %116 = vector.load %arg9[%c0_72, %c0_73] : memref<64x64xf32, #tpu.memory_space<vmem>>, vector<64x64xf32>
    %cst_74 = arith.constant dense<0.000000e+00> : vector<128x64xf32>
    %117 = tpu.matmul %115, %116, %cst_74 {dimension_numbers = #tpu.dot_dimension_numbers<[1], [0], [0], [1], [0, 0, 1, 1], [], []>} : vector<128x64xf32>, vector<64x64xf32>, vector<128x64xf32> -> vector<128x64xf32>
    %c0_75 = arith.constant 0 : index
    %c0_76 = arith.constant 0 : index
    %118 = vector.load %arg10[%c0_75, %c0_76] : memref<1x64xf32, #tpu.memory_space<vmem>>, vector<1x64xf32>
    %119 = vector.broadcast %118 : vector<1x64xf32> to vector<128x64xf32>
    %120 = arith.addf %117, %119 : vector<128x64xf32>
    %cst_77 = arith.constant 1.000000e+02 : f32
    %121 = vector.broadcast %cst_77 : f32 to vector<128x64xf32>
    %122 = arith.mulf %120, %121 : vector<128x64xf32>
    %cst_78 = arith.constant 2.000000e+01 : f32
    %123 = vector.broadcast %cst_78 : f32 to vector<128x64xf32>
    %124 = arith.cmpf ogt, %122, %123 : vector<128x64xf32>
    %125 = math.exp %122 : vector<128x64xf32>
    %126 = math.log1p %125 : vector<128x64xf32>
    %cst_79 = arith.constant 0.00999999977 : f32
    %127 = vector.broadcast %cst_79 : f32 to vector<128x64xf32>
    %128 = arith.mulf %126, %127 : vector<128x64xf32>
    %129 = arith.select %124, %120, %128 : vector<128x64xi1>, vector<128x64xf32>
    %c0_80 = arith.constant 0 : index
    %c0_81 = arith.constant 0 : index
    %130 = vector.load %arg11[%c0_80, %c0_81] : memref<64x9xf32, #tpu.memory_space<vmem>>, vector<64x9xf32>
    %cst_82 = arith.constant dense<0.000000e+00> : vector<128x9xf32>
    %131 = tpu.matmul %129, %130, %cst_82 {dimension_numbers = #tpu.dot_dimension_numbers<[1], [0], [0], [1], [0, 0, 1, 1], [], []>} : vector<128x64xf32>, vector<64x9xf32>, vector<128x9xf32> -> vector<128x9xf32>
    %c0_83 = arith.constant 0 : index
    %c0_84 = arith.constant 0 : index
    %132 = vector.load %arg12[%c0_83, %c0_84] : memref<1x9xf32, #tpu.memory_space<vmem>>, vector<1x9xf32>
    %133 = vector.broadcast %132 : vector<1x9xf32> to vector<128x9xf32>
    %134 = arith.addf %131, %133 : vector<128x9xf32>
    %c128_85 = arith.constant 128 : index
    %c0_86 = arith.constant 0 : index
    %135 = vector.load %arg13[%c128_85, %c0_86] : memref<512x9xf32, #tpu.memory_space<vmem>>, vector<128x9xf32>
    tpu.vector_store %arg13[%c128_85, %c0_86], %134 {strides = array<i32>} : memref<512x9xf32, #tpu.memory_space<vmem>>, vector<128x9xf32>,
    %c256 = arith.constant 256 : index
    %c0_87 = arith.constant 0 : index
    %136 = vector.load %arg1[%c256, %c0_87] : memref<512x3xf32, #tpu.memory_space<vmem>>, vector<128x3xf32>
    %c0_88 = arith.constant 0 : index
    %c0_89 = arith.constant 0 : index
    %137 = vector.load %arg2[%c0_88, %c0_89] : memref<3x64xf32, #tpu.memory_space<vmem>>, vector<3x64xf32>
    %cst_90 = arith.constant dense<0.000000e+00> : vector<128x64xf32>
    %138 = tpu.matmul %136, %137, %cst_90 {dimension_numbers = #tpu.dot_dimension_numbers<[1], [0], [0], [1], [0, 0, 1, 1], [], []>} : vector<128x3xf32>, vector<3x64xf32>, vector<128x64xf32> -> vector<128x64xf32>
    %c0_91 = arith.constant 0 : index
    %c0_92 = arith.constant 0 : index
    %139 = vector.load %arg3[%c0_91, %c0_92] : memref<1x64xf32, #tpu.memory_space<vmem>>, vector<1x64xf32>
    %140 = vector.broadcast %139 : vector<1x64xf32> to vector<128x64xf32>
    %141 = arith.addf %138, %140 : vector<128x64xf32>
    %cst_93 = arith.constant 1.000000e+02 : f32
    %142 = vector.broadcast %cst_93 : f32 to vector<128x64xf32>
    %143 = arith.mulf %141, %142 : vector<128x64xf32>
    %cst_94 = arith.constant 2.000000e+01 : f32
    %144 = vector.broadcast %cst_94 : f32 to vector<128x64xf32>
    %145 = arith.cmpf ogt, %143, %144 : vector<128x64xf32>
    %146 = math.exp %143 : vector<128x64xf32>
    %147 = math.log1p %146 : vector<128x64xf32>
    %cst_95 = arith.constant 0.00999999977 : f32
    %148 = vector.broadcast %cst_95 : f32 to vector<128x64xf32>
    %149 = arith.mulf %147, %148 : vector<128x64xf32>
    %150 = arith.select %145, %141, %149 : vector<128x64xi1>, vector<128x64xf32>
    %c0_96 = arith.constant 0 : index
    %c0_97 = arith.constant 0 : index
    %151 = vector.load %arg4[%c0_96, %c0_97] : memref<64x64xf32, #tpu.memory_space<vmem>>, vector<64x64xf32>
    %cst_98 = arith.constant dense<0.000000e+00> : vector<128x64xf32>
    %152 = tpu.matmul %150, %151, %cst_98 {dimension_numbers = #tpu.dot_dimension_numbers<[1], [0], [0], [1], [0, 0, 1, 1], [], []>} : vector<128x64xf32>, vector<64x64xf32>, vector<128x64xf32> -> vector<128x64xf32>
    %c0_99 = arith.constant 0 : index
    %c0_100 = arith.constant 0 : index
    %153 = vector.load %arg5[%c0_99, %c0_100] : memref<1x64xf32, #tpu.memory_space<vmem>>, vector<1x64xf32>
    %154 = vector.broadcast %153 : vector<1x64xf32> to vector<128x64xf32>
    %155 = arith.addf %152, %154 : vector<128x64xf32>
    %cst_101 = arith.constant 1.000000e+02 : f32
    %156 = vector.broadcast %cst_101 : f32 to vector<128x64xf32>
    %157 = arith.mulf %155, %156 : vector<128x64xf32>
    %cst_102 = arith.constant 2.000000e+01 : f32
    %158 = vector.broadcast %cst_102 : f32 to vector<128x64xf32>
    %159 = arith.cmpf ogt, %157, %158 : vector<128x64xf32>
    %160 = math.exp %157 : vector<128x64xf32>
    %161 = math.log1p %160 : vector<128x64xf32>
    %cst_103 = arith.constant 0.00999999977 : f32
    %162 = vector.broadcast %cst_103 : f32 to vector<128x64xf32>
    %163 = arith.mulf %161, %162 : vector<128x64xf32>
    %164 = arith.select %159, %155, %163 : vector<128x64xi1>, vector<128x64xf32>
    %c0_104 = arith.constant 0 : index
    %c0_105 = arith.constant 0 : index
    %165 = vector.load %arg6[%c0_104, %c0_105] : memref<64x64xf32, #tpu.memory_space<vmem>>, vector<64x64xf32>
    %cst_106 = arith.constant dense<0.000000e+00> : vector<128x64xf32>
    %166 = tpu.matmul %164, %165, %cst_106 {dimension_numbers = #tpu.dot_dimension_numbers<[1], [0], [0], [1], [0, 0, 1, 1], [], []>} : vector<128x64xf32>, vector<64x64xf32>, vector<128x64xf32> -> vector<128x64xf32>
    %c0_107 = arith.constant 0 : index
    %c0_108 = arith.constant 0 : index
    %167 = vector.load %arg7[%c0_107, %c0_108] : memref<3x64xf32, #tpu.memory_space<vmem>>, vector<3x64xf32>
    %cst_109 = arith.constant dense<0.000000e+00> : vector<128x64xf32>
    %168 = tpu.matmul %136, %167, %cst_109 {dimension_numbers = #tpu.dot_dimension_numbers<[1], [0], [0], [1], [0, 0, 1, 1], [], []>} : vector<128x3xf32>, vector<3x64xf32>, vector<128x64xf32> -> vector<128x64xf32>
    %169 = arith.addf %166, %168 : vector<128x64xf32>
    %cst_110 = arith.constant 0.707106769 : f32
    %170 = vector.broadcast %cst_110 : f32 to vector<128x64xf32>
    %171 = arith.mulf %169, %170 : vector<128x64xf32>
    %c0_111 = arith.constant 0 : index
    %c0_112 = arith.constant 0 : index
    %172 = vector.load %arg8[%c0_111, %c0_112] : memref<1x64xf32, #tpu.memory_space<vmem>>, vector<1x64xf32>
    %173 = vector.broadcast %172 : vector<1x64xf32> to vector<128x64xf32>
    %174 = arith.addf %171, %173 : vector<128x64xf32>
    %cst_113 = arith.constant 1.000000e+02 : f32
    %175 = vector.broadcast %cst_113 : f32 to vector<128x64xf32>
    %176 = arith.mulf %174, %175 : vector<128x64xf32>
    %cst_114 = arith.constant 2.000000e+01 : f32
    %177 = vector.broadcast %cst_114 : f32 to vector<128x64xf32>
    %178 = arith.cmpf ogt, %176, %177 : vector<128x64xf32>
    %179 = math.exp %176 : vector<128x64xf32>
    %180 = math.log1p %179 : vector<128x64xf32>
    %cst_115 = arith.constant 0.00999999977 : f32
    %181 = vector.broadcast %cst_115 : f32 to vector<128x64xf32>
    %182 = arith.mulf %180, %181 : vector<128x64xf32>
    %183 = arith.select %178, %174, %182 : vector<128x64xi1>, vector<128x64xf32>
    %c0_116 = arith.constant 0 : index
    %c0_117 = arith.constant 0 : index
    %184 = vector.load %arg9[%c0_116, %c0_117] : memref<64x64xf32, #tpu.memory_space<vmem>>, vector<64x64xf32>
    %cst_118 = arith.constant dense<0.000000e+00> : vector<128x64xf32>
    %185 = tpu.matmul %183, %184, %cst_118 {dimension_numbers = #tpu.dot_dimension_numbers<[1], [0], [0], [1], [0, 0, 1, 1], [], []>} : vector<128x64xf32>, vector<64x64xf32>, vector<128x64xf32> -> vector<128x64xf32>
    %c0_119 = arith.constant 0 : index
    %c0_120 = arith.constant 0 : index
    %186 = vector.load %arg10[%c0_119, %c0_120] : memref<1x64xf32, #tpu.memory_space<vmem>>, vector<1x64xf32>
    %187 = vector.broadcast %186 : vector<1x64xf32> to vector<128x64xf32>
    %188 = arith.addf %185, %187 : vector<128x64xf32>
    %cst_121 = arith.constant 1.000000e+02 : f32
    %189 = vector.broadcast %cst_121 : f32 to vector<128x64xf32>
    %190 = arith.mulf %188, %189 : vector<128x64xf32>
    %cst_122 = arith.constant 2.000000e+01 : f32
    %191 = vector.broadcast %cst_122 : f32 to vector<128x64xf32>
    %192 = arith.cmpf ogt, %190, %191 : vector<128x64xf32>
    %193 = math.exp %190 : vector<128x64xf32>
    %194 = math.log1p %193 : vector<128x64xf32>
    %cst_123 = arith.constant 0.00999999977 : f32
    %195 = vector.broadcast %cst_123 : f32 to vector<128x64xf32>
    %196 = arith.mulf %194, %195 : vector<128x64xf32>
    %197 = arith.select %192, %188, %196 : vector<128x64xi1>, vector<128x64xf32>
    %c0_124 = arith.constant 0 : index
    %c0_125 = arith.constant 0 : index
    %198 = vector.load %arg11[%c0_124, %c0_125] : memref<64x9xf32, #tpu.memory_space<vmem>>, vector<64x9xf32>
    %cst_126 = arith.constant dense<0.000000e+00> : vector<128x9xf32>
    %199 = tpu.matmul %197, %198, %cst_126 {dimension_numbers = #tpu.dot_dimension_numbers<[1], [0], [0], [1], [0, 0, 1, 1], [], []>} : vector<128x64xf32>, vector<64x9xf32>, vector<128x9xf32> -> vector<128x9xf32>
    %c0_127 = arith.constant 0 : index
    %c0_128 = arith.constant 0 : index
    %200 = vector.load %arg12[%c0_127, %c0_128] : memref<1x9xf32, #tpu.memory_space<vmem>>, vector<1x9xf32>
    %201 = vector.broadcast %200 : vector<1x9xf32> to vector<128x9xf32>
    %202 = arith.addf %199, %201 : vector<128x9xf32>
    %c256_129 = arith.constant 256 : index
    %c0_130 = arith.constant 0 : index
    %203 = vector.load %arg13[%c256_129, %c0_130] : memref<512x9xf32, #tpu.memory_space<vmem>>, vector<128x9xf32>
    tpu.vector_store %arg13[%c256_129, %c0_130], %202 {strides = array<i32>} : memref<512x9xf32, #tpu.memory_space<vmem>>, vector<128x9xf32>,
    %c384 = arith.constant 384 : index
    %c0_131 = arith.constant 0 : index
    %204 = vector.load %arg1[%c384, %c0_131] : memref<512x3xf32, #tpu.memory_space<vmem>>, vector<128x3xf32>
    %c0_132 = arith.constant 0 : index
    %c0_133 = arith.constant 0 : index
    %205 = vector.load %arg2[%c0_132, %c0_133] : memref<3x64xf32, #tpu.memory_space<vmem>>, vector<3x64xf32>
    %cst_134 = arith.constant dense<0.000000e+00> : vector<128x64xf32>
    %206 = tpu.matmul %204, %205, %cst_134 {dimension_numbers = #tpu.dot_dimension_numbers<[1], [0], [0], [1], [0, 0, 1, 1], [], []>} : vector<128x3xf32>, vector<3x64xf32>, vector<128x64xf32> -> vector<128x64xf32>
    %c0_135 = arith.constant 0 : index
    %c0_136 = arith.constant 0 : index
    %207 = vector.load %arg3[%c0_135, %c0_136] : memref<1x64xf32, #tpu.memory_space<vmem>>, vector<1x64xf32>
    %208 = vector.broadcast %207 : vector<1x64xf32> to vector<128x64xf32>
    %209 = arith.addf %206, %208 : vector<128x64xf32>
    %cst_137 = arith.constant 1.000000e+02 : f32
    %210 = vector.broadcast %cst_137 : f32 to vector<128x64xf32>
    %211 = arith.mulf %209, %210 : vector<128x64xf32>
    %cst_138 = arith.constant 2.000000e+01 : f32
    %212 = vector.broadcast %cst_138 : f32 to vector<128x64xf32>
    %213 = arith.cmpf ogt, %211, %212 : vector<128x64xf32>
    %214 = math.exp %211 : vector<128x64xf32>
    %215 = math.log1p %214 : vector<128x64xf32>
    %cst_139 = arith.constant 0.00999999977 : f32
    %216 = vector.broadcast %cst_139 : f32 to vector<128x64xf32>
    %217 = arith.mulf %215, %216 : vector<128x64xf32>
    %218 = arith.select %213, %209, %217 : vector<128x64xi1>, vector<128x64xf32>
    %c0_140 = arith.constant 0 : index
    %c0_141 = arith.constant 0 : index
    %219 = vector.load %arg4[%c0_140, %c0_141] : memref<64x64xf32, #tpu.memory_space<vmem>>, vector<64x64xf32>
    %cst_142 = arith.constant dense<0.000000e+00> : vector<128x64xf32>
    %220 = tpu.matmul %218, %219, %cst_142 {dimension_numbers = #tpu.dot_dimension_numbers<[1], [0], [0], [1], [0, 0, 1, 1], [], []>} : vector<128x64xf32>, vector<64x64xf32>, vector<128x64xf32> -> vector<128x64xf32>
    %c0_143 = arith.constant 0 : index
    %c0_144 = arith.constant 0 : index
    %221 = vector.load %arg5[%c0_143, %c0_144] : memref<1x64xf32, #tpu.memory_space<vmem>>, vector<1x64xf32>
    %222 = vector.broadcast %221 : vector<1x64xf32> to vector<128x64xf32>
    %223 = arith.addf %220, %222 : vector<128x64xf32>
    %cst_145 = arith.constant 1.000000e+02 : f32
    %224 = vector.broadcast %cst_145 : f32 to vector<128x64xf32>
    %225 = arith.mulf %223, %224 : vector<128x64xf32>
    %cst_146 = arith.constant 2.000000e+01 : f32
    %226 = vector.broadcast %cst_146 : f32 to vector<128x64xf32>
    %227 = arith.cmpf ogt, %225, %226 : vector<128x64xf32>
    %228 = math.exp %225 : vector<128x64xf32>
    %229 = math.log1p %228 : vector<128x64xf32>
    %cst_147 = arith.constant 0.00999999977 : f32
    %230 = vector.broadcast %cst_147 : f32 to vector<128x64xf32>
    %231 = arith.mulf %229, %230 : vector<128x64xf32>
    %232 = arith.select %227, %223, %231 : vector<128x64xi1>, vector<128x64xf32>
    %c0_148 = arith.constant 0 : index
    %c0_149 = arith.constant 0 : index
    %233 = vector.load %arg6[%c0_148, %c0_149] : memref<64x64xf32, #tpu.memory_space<vmem>>, vector<64x64xf32>
    %cst_150 = arith.constant dense<0.000000e+00> : vector<128x64xf32>
    %234 = tpu.matmul %232, %233, %cst_150 {dimension_numbers = #tpu.dot_dimension_numbers<[1], [0], [0], [1], [0, 0, 1, 1], [], []>} : vector<128x64xf32>, vector<64x64xf32>, vector<128x64xf32> -> vector<128x64xf32>
    %c0_151 = arith.constant 0 : index
    %c0_152 = arith.constant 0 : index
    %235 = vector.load %arg7[%c0_151, %c0_152] : memref<3x64xf32, #tpu.memory_space<vmem>>, vector<3x64xf32>
    %cst_153 = arith.constant dense<0.000000e+00> : vector<128x64xf32>
    %236 = tpu.matmul %204, %235, %cst_153 {dimension_numbers = #tpu.dot_dimension_numbers<[1], [0], [0], [1], [0, 0, 1, 1], [], []>} : vector<128x3xf32>, vector<3x64xf32>, vector<128x64xf32> -> vector<128x64xf32>
    %237 = arith.addf %234, %236 : vector<128x64xf32>
    %cst_154 = arith.constant 0.707106769 : f32
    %238 = vector.broadcast %cst_154 : f32 to vector<128x64xf32>
    %239 = arith.mulf %237, %238 : vector<128x64xf32>
    %c0_155 = arith.constant 0 : index
    %c0_156 = arith.constant 0 : index
    %240 = vector.load %arg8[%c0_155, %c0_156] : memref<1x64xf32, #tpu.memory_space<vmem>>, vector<1x64xf32>
    %241 = vector.broadcast %240 : vector<1x64xf32> to vector<128x64xf32>
    %242 = arith.addf %239, %241 : vector<128x64xf32>
    %cst_157 = arith.constant 1.000000e+02 : f32
    %243 = vector.broadcast %cst_157 : f32 to vector<128x64xf32>
    %244 = arith.mulf %242, %243 : vector<128x64xf32>
    %cst_158 = arith.constant 2.000000e+01 : f32
    %245 = vector.broadcast %cst_158 : f32 to vector<128x64xf32>
    %246 = arith.cmpf ogt, %244, %245 : vector<128x64xf32>
    %247 = math.exp %244 : vector<128x64xf32>
    %248 = math.log1p %247 : vector<128x64xf32>
    %cst_159 = arith.constant 0.00999999977 : f32
    %249 = vector.broadcast %cst_159 : f32 to vector<128x64xf32>
    %250 = arith.mulf %248, %249 : vector<128x64xf32>
    %251 = arith.select %246, %242, %250 : vector<128x64xi1>, vector<128x64xf32>
    %c0_160 = arith.constant 0 : index
    %c0_161 = arith.constant 0 : index
    %252 = vector.load %arg9[%c0_160, %c0_161] : memref<64x64xf32, #tpu.memory_space<vmem>>, vector<64x64xf32>
    %cst_162 = arith.constant dense<0.000000e+00> : vector<128x64xf32>
    %253 = tpu.matmul %251, %252, %cst_162 {dimension_numbers = #tpu.dot_dimension_numbers<[1], [0], [0], [1], [0, 0, 1, 1], [], []>} : vector<128x64xf32>, vector<64x64xf32>, vector<128x64xf32> -> vector<128x64xf32>
    %c0_163 = arith.constant 0 : index
    %c0_164 = arith.constant 0 : index
    %254 = vector.load %arg10[%c0_163, %c0_164] : memref<1x64xf32, #tpu.memory_space<vmem>>, vector<1x64xf32>
    %255 = vector.broadcast %254 : vector<1x64xf32> to vector<128x64xf32>
    %256 = arith.addf %253, %255 : vector<128x64xf32>
    %cst_165 = arith.constant 1.000000e+02 : f32
    %257 = vector.broadcast %cst_165 : f32 to vector<128x64xf32>
    %258 = arith.mulf %256, %257 : vector<128x64xf32>
    %cst_166 = arith.constant 2.000000e+01 : f32
    %259 = vector.broadcast %cst_166 : f32 to vector<128x64xf32>
    %260 = arith.cmpf ogt, %258, %259 : vector<128x64xf32>
    %261 = math.exp %258 : vector<128x64xf32>
    %262 = math.log1p %261 : vector<128x64xf32>
    %cst_167 = arith.constant 0.00999999977 : f32
    %263 = vector.broadcast %cst_167 : f32 to vector<128x64xf32>
    %264 = arith.mulf %262, %263 : vector<128x64xf32>
    %265 = arith.select %260, %256, %264 : vector<128x64xi1>, vector<128x64xf32>
    %c0_168 = arith.constant 0 : index
    %c0_169 = arith.constant 0 : index
    %266 = vector.load %arg11[%c0_168, %c0_169] : memref<64x9xf32, #tpu.memory_space<vmem>>, vector<64x9xf32>
    %cst_170 = arith.constant dense<0.000000e+00> : vector<128x9xf32>
    %267 = tpu.matmul %265, %266, %cst_170 {dimension_numbers = #tpu.dot_dimension_numbers<[1], [0], [0], [1], [0, 0, 1, 1], [], []>} : vector<128x64xf32>, vector<64x9xf32>, vector<128x9xf32> -> vector<128x9xf32>
    %c0_171 = arith.constant 0 : index
    %c0_172 = arith.constant 0 : index
    %268 = vector.load %arg12[%c0_171, %c0_172] : memref<1x9xf32, #tpu.memory_space<vmem>>, vector<1x9xf32>
    %269 = vector.broadcast %268 : vector<1x9xf32> to vector<128x9xf32>
    %270 = arith.addf %267, %269 : vector<128x9xf32>
    %c384_173 = arith.constant 384 : index
    %c0_174 = arith.constant 0 : index
    %271 = vector.load %arg13[%c384_173, %c0_174] : memref<512x9xf32, #tpu.memory_space<vmem>>, vector<128x9xf32>
    tpu.vector_store %arg13[%c384_173, %c0_174], %270 {strides = array<i32>} : memref<512x9xf32, #tpu.memory_space<vmem>>, vector<128x9xf32>,
    return
  }
  func.func @transform_0(%arg0: i32) -> (i32, i32) {
    %c0_i32 = arith.constant 0 : i32
    %c0_i32_0 = arith.constant 0 : i32
    return %arg0, %c0_i32 : i32, i32
  }
  func.func @transform_1(%arg0: i32) -> (i32, i32) {
    %c0_i32 = arith.constant 0 : i32
    %c0_i32_0 = arith.constant 0 : i32
    %c0_i32_1 = arith.constant 0 : i32
    return %c0_i32, %c0_i32_0 : i32, i32
  }
  func.func @transform_2(%arg0: i32) -> (i32, i32) {
    %c0_i32 = arith.constant 0 : i32
    %c0_i32_0 = arith.constant 0 : i32
    %c0_i32_1 = arith.constant 0 : i32
    return %c0_i32, %c0_i32_0 : i32, i32
  }
  func.func @transform_3(%arg0: i32) -> (i32, i32) {
    %c0_i32 = arith.constant 0 : i32
    %c0_i32_0 = arith.constant 0 : i32
    %c0_i32_1 = arith.constant 0 : i32
    return %c0_i32, %c0_i32_0 : i32, i32
  }
  func.func @transform_4(%arg0: i32) -> (i32, i32) {
    %c0_i32 = arith.constant 0 : i32
    %c0_i32_0 = arith.constant 0 : i32
    %c0_i32_1 = arith.constant 0 : i32
    return %c0_i32, %c0_i32_0 : i32, i32
  }
  func.func @transform_5(%arg0: i32) -> (i32, i32) {
    %c0_i32 = arith.constant 0 : i32
    %c0_i32_0 = arith.constant 0 : i32
    %c0_i32_1 = arith.constant 0 : i32
    return %c0_i32, %c0_i32_0 : i32, i32
  }
  func.func @transform_6(%arg0: i32) -> (i32, i32) {
    %c0_i32 = arith.constant 0 : i32
    %c0_i32_0 = arith.constant 0 : i32
    %c0_i32_1 = arith.constant 0 : i32
    return %c0_i32, %c0_i32_0 : i32, i32
  }
  func.func @transform_7(%arg0: i32) -> (i32, i32) {
    %c0_i32 = arith.constant 0 : i32
    %c0_i32_0 = arith.constant 0 : i32
    %c0_i32_1 = arith.constant 0 : i32
    return %c0_i32, %c0_i32_0 : i32, i32
  }
  func.func @transform_8(%arg0: i32) -> (i32, i32) {
    %c0_i32 = arith.constant 0 : i32
    %c0_i32_0 = arith.constant 0 : i32
    %c0_i32_1 = arith.constant 0 : i32
    return %c0_i32, %c0_i32_0 : i32, i32
  }
  func.func @transform_9(%arg0: i32) -> (i32, i32) {
    %c0_i32 = arith.constant 0 : i32
    %c0_i32_0 = arith.constant 0 : i32
    %c0_i32_1 = arith.constant 0 : i32
    return %c0_i32, %c0_i32_0 : i32, i32
  }
  func.func @transform_10(%arg0: i32) -> (i32, i32) {
    %c0_i32 = arith.constant 0 : i32
    %c0_i32_0 = arith.constant 0 : i32
    %c0_i32_1 = arith.constant 0 : i32
    return %c0_i32, %c0_i32_0 : i32, i32
  }
  func.func @transform_11(%arg0: i32) -> (i32, i32) {
    %c0_i32 = arith.constant 0 : i32
    %c0_i32_0 = arith.constant 0 : i32
    %c0_i32_1 = arith.constant 0 : i32
    return %c0_i32, %c0_i32_0 : i32, i32
  }
  func.func @transform_12(%arg0: i32) -> (i32, i32) {
    %c0_i32 = arith.constant 0 : i32
    %c0_i32_0 = arith.constant 0 : i32
    return %arg0, %c0_i32 : i32, i32
  }
}

</mosaic_0001>

<llo_original>
// kernel: tpu_custom_call.1
$region0: #{tpu_custom_call.1}
  #allocation0 [shape = 'u32[]', space=smem, size = 0x4, offset = 0x4, fixed_abs, tag = 'smem constant byte address 0x4 - core index']
  #allocation1 [shape = 'u32[144,128]{1,0:T(1,128)}', space=vmem, size = 0x12000, scoped, tag = 'internal scratch']
  %s0 = inlined_call_operand.vmem [shape: f32[1024,3], index: 0, kind: input, shape index: {}]
  %s1 = inlined_call_operand.vmem [shape: f32[3,64], index: 1, kind: input, shape index: {}]
  %s2 = inlined_call_operand.vmem [shape: f32[1,64], index: 2, kind: input, shape index: {}]
  %s3 = inlined_call_operand.vmem [shape: f32[64,64], index: 3, kind: input, shape index: {}]
  %s4 = inlined_call_operand.vmem [shape: f32[1,64], index: 4, kind: input, shape index: {}]
  %s5 = inlined_call_operand.vmem [shape: f32[64,64], index: 5, kind: input, shape index: {}]
  %s6 = inlined_call_operand.vmem [shape: f32[3,64], index: 6, kind: input, shape index: {}]
  %s7 = inlined_call_operand.vmem [shape: f32[1,64], index: 7, kind: input, shape index: {}]
  %s8 = inlined_call_operand.vmem [shape: f32[64,64], index: 8, kind: input, shape index: {}]
  %s9 = inlined_call_operand.vmem [shape: f32[1,64], index: 9, kind: input, shape index: {}]
  %s10 = inlined_call_operand.vmem [shape: f32[64,9], index: 10, kind: input, shape index: {}]
  %s11 = inlined_call_operand.vmem [shape: f32[1,9], index: 11, kind: input, shape index: {}]
  %s12 = inlined_call_operand.vmem [shape: f32[1024,9], index: 12, kind: output, shape index: {}]
  %s13 = sld [smem:[#allocation0]]
  $region81: #{tpu_custom_call.1} parent=0
    _
  %s15 = ssub.s32 1, %s13
  %s16 = scalar_select 0, %s15, %s13
  loop: start=0, step=1, limit=4
  $region2: #{tpu_custom_call.1} parent=0 // loop_pre_header
    _
  $region3: #{tpu_custom_call.1} parent=0 // loop_header
    %s18 = sphi 0, %s22
    %p19 = scmp.ge.s32.totalorder %s18, 4
    %s28 = sphi 0, %s30
    %s31 = sphi 0, %s28
    %s32 = sphi 0, %s31
    %s48 = sphi 0, %s32
    %s52 = sphi 0, %s52
    %s54 = sphi 0, %s52
    %s55 = sphi 0, %s54
    %s69 = sphi 0, %s55
    %s73 = sphi 0, %s73
    %s75 = sphi 0, %s73
    %s76 = sphi 0, %s75
    %s90 = sphi 0, %s76
    %s94 = sphi 0, %s94
    %s96 = sphi 0, %s94
    %s97 = sphi 0, %s96
    %s111 = sphi 0, %s97
    %s115 = sphi 0, %s115
    %s117 = sphi 0, %s115
    %s118 = sphi 0, %s117
    %s132 = sphi 0, %s118
    %s136 = sphi 0, %s136
    %s138 = sphi 0, %s136
    %s139 = sphi 0, %s138
    %s153 = sphi 0, %s139
    %s157 = sphi 0, %s157
    %s159 = sphi 0, %s157
    %s160 = sphi 0, %s159
    %s174 = sphi 0, %s160
    %s178 = sphi 0, %s178
    %s180 = sphi 0, %s178
    %s181 = sphi 0, %s180
    %s195 = sphi 0, %s181
    %s199 = sphi 0, %s199
    %s201 = sphi 0, %s199
    %s202 = sphi 0, %s201
    %s216 = sphi 0, %s202
    %s220 = sphi 0, %s220
    %s222 = sphi 0, %s220
    %s223 = sphi 0, %s222
    %s237 = sphi 0, %s223
    %s241 = sphi 0, %s241
    %s243 = sphi 0, %s241
    %s244 = sphi 0, %s243
    %s258 = sphi 0, %s244
    %s262 = sphi 0, %s262
    %s264 = sphi 0, %s262
    %s265 = sphi 0, %s264
    %s279 = sphi 0, %s265
    %s285 = sphi 0, %s287
    %s288 = sphi 0, %s285
    %s289 = sphi 0, %s288
    %s305 = sphi 0, %s289
  $region4: #{tpu_custom_call.1} parent=0 // loop_header_branch
    %21 = sbr.rel (%p19) target = $region8
  $region5: #{tpu_custom_call.1} parent=0 // loop_body
    %s23 = ssub.s32 %s18, 1
    %s24 = ssub.s32 %s18, 2
    %s25 = sadd.s32 %s18, 1
    %s26 = ssub.s32 %s18, %s25
    %p27 = scmp.eq.s32.totalorder %s26, 0
    %s29 = sadd.s32 %s28, 1
    %s30 = scalar_select %p27, %s28, %s29
    %p33 = pneg %p27
    %p34 = scmp.eq.s32.totalorder %s18, 1
    %p35 = por %p33, %p34
    %p36 = scmp.ne.s32.totalorder %s28, %s31
    %p37 = scmp.eq.s32.totalorder %s18, 0
    %p38 = por %p36, %p37
    %p39 = scmp.ne.s32.totalorder %s28, %s31
    %p40 = scmp.eq.s32.totalorder %s23, 1
    %p41 = por %p39, %p40
    %p42 = scmp.ne.s32.totalorder %s31, %s32
    %p43 = scmp.eq.s32.totalorder %s23, 0
    %p44 = por %p42, %p43
    %p45 = scmp.ne.s32.totalorder %s31, %s32
    %p46 = scmp.eq.s32.totalorder %s24, 1
    %p47 = por %p45, %p46
    %p49 = scmp.ne.s32.totalorder %s32, %s48
    %p50 = scmp.eq.s32.totalorder %s24, 0
    %p51 = por %p49, %p50
    %s53 = sadd.s32 %s52, 1
    %p56 = scmp.eq.s32.totalorder %s18, 1
    %p57 = scmp.ne.s32.totalorder %s52, %s54
    %p58 = scmp.eq.s32.totalorder %s18, 0
    %p59 = por %p57, %p58
    %p60 = scmp.ne.s32.totalorder %s52, %s54
    %p61 = scmp.eq.s32.totalorder %s23, 1
    %p62 = por %p60, %p61
    %p63 = scmp.ne.s32.totalorder %s54, %s55
    %p64 = scmp.eq.s32.totalorder %s23, 0
    %p65 = por %p63, %p64
    %p66 = scmp.ne.s32.totalorder %s54, %s55
    %p67 = scmp.eq.s32.totalorder %s24, 1
    %p68 = por %p66, %p67
    %p70 = scmp.ne.s32.totalorder %s55, %s69
    %p71 = scmp.eq.s32.totalorder %s24, 0
    %p72 = por %p70, %p71
    %s74 = sadd.s32 %s73, 1
    %p77 = scmp.eq.s32.totalorder %s18, 1
    %p78 = scmp.ne.s32.totalorder %s73, %s75
    %p79 = scmp.eq.s32.totalorder %s18, 0
    %p80 = por %p78, %p79
    %p81 = scmp.ne.s32.totalorder %s73, %s75
    %p82 = scmp.eq.s32.totalorder %s23, 1
    %p83 = por %p81, %p82
    %p84 = scmp.ne.s32.totalorder %s75, %s76
    %p85 = scmp.eq.s32.totalorder %s23, 0
    %p86 = por %p84, %p85
    %p87 = scmp.ne.s32.totalorder %s75, %s76
    %p88 = scmp.eq.s32.totalorder %s24, 1
    %p89 = por %p87, %p88
    %p91 = scmp.ne.s32.totalorder %s76, %s90
    %p92 = scmp.eq.s32.totalorder %s24, 0
    %p93 = por %p91, %p92
    %s95 = sadd.s32 %s94, 1
    %p98 = scmp.eq.s32.totalorder %s18, 1
    %p99 = scmp.ne.s32.totalorder %s94, %s96
    %p100 = scmp.eq.s32.totalorder %s18, 0
    %p101 = por %p99, %p100
    %p102 = scmp.ne.s32.totalorder %s94, %s96
    %p103 = scmp.eq.s32.totalorder %s23, 1
    %p104 = por %p102, %p103
    %p105 = scmp.ne.s32.totalorder %s96, %s97
    %p106 = scmp.eq.s32.totalorder %s23, 0
    %p107 = por %p105, %p106
    %p108 = scmp.ne.s32.totalorder %s96, %s97
    %p109 = scmp.eq.s32.totalorder %s24, 1
    %p110 = por %p108, %p109
    %p112 = scmp.ne.s32.totalorder %s97, %s111
    %p113 = scmp.eq.s32.totalorder %s24, 0
    %p114 = por %p112, %p113
    %s116 = sadd.s32 %s115, 1
    %p119 = scmp.eq.s32.totalorder %s18, 1
    %p120 = scmp.ne.s32.totalorder %s115, %s117
    %p121 = scmp.eq.s32.totalorder %s18, 0
    %p122 = por %p120, %p121
    %p123 = scmp.ne.s32.totalorder %s115, %s117
    %p124 = scmp.eq.s32.totalorder %s23, 1
    %p125 = por %p123, %p124
    %p126 = scmp.ne.s32.totalorder %s117, %s118
    %p127 = scmp.eq.s32.totalorder %s23, 0
    %p128 = por %p126, %p127
    %p129 = scmp.ne.s32.totalorder %s117, %s118
    %p130 = scmp.eq.s32.totalorder %s24, 1
    %p131 = por %p129, %p130
    %p133 = scmp.ne.s32.totalorder %s118, %s132
    %p134 = scmp.eq.s32.totalorder %s24, 0
    %p135 = por %p133, %p134
    %s137 = sadd.s32 %s136, 1
    %p140 = scmp.eq.s32.totalorder %s18, 1
    %p141 = scmp.ne.s32.totalorder %s136, %s138
    %p142 = scmp.eq.s32.totalorder %s18, 0
    %p143 = por %p141, %p142
    %p144 = scmp.ne.s32.totalorder %s136, %s138
    %p145 = scmp.eq.s32.totalorder %s23, 1
    %p146 = por %p144, %p145
    %p147 = scmp.ne.s32.totalorder %s138, %s139
    %p148 = scmp.eq.s32.totalorder %s23, 0
    %p149 = por %p147, %p148
    %p150 = scmp.ne.s32.totalorder %s138, %s139
    %p151 = scmp.eq.s32.totalorder %s24, 1
    %p152 = por %p150, %p151
    %p154 = scmp.ne.s32.totalorder %s139, %s153
    %p155 = scmp.eq.s32.totalorder %s24, 0
    %p156 = por %p154, %p155
    %s158 = sadd.s32 %s157, 1
    %p161 = scmp.eq.s32.totalorder %s18, 1
    %p162 = scmp.ne.s32.totalorder %s157, %s159
    %p163 = scmp.eq.s32.totalorder %s18, 0
    %p164 = por %p162, %p163
    %p165 = scmp.ne.s32.totalorder %s157, %s159
    %p166 = scmp.eq.s32.totalorder %s23, 1
    %p167 = por %p165, %p166
    %p168 = scmp.ne.s32.totalorder %s159, %s160
    %p169 = scmp.eq.s32.totalorder %s23, 0
    %p170 = por %p168, %p169
    %p171 = scmp.ne.s32.totalorder %s159, %s160
    %p172 = scmp.eq.s32.totalorder %s24, 1
    %p173 = por %p171, %p172
    %p175 = scmp.ne.s32.totalorder %s160, %s174
    %p176 = scmp.eq.s32.totalorder %s24, 0
    %p177 = por %p175, %p176
    %s179 = sadd.s32 %s178, 1
    %p182 = scmp.eq.s32.totalorder %s18, 1
    %p183 = scmp.ne.s32.totalorder %s178, %s180
    %p184 = scmp.eq.s32.totalorder %s18, 0
    %p185 = por %p183, %p184
    %p186 = scmp.ne.s32.totalorder %s178, %s180
    %p187 = scmp.eq.s32.totalorder %s23, 1
    %p188 = por %p186, %p187
    %p189 = scmp.ne.s32.totalorder %s180, %s181
    %p190 = scmp.eq.s32.totalorder %s23, 0
    %p191 = por %p189, %p190
    %p192 = scmp.ne.s32.totalorder %s180, %s181
    %p193 = scmp.eq.s32.totalorder %s24, 1
    %p194 = por %p192, %p193
    %p196 = scmp.ne.s32.totalorder %s181, %s195
    %p197 = scmp.eq.s32.totalorder %s24, 0
    %p198 = por %p196, %p197
    %s200 = sadd.s32 %s199, 1
    %p203 = scmp.eq.s32.totalorder %s18, 1
    %p204 = scmp.ne.s32.totalorder %s199, %s201
    %p205 = scmp.eq.s32.totalorder %s18, 0
    %p206 = por %p204, %p205
    %p207 = scmp.ne.s32.totalorder %s199, %s201
    %p208 = scmp.eq.s32.totalorder %s23, 1
    %p209 = por %p207, %p208
    %p210 = scmp.ne.s32.totalorder %s201, %s202
    %p211 = scmp.eq.s32.totalorder %s23, 0
    %p212 = por %p210, %p211
    %p213 = scmp.ne.s32.totalorder %s201, %s202
    %p214 = scmp.eq.s32.totalorder %s24, 1
    %p215 = por %p213, %p214
    %p217 = scmp.ne.s32.totalorder %s202, %s216
    %p218 = scmp.eq.s32.totalorder %s24, 0
    %p219 = por %p217, %p218
    %s221 = sadd.s32 %s220, 1
    %p224 = scmp.eq.s32.totalorder %s18, 1
    %p225 = scmp.ne.s32.totalorder %s220, %s222
    %p226 = scmp.eq.s32.totalorder %s18, 0
    %p227 = por %p225, %p226
    %p228 = scmp.ne.s32.totalorder %s220, %s222
    %p229 = scmp.eq.s32.totalorder %s23, 1
    %p230 = por %p228, %p229
    %p231 = scmp.ne.s32.totalorder %s222, %s223
    %p232 = scmp.eq.s32.totalorder %s23, 0
    %p233 = por %p231, %p232
    %p234 = scmp.ne.s32.totalorder %s222, %s223
    %p235 = scmp.eq.s32.totalorder %s24, 1
    %p236 = por %p234, %p235
    %p238 = scmp.ne.s32.totalorder %s223, %s237
    %p239 = scmp.eq.s32.totalorder %s24, 0
    %p240 = por %p238, %p239
    %s242 = sadd.s32 %s241, 1
    %p245 = scmp.eq.s32.totalorder %s18, 1
    %p246 = scmp.ne.s32.totalorder %s241, %s243
    %p247 = scmp.eq.s32.totalorder %s18, 0
    %p248 = por %p246, %p247
    %p249 = scmp.ne.s32.totalorder %s241, %s243
    %p250 = scmp.eq.s32.totalorder %s23, 1
    %p251 = por %p249, %p250
    %p252 = scmp.ne.s32.totalorder %s243, %s244
    %p253 = scmp.eq.s32.totalorder %s23, 0
    %p254 = por %p252, %p253
    %p255 = scmp.ne.s32.totalorder %s243, %s244
    %p256 = scmp.eq.s32.totalorder %s24, 1
    %p257 = por %p255, %p256
    %p259 = scmp.ne.s32.totalorder %s244, %s258
    %p260 = scmp.eq.s32.totalorder %s24, 0
    %p261 = por %p259, %p260
    %s263 = sadd.s32 %s262, 1
    %p266 = scmp.eq.s32.totalorder %s18, 1
    %p267 = scmp.ne.s32.totalorder %s262, %s264
    %p268 = scmp.eq.s32.totalorder %s18, 0
    %p269 = por %p267, %p268
    %p270 = scmp.ne.s32.totalorder %s262, %s264
    %p271 = scmp.eq.s32.totalorder %s23, 1
    %p272 = por %p270, %p271
    %p273 = scmp.ne.s32.totalorder %s264, %s265
    %p274 = scmp.eq.s32.totalorder %s23, 0
    %p275 = por %p273, %p274
    %p276 = scmp.ne.s32.totalorder %s264, %s265
    %p277 = scmp.eq.s32.totalorder %s24, 1
    %p278 = por %p276, %p277
    %p280 = scmp.ne.s32.totalorder %s265, %s279
    %p281 = scmp.eq.s32.totalorder %s24, 0
    %p282 = por %p280, %p281
    %s283 = ssub.s32 %s18, %s25
    %p284 = scmp.eq.s32.totalorder %s283, 0
    %s286 = sadd.s32 %s285, 1
    %s287 = scalar_select %p284, %s285, %s286
    %p290 = pneg %p284
    %p291 = scmp.eq.s32.totalorder %s18, 1
    %p292 = por %p290, %p291
    %p293 = scmp.ne.s32.totalorder %s285, %s288
    %p294 = scmp.eq.s32.totalorder %s18, 0
    %p295 = por %p293, %p294
    %p296 = scmp.ne.s32.totalorder %s285, %s288
    %p297 = scmp.eq.s32.totalorder %s23, 1
    %p298 = por %p296, %p297
    %p299 = scmp.ne.s32.totalorder %s288, %s289
    %p300 = scmp.eq.s32.totalorder %s23, 0
    %p301 = por %p299, %p300
    %p302 = scmp.ne.s32.totalorder %s288, %s289
    %p303 = scmp.eq.s32.totalorder %s24, 1
    %p304 = por %p302, %p303
    %p306 = scmp.ne.s32.totalorder %s289, %s305
    %p307 = scmp.eq.s32.totalorder %s24, 0
    %p308 = por %p306, %p307
    %p309 = scmp.le.s32.totalorder 1, %s18
    %p310 = scmp.lt.s32.totalorder %s18, 3
    %p311 = pnand %p309, %p310
    %p312 = pneg %p311
    // Predicated region
    $region9: #{tpu_custom_call.1} parent=5 // pred_check
      _
    $region10: #{tpu_custom_call.1} parent=5 // pred_check_branch
      %314 = sbr.rel (%p311) target = $region12
    $region11: #{tpu_custom_call.1} parent=5 // pred_region
      %s315 = ssub.s32 %s18, 1
      // Predicated region
      $region13: #{tpu_custom_call.1} parent=11 // pred_check
        %p316 = pneg %p65
      $region14: #{tpu_custom_call.1} parent=11 // pred_check_branch
        %318 = sbr.rel (%p316) target = $region16
      $region15: #{tpu_custom_call.1} parent=11 // pred_region
        _
      $region16: #{tpu_custom_call.1} parent=11 // pred_fallthru
        _
      // Predicated region
      $region17: #{tpu_custom_call.1} parent=11 // pred_check
        %p319 = pneg %p86
      $region18: #{tpu_custom_call.1} parent=11 // pred_check_branch
        %321 = sbr.rel (%p319) target = $region20
      $region19: #{tpu_custom_call.1} parent=11 // pred_region
        _
      $region20: #{tpu_custom_call.1} parent=11 // pred_fallthru
        _
      // Predicated region
      $region21: #{tpu_custom_call.1} parent=11 // pred_check
        %p322 = pneg %p107
      $region22: #{tpu_custom_call.1} parent=11 // pred_check_branch
        %324 = sbr.rel (%p322) target = $region24
      $region23: #{tpu_custom_call.1} parent=11 // pred_region
        _
      $region24: #{tpu_custom_call.1} parent=11 // pred_fallthru
        _
      // Predicated region
      $region25: #{tpu_custom_call.1} parent=11 // pred_check
        %p325 = pneg %p128
      $region26: #{tpu_custom_call.1} parent=11 // pred_check_branch
        %327 = sbr.rel (%p325) target = $region28
      $region27: #{tpu_custom_call.1} parent=11 // pred_region
        _
      $region28: #{tpu_custom_call.1} parent=11 // pred_fallthru
        _
      // Predicated region
      $region29: #{tpu_custom_call.1} parent=11 // pred_check
        %p328 = pneg %p149
      $region30: #{tpu_custom_call.1} parent=11 // pred_check_branch
        %330 = sbr.rel (%p328) target = $region32
      $region31: #{tpu_custom_call.1} parent=11 // pred_region
        _
      $region32: #{tpu_custom_call.1} parent=11 // pred_fallthru
        _
      // Predicated region
      $region33: #{tpu_custom_call.1} parent=11 // pred_check
        %p331 = pneg %p170
      $region34: #{tpu_custom_call.1} parent=11 // pred_check_branch
        %333 = sbr.rel (%p331) target = $region36
      $region35: #{tpu_custom_call.1} parent=11 // pred_region
        _
      $region36: #{tpu_custom_call.1} parent=11 // pred_fallthru
        _
      // Predicated region
      $region37: #{tpu_custom_call.1} parent=11 // pred_check
        %p334 = pneg %p191
      $region38: #{tpu_custom_call.1} parent=11 // pred_check_branch
        %336 = sbr.rel (%p334) target = $region40
      $region39: #{tpu_custom_call.1} parent=11 // pred_region
        _
      $region40: #{tpu_custom_call.1} parent=11 // pred_fallthru
        _
      // Predicated region
      $region41: #{tpu_custom_call.1} parent=11 // pred_check
        %p337 = pneg %p212
      $region42: #{tpu_custom_call.1} parent=11 // pred_check_branch
        %339 = sbr.rel (%p337) target = $region44
      $region43: #{tpu_custom_call.1} parent=11 // pred_region
        _
      $region44: #{tpu_custom_call.1} parent=11 // pred_fallthru
        _
      // Predicated region
      $region45: #{tpu_custom_call.1} parent=11 // pred_check
        %p340 = pneg %p233
      $region46: #{tpu_custom_call.1} parent=11 // pred_check_branch
        %342 = sbr.rel (%p340) target = $region48
      $region47: #{tpu_custom_call.1} parent=11 // pred_region
        _
      $region48: #{tpu_custom_call.1} parent=11 // pred_fallthru
        _
      // Predicated region
      $region49: #{tpu_custom_call.1} parent=11 // pred_check
        %p343 = pneg %p254
      $region50: #{tpu_custom_call.1} parent=11 // pred_check_branch
        %345 = sbr.rel (%p343) target = $region52
      $region51: #{tpu_custom_call.1} parent=11 // pred_region
        _
      $region52: #{tpu_custom_call.1} parent=11 // pred_fallthru
        _
      // Predicated region
      $region53: #{tpu_custom_call.1} parent=11 // pred_check
        %p346 = pneg %p275
      $region54: #{tpu_custom_call.1} parent=11 // pred_check_branch
        %348 = sbr.rel (%p346) target = $region56
      $region55: #{tpu_custom_call.1} parent=11 // pred_region
        _
      $region56: #{tpu_custom_call.1} parent=11 // pred_fallthru
        _
    $region12: #{tpu_custom_call.1} parent=5 // pred_fallthru
      _
    %p349 = scmp.lt.s32.totalorder %s18, 2
    // Predicated region
    $region57: #{tpu_custom_call.1} parent=5 // pred_check
      %p350 = pneg %p349
    $region58: #{tpu_custom_call.1} parent=5 // pred_check_branch
      %352 = sbr.rel (%p350) target = $region60
    $region59: #{tpu_custom_call.1} parent=5 // pred_region
      // Predicated region
      $region61: #{tpu_custom_call.1} parent=59 // pred_check
        %p353 = pneg %p38
      $region62: #{tpu_custom_call.1} parent=59 // pred_check_branch
        %355 = sbr.rel (%p353) target = $region64
      $region63: #{tpu_custom_call.1} parent=59 // pred_region
        %s356 = smul.u32 64, %s18
        %p357 = scmp.lt.s32.totalorder %s356, 127
        %s358 = scalar_select %p357, %s356, 127
        %s359 = smul.addr %s358, 8
        %s360 = scalar_lea.vmem %s0, %s359
        %s361 = smul.u32 64, %s18
      $region64: #{tpu_custom_call.1} parent=59 // pred_fallthru
        _
    $region60: #{tpu_custom_call.1} parent=5 // pred_fallthru
      _
    %p362 = scmp.le.s32.totalorder 1, %s18
    %p363 = scmp.lt.s32.totalorder %s18, 3
    %p364 = pnand %p362, %p363
    %p365 = pneg %p364
    // Predicated region
    $region65: #{tpu_custom_call.1} parent=5 // pred_check
      _
    $region66: #{tpu_custom_call.1} parent=5 // pred_check_branch
      %367 = sbr.rel (%p364) target = $region68
    $region67: #{tpu_custom_call.1} parent=5 // pred_region
      %s368 = ssub.s32 %s18, 1
      %s369 = smul.u32 64, %s23
      %p370 = scmp.lt.s32.totalorder %s369, 127
      %s371 = scalar_select %p370, %s369, 127
      %s372 = smul.addr %s371, 8
      %s373 = scalar_lea.vmem %s0, %s372
      %p374 = pneg %p44
      %p375 = pneg %p41
      %p376 = pneg %p65
      %p377 = pneg %p62
      %p378 = pneg %p86
      %p379 = pneg %p83
      %p380 = pneg %p107
      %p381 = pneg %p104
      %p382 = pneg %p128
      %p383 = pneg %p125
      %p384 = pneg %p149
      %p385 = pneg %p146
      %p386 = pneg %p170
      %p387 = pneg %p167
      %p388 = pneg %p191
      %p389 = pneg %p188
      %p390 = pneg %p212
      %p391 = pneg %p209
      %p392 = pneg %p233
      %p393 = pneg %p230
      %p394 = pneg %p254
      %p395 = pneg %p251
      %p396 = pneg %p275
      %p397 = pneg %p272
      %p398 = pneg %p301
      %p399 = pneg %p298
      %s400 = smul.u32 64, %s23
      %p401 = scmp.lt.s32.totalorder %s400, 127
      %s402 = scalar_select %p401, %s400, 127
      %s403 = smul.addr %s402, 8
      %s404 = scalar_lea.vmem %s12, %s403
      %s405 = smul.u32 64, %s23
      %p406 = scmp.lt.s32.totalorder %s405, 127
      %s407 = scalar_select %p406, %s405, 127
      %s408 = smul.addr %s407, 8
      %s409 = scalar_lea.vmem %s0, %s408
      %s410 = smul.u32 64, %s23
      %s411 = smul.u32 64, %s23
      %p412 = scmp.lt.s32.totalorder %s411, 127
      %s413 = scalar_select %p412, %s411, 127
      %s414 = smul.addr %s413, 8
      %s415 = scalar_lea.vmem %s12, %s414
      %s416 = smul.u32 64, %s23
      %v417 = vld [vmem:[%s409] sm:$0xff]
      %v418 = vld [vmem:[%s409 + $0x8] sm:$0xff]
      %v419 = vld [vmem:[%s409 + $0x10] sm:$0xff]
      %v420 = vld [vmem:[%s409 + $0x18] sm:$0xff]
      %v421 = vld [vmem:[%s409 + $0x20] sm:$0xff]
      %v422 = vld [vmem:[%s409 + $0x28] sm:$0xff]
      %v423 = vld [vmem:[%s409 + $0x30] sm:$0xff]
      %v424 = vld [vmem:[%s409 + $0x38] sm:$0xff]
      %v425 = vld [vmem:[%s409 + $0x40] sm:$0xff]
      %v426 = vld [vmem:[%s409 + $0x48] sm:$0xff]
      %v427 = vld [vmem:[%s409 + $0x50] sm:$0xff]
      %v428 = vld [vmem:[%s409 + $0x58] sm:$0xff]
      %v429 = vld [vmem:[%s409 + $0x60] sm:$0xff]
      %v430 = vld [vmem:[%s409 + $0x68] sm:$0xff]
      %v431 = vld [vmem:[%s409 + $0x70] sm:$0xff]
      %v432 = vld [vmem:[%s409 + $0x78] sm:$0xff]
      %v433 = vld [vmem:[%s1] sm:$0x7]
      %v434 = vld [vmem:[%s2] sm:$0x1]
      %v436 = vlaneseq
      %v437 = vshrl.u32 %v436, 7
      %v438 = vsub.s32 0, %v437
      %v439 = vrot.slane %v434, %v438
      %vm441 = vcmask 23552
      %v443 = vsel %vm441, %v417, 0
      %v446 = vsel %vm441, %v418, 0
      %v449 = vsel %vm441, %v419, 0
      %v452 = vsel %vm441, %v420, 0
      %v455 = vsel %vm441, %v421, 0
      %v458 = vsel %vm441, %v422, 0
      %v461 = vsel %vm441, %v423, 0
      %v464 = vsel %vm441, %v424, 0
      %v467 = vsel %vm441, %v425, 0
      %v470 = vsel %vm441, %v426, 0
      %v473 = vsel %vm441, %v427, 0
      %v476 = vsel %vm441, %v428, 0
      %v479 = vsel %vm441, %v429, 0
      %v482 = vsel %vm441, %v430, 0
      %v485 = vsel %vm441, %v431, 0
      %v488 = vsel %vm441, %v432, 0
      %vm490 = vcmask 1042432
      %v492 = vsel %vm490, %v433, 0
      %494 = vmatprep.subr.mxu0 0.0
      %495 = vmatpush1.msra.mxu0 %v492
      %496 = vmatprep.subr.mxu0 0.0
      %497 = vmatpush1.msra.mxu0 0.0
      %498 = vmatprep.subr.mxu0 0.0
      %499 = vmatpush1.msra.mxu0 0.0
      %500 = vmatprep.subr.mxu0 0.0
      %501 = vmatpush1.msra.mxu0 0.0
      %502 = vmatprep.subr.mxu0 0.0
      %503 = vmatpush1.msra.mxu0 0.0
      %504 = vmatprep.subr.mxu0 0.0
      %505 = vmatpush1.msra.mxu0 0.0
      %506 = vmatprep.subr.mxu0 0.0
      %507 = vmatpush1.msra.mxu0 0.0
      %508 = vmatprep.subr.mxu0 0.0
      %509 = vmatpush1.msra.mxu0 0.0
      %510 = vmatprep.subr.mxu0 0.0
      %511 = vmatpush1.msra.mxu0 0.0
      %512 = vmatprep.subr.mxu0 0.0
      %513 = vmatpush1.msra.mxu0 0.0
      %514 = vmatprep.subr.mxu0 0.0
      %515 = vmatpush1.msra.mxu0 0.0
      %516 = vmatprep.subr.mxu0 0.0
      %517 = vmatpush1.msra.mxu0 0.0
      %518 = vmatprep.subr.mxu0 0.0
      %519 = vmatpush1.msra.mxu0 0.0
      %520 = vmatprep.subr.mxu0 0.0
      %521 = vmatpush1.msra.mxu0 0.0
      %522 = vmatprep.subr.mxu0 0.0
      %523 = vmatpush1.msra.mxu0 0.0
      %524 = vmatprep.subr.mxu0 0.0
      %525 = vmatpush1.msra.mxu0 0.0
      %526 = vmatprep.subr.mxu0 0.0
      %527 = vmatpush1.msra.mxu0 0.0
      %528 = vmatprep.subr.mxu0 0.0
      %529 = vmatpush1.msra.mxu0 0.0
      %530 = vmatprep.subr.mxu0 0.0
      %531 = vmatpush1.msra.mxu0 0.0
      %532 = vmatprep.subr.mxu0 0.0
      %533 = vmatpush1.msra.mxu0 0.0
      %534 = vmatprep.subr.mxu0 0.0
      %535 = vmatpush1.msra.mxu0 0.0
      %536 = vmatprep.subr.mxu0 0.0
      %537 = vmatpush1.msra.mxu0 0.0
      %538 = vmatprep.subr.mxu0 0.0
      %539 = vmatpush1.msra.mxu0 0.0
      %540 = vmatprep.subr.mxu0 0.0
      %541 = vmatpush1.msra.mxu0 0.0
      %542 = vmatprep.subr.mxu0 0.0
      %543 = vmatpush1.msra.mxu0 0.0
      %544 = vmatprep.subr.mxu0 0.0
      %545 = vmatpush1.msra.mxu0 0.0
      %546 = vmatprep.subr.mxu0 0.0
      %547 = vmatpush1.msra.mxu0 0.0
      %548 = vmatprep.subr.mxu0 0.0
      %549 = vmatpush1.msra.mxu0 0.0
      %550 = vmatprep.subr.mxu0 0.0
      %551 = vmatpush1.msra.mxu0 0.0
      %552 = vmatprep.subr.mxu0 0.0
      %553 = vmatpush1.msra.mxu0 0.0
      %554 = vmatprep.subr.mxu0 0.0
      %555 = vmatpush1.msra.mxu0 0.0
      %556 = vmatprep.subr.mxu0 0.0
      %557 = vmatpush1.msra.mxu0 0.0
      %558 = vmatprep.mubr.f32.mxu0 0.0
      %559 = vmatmul.mubr.f32.gmra.mrb[0].mxu0 %v443
      %v560 = vpop.f32.mrb[0].mxu0
      %v561 = vadd.f32 %v439, %v560
      %v562 = vpop.f32.mrb[0].mxu0
      %563 = vmatprep.mubr.f32.mxu0 0.0
      %564 = vmatmul.mubr.f32.gmra.mrb[0].mxu0 %v446
      %v565 = vpop.f32.mrb[0].mxu0
      %v566 = vadd.f32 %v439, %v565
      %v567 = vpop.f32.mrb[0].mxu0
      %568 = vmatprep.mubr.f32.mxu0 0.0
      %569 = vmatmul.mubr.f32.gmra.mrb[0].mxu0 %v449
      %v570 = vpop.f32.mrb[0].mxu0
      %v571 = vadd.f32 %v439, %v570
      %v572 = vpop.f32.mrb[0].mxu0
      %573 = vmatprep.mubr.f32.mxu0 0.0
      %574 = vmatmul.mubr.f32.gmra.mrb[0].mxu0 %v452
      %v575 = vpop.f32.mrb[0].mxu0
      %v576 = vadd.f32 %v439, %v575
      %v577 = vpop.f32.mrb[0].mxu0
      %578 = vmatprep.mubr.f32.mxu0 0.0
      %579 = vmatmul.mubr.f32.gmra.mrb[0].mxu0 %v455
      %v580 = vpop.f32.mrb[0].mxu0
      %v581 = vadd.f32 %v439, %v580
      %v582 = vpop.f32.mrb[0].mxu0
      %583 = vmatprep.mubr.f32.mxu0 0.0
      %584 = vmatmul.mubr.f32.gmra.mrb[0].mxu0 %v458
      %v585 = vpop.f32.mrb[0].mxu0
      %v586 = vadd.f32 %v439, %v585
      %v587 = vpop.f32.mrb[0].mxu0
      %588 = vmatprep.mubr.f32.mxu0 0.0
      %589 = vmatmul.mubr.f32.gmra.mrb[0].mxu0 %v461
      %v590 = vpop.f32.mrb[0].mxu0
      %v591 = vadd.f32 %v439, %v590
      %v592 = vpop.f32.mrb[0].mxu0
      %593 = vmatprep.mubr.f32.mxu0 0.0
      %594 = vmatmul.mubr.f32.gmra.mrb[0].mxu0 %v464
      %v595 = vpop.f32.mrb[0].mxu0
      %v596 = vadd.f32 %v439, %v595
      %v597 = vpop.f32.mrb[0].mxu0
      %598 = vmatprep.mubr.f32.mxu0 0.0
      %599 = vmatmul.mubr.f32.gmra.mrb[0].mxu0 %v467
      %v600 = vpop.f32.mrb[0].mxu0
      %v601 = vadd.f32 %v439, %v600
      %v602 = vpop.f32.mrb[0].mxu0
      %603 = vmatprep.mubr.f32.mxu0 0.0
      %604 = vmatmul.mubr.f32.gmra.mrb[0].mxu0 %v470
      %v605 = vpop.f32.mrb[0].mxu0
      %v606 = vadd.f32 %v439, %v605
      %v607 = vpop.f32.mrb[0].mxu0
      %608 = vmatprep.mubr.f32.mxu0 0.0
      %609 = vmatmul.mubr.f32.gmra.mrb[0].mxu0 %v473
      %v610 = vpop.f32.mrb[0].mxu0
      %v611 = vadd.f32 %v439, %v610
      %v612 = vpop.f32.mrb[0].mxu0
      %613 = vmatprep.mubr.f32.mxu0 0.0
      %614 = vmatmul.mubr.f32.gmra.mrb[0].mxu0 %v476
      %v615 = vpop.f32.mrb[0].mxu0
      %v616 = vadd.f32 %v439, %v615
      %v617 = vpop.f32.mrb[0].mxu0
      %618 = vmatprep.mubr.f32.mxu0 0.0
      %619 = vmatmul.mubr.f32.gmra.mrb[0].mxu0 %v479
      %v620 = vpop.f32.mrb[0].mxu0
      %v621 = vadd.f32 %v439, %v620
      %v622 = vpop.f32.mrb[0].mxu0
      %623 = vmatprep.mubr.f32.mxu0 0.0
      %624 = vmatmul.mubr.f32.gmra.mrb[0].mxu0 %v482
      %v625 = vpop.f32.mrb[0].mxu0
      %v626 = vadd.f32 %v439, %v625
      %v627 = vpop.f32.mrb[0].mxu0
      %628 = vmatprep.mubr.f32.mxu0 0.0
      %629 = vmatmul.mubr.f32.gmra.mrb[0].mxu0 %v485
      %v630 = vpop.f32.mrb[0].mxu0
      %v631 = vadd.f32 %v439, %v630
      %v632 = vpop.f32.mrb[0].mxu0
      %633 = vmatprep.mubr.f32.mxu0 0.0
      %634 = vmatmul.mubr.f32.gmra.mrb[0].mxu0 %v488
      %v635 = vpop.f32.mrb[0].mxu0
      %v636 = vadd.f32 %v439, %v635
      %v637 = vpop.f32.mrb[0].mxu0
      %638 = vdwg.mxu0
      %v639 = vmul.f32 %v561, 100.0
      %v640 = vmul.f32 %v566, 100.0
      %v641 = vmul.f32 %v571, 100.0
      %v642 = vmul.f32 %v576, 100.0
      %v643 = vmul.f32 %v581, 100.0
      %v644 = vmul.f32 %v586, 100.0
      %v645 = vmul.f32 %v591, 100.0
      %v646 = vmul.f32 %v596, 100.0
      %v647 = vmul.f32 %v601, 100.0
      %v648 = vmul.f32 %v606, 100.0
      %v649 = vmul.f32 %v611, 100.0
      %v650 = vmul.f32 %v616, 100.0
      %v651 = vmul.f32 %v621, 100.0
      %v652 = vmul.f32 %v626, 100.0
      %v653 = vmul.f32 %v631, 100.0
      %v654 = vmul.f32 %v636, 100.0
      %vm655 = vcmp.gt.f32.partialorder %v639, 20.0
      %vm656 = vcmp.gt.f32.partialorder %v640, 20.0
      %vm657 = vcmp.gt.f32.partialorder %v641, 20.0
      %vm658 = vcmp.gt.f32.partialorder %v642, 20.0
      %vm659 = vcmp.gt.f32.partialorder %v643, 20.0
      %vm660 = vcmp.gt.f32.partialorder %v644, 20.0
      %vm661 = vcmp.gt.f32.partialorder %v645, 20.0
      %vm662 = vcmp.gt.f32.partialorder %v646, 20.0
      %vm663 = vcmp.gt.f32.partialorder %v647, 20.0
      %vm664 = vcmp.gt.f32.partialorder %v648, 20.0
      %vm665 = vcmp.gt.f32.partialorder %v649, 20.0
      %vm666 = vcmp.gt.f32.partialorder %v650, 20.0
      %vm667 = vcmp.gt.f32.partialorder %v651, 20.0
      %vm668 = vcmp.gt.f32.partialorder %v652, 20.0
      %vm669 = vcmp.gt.f32.partialorder %v653, 20.0
      %vm670 = vcmp.gt.f32.partialorder %v654, 20.0
      %v671 = vmul.f32 %v639, 1.442695
      %v672 = vpow.pop %v671
      %v673 = vmul.f32 %v640, 1.442695
      %v674 = vpow.pop %v673
      %v675 = vmul.f32 %v641, 1.442695
      %v676 = vpow.pop %v675
      %v677 = vmul.f32 %v642, 1.442695
      %v678 = vpow.pop %v677
      %v679 = vmul.f32 %v643, 1.442695
      %v680 = vpow.pop %v679
      %v681 = vmul.f32 %v644, 1.442695
      %v682 = vpow.pop %v681
      %v683 = vmul.f32 %v645, 1.442695
      %v684 = vpow.pop %v683
      %v685 = vmul.f32 %v646, 1.442695
      %v686 = vpow.pop %v685
      %v687 = vmul.f32 %v647, 1.442695
      %v688 = vpow.pop %v687
      %v689 = vmul.f32 %v648, 1.442695
      %v690 = vpow.pop %v689
      %v691 = vmul.f32 %v649, 1.442695
      %v692 = vpow.pop %v691
      %v693 = vmul.f32 %v650, 1.442695
      %v694 = vpow.pop %v693
      %v695 = vmul.f32 %v651, 1.442695
      %v696 = vpow.pop %v695
      %v697 = vmul.f32 %v652, 1.442695
      %v698 = vpow.pop %v697
      %v699 = vmul.f32 %v653, 1.442695
      %v700 = vpow.pop %v699
      %v701 = vmul.f32 %v654, 1.442695
      %v702 = vpow.pop %v701
      %v703 = vadd.f32 %v672, 1.0
      %v704 = vlog2.pop %v703
      %v705 = vmul.f32 %v704, 0.6931472
      %v706 = vmul.f32 -0.5, %v672
      %v707 = vadd.f32 %v706, 1.0
      %v708 = vmul.f32 %v707, %v672
      %v709 = vand.u32 2147483647, %v672
      %vm710 = vcmp.lt.f32.partialorder %v709, 0.0004427343
      %v711 = vsel %vm710, %v708, %v705
      %v712 = vadd.f32 %v674, 1.0
      %v713 = vlog2.pop %v712
      %v714 = vmul.f32 %v713, 0.6931472
      %v715 = vmul.f32 -0.5, %v674
      %v716 = vadd.f32 %v715, 1.0
      %v717 = vmul.f32 %v716, %v674
      %v718 = vand.u32 2147483647, %v674
      %vm719 = vcmp.lt.f32.partialorder %v718, 0.0004427343
      %v720 = vsel %vm719, %v717, %v714
      %v721 = vadd.f32 %v676, 1.0
      %v722 = vlog2.pop %v721
      %v723 = vmul.f32 %v722, 0.6931472
      %v724 = vmul.f32 -0.5, %v676
      %v725 = vadd.f32 %v724, 1.0
      %v726 = vmul.f32 %v725, %v676
      %v727 = vand.u32 2147483647, %v676
      %vm728 = vcmp.lt.f32.partialorder %v727, 0.0004427343
      %v729 = vsel %vm728, %v726, %v723
      %v730 = vadd.f32 %v678, 1.0
      %v731 = vlog2.pop %v730
      %v732 = vmul.f32 %v731, 0.6931472
      %v733 = vmul.f32 -0.5, %v678
      %v734 = vadd.f32 %v733, 1.0
      %v735 = vmul.f32 %v734, %v678
      %v736 = vand.u32 2147483647, %v678
      %vm737 = vcmp.lt.f32.partialorder %v736, 0.0004427343
      %v738 = vsel %vm737, %v735, %v732
      %v739 = vadd.f32 %v680, 1.0
      %v740 = vlog2.pop %v739
      %v741 = vmul.f32 %v740, 0.6931472
      %v742 = vmul.f32 -0.5, %v680
      %v743 = vadd.f32 %v742, 1.0
      %v744 = vmul.f32 %v743, %v680
      %v745 = vand.u32 2147483647, %v680
      %vm746 = vcmp.lt.f32.partialorder %v745, 0.0004427343
      %v747 = vsel %vm746, %v744, %v741
      %v748 = vadd.f32 %v682, 1.0
      %v749 = vlog2.pop %v748
      %v750 = vmul.f32 %v749, 0.6931472
      %v751 = vmul.f32 -0.5, %v682
      %v752 = vadd.f32 %v751, 1.0
      %v753 = vmul.f32 %v752, %v682
      %v754 = vand.u32 2147483647, %v682
      %vm755 = vcmp.lt.f32.partialorder %v754, 0.0004427343
      %v756 = vsel %vm755, %v753, %v750
      %v757 = vadd.f32 %v684, 1.0
      %v758 = vlog2.pop %v757
      %v759 = vmul.f32 %v758, 0.6931472
      %v760 = vmul.f32 -0.5, %v684
      %v761 = vadd.f32 %v760, 1.0
      %v762 = vmul.f32 %v761, %v684
      %v763 = vand.u32 2147483647, %v684
      %vm764 = vcmp.lt.f32.partialorder %v763, 0.0004427343
      %v765 = vsel %vm764, %v762, %v759
      %v766 = vadd.f32 %v686, 1.0
      %v767 = vlog2.pop %v766
      %v768 = vmul.f32 %v767, 0.6931472
      %v769 = vmul.f32 -0.5, %v686
      %v770 = vadd.f32 %v769, 1.0
      %v771 = vmul.f32 %v770, %v686
      %v772 = vand.u32 2147483647, %v686
      %vm773 = vcmp.lt.f32.partialorder %v772, 0.0004427343
      %v774 = vsel %vm773, %v771, %v768
      %v775 = vadd.f32 %v688, 1.0
      %v776 = vlog2.pop %v775
      %v777 = vmul.f32 %v776, 0.6931472
      %v778 = vmul.f32 -0.5, %v688
      %v779 = vadd.f32 %v778, 1.0
      %v780 = vmul.f32 %v779, %v688
      %v781 = vand.u32 2147483647, %v688
      %vm782 = vcmp.lt.f32.partialorder %v781, 0.0004427343
      %v783 = vsel %vm782, %v780, %v777
      %v784 = vadd.f32 %v690, 1.0
      %v785 = vlog2.pop %v784
      %v786 = vmul.f32 %v785, 0.6931472
      %v787 = vmul.f32 -0.5, %v690
      %v788 = vadd.f32 %v787, 1.0
      %v789 = vmul.f32 %v788, %v690
      %v790 = vand.u32 2147483647, %v690
      %vm791 = vcmp.lt.f32.partialorder %v790, 0.0004427343
      %v792 = vsel %vm791, %v789, %v786
      %v793 = vadd.f32 %v692, 1.0
      %v794 = vlog2.pop %v793
      %v795 = vmul.f32 %v794, 0.6931472
      %v796 = vmul.f32 -0.5, %v692
      %v797 = vadd.f32 %v796, 1.0
      %v798 = vmul.f32 %v797, %v692
      %v799 = vand.u32 2147483647, %v692
      %vm800 = vcmp.lt.f32.partialorder %v799, 0.0004427343
      %v801 = vsel %vm800, %v798, %v795
      %v802 = vadd.f32 %v694, 1.0
      %v803 = vlog2.pop %v802
      %v804 = vmul.f32 %v803, 0.6931472
      %v805 = vmul.f32 -0.5, %v694
      %v806 = vadd.f32 %v805, 1.0
      %v807 = vmul.f32 %v806, %v694
      %v808 = vand.u32 2147483647, %v694
      %vm809 = vcmp.lt.f32.partialorder %v808, 0.0004427343
      %v810 = vsel %vm809, %v807, %v804
      %v811 = vadd.f32 %v696, 1.0
      %v812 = vlog2.pop %v811
      %v813 = vmul.f32 %v812, 0.6931472
      %v814 = vmul.f32 -0.5, %v696
      %v815 = vadd.f32 %v814, 1.0
      %v816 = vmul.f32 %v815, %v696
      %v817 = vand.u32 2147483647, %v696
      %vm818 = vcmp.lt.f32.partialorder %v817, 0.0004427343
      %v819 = vsel %vm818, %v816, %v813
      %v820 = vadd.f32 %v698, 1.0
      %v821 = vlog2.pop %v820
      %v822 = vmul.f32 %v821, 0.6931472
      %v823 = vmul.f32 -0.5, %v698
      %v824 = vadd.f32 %v823, 1.0
      %v825 = vmul.f32 %v824, %v698
      %v826 = vand.u32 2147483647, %v698
      %vm827 = vcmp.lt.f32.partialorder %v826, 0.0004427343
      %v828 = vsel %vm827, %v825, %v822
      %v829 = vadd.f32 %v700, 1.0
      %v830 = vlog2.pop %v829
      %v831 = vmul.f32 %v830, 0.6931472
      %v832 = vmul.f32 -0.5, %v700
      %v833 = vadd.f32 %v832, 1.0
      %v834 = vmul.f32 %v833, %v700
      %v835 = vand.u32 2147483647, %v700
      %vm836 = vcmp.lt.f32.partialorder %v835, 0.0004427343
      %v837 = vsel %vm836, %v834, %v831
      %v838 = vadd.f32 %v702, 1.0
      %v839 = vlog2.pop %v838
      %v840 = vmul.f32 %v839, 0.6931472
      %v841 = vmul.f32 -0.5, %v702
      %v842 = vadd.f32 %v841, 1.0
      %v843 = vmul.f32 %v842, %v702
      %v844 = vand.u32 2147483647, %v702
      %vm845 = vcmp.lt.f32.partialorder %v844, 0.0004427343
      %v846 = vsel %vm845, %v843, %v840
      %v847 = vmul.f32 %v711, 0.01
      %v848 = vmul.f32 %v720, 0.01
      %v849 = vmul.f32 %v729, 0.01
      %v850 = vmul.f32 %v738, 0.01
      %v851 = vmul.f32 %v747, 0.01
      %v852 = vmul.f32 %v756, 0.01
      %v853 = vmul.f32 %v765, 0.01
      %v854 = vmul.f32 %v774, 0.01
      %v855 = vmul.f32 %v783, 0.01
      %v856 = vmul.f32 %v792, 0.01
      %v857 = vmul.f32 %v801, 0.01
      %v858 = vmul.f32 %v810, 0.01
      %v859 = vmul.f32 %v819, 0.01
      %v860 = vmul.f32 %v828, 0.01
      %v861 = vmul.f32 %v837, 0.01
      %v862 = vmul.f32 %v846, 0.01
      %v863 = vsel %vm655, %v561, %v847
      %v864 = vsel %vm656, %v566, %v848
      %v865 = vsel %vm657, %v571, %v849
      %v866 = vsel %vm658, %v576, %v850
      %v867 = vsel %vm659, %v581, %v851
      %v868 = vsel %vm660, %v586, %v852
      %v869 = vsel %vm661, %v591, %v853
      %v870 = vsel %vm662, %v596, %v854
      %v871 = vsel %vm663, %v601, %v855
      %v872 = vsel %vm664, %v606, %v856
      %v873 = vsel %vm665, %v611, %v857
      %v874 = vsel %vm666, %v616, %v858
      %v875 = vsel %vm667, %v621, %v859
      %v876 = vsel %vm668, %v626, %v860
      %v877 = vsel %vm669, %v631, %v861
      %v878 = vsel %vm670, %v636, %v862
      %v879 = vld [vmem:[%s3] sm:$0xff]
      %v880 = vld [vmem:[%s3 + $0x8] sm:$0xff]
      %v881 = vld [vmem:[%s3 + $0x10] sm:$0xff]
      %v882 = vld [vmem:[%s3 + $0x18] sm:$0xff]
      %v883 = vld [vmem:[%s3 + $0x20] sm:$0xff]
      %v884 = vld [vmem:[%s3 + $0x28] sm:$0xff]
      %v885 = vld [vmem:[%s3 + $0x30] sm:$0xff]
      %v886 = vld [vmem:[%s3 + $0x38] sm:$0xff]
      %v887 = vld [vmem:[%s4] sm:$0x1]
      %v889 = vlaneseq
      %v890 = vshrl.u32 %v889, 7
      %v891 = vsub.s32 0, %v890
      %v892 = vrot.slane %v887, %v891
      %vm894 = vcmask 523264
      %v896 = vsel %vm894, %v863, 0
      %v899 = vsel %vm894, %v864, 0
      %v902 = vsel %vm894, %v865, 0
      %v905 = vsel %vm894, %v866, 0
      %v908 = vsel %vm894, %v867, 0
      %v911 = vsel %vm894, %v868, 0
      %v914 = vsel %vm894, %v869, 0
      %v917 = vsel %vm894, %v870, 0
      %v920 = vsel %vm894, %v871, 0
      %v923 = vsel %vm894, %v872, 0
      %v926 = vsel %vm894, %v873, 0
      %v929 = vsel %vm894, %v874, 0
      %v932 = vsel %vm894, %v875, 0
      %v935 = vsel %vm894, %v876, 0
      %v938 = vsel %vm894, %v877, 0
      %v941 = vsel %vm894, %v878, 0
      %943 = vmatprep.subr.mxu0 0.0
      %944 = vmatpush1.msra.mxu0 %v879
      %945 = vmatprep.subr.mxu0 0.0
      %946 = vmatpush1.msra.mxu0 %v880
      %947 = vmatprep.subr.mxu0 0.0
      %948 = vmatpush1.msra.mxu0 %v881
      %949 = vmatprep.subr.mxu0 0.0
      %950 = vmatpush1.msra.mxu0 %v882
      %951 = vmatprep.subr.mxu0 0.0
      %952 = vmatpush1.msra.mxu0 %v883
      %953 = vmatprep.subr.mxu0 0.0
      %954 = vmatpush1.msra.mxu0 %v884
      %955 = vmatprep.subr.mxu0 0.0
      %956 = vmatpush1.msra.mxu0 %v885
      %957 = vmatprep.subr.mxu0 0.0
      %958 = vmatpush1.msra.mxu0 %v886
      %959 = vmatprep.subr.mxu0 0.0
      %960 = vmatpush1.msra.mxu0 0.0
      %961 = vmatprep.subr.mxu0 0.0
      %962 = vmatpush1.msra.mxu0 0.0
      %963 = vmatprep.subr.mxu0 0.0
      %964 = vmatpush1.msra.mxu0 0.0
      %965 = vmatprep.subr.mxu0 0.0
      %966 = vmatpush1.msra.mxu0 0.0
      %967 = vmatprep.subr.mxu0 0.0
      %968 = vmatpush1.msra.mxu0 0.0
      %969 = vmatprep.subr.mxu0 0.0
      %970 = vmatpush1.msra.mxu0 0.0
      %971 = vmatprep.subr.mxu0 0.0
      %972 = vmatpush1.msra.mxu0 0.0
      %973 = vmatprep.subr.mxu0 0.0
      %974 = vmatpush1.msra.mxu0 0.0
      %975 = vmatprep.subr.mxu0 0.0
      %976 = vmatpush1.msra.mxu0 0.0
      %977 = vmatprep.subr.mxu0 0.0
      %978 = vmatpush1.msra.mxu0 0.0
      %979 = vmatprep.subr.mxu0 0.0
      %980 = vmatpush1.msra.mxu0 0.0
      %981 = vmatprep.subr.mxu0 0.0
      %982 = vmatpush1.msra.mxu0 0.0
      %983 = vmatprep.subr.mxu0 0.0
      %984 = vmatpush1.msra.mxu0 0.0
      %985 = vmatprep.subr.mxu0 0.0
      %986 = vmatpush1.msra.mxu0 0.0
      %987 = vmatprep.subr.mxu0 0.0
      %988 = vmatpush1.msra.mxu0 0.0
      %989 = vmatprep.subr.mxu0 0.0
      %990 = vmatpush1.msra.mxu0 0.0
      %991 = vmatprep.subr.mxu0 0.0
      %992 = vmatpush1.msra.mxu0 0.0
      %993 = vmatprep.subr.mxu0 0.0
      %994 = vmatpush1.msra.mxu0 0.0
      %995 = vmatprep.subr.mxu0 0.0
      %996 = vmatpush1.msra.mxu0 0.0
      %997 = vmatprep.subr.mxu0 0.0
      %998 = vmatpush1.msra.mxu0 0.0
      %999 = vmatprep.subr.mxu0 0.0
      %1000 = vmatpush1.msra.mxu0 0.0
      %1001 = vmatprep.subr.mxu0 0.0
      %1002 = vmatpush1.msra.mxu0 0.0
      %1003 = vmatprep.subr.mxu0 0.0
      %1004 = vmatpush1.msra.mxu0 0.0
      %1005 = vmatprep.subr.mxu0 0.0
      %1006 = vmatpush1.msra.mxu0 0.0
      %1007 = vmatprep.mubr.f32.mxu0 0.0
      %1008 = vmatmul.mubr.f32.gmra.mrb[0].mxu0 %v896
      %v1009 = vpop.f32.mrb[0].mxu0
      %v1010 = vadd.f32 %v892, %v1009
      %v1011 = vpop.f32.mrb[0].mxu0
      %1012 = vmatprep.mubr.f32.mxu0 0.0
      %1013 = vmatmul.mubr.f32.gmra.mrb[0].mxu0 %v899
      %v1014 = vpop.f32.mrb[0].mxu0
      %v1015 = vadd.f32 %v892, %v1014
      %v1016 = vpop.f32.mrb[0].mxu0
      %1017 = vmatprep.mubr.f32.mxu0 0.0
      %1018 = vmatmul.mubr.f32.gmra.mrb[0].mxu0 %v902
      %v1019 = vpop.f32.mrb[0].mxu0
      %v1020 = vadd.f32 %v892, %v1019
      %v1021 = vpop.f32.mrb[0].mxu0
      %1022 = vmatprep.mubr.f32.mxu0 0.0
      %1023 = vmatmul.mubr.f32.gmra.mrb[0].mxu0 %v905
      %v1024 = vpop.f32.mrb[0].mxu0
      %v1025 = vadd.f32 %v892, %v1024
      %v1026 = vpop.f32.mrb[0].mxu0
      %1027 = vmatprep.mubr.f32.mxu0 0.0
      %1028 = vmatmul.mubr.f32.gmra.mrb[0].mxu0 %v908
      %v1029 = vpop.f32.mrb[0].mxu0
      %v1030 = vadd.f32 %v892, %v1029
      %v1031 = vpop.f32.mrb[0].mxu0
      %1032 = vmatprep.mubr.f32.mxu0 0.0
      %1033 = vmatmul.mubr.f32.gmra.mrb[0].mxu0 %v911
      %v1034 = vpop.f32.mrb[0].mxu0
      %v1035 = vadd.f32 %v892, %v1034
      %v1036 = vpop.f32.mrb[0].mxu0
      %1037 = vmatprep.mubr.f32.mxu0 0.0
      %1038 = vmatmul.mubr.f32.gmra.mrb[0].mxu0 %v914
      %v1039 = vpop.f32.mrb[0].mxu0
      %v1040 = vadd.f32 %v892, %v1039
      %v1041 = vpop.f32.mrb[0].mxu0
      %1042 = vmatprep.mubr.f32.mxu0 0.0
      %1043 = vmatmul.mubr.f32.gmra.mrb[0].mxu0 %v917
      %v1044 = vpop.f32.mrb[0].mxu0
      %v1045 = vadd.f32 %v892, %v1044
      %v1046 = vpop.f32.mrb[0].mxu0
      %1047 = vmatprep.mubr.f32.mxu0 0.0
      %1048 = vmatmul.mubr.f32.gmra.mrb[0].mxu0 %v920
      %v1049 = vpop.f32.mrb[0].mxu0
      %v1050 = vadd.f32 %v892, %v1049
      %v1051 = vpop.f32.mrb[0].mxu0
      %1052 = vmatprep.mubr.f32.mxu0 0.0
      %1053 = vmatmul.mubr.f32.gmra.mrb[0].mxu0 %v923
      %v1054 = vpop.f32.mrb[0].mxu0
      %v1055 = vadd.f32 %v892, %v1054
      %v1056 = vpop.f32.mrb[0].mxu0
      %1057 = vmatprep.mubr.f32.mxu0 0.0
      %1058 = vmatmul.mubr.f32.gmra.mrb[0].mxu0 %v926
      %v1059 = vpop.f32.mrb[0].mxu0
      %v1060 = vadd.f32 %v892, %v1059
      %v1061 = vpop.f32.mrb[0].mxu0
      %1062 = vmatprep.mubr.f32.mxu0 0.0
      %1063 = vmatmul.mubr.f32.gmra.mrb[0].mxu0 %v929
      %v1064 = vpop.f32.mrb[0].mxu0
      %v1065 = vadd.f32 %v892, %v1064
      %v1066 = vpop.f32.mrb[0].mxu0
      %1067 = vmatprep.mubr.f32.mxu0 0.0
      %1068 = vmatmul.mubr.f32.gmra.mrb[0].mxu0 %v932
      %v1069 = vpop.f32.mrb[0].mxu0
      %v1070 = vadd.f32 %v892, %v1069
      %v1071 = vpop.f32.mrb[0].mxu0
      %1072 = vmatprep.mubr.f32.mxu0 0.0
      %1073 = vmatmul.mubr.f32.gmra.mrb[0].mxu0 %v935
      %v1074 = vpop.f32.mrb[0].mxu0
      %v1075 = vadd.f32 %v892, %v1074
      %v1076 = vpop.f32.mrb[0].mxu0
      %1077 = vmatprep.mubr.f32.mxu0 0.0
      %1078 = vmatmul.mubr.f32.gmra.mrb[0].mxu0 %v938
      %v1079 = vpop.f32.mrb[0].mxu0
      %v1080 = vadd.f32 %v892, %v1079
      %v1081 = vpop.f32.mrb[0].mxu0
      %1082 = vmatprep.mubr.f32.mxu0 0.0
      %1083 = vmatmul.mubr.f32.gmra.mrb[0].mxu0 %v941
      %v1084 = vpop.f32.mrb[0].mxu0
      %v1085 = vadd.f32 %v892, %v1084
      %v1086 = vpop.f32.mrb[0].mxu0
      %1087 = vdwg.mxu0
      %v1088 = vmul.f32 %v1010, 100.0
      %v1089 = vmul.f32 %v1015, 100.0
      %v1090 = vmul.f32 %v1020, 100.0
      %v1091 = vmul.f32 %v1025, 100.0
      %v1092 = vmul.f32 %v1030, 100.0
      %v1093 = vmul.f32 %v1035, 100.0
      %v1094 = vmul.f32 %v1040, 100.0
      %v1095 = vmul.f32 %v1045, 100.0
      %v1096 = vmul.f32 %v1050, 100.0
      %v1097 = vmul.f32 %v1055, 100.0
      %v1098 = vmul.f32 %v1060, 100.0
      %v1099 = vmul.f32 %v1065, 100.0
      %v1100 = vmul.f32 %v1070, 100.0
      %v1101 = vmul.f32 %v1075, 100.0
      %v1102 = vmul.f32 %v1080, 100.0
      %v1103 = vmul.f32 %v1085, 100.0
      %vm1104 = vcmp.gt.f32.partialorder %v1088, 20.0
      %vm1105 = vcmp.gt.f32.partialorder %v1089, 20.0
      %vm1106 = vcmp.gt.f32.partialorder %v1090, 20.0
      %vm1107 = vcmp.gt.f32.partialorder %v1091, 20.0
      %vm1108 = vcmp.gt.f32.partialorder %v1092, 20.0
      %vm1109 = vcmp.gt.f32.partialorder %v1093, 20.0
      %vm1110 = vcmp.gt.f32.partialorder %v1094, 20.0
      %vm1111 = vcmp.gt.f32.partialorder %v1095, 20.0
      %vm1112 = vcmp.gt.f32.partialorder %v1096, 20.0
      %vm1113 = vcmp.gt.f32.partialorder %v1097, 20.0
      %vm1114 = vcmp.gt.f32.partialorder %v1098, 20.0
      %vm1115 = vcmp.gt.f32.partialorder %v1099, 20.0
      %vm1116 = vcmp.gt.f32.partialorder %v1100, 20.0
      %vm1117 = vcmp.gt.f32.partialorder %v1101, 20.0
      %vm1118 = vcmp.gt.f32.partialorder %v1102, 20.0
      %vm1119 = vcmp.gt.f32.partialorder %v1103, 20.0
      %v1120 = vmul.f32 %v1088, 1.442695
      %v1121 = vpow.pop %v1120
      %v1122 = vmul.f32 %v1089, 1.442695
      %v1123 = vpow.pop %v1122
      %v1124 = vmul.f32 %v1090, 1.442695
      %v1125 = vpow.pop %v1124
      %v1126 = vmul.f32 %v1091, 1.442695
      %v1127 = vpow.pop %v1126
      %v1128 = vmul.f32 %v1092, 1.442695
      %v1129 = vpow.pop %v1128
      %v1130 = vmul.f32 %v1093, 1.442695
      %v1131 = vpow.pop %v1130
      %v1132 = vmul.f32 %v1094, 1.442695
      %v1133 = vpow.pop %v1132
      %v1134 = vmul.f32 %v1095, 1.442695
      %v1135 = vpow.pop %v1134
      %v1136 = vmul.f32 %v1096, 1.442695
      %v1137 = vpow.pop %v1136
      %v1138 = vmul.f32 %v1097, 1.442695
      %v1139 = vpow.pop %v1138
      %v1140 = vmul.f32 %v1098, 1.442695
      %v1141 = vpow.pop %v1140
      %v1142 = vmul.f32 %v1099, 1.442695
      %v1143 = vpow.pop %v1142
      %v1144 = vmul.f32 %v1100, 1.442695
      %v1145 = vpow.pop %v1144
      %v1146 = vmul.f32 %v1101, 1.442695
      %v1147 = vpow.pop %v1146
      %v1148 = vmul.f32 %v1102, 1.442695
      %v1149 = vpow.pop %v1148
      %v1150 = vmul.f32 %v1103, 1.442695
      %v1151 = vpow.pop %v1150
      %v1152 = vadd.f32 %v1121, 1.0
      %v1153 = vlog2.pop %v1152
      %v1154 = vmul.f32 %v1153, 0.6931472
      %v1155 = vmul.f32 -0.5, %v1121
      %v1156 = vadd.f32 %v1155, 1.0
      %v1157 = vmul.f32 %v1156, %v1121
      %v1158 = vand.u32 2147483647, %v1121
      %vm1159 = vcmp.lt.f32.partialorder %v1158, 0.0004427343
      %v1160 = vsel %vm1159, %v1157, %v1154
      %v1161 = vadd.f32 %v1123, 1.0
      %v1162 = vlog2.pop %v1161
      %v1163 = vmul.f32 %v1162, 0.6931472
      %v1164 = vmul.f32 -0.5, %v1123
      %v1165 = vadd.f32 %v1164, 1.0
      %v1166 = vmul.f32 %v1165, %v1123
      %v1167 = vand.u32 2147483647, %v1123
      %vm1168 = vcmp.lt.f32.partialorder %v1167, 0.0004427343
      %v1169 = vsel %vm1168, %v1166, %v1163
      %v1170 = vadd.f32 %v1125, 1.0
      %v1171 = vlog2.pop %v1170
      %v1172 = vmul.f32 %v1171, 0.6931472
      %v1173 = vmul.f32 -0.5, %v1125
      %v1174 = vadd.f32 %v1173, 1.0
      %v1175 = vmul.f32 %v1174, %v1125
      %v1176 = vand.u32 2147483647, %v1125
      %vm1177 = vcmp.lt.f32.partialorder %v1176, 0.0004427343
      %v1178 = vsel %vm1177, %v1175, %v1172
      %v1179 = vadd.f32 %v1127, 1.0
      %v1180 = vlog2.pop %v1179
      %v1181 = vmul.f32 %v1180, 0.6931472
      %v1182 = vmul.f32 -0.5, %v1127
      %v1183 = vadd.f32 %v1182, 1.0
      %v1184 = vmul.f32 %v1183, %v1127
      %v1185 = vand.u32 2147483647, %v1127
      %vm1186 = vcmp.lt.f32.partialorder %v1185, 0.0004427343
      %v1187 = vsel %vm1186, %v1184, %v1181
      %v1188 = vadd.f32 %v1129, 1.0
      %v1189 = vlog2.pop %v1188
      %v1190 = vmul.f32 %v1189, 0.6931472
      %v1191 = vmul.f32 -0.5, %v1129
      %v1192 = vadd.f32 %v1191, 1.0
      %v1193 = vmul.f32 %v1192, %v1129
      %v1194 = vand.u32 2147483647, %v1129
      %vm1195 = vcmp.lt.f32.partialorder %v1194, 0.0004427343
      %v1196 = vsel %vm1195, %v1193, %v1190
      %v1197 = vadd.f32 %v1131, 1.0
      %v1198 = vlog2.pop %v1197
      %v1199 = vmul.f32 %v1198, 0.6931472
      %v1200 = vmul.f32 -0.5, %v1131
      %v1201 = vadd.f32 %v1200, 1.0
      %v1202 = vmul.f32 %v1201, %v1131
      %v1203 = vand.u32 2147483647, %v1131
      %vm1204 = vcmp.lt.f32.partialorder %v1203, 0.0004427343
      %v1205 = vsel %vm1204, %v1202, %v1199
      %v1206 = vadd.f32 %v1133, 1.0
      %v1207 = vlog2.pop %v1206
      %v1208 = vmul.f32 %v1207, 0.6931472
      %v1209 = vmul.f32 -0.5, %v1133
      %v1210 = vadd.f32 %v1209, 1.0
      %v1211 = vmul.f32 %v1210, %v1133
      %v1212 = vand.u32 2147483647, %v1133
      %vm1213 = vcmp.lt.f32.partialorder %v1212, 0.0004427343
      %v1214 = vsel %vm1213, %v1211, %v1208
      %v1215 = vadd.f32 %v1135, 1.0
      %v1216 = vlog2.pop %v1215
      %v1217 = vmul.f32 %v1216, 0.6931472
      %v1218 = vmul.f32 -0.5, %v1135
      %v1219 = vadd.f32 %v1218, 1.0
      %v1220 = vmul.f32 %v1219, %v1135
      %v1221 = vand.u32 2147483647, %v1135
      %vm1222 = vcmp.lt.f32.partialorder %v1221, 0.0004427343
      %v1223 = vsel %vm1222, %v1220, %v1217
      %v1224 = vadd.f32 %v1137, 1.0
      %v1225 = vlog2.pop %v1224
      %v1226 = vmul.f32 %v1225, 0.6931472
      %v1227 = vmul.f32 -0.5, %v1137
      %v1228 = vadd.f32 %v1227, 1.0
      %v1229 = vmul.f32 %v1228, %v1137
      %v1230 = vand.u32 2147483647, %v1137
      %vm1231 = vcmp.lt.f32.partialorder %v1230, 0.0004427343
      %v1232 = vsel %vm1231, %v1229, %v1226
      %v1233 = vadd.f32 %v1139, 1.0
      %v1234 = vlog2.pop %v1233
      %v1235 = vmul.f32 %v1234, 0.6931472
      %v1236 = vmul.f32 -0.5, %v1139
      %v1237 = vadd.f32 %v1236, 1.0
      %v1238 = vmul.f32 %v1237, %v1139
      %v1239 = vand.u32 2147483647, %v1139
      %vm1240 = vcmp.lt.f32.partialorder %v1239, 0.0004427343
      %v1241 = vsel %vm1240, %v1238, %v1235
      %v1242 = vadd.f32 %v1141, 1.0
      %v1243 = vlog2.pop %v1242
      %v1244 = vmul.f32 %v1243, 0.6931472
      %v1245 = vmul.f32 -0.5, %v1141
      %v1246 = vadd.f32 %v1245, 1.0
      %v1247 = vmul.f32 %v1246, %v1141
      %v1248 = vand.u32 2147483647, %v1141
      %vm1249 = vcmp.lt.f32.partialorder %v1248, 0.0004427343
      %v1250 = vsel %vm1249, %v1247, %v1244
      %v1251 = vadd.f32 %v1143, 1.0
      %v1252 = vlog2.pop %v1251
      %v1253 = vmul.f32 %v1252, 0.6931472
      %v1254 = vmul.f32 -0.5, %v1143
      %v1255 = vadd.f32 %v1254, 1.0
      %v1256 = vmul.f32 %v1255, %v1143
      %v1257 = vand.u32 2147483647, %v1143
      %vm1258 = vcmp.lt.f32.partialorder %v1257, 0.0004427343
      %v1259 = vsel %vm1258, %v1256, %v1253
      %v1260 = vadd.f32 %v1145, 1.0
      %v1261 = vlog2.pop %v1260
      %v1262 = vmul.f32 %v1261, 0.6931472
      %v1263 = vmul.f32 -0.5, %v1145
      %v1264 = vadd.f32 %v1263, 1.0
      %v1265 = vmul.f32 %v1264, %v1145
      %v1266 = vand.u32 2147483647, %v1145
      %vm1267 = vcmp.lt.f32.partialorder %v1266, 0.0004427343
      %v1268 = vsel %vm1267, %v1265, %v1262
      %v1269 = vadd.f32 %v1147, 1.0
      %v1270 = vlog2.pop %v1269
      %v1271 = vmul.f32 %v1270, 0.6931472
      %v1272 = vmul.f32 -0.5, %v1147
      %v1273 = vadd.f32 %v1272, 1.0
      %v1274 = vmul.f32 %v1273, %v1147
      %v1275 = vand.u32 2147483647, %v1147
      %vm1276 = vcmp.lt.f32.partialorder %v1275, 0.0004427343
      %v1277 = vsel %vm1276, %v1274, %v1271
      %v1278 = vadd.f32 %v1149, 1.0
      %v1279 = vlog2.pop %v1278
      %v1280 = vmul.f32 %v1279, 0.6931472
      %v1281 = vmul.f32 -0.5, %v1149
      %v1282 = vadd.f32 %v1281, 1.0
      %v1283 = vmul.f32 %v1282, %v1149
      %v1284 = vand.u32 2147483647, %v1149
      %vm1285 = vcmp.lt.f32.partialorder %v1284, 0.0004427343
      %v1286 = vsel %vm1285, %v1283, %v1280
      %v1287 = vadd.f32 %v1151, 1.0
      %v1288 = vlog2.pop %v1287
      %v1289 = vmul.f32 %v1288, 0.6931472
      %v1290 = vmul.f32 -0.5, %v1151
      %v1291 = vadd.f32 %v1290, 1.0
      %v1292 = vmul.f32 %v1291, %v1151
      %v1293 = vand.u32 2147483647, %v1151
      %vm1294 = vcmp.lt.f32.partialorder %v1293, 0.0004427343
      %v1295 = vsel %vm1294, %v1292, %v1289
      %v1296 = vmul.f32 %v1160, 0.01
      %v1297 = vmul.f32 %v1169, 0.01
      %v1298 = vmul.f32 %v1178, 0.01
      %v1299 = vmul.f32 %v1187, 0.01
      %v1300 = vmul.f32 %v1196, 0.01
      %v1301 = vmul.f32 %v1205, 0.01
      %v1302 = vmul.f32 %v1214, 0.01
      %v1303 = vmul.f32 %v1223, 0.01
      %v1304 = vmul.f32 %v1232, 0.01
      %v1305 = vmul.f32 %v1241, 0.01
      %v1306 = vmul.f32 %v1250, 0.01
      %v1307 = vmul.f32 %v1259, 0.01
      %v1308 = vmul.f32 %v1268, 0.01
      %v1309 = vmul.f32 %v1277, 0.01
      %v1310 = vmul.f32 %v1286, 0.01
      %v1311 = vmul.f32 %v1295, 0.01
      %v1312 = vsel %vm1104, %v1010, %v1296
      %v1313 = vsel %vm1105, %v1015, %v1297
      %v1314 = vsel %vm1106, %v1020, %v1298
      %v1315 = vsel %vm1107, %v1025, %v1299
      %v1316 = vsel %vm1108, %v1030, %v1300
      %v1317 = vsel %vm1109, %v1035, %v1301
      %v1318 = vsel %vm1110, %v1040, %v1302
      %v1319 = vsel %vm1111, %v1045, %v1303
      %v1320 = vsel %vm1112, %v1050, %v1304
      %v1321 = vsel %vm1113, %v1055, %v1305
      %v1322 = vsel %vm1114, %v1060, %v1306
      %v1323 = vsel %vm1115, %v1065, %v1307
      %v1324 = vsel %vm1116, %v1070, %v1308
      %v1325 = vsel %vm1117, %v1075, %v1309
      %v1326 = vsel %vm1118, %v1080, %v1310
      %v1327 = vsel %vm1119, %v1085, %v1311
      %v1328 = vld [vmem:[%s5] sm:$0xff]
      %v1329 = vld [vmem:[%s5 + $0x8] sm:$0xff]
      %v1330 = vld [vmem:[%s5 + $0x10] sm:$0xff]
      %v1331 = vld [vmem:[%s5 + $0x18] sm:$0xff]
      %v1332 = vld [vmem:[%s5 + $0x20] sm:$0xff]
      %v1333 = vld [vmem:[%s5 + $0x28] sm:$0xff]
      %v1334 = vld [vmem:[%s5 + $0x30] sm:$0xff]
      %v1335 = vld [vmem:[%s5 + $0x38] sm:$0xff]
      %v1336 = vld [vmem:[%s6] sm:$0x7]
      %v1338 = vsel %vm490, %v1336, 0
      %1340 = vmatprep.subr.mxu0 0.0
      %1341 = vmatpush1.msra.mxu0 %v1338
      %1342 = vmatprep.subr.mxu0 0.0
      %1343 = vmatpush1.msra.mxu0 0.0
      %1344 = vmatprep.subr.mxu0 0.0
      %1345 = vmatpush1.msra.mxu0 0.0
      %1346 = vmatprep.subr.mxu0 0.0
      %1347 = vmatpush1.msra.mxu0 0.0
      %1348 = vmatprep.subr.mxu0 0.0
      %1349 = vmatpush1.msra.mxu0 0.0
      %1350 = vmatprep.subr.mxu0 0.0
      %1351 = vmatpush1.msra.mxu0 0.0
      %1352 = vmatprep.subr.mxu0 0.0
      %1353 = vmatpush1.msra.mxu0 0.0
      %1354 = vmatprep.subr.mxu0 0.0
      %1355 = vmatpush1.msra.mxu0 0.0
      %1356 = vmatprep.subr.mxu0 0.0
      %1357 = vmatpush1.msra.mxu0 0.0
      %1358 = vmatprep.subr.mxu0 0.0
      %1359 = vmatpush1.msra.mxu0 0.0
      %1360 = vmatprep.subr.mxu0 0.0
      %1361 = vmatpush1.msra.mxu0 0.0
      %1362 = vmatprep.subr.mxu0 0.0
      %1363 = vmatpush1.msra.mxu0 0.0
      %1364 = vmatprep.subr.mxu0 0.0
      %1365 = vmatpush1.msra.mxu0 0.0
      %1366 = vmatprep.subr.mxu0 0.0
      %1367 = vmatpush1.msra.mxu0 0.0
      %1368 = vmatprep.subr.mxu0 0.0
      %1369 = vmatpush1.msra.mxu0 0.0
      %1370 = vmatprep.subr.mxu0 0.0
      %1371 = vmatpush1.msra.mxu0 0.0
      %1372 = vmatprep.subr.mxu0 0.0
      %1373 = vmatpush1.msra.mxu0 0.0
      %1374 = vmatprep.subr.mxu0 0.0
      %1375 = vmatpush1.msra.mxu0 0.0
      %1376 = vmatprep.subr.mxu0 0.0
      %1377 = vmatpush1.msra.mxu0 0.0
      %1378 = vmatprep.subr.mxu0 0.0
      %1379 = vmatpush1.msra.mxu0 0.0
      %1380 = vmatprep.subr.mxu0 0.0
      %1381 = vmatpush1.msra.mxu0 0.0
      %1382 = vmatprep.subr.mxu0 0.0
      %1383 = vmatpush1.msra.mxu0 0.0
      %1384 = vmatprep.subr.mxu0 0.0
      %1385 = vmatpush1.msra.mxu0 0.0
      %1386 = vmatprep.subr.mxu0 0.0
      %1387 = vmatpush1.msra.mxu0 0.0
      %1388 = vmatprep.subr.mxu0 0.0
      %1389 = vmatpush1.msra.mxu0 0.0
      %1390 = vmatprep.subr.mxu0 0.0
      %1391 = vmatpush1.msra.mxu0 0.0
      %1392 = vmatprep.subr.mxu0 0.0
      %1393 = vmatpush1.msra.mxu0 0.0
      %1394 = vmatprep.subr.mxu0 0.0
      %1395 = vmatpush1.msra.mxu0 0.0
      %1396 = vmatprep.subr.mxu0 0.0
      %1397 = vmatpush1.msra.mxu0 0.0
      %1398 = vmatprep.subr.mxu0 0.0
      %1399 = vmatpush1.msra.mxu0 0.0
      %1400 = vmatprep.subr.mxu0 0.0
      %1401 = vmatpush1.msra.mxu0 0.0
      %1402 = vmatprep.subr.mxu0 0.0
      %1403 = vmatpush1.msra.mxu0 0.0
      %1404 = vmatprep.mubr.f32.mxu0 0.0
      %1405 = vmatmul.mubr.f32.gmra.mrb[0].mxu0 %v443
      %v1406 = vpop.f32.mrb[0].mxu0
      %v1407 = vadd.f32 0.0, %v1406
      %v1408 = vpop.f32.mrb[0].mxu0
      %1409 = vmatprep.mubr.f32.mxu0 0.0
      %1410 = vmatmul.mubr.f32.gmra.mrb[0].mxu0 %v446
      %v1411 = vpop.f32.mrb[0].mxu0
      %v1412 = vadd.f32 0.0, %v1411
      %v1413 = vpop.f32.mrb[0].mxu0
      %1414 = vmatprep.mubr.f32.mxu0 0.0
      %1415 = vmatmul.mubr.f32.gmra.mrb[0].mxu0 %v449
      %v1416 = vpop.f32.mrb[0].mxu0
      %v1417 = vadd.f32 0.0, %v1416
      %v1418 = vpop.f32.mrb[0].mxu0
      %1419 = vmatprep.mubr.f32.mxu0 0.0
      %1420 = vmatmul.mubr.f32.gmra.mrb[0].mxu0 %v452
      %v1421 = vpop.f32.mrb[0].mxu0
      %v1422 = vadd.f32 0.0, %v1421
      %v1423 = vpop.f32.mrb[0].mxu0
      %1424 = vmatprep.mubr.f32.mxu0 0.0
      %1425 = vmatmul.mubr.f32.gmra.mrb[0].mxu0 %v455
      %v1426 = vpop.f32.mrb[0].mxu0
      %v1427 = vadd.f32 0.0, %v1426
      %v1428 = vpop.f32.mrb[0].mxu0
      %1429 = vmatprep.mubr.f32.mxu0 0.0
      %1430 = vmatmul.mubr.f32.gmra.mrb[0].mxu0 %v458
      %v1431 = vpop.f32.mrb[0].mxu0
      %v1432 = vadd.f32 0.0, %v1431
      %v1433 = vpop.f32.mrb[0].mxu0
      %1434 = vmatprep.mubr.f32.mxu0 0.0
      %1435 = vmatmul.mubr.f32.gmra.mrb[0].mxu0 %v461
      %v1436 = vpop.f32.mrb[0].mxu0
      %v1437 = vadd.f32 0.0, %v1436
      %v1438 = vpop.f32.mrb[0].mxu0
      %1439 = vmatprep.mubr.f32.mxu0 0.0
      %1440 = vmatmul.mubr.f32.gmra.mrb[0].mxu0 %v464
      %v1441 = vpop.f32.mrb[0].mxu0
      %v1442 = vadd.f32 0.0, %v1441
      %v1443 = vpop.f32.mrb[0].mxu0
      %1444 = vmatprep.mubr.f32.mxu0 0.0
      %1445 = vmatmul.mubr.f32.gmra.mrb[0].mxu0 %v467
      %v1446 = vpop.f32.mrb[0].mxu0
      %v1447 = vadd.f32 0.0, %v1446
      %v1448 = vpop.f32.mrb[0].mxu0
      %1449 = vmatprep.mubr.f32.mxu0 0.0
      %1450 = vmatmul.mubr.f32.gmra.mrb[0].mxu0 %v470
      %v1451 = vpop.f32.mrb[0].mxu0
      %v1452 = vadd.f32 0.0, %v1451
      %v1453 = vpop.f32.mrb[0].mxu0
      %1454 = vmatprep.mubr.f32.mxu0 0.0
      %1455 = vmatmul.mubr.f32.gmra.mrb[0].mxu0 %v473
      %v1456 = vpop.f32.mrb[0].mxu0
      %v1457 = vadd.f32 0.0, %v1456
      %v1458 = vpop.f32.mrb[0].mxu0
      %1459 = vmatprep.mubr.f32.mxu0 0.0
      %1460 = vmatmul.mubr.f32.gmra.mrb[0].mxu0 %v476
      %v1461 = vpop.f32.mrb[0].mxu0
      %v1462 = vadd.f32 0.0, %v1461
      %v1463 = vpop.f32.mrb[0].mxu0
      %1464 = vmatprep.mubr.f32.mxu0 0.0
      %1465 = vmatmul.mubr.f32.gmra.mrb[0].mxu0 %v479
      %v1466 = vpop.f32.mrb[0].mxu0
      %v1467 = vadd.f32 0.0, %v1466
      %v1468 = vpop.f32.mrb[0].mxu0
      %1469 = vmatprep.mubr.f32.mxu0 0.0
      %1470 = vmatmul.mubr.f32.gmra.mrb[0].mxu0 %v482
      %v1471 = vpop.f32.mrb[0].mxu0
      %v1472 = vadd.f32 0.0, %v1471
      %v1473 = vpop.f32.mrb[0].mxu0
      %1474 = vmatprep.mubr.f32.mxu0 0.0
      %1475 = vmatmul.mubr.f32.gmra.mrb[0].mxu0 %v485
      %v1476 = vpop.f32.mrb[0].mxu0
      %v1477 = vadd.f32 0.0, %v1476
      %v1478 = vpop.f32.mrb[0].mxu0
      %1479 = vmatprep.mubr.f32.mxu0 0.0
      %1480 = vmatmul.mubr.f32.gmra.mrb[0].mxu0 %v488
      %v1481 = vpop.f32.mrb[0].mxu0
      %v1482 = vadd.f32 0.0, %v1481
      %v1483 = vpop.f32.mrb[0].mxu0
      %1484 = vdwg.mxu0
      %v1486 = vsel %vm894, %v1312, 0
      %v1489 = vsel %vm894, %v1313, 0
      %v1492 = vsel %vm894, %v1314, 0
      %v1495 = vsel %vm894, %v1315, 0
      %v1498 = vsel %vm894, %v1316, 0
      %v1501 = vsel %vm894, %v1317, 0
      %v1504 = vsel %vm894, %v1318, 0
      %v1507 = vsel %vm894, %v1319, 0
      %v1510 = vsel %vm894, %v1320, 0
      %v1513 = vsel %vm894, %v1321, 0
      %v1516 = vsel %vm894, %v1322, 0
      %v1519 = vsel %vm894, %v1323, 0
      %v1522 = vsel %vm894, %v1324, 0
      %v1525 = vsel %vm894, %v1325, 0
      %v1528 = vsel %vm894, %v1326, 0
      %v1531 = vsel %vm894, %v1327, 0
      %1533 = vmatprep.subr.mxu0 0.0
      %1534 = vmatpush1.msra.mxu0 %v1328
      %1535 = vmatprep.subr.mxu0 0.0
      %1536 = vmatpush1.msra.mxu0 %v1329
      %1537 = vmatprep.subr.mxu0 0.0
      %1538 = vmatpush1.msra.mxu0 %v1330
      %1539 = vmatprep.subr.mxu0 0.0
      %1540 = vmatpush1.msra.mxu0 %v1331
      %1541 = vmatprep.subr.mxu0 0.0
      %1542 = vmatpush1.msra.mxu0 %v1332
      %1543 = vmatprep.subr.mxu0 0.0
      %1544 = vmatpush1.msra.mxu0 %v1333
      %1545 = vmatprep.subr.mxu0 0.0
      %1546 = vmatpush1.msra.mxu0 %v1334
      %1547 = vmatprep.subr.mxu0 0.0
      %1548 = vmatpush1.msra.mxu0 %v1335
      %1549 = vmatprep.subr.mxu0 0.0
      %1550 = vmatpush1.msra.mxu0 0.0
      %1551 = vmatprep.subr.mxu0 0.0
      %1552 = vmatpush1.msra.mxu0 0.0
      %1553 = vmatprep.subr.mxu0 0.0
      %1554 = vmatpush1.msra.mxu0 0.0
      %1555 = vmatprep.subr.mxu0 0.0
      %1556 = vmatpush1.msra.mxu0 0.0
      %1557 = vmatprep.subr.mxu0 0.0
      %1558 = vmatpush1.msra.mxu0 0.0
      %1559 = vmatprep.subr.mxu0 0.0
      %1560 = vmatpush1.msra.mxu0 0.0
      %1561 = vmatprep.subr.mxu0 0.0
      %1562 = vmatpush1.msra.mxu0 0.0
      %1563 = vmatprep.subr.mxu0 0.0
      %1564 = vmatpush1.msra.mxu0 0.0
      %1565 = vmatprep.subr.mxu0 0.0
      %1566 = vmatpush1.msra.mxu0 0.0
      %1567 = vmatprep.subr.mxu0 0.0
      %1568 = vmatpush1.msra.mxu0 0.0
      %1569 = vmatprep.subr.mxu0 0.0
      %1570 = vmatpush1.msra.mxu0 0.0
      %1571 = vmatprep.subr.mxu0 0.0
      %1572 = vmatpush1.msra.mxu0 0.0
      %1573 = vmatprep.subr.mxu0 0.0
      %1574 = vmatpush1.msra.mxu0 0.0
      %1575 = vmatprep.subr.mxu0 0.0
      %1576 = vmatpush1.msra.mxu0 0.0
      %1577 = vmatprep.subr.mxu0 0.0
      %1578 = vmatpush1.msra.mxu0 0.0
      %1579 = vmatprep.subr.mxu0 0.0
      %1580 = vmatpush1.msra.mxu0 0.0
      %1581 = vmatprep.subr.mxu0 0.0
      %1582 = vmatpush1.msra.mxu0 0.0
      %1583 = vmatprep.subr.mxu0 0.0
      %1584 = vmatpush1.msra.mxu0 0.0
      %1585 = vmatprep.subr.mxu0 0.0
      %1586 = vmatpush1.msra.mxu0 0.0
      %1587 = vmatprep.subr.mxu0 0.0
      %1588 = vmatpush1.msra.mxu0 0.0
      %1589 = vmatprep.subr.mxu0 0.0
      %1590 = vmatpush1.msra.mxu0 0.0
      %1591 = vmatprep.subr.mxu0 0.0
      %1592 = vmatpush1.msra.mxu0 0.0
      %1593 = vmatprep.subr.mxu0 0.0
      %1594 = vmatpush1.msra.mxu0 0.0
      %1595 = vmatprep.subr.mxu0 0.0
      %1596 = vmatpush1.msra.mxu0 0.0
      %1597 = vmatprep.mubr.f32.mxu0 0.0
      %1598 = vmatmul.mubr.f32.gmra.mrb[0].mxu0 %v1486
      %v1599 = vpop.f32.mrb[0].mxu0
      %v1600 = vadd.f32 %v1407, %v1599
      %v1601 = vpop.f32.mrb[0].mxu0
      %1602 = vmatprep.mubr.f32.mxu0 0.0
      %1603 = vmatmul.mubr.f32.gmra.mrb[0].mxu0 %v1489
      %v1604 = vpop.f32.mrb[0].mxu0
      %v1605 = vadd.f32 %v1412, %v1604
      %v1606 = vpop.f32.mrb[0].mxu0
      %1607 = vmatprep.mubr.f32.mxu0 0.0
      %1608 = vmatmul.mubr.f32.gmra.mrb[0].mxu0 %v1492
      %v1609 = vpop.f32.mrb[0].mxu0
      %v1610 = vadd.f32 %v1417, %v1609
      %v1611 = vpop.f32.mrb[0].mxu0
      %1612 = vmatprep.mubr.f32.mxu0 0.0
      %1613 = vmatmul.mubr.f32.gmra.mrb[0].mxu0 %v1495
      %v1614 = vpop.f32.mrb[0].mxu0
      %v1615 = vadd.f32 %v1422, %v1614
      %v1616 = vpop.f32.mrb[0].mxu0
      %1617 = vmatprep.mubr.f32.mxu0 0.0
      %1618 = vmatmul.mubr.f32.gmra.mrb[0].mxu0 %v1498
      %v1619 = vpop.f32.mrb[0].mxu0
      %v1620 = vadd.f32 %v1427, %v1619
      %v1621 = vpop.f32.mrb[0].mxu0
      %1622 = vmatprep.mubr.f32.mxu0 0.0
      %1623 = vmatmul.mubr.f32.gmra.mrb[0].mxu0 %v1501
      %v1624 = vpop.f32.mrb[0].mxu0
      %v1625 = vadd.f32 %v1432, %v1624
      %v1626 = vpop.f32.mrb[0].mxu0
      %1627 = vmatprep.mubr.f32.mxu0 0.0
      %1628 = vmatmul.mubr.f32.gmra.mrb[0].mxu0 %v1504
      %v1629 = vpop.f32.mrb[0].mxu0
      %v1630 = vadd.f32 %v1437, %v1629
      %v1631 = vpop.f32.mrb[0].mxu0
      %1632 = vmatprep.mubr.f32.mxu0 0.0
      %1633 = vmatmul.mubr.f32.gmra.mrb[0].mxu0 %v1507
      %v1634 = vpop.f32.mrb[0].mxu0
      %v1635 = vadd.f32 %v1442, %v1634
      %v1636 = vpop.f32.mrb[0].mxu0
      %1637 = vmatprep.mubr.f32.mxu0 0.0
      %1638 = vmatmul.mubr.f32.gmra.mrb[0].mxu0 %v1510
      %v1639 = vpop.f32.mrb[0].mxu0
      %v1640 = vadd.f32 %v1447, %v1639
      %v1641 = vpop.f32.mrb[0].mxu0
      %1642 = vmatprep.mubr.f32.mxu0 0.0
      %1643 = vmatmul.mubr.f32.gmra.mrb[0].mxu0 %v1513
      %v1644 = vpop.f32.mrb[0].mxu0
      %v1645 = vadd.f32 %v1452, %v1644
      %v1646 = vpop.f32.mrb[0].mxu0
      %1647 = vmatprep.mubr.f32.mxu0 0.0
      %1648 = vmatmul.mubr.f32.gmra.mrb[0].mxu0 %v1516
      %v1649 = vpop.f32.mrb[0].mxu0
      %v1650 = vadd.f32 %v1457, %v1649
      %v1651 = vpop.f32.mrb[0].mxu0
      %1652 = vmatprep.mubr.f32.mxu0 0.0
      %1653 = vmatmul.mubr.f32.gmra.mrb[0].mxu0 %v1519
      %v1654 = vpop.f32.mrb[0].mxu0
      %v1655 = vadd.f32 %v1462, %v1654
      %v1656 = vpop.f32.mrb[0].mxu0
      %1657 = vmatprep.mubr.f32.mxu0 0.0
      %1658 = vmatmul.mubr.f32.gmra.mrb[0].mxu0 %v1522
      %v1659 = vpop.f32.mrb[0].mxu0
      %v1660 = vadd.f32 %v1467, %v1659
      %v1661 = vpop.f32.mrb[0].mxu0
      %1662 = vmatprep.mubr.f32.mxu0 0.0
      %1663 = vmatmul.mubr.f32.gmra.mrb[0].mxu0 %v1525
      %v1664 = vpop.f32.mrb[0].mxu0
      %v1665 = vadd.f32 %v1472, %v1664
      %v1666 = vpop.f32.mrb[0].mxu0
      %1667 = vmatprep.mubr.f32.mxu0 0.0
      %1668 = vmatmul.mubr.f32.gmra.mrb[0].mxu0 %v1528
      %v1669 = vpop.f32.mrb[0].mxu0
      %v1670 = vadd.f32 %v1477, %v1669
      %v1671 = vpop.f32.mrb[0].mxu0
      %1672 = vmatprep.mubr.f32.mxu0 0.0
      %1673 = vmatmul.mubr.f32.gmra.mrb[0].mxu0 %v1531
      %v1674 = vpop.f32.mrb[0].mxu0
      %v1675 = vadd.f32 %v1482, %v1674
      %v1676 = vpop.f32.mrb[0].mxu0
      %1677 = vdwg.mxu0
      %v1678 = vmul.f32 %v1600, 0.70710677
      %v1679 = vmul.f32 %v1605, 0.70710677
      %v1680 = vmul.f32 %v1610, 0.70710677
      %v1681 = vmul.f32 %v1615, 0.70710677
      %v1682 = vmul.f32 %v1620, 0.70710677
      %v1683 = vmul.f32 %v1625, 0.70710677
      %v1684 = vmul.f32 %v1630, 0.70710677
      %v1685 = vmul.f32 %v1635, 0.70710677
      %v1686 = vmul.f32 %v1640, 0.70710677
      %v1687 = vmul.f32 %v1645, 0.70710677
      %v1688 = vmul.f32 %v1650, 0.70710677
      %v1689 = vmul.f32 %v1655, 0.70710677
      %v1690 = vmul.f32 %v1660, 0.70710677
      %v1691 = vmul.f32 %v1665, 0.70710677
      %v1692 = vmul.f32 %v1670, 0.70710677
      %v1693 = vmul.f32 %v1675, 0.70710677
      %v1694 = vld [vmem:[%s7] sm:$0x1]
      %v1696 = vlaneseq
      %v1697 = vshrl.u32 %v1696, 7
      %v1698 = vsub.s32 0, %v1697
      %v1699 = vrot.slane %v1694, %v1698
      %v1701 = vadd.f32 %v1678, %v1699
      %v1702 = vadd.f32 %v1679, %v1699
      %v1703 = vadd.f32 %v1680, %v1699
      %v1704 = vadd.f32 %v1681, %v1699
      %v1705 = vadd.f32 %v1682, %v1699
      %v1706 = vadd.f32 %v1683, %v1699
      %v1707 = vadd.f32 %v1684, %v1699
      %v1708 = vadd.f32 %v1685, %v1699
      %v1709 = vadd.f32 %v1686, %v1699
      %v1710 = vadd.f32 %v1687, %v1699
      %v1711 = vadd.f32 %v1688, %v1699
      %v1712 = vadd.f32 %v1689, %v1699
      %v1713 = vadd.f32 %v1690, %v1699
      %v1714 = vadd.f32 %v1691, %v1699
      %v1715 = vadd.f32 %v1692, %v1699
      %v1716 = vadd.f32 %v1693, %v1699
      %v1717 = vmul.f32 %v1701, 100.0
      %v1718 = vmul.f32 %v1702, 100.0
      %v1719 = vmul.f32 %v1703, 100.0
      %v1720 = vmul.f32 %v1704, 100.0
      %v1721 = vmul.f32 %v1705, 100.0
      %v1722 = vmul.f32 %v1706, 100.0
      %v1723 = vmul.f32 %v1707, 100.0
      %v1724 = vmul.f32 %v1708, 100.0
      %v1725 = vmul.f32 %v1709, 100.0
      %v1726 = vmul.f32 %v1710, 100.0
      %v1727 = vmul.f32 %v1711, 100.0
      %v1728 = vmul.f32 %v1712, 100.0
      %v1729 = vmul.f32 %v1713, 100.0
      %v1730 = vmul.f32 %v1714, 100.0
      %v1731 = vmul.f32 %v1715, 100.0
      %v1732 = vmul.f32 %v1716, 100.0
      %vm1733 = vcmp.gt.f32.partialorder %v1717, 20.0
      %vm1734 = vcmp.gt.f32.partialorder %v1718, 20.0
      %vm1735 = vcmp.gt.f32.partialorder %v1719, 20.0
      %vm1736 = vcmp.gt.f32.partialorder %v1720, 20.0
      %vm1737 = vcmp.gt.f32.partialorder %v1721, 20.0
      %vm1738 = vcmp.gt.f32.partialorder %v1722, 20.0
      %vm1739 = vcmp.gt.f32.partialorder %v1723, 20.0
      %vm1740 = vcmp.gt.f32.partialorder %v1724, 20.0
      %vm1741 = vcmp.gt.f32.partialorder %v1725, 20.0
      %vm1742 = vcmp.gt.f32.partialorder %v1726, 20.0
      %vm1743 = vcmp.gt.f32.partialorder %v1727, 20.0
      %vm1744 = vcmp.gt.f32.partialorder %v1728, 20.0
      %vm1745 = vcmp.gt.f32.partialorder %v1729, 20.0
      %vm1746 = vcmp.gt.f32.partialorder %v1730, 20.0
      %vm1747 = vcmp.gt.f32.partialorder %v1731, 20.0
      %vm1748 = vcmp.gt.f32.partialorder %v1732, 20.0
      %v1749 = vmul.f32 %v1717, 1.442695
      %v1750 = vpow.pop %v1749
      %v1751 = vmul.f32 %v1718, 1.442695
      %v1752 = vpow.pop %v1751
      %v1753 = vmul.f32 %v1719, 1.442695
      %v1754 = vpow.pop %v1753
      %v1755 = vmul.f32 %v1720, 1.442695
      %v1756 = vpow.pop %v1755
      %v1757 = vmul.f32 %v1721, 1.442695
      %v1758 = vpow.pop %v1757
      %v1759 = vmul.f32 %v1722, 1.442695
      %v1760 = vpow.pop %v1759
      %v1761 = vmul.f32 %v1723, 1.442695
      %v1762 = vpow.pop %v1761
      %v1763 = vmul.f32 %v1724, 1.442695
      %v1764 = vpow.pop %v1763
      %v1765 = vmul.f32 %v1725, 1.442695
      %v1766 = vpow.pop %v1765
      %v1767 = vmul.f32 %v1726, 1.442695
      %v1768 = vpow.pop %v1767
      %v1769 = vmul.f32 %v1727, 1.442695
      %v1770 = vpow.pop %v1769
      %v1771 = vmul.f32 %v1728, 1.442695
      %v1772 = vpow.pop %v1771
      %v1773 = vmul.f32 %v1729, 1.442695
      %v1774 = vpow.pop %v1773
      %v1775 = vmul.f32 %v1730, 1.442695
      %v1776 = vpow.pop %v1775
      %v1777 = vmul.f32 %v1731, 1.442695
      %v1778 = vpow.pop %v1777
      %v1779 = vmul.f32 %v1732, 1.442695
      %v1780 = vpow.pop %v1779
      %v1781 = vadd.f32 %v1750, 1.0
      %v1782 = vlog2.pop %v1781
      %v1783 = vmul.f32 %v1782, 0.6931472
      %v1784 = vmul.f32 -0.5, %v1750
      %v1785 = vadd.f32 %v1784, 1.0
      %v1786 = vmul.f32 %v1785, %v1750
      %v1787 = vand.u32 2147483647, %v1750
      %vm1788 = vcmp.lt.f32.partialorder %v1787, 0.0004427343
      %v1789 = vsel %vm1788, %v1786, %v1783
      %v1790 = vadd.f32 %v1752, 1.0
      %v1791 = vlog2.pop %v1790
      %v1792 = vmul.f32 %v1791, 0.6931472
      %v1793 = vmul.f32 -0.5, %v1752
      %v1794 = vadd.f32 %v1793, 1.0
      %v1795 = vmul.f32 %v1794, %v1752
      %v1796 = vand.u32 2147483647, %v1752
      %vm1797 = vcmp.lt.f32.partialorder %v1796, 0.0004427343
      %v1798 = vsel %vm1797, %v1795, %v1792
      %v1799 = vadd.f32 %v1754, 1.0
      %v1800 = vlog2.pop %v1799
      %v1801 = vmul.f32 %v1800, 0.6931472
      %v1802 = vmul.f32 -0.5, %v1754
      %v1803 = vadd.f32 %v1802, 1.0
      %v1804 = vmul.f32 %v1803, %v1754
      %v1805 = vand.u32 2147483647, %v1754
      %vm1806 = vcmp.lt.f32.partialorder %v1805, 0.0004427343
      %v1807 = vsel %vm1806, %v1804, %v1801
      %v1808 = vadd.f32 %v1756, 1.0
      %v1809 = vlog2.pop %v1808
      %v1810 = vmul.f32 %v1809, 0.6931472
      %v1811 = vmul.f32 -0.5, %v1756
      %v1812 = vadd.f32 %v1811, 1.0
      %v1813 = vmul.f32 %v1812, %v1756
      %v1814 = vand.u32 2147483647, %v1756
      %vm1815 = vcmp.lt.f32.partialorder %v1814, 0.0004427343
      %v1816 = vsel %vm1815, %v1813, %v1810
      %v1817 = vadd.f32 %v1758, 1.0
      %v1818 = vlog2.pop %v1817
      %v1819 = vmul.f32 %v1818, 0.6931472
      %v1820 = vmul.f32 -0.5, %v1758
      %v1821 = vadd.f32 %v1820, 1.0
      %v1822 = vmul.f32 %v1821, %v1758
      %v1823 = vand.u32 2147483647, %v1758
      %vm1824 = vcmp.lt.f32.partialorder %v1823, 0.0004427343
      %v1825 = vsel %vm1824, %v1822, %v1819
      %v1826 = vadd.f32 %v1760, 1.0
      %v1827 = vlog2.pop %v1826
      %v1828 = vmul.f32 %v1827, 0.6931472
      %v1829 = vmul.f32 -0.5, %v1760
      %v1830 = vadd.f32 %v1829, 1.0
      %v1831 = vmul.f32 %v1830, %v1760
      %v1832 = vand.u32 2147483647, %v1760
      %vm1833 = vcmp.lt.f32.partialorder %v1832, 0.0004427343
      %v1834 = vsel %vm1833, %v1831, %v1828
      %v1835 = vadd.f32 %v1762, 1.0
      %v1836 = vlog2.pop %v1835
      %v1837 = vmul.f32 %v1836, 0.6931472
      %v1838 = vmul.f32 -0.5, %v1762
      %v1839 = vadd.f32 %v1838, 1.0
      %v1840 = vmul.f32 %v1839, %v1762
      %v1841 = vand.u32 2147483647, %v1762
      %vm1842 = vcmp.lt.f32.partialorder %v1841, 0.0004427343
      %v1843 = vsel %vm1842, %v1840, %v1837
      %v1844 = vadd.f32 %v1764, 1.0
      %v1845 = vlog2.pop %v1844
      %v1846 = vmul.f32 %v1845, 0.6931472
      %v1847 = vmul.f32 -0.5, %v1764
      %v1848 = vadd.f32 %v1847, 1.0
      %v1849 = vmul.f32 %v1848, %v1764
      %v1850 = vand.u32 2147483647, %v1764
      %vm1851 = vcmp.lt.f32.partialorder %v1850, 0.0004427343
      %v1852 = vsel %vm1851, %v1849, %v1846
      %v1853 = vadd.f32 %v1766, 1.0
      %v1854 = vlog2.pop %v1853
      %v1855 = vmul.f32 %v1854, 0.6931472
      %v1856 = vmul.f32 -0.5, %v1766
      %v1857 = vadd.f32 %v1856, 1.0
      %v1858 = vmul.f32 %v1857, %v1766
      %v1859 = vand.u32 2147483647, %v1766
      %vm1860 = vcmp.lt.f32.partialorder %v1859, 0.0004427343
      %v1861 = vsel %vm1860, %v1858, %v1855
      %v1862 = vadd.f32 %v1768, 1.0
      %v1863 = vlog2.pop %v1862
      %v1864 = vmul.f32 %v1863, 0.6931472
      %v1865 = vmul.f32 -0.5, %v1768
      %v1866 = vadd.f32 %v1865, 1.0
      %v1867 = vmul.f32 %v1866, %v1768
      %v1868 = vand.u32 2147483647, %v1768
      %vm1869 = vcmp.lt.f32.partialorder %v1868, 0.0004427343
      %v1870 = vsel %vm1869, %v1867, %v1864
      %v1871 = vadd.f32 %v1770, 1.0
      %v1872 = vlog2.pop %v1871
      %v1873 = vmul.f32 %v1872, 0.6931472
      %v1874 = vmul.f32 -0.5, %v1770
      %v1875 = vadd.f32 %v1874, 1.0
      %v1876 = vmul.f32 %v1875, %v1770
      %v1877 = vand.u32 2147483647, %v1770
      %vm1878 = vcmp.lt.f32.partialorder %v1877, 0.0004427343
      %v1879 = vsel %vm1878, %v1876, %v1873
      %v1880 = vadd.f32 %v1772, 1.0
      %v1881 = vlog2.pop %v1880
      %v1882 = vmul.f32 %v1881, 0.6931472
      %v1883 = vmul.f32 -0.5, %v1772
      %v1884 = vadd.f32 %v1883, 1.0
      %v1885 = vmul.f32 %v1884, %v1772
      %v1886 = vand.u32 2147483647, %v1772
      %vm1887 = vcmp.lt.f32.partialorder %v1886, 0.0004427343
      %v1888 = vsel %vm1887, %v1885, %v1882
      %v1889 = vadd.f32 %v1774, 1.0
      %v1890 = vlog2.pop %v1889
      %v1891 = vmul.f32 %v1890, 0.6931472
      %v1892 = vmul.f32 -0.5, %v1774
      %v1893 = vadd.f32 %v1892, 1.0
      %v1894 = vmul.f32 %v1893, %v1774
      %v1895 = vand.u32 2147483647, %v1774
      %vm1896 = vcmp.lt.f32.partialorder %v1895, 0.0004427343
      %v1897 = vsel %vm1896, %v1894, %v1891
      %v1898 = vadd.f32 %v1776, 1.0
      %v1899 = vlog2.pop %v1898
      %v1900 = vmul.f32 %v1899, 0.6931472
      %v1901 = vmul.f32 -0.5, %v1776
      %v1902 = vadd.f32 %v1901, 1.0
      %v1903 = vmul.f32 %v1902, %v1776
      %v1904 = vand.u32 2147483647, %v1776
      %vm1905 = vcmp.lt.f32.partialorder %v1904, 0.0004427343
      %v1906 = vsel %vm1905, %v1903, %v1900
      %v1907 = vadd.f32 %v1778, 1.0
      %v1908 = vlog2.pop %v1907
      %v1909 = vmul.f32 %v1908, 0.6931472
      %v1910 = vmul.f32 -0.5, %v1778
      %v1911 = vadd.f32 %v1910, 1.0
      %v1912 = vmul.f32 %v1911, %v1778
      %v1913 = vand.u32 2147483647, %v1778
      %vm1914 = vcmp.lt.f32.partialorder %v1913, 0.0004427343
      %v1915 = vsel %vm1914, %v1912, %v1909
      %v1916 = vadd.f32 %v1780, 1.0
      %v1917 = vlog2.pop %v1916
      %v1918 = vmul.f32 %v1917, 0.6931472
      %v1919 = vmul.f32 -0.5, %v1780
      %v1920 = vadd.f32 %v1919, 1.0
      %v1921 = vmul.f32 %v1920, %v1780
      %v1922 = vand.u32 2147483647, %v1780
      %vm1923 = vcmp.lt.f32.partialorder %v1922, 0.0004427343
      %v1924 = vsel %vm1923, %v1921, %v1918
      %v1925 = vmul.f32 %v1789, 0.01
      %v1926 = vmul.f32 %v1798, 0.01
      %v1927 = vmul.f32 %v1807, 0.01
      %v1928 = vmul.f32 %v1816, 0.01
      %v1929 = vmul.f32 %v1825, 0.01
      %v1930 = vmul.f32 %v1834, 0.01
      %v1931 = vmul.f32 %v1843, 0.01
      %v1932 = vmul.f32 %v1852, 0.01
      %v1933 = vmul.f32 %v1861, 0.01
      %v1934 = vmul.f32 %v1870, 0.01
      %v1935 = vmul.f32 %v1879, 0.01
      %v1936 = vmul.f32 %v1888, 0.01
      %v1937 = vmul.f32 %v1897, 0.01
      %v1938 = vmul.f32 %v1906, 0.01
      %v1939 = vmul.f32 %v1915, 0.01
      %v1940 = vmul.f32 %v1924, 0.01
      %v1941 = vsel %vm1733, %v1701, %v1925
      %v1942 = vsel %vm1734, %v1702, %v1926
      %v1943 = vsel %vm1735, %v1703, %v1927
      %v1944 = vsel %vm1736, %v1704, %v1928
      %v1945 = vsel %vm1737, %v1705, %v1929
      %v1946 = vsel %vm1738, %v1706, %v1930
      %v1947 = vsel %vm1739, %v1707, %v1931
      %v1948 = vsel %vm1740, %v1708, %v1932
      %v1949 = vsel %vm1741, %v1709, %v1933
      %v1950 = vsel %vm1742, %v1710, %v1934
      %v1951 = vsel %vm1743, %v1711, %v1935
      %v1952 = vsel %vm1744, %v1712, %v1936
      %v1953 = vsel %vm1745, %v1713, %v1937
      %v1954 = vsel %vm1746, %v1714, %v1938
      %v1955 = vsel %vm1747, %v1715, %v1939
      %v1956 = vsel %vm1748, %v1716, %v1940
      %v1957 = vld [vmem:[%s8] sm:$0xff]
      %v1958 = vld [vmem:[%s8 + $0x8] sm:$0xff]
      %v1959 = vld [vmem:[%s8 + $0x10] sm:$0xff]
      %v1960 = vld [vmem:[%s8 + $0x18] sm:$0xff]
      %v1961 = vld [vmem:[%s8 + $0x20] sm:$0xff]
      %v1962 = vld [vmem:[%s8 + $0x28] sm:$0xff]
      %v1963 = vld [vmem:[%s8 + $0x30] sm:$0xff]
      %v1964 = vld [vmem:[%s8 + $0x38] sm:$0xff]
      %v1965 = vld [vmem:[%s9] sm:$0x1]
      %v1967 = vlaneseq
      %v1968 = vshrl.u32 %v1967, 7
      %v1969 = vsub.s32 0, %v1968
      %v1970 = vrot.slane %v1965, %v1969
      %v1973 = vsel %vm894, %v1941, 0
      %v1976 = vsel %vm894, %v1942, 0
      %v1979 = vsel %vm894, %v1943, 0
      %v1982 = vsel %vm894, %v1944, 0
      %v1985 = vsel %vm894, %v1945, 0
      %v1988 = vsel %vm894, %v1946, 0
      %v1991 = vsel %vm894, %v1947, 0
      %v1994 = vsel %vm894, %v1948, 0
      %v1997 = vsel %vm894, %v1949, 0
      %v2000 = vsel %vm894, %v1950, 0
      %v2003 = vsel %vm894, %v1951, 0
      %v2006 = vsel %vm894, %v1952, 0
      %v2009 = vsel %vm894, %v1953, 0
      %v2012 = vsel %vm894, %v1954, 0
      %v2015 = vsel %vm894, %v1955, 0
      %v2018 = vsel %vm894, %v1956, 0
      %2020 = vmatprep.subr.mxu0 0.0
      %2021 = vmatpush1.msra.mxu0 %v1957
      %2022 = vmatprep.subr.mxu0 0.0
      %2023 = vmatpush1.msra.mxu0 %v1958
      %2024 = vmatprep.subr.mxu0 0.0
      %2025 = vmatpush1.msra.mxu0 %v1959
      %2026 = vmatprep.subr.mxu0 0.0
      %2027 = vmatpush1.msra.mxu0 %v1960
      %2028 = vmatprep.subr.mxu0 0.0
      %2029 = vmatpush1.msra.mxu0 %v1961
      %2030 = vmatprep.subr.mxu0 0.0
      %2031 = vmatpush1.msra.mxu0 %v1962
      %2032 = vmatprep.subr.mxu0 0.0
      %2033 = vmatpush1.msra.mxu0 %v1963
      %2034 = vmatprep.subr.mxu0 0.0
      %2035 = vmatpush1.msra.mxu0 %v1964
      %2036 = vmatprep.subr.mxu0 0.0
      %2037 = vmatpush1.msra.mxu0 0.0
      %2038 = vmatprep.subr.mxu0 0.0
      %2039 = vmatpush1.msra.mxu0 0.0
      %2040 = vmatprep.subr.mxu0 0.0
      %2041 = vmatpush1.msra.mxu0 0.0
      %2042 = vmatprep.subr.mxu0 0.0
      %2043 = vmatpush1.msra.mxu0 0.0
      %2044 = vmatprep.subr.mxu0 0.0
      %2045 = vmatpush1.msra.mxu0 0.0
      %2046 = vmatprep.subr.mxu0 0.0
      %2047 = vmatpush1.msra.mxu0 0.0
      %2048 = vmatprep.subr.mxu0 0.0
      %2049 = vmatpush1.msra.mxu0 0.0
      %2050 = vmatprep.subr.mxu0 0.0
      %2051 = vmatpush1.msra.mxu0 0.0
      %2052 = vmatprep.subr.mxu0 0.0
      %2053 = vmatpush1.msra.mxu0 0.0
      %2054 = vmatprep.subr.mxu0 0.0
      %2055 = vmatpush1.msra.mxu0 0.0
      %2056 = vmatprep.subr.mxu0 0.0
      %2057 = vmatpush1.msra.mxu0 0.0
      %2058 = vmatprep.subr.mxu0 0.0
      %2059 = vmatpush1.msra.mxu0 0.0
      %2060 = vmatprep.subr.mxu0 0.0
      %2061 = vmatpush1.msra.mxu0 0.0
      %2062 = vmatprep.subr.mxu0 0.0
      %2063 = vmatpush1.msra.mxu0 0.0
      %2064 = vmatprep.subr.mxu0 0.0
      %2065 = vmatpush1.msra.mxu0 0.0
      %2066 = vmatprep.subr.mxu0 0.0
      %2067 = vmatpush1.msra.mxu0 0.0
      %2068 = vmatprep.subr.mxu0 0.0
      %2069 = vmatpush1.msra.mxu0 0.0
      %2070 = vmatprep.subr.mxu0 0.0
      %2071 = vmatpush1.msra.mxu0 0.0
      %2072 = vmatprep.subr.mxu0 0.0
      %2073 = vmatpush1.msra.mxu0 0.0
      %2074 = vmatprep.subr.mxu0 0.0
      %2075 = vmatpush1.msra.mxu0 0.0
      %2076 = vmatprep.subr.mxu0 0.0
      %2077 = vmatpush1.msra.mxu0 0.0
      %2078 = vmatprep.subr.mxu0 0.0
      %2079 = vmatpush1.msra.mxu0 0.0
      %2080 = vmatprep.subr.mxu0 0.0
      %2081 = vmatpush1.msra.mxu0 0.0
      %2082 = vmatprep.subr.mxu0 0.0
      %2083 = vmatpush1.msra.mxu0 0.0
      %2084 = vmatprep.mubr.f32.mxu0 0.0
      %2085 = vmatmul.mubr.f32.gmra.mrb[0].mxu0 %v1973
      %v2086 = vpop.f32.mrb[0].mxu0
      %v2087 = vadd.f32 %v1970, %v2086
      %v2088 = vpop.f32.mrb[0].mxu0
      %2089 = vmatprep.mubr.f32.mxu0 0.0
      %2090 = vmatmul.mubr.f32.gmra.mrb[0].mxu0 %v1976
      %v2091 = vpop.f32.mrb[0].mxu0
      %v2092 = vadd.f32 %v1970, %v2091
      %v2093 = vpop.f32.mrb[0].mxu0
      %2094 = vmatprep.mubr.f32.mxu0 0.0
      %2095 = vmatmul.mubr.f32.gmra.mrb[0].mxu0 %v1979
      %v2096 = vpop.f32.mrb[0].mxu0
      %v2097 = vadd.f32 %v1970, %v2096
      %v2098 = vpop.f32.mrb[0].mxu0
      %2099 = vmatprep.mubr.f32.mxu0 0.0
      %2100 = vmatmul.mubr.f32.gmra.mrb[0].mxu0 %v1982
      %v2101 = vpop.f32.mrb[0].mxu0
      %v2102 = vadd.f32 %v1970, %v2101
      %v2103 = vpop.f32.mrb[0].mxu0
      %2104 = vmatprep.mubr.f32.mxu0 0.0
      %2105 = vmatmul.mubr.f32.gmra.mrb[0].mxu0 %v1985
      %v2106 = vpop.f32.mrb[0].mxu0
      %v2107 = vadd.f32 %v1970, %v2106
      %v2108 = vpop.f32.mrb[0].mxu0
      %2109 = vmatprep.mubr.f32.mxu0 0.0
      %2110 = vmatmul.mubr.f32.gmra.mrb[0].mxu0 %v1988
      %v2111 = vpop.f32.mrb[0].mxu0
      %v2112 = vadd.f32 %v1970, %v2111
      %v2113 = vpop.f32.mrb[0].mxu0
      %2114 = vmatprep.mubr.f32.mxu0 0.0
      %2115 = vmatmul.mubr.f32.gmra.mrb[0].mxu0 %v1991
      %v2116 = vpop.f32.mrb[0].mxu0
      %v2117 = vadd.f32 %v1970, %v2116
      %v2118 = vpop.f32.mrb[0].mxu0
      %2119 = vmatprep.mubr.f32.mxu0 0.0
      %2120 = vmatmul.mubr.f32.gmra.mrb[0].mxu0 %v1994
      %v2121 = vpop.f32.mrb[0].mxu0
      %v2122 = vadd.f32 %v1970, %v2121
      %v2123 = vpop.f32.mrb[0].mxu0
      %2124 = vmatprep.mubr.f32.mxu0 0.0
      %2125 = vmatmul.mubr.f32.gmra.mrb[0].mxu0 %v1997
      %v2126 = vpop.f32.mrb[0].mxu0
      %v2127 = vadd.f32 %v1970, %v2126
      %v2128 = vpop.f32.mrb[0].mxu0
      %2129 = vmatprep.mubr.f32.mxu0 0.0
      %2130 = vmatmul.mubr.f32.gmra.mrb[0].mxu0 %v2000
      %v2131 = vpop.f32.mrb[0].mxu0
      %v2132 = vadd.f32 %v1970, %v2131
      %v2133 = vpop.f32.mrb[0].mxu0
      %2134 = vmatprep.mubr.f32.mxu0 0.0
      %2135 = vmatmul.mubr.f32.gmra.mrb[0].mxu0 %v2003
      %v2136 = vpop.f32.mrb[0].mxu0
      %v2137 = vadd.f32 %v1970, %v2136
      %v2138 = vpop.f32.mrb[0].mxu0
      %2139 = vmatprep.mubr.f32.mxu0 0.0
      %2140 = vmatmul.mubr.f32.gmra.mrb[0].mxu0 %v2006
      %v2141 = vpop.f32.mrb[0].mxu0
      %v2142 = vadd.f32 %v1970, %v2141
      %v2143 = vpop.f32.mrb[0].mxu0
      %2144 = vmatprep.mubr.f32.mxu0 0.0
      %2145 = vmatmul.mubr.f32.gmra.mrb[0].mxu0 %v2009
      %v2146 = vpop.f32.mrb[0].mxu0
      %v2147 = vadd.f32 %v1970, %v2146
      %v2148 = vpop.f32.mrb[0].mxu0
      %2149 = vmatprep.mubr.f32.mxu0 0.0
      %2150 = vmatmul.mubr.f32.gmra.mrb[0].mxu0 %v2012
      %v2151 = vpop.f32.mrb[0].mxu0
      %v2152 = vadd.f32 %v1970, %v2151
      %v2153 = vpop.f32.mrb[0].mxu0
      %2154 = vmatprep.mubr.f32.mxu0 0.0
      %2155 = vmatmul.mubr.f32.gmra.mrb[0].mxu0 %v2015
      %v2156 = vpop.f32.mrb[0].mxu0
      %v2157 = vadd.f32 %v1970, %v2156
      %v2158 = vpop.f32.mrb[0].mxu0
      %2159 = vmatprep.mubr.f32.mxu0 0.0
      %2160 = vmatmul.mubr.f32.gmra.mrb[0].mxu0 %v2018
      %v2161 = vpop.f32.mrb[0].mxu0
      %v2162 = vadd.f32 %v1970, %v2161
      %v2163 = vpop.f32.mrb[0].mxu0
      %2164 = vdwg.mxu0
      %v2165 = vmul.f32 %v2087, 100.0
      %v2166 = vmul.f32 %v2092, 100.0
      %v2167 = vmul.f32 %v2097, 100.0
      %v2168 = vmul.f32 %v2102, 100.0
      %v2169 = vmul.f32 %v2107, 100.0
      %v2170 = vmul.f32 %v2112, 100.0
      %v2171 = vmul.f32 %v2117, 100.0
      %v2172 = vmul.f32 %v2122, 100.0
      %v2173 = vmul.f32 %v2127, 100.0
      %v2174 = vmul.f32 %v2132, 100.0
      %v2175 = vmul.f32 %v2137, 100.0
      %v2176 = vmul.f32 %v2142, 100.0
      %v2177 = vmul.f32 %v2147, 100.0
      %v2178 = vmul.f32 %v2152, 100.0
      %v2179 = vmul.f32 %v2157, 100.0
      %v2180 = vmul.f32 %v2162, 100.0
      %vm2181 = vcmp.gt.f32.partialorder %v2165, 20.0
      %vm2182 = vcmp.gt.f32.partialorder %v2166, 20.0
      %vm2183 = vcmp.gt.f32.partialorder %v2167, 20.0
      %vm2184 = vcmp.gt.f32.partialorder %v2168, 20.0
      %vm2185 = vcmp.gt.f32.partialorder %v2169, 20.0
      %vm2186 = vcmp.gt.f32.partialorder %v2170, 20.0
      %vm2187 = vcmp.gt.f32.partialorder %v2171, 20.0
      %vm2188 = vcmp.gt.f32.partialorder %v2172, 20.0
      %vm2189 = vcmp.gt.f32.partialorder %v2173, 20.0
      %vm2190 = vcmp.gt.f32.partialorder %v2174, 20.0
      %vm2191 = vcmp.gt.f32.partialorder %v2175, 20.0
      %vm2192 = vcmp.gt.f32.partialorder %v2176, 20.0
      %vm2193 = vcmp.gt.f32.partialorder %v2177, 20.0
      %vm2194 = vcmp.gt.f32.partialorder %v2178, 20.0
      %vm2195 = vcmp.gt.f32.partialorder %v2179, 20.0
      %vm2196 = vcmp.gt.f32.partialorder %v2180, 20.0
      %v2197 = vmul.f32 %v2165, 1.442695
      %v2198 = vpow.pop %v2197
      %v2199 = vmul.f32 %v2166, 1.442695
      %v2200 = vpow.pop %v2199
      %v2201 = vmul.f32 %v2167, 1.442695
      %v2202 = vpow.pop %v2201
      %v2203 = vmul.f32 %v2168, 1.442695
      %v2204 = vpow.pop %v2203
      %v2205 = vmul.f32 %v2169, 1.442695
      %v2206 = vpow.pop %v2205
      %v2207 = vmul.f32 %v2170, 1.442695
      %v2208 = vpow.pop %v2207
      %v2209 = vmul.f32 %v2171, 1.442695
      %v2210 = vpow.pop %v2209
      %v2211 = vmul.f32 %v2172, 1.442695
      %v2212 = vpow.pop %v2211
      %v2213 = vmul.f32 %v2173, 1.442695
      %v2214 = vpow.pop %v2213
      %v2215 = vmul.f32 %v2174, 1.442695
      %v2216 = vpow.pop %v2215
      %v2217 = vmul.f32 %v2175, 1.442695
      %v2218 = vpow.pop %v2217
      %v2219 = vmul.f32 %v2176, 1.442695
      %v2220 = vpow.pop %v2219
      %v2221 = vmul.f32 %v2177, 1.442695
      %v2222 = vpow.pop %v2221
      %v2223 = vmul.f32 %v2178, 1.442695
      %v2224 = vpow.pop %v2223
      %v2225 = vmul.f32 %v2179, 1.442695
      %v2226 = vpow.pop %v2225
      %v2227 = vmul.f32 %v2180, 1.442695
      %v2228 = vpow.pop %v2227
      %v2229 = vadd.f32 %v2198, 1.0
      %v2230 = vlog2.pop %v2229
      %v2231 = vmul.f32 %v2230, 0.6931472
      %v2232 = vmul.f32 -0.5, %v2198
      %v2233 = vadd.f32 %v2232, 1.0
      %v2234 = vmul.f32 %v2233, %v2198
      %v2235 = vand.u32 2147483647, %v2198
      %vm2236 = vcmp.lt.f32.partialorder %v2235, 0.0004427343
      %v2237 = vsel %vm2236, %v2234, %v2231
      %v2238 = vadd.f32 %v2200, 1.0
      %v2239 = vlog2.pop %v2238
      %v2240 = vmul.f32 %v2239, 0.6931472
      %v2241 = vmul.f32 -0.5, %v2200
      %v2242 = vadd.f32 %v2241, 1.0
      %v2243 = vmul.f32 %v2242, %v2200
      %v2244 = vand.u32 2147483647, %v2200
      %vm2245 = vcmp.lt.f32.partialorder %v2244, 0.0004427343
      %v2246 = vsel %vm2245, %v2243, %v2240
      %v2247 = vadd.f32 %v2202, 1.0
      %v2248 = vlog2.pop %v2247
      %v2249 = vmul.f32 %v2248, 0.6931472
      %v2250 = vmul.f32 -0.5, %v2202
      %v2251 = vadd.f32 %v2250, 1.0
      %v2252 = vmul.f32 %v2251, %v2202
      %v2253 = vand.u32 2147483647, %v2202
      %vm2254 = vcmp.lt.f32.partialorder %v2253, 0.0004427343
      %v2255 = vsel %vm2254, %v2252, %v2249
      %v2256 = vadd.f32 %v2204, 1.0
      %v2257 = vlog2.pop %v2256
      %v2258 = vmul.f32 %v2257, 0.6931472
      %v2259 = vmul.f32 -0.5, %v2204
      %v2260 = vadd.f32 %v2259, 1.0
      %v2261 = vmul.f32 %v2260, %v2204
      %v2262 = vand.u32 2147483647, %v2204
      %vm2263 = vcmp.lt.f32.partialorder %v2262, 0.0004427343
      %v2264 = vsel %vm2263, %v2261, %v2258
      %v2265 = vadd.f32 %v2206, 1.0
      %v2266 = vlog2.pop %v2265
      %v2267 = vmul.f32 %v2266, 0.6931472
      %v2268 = vmul.f32 -0.5, %v2206
      %v2269 = vadd.f32 %v2268, 1.0
      %v2270 = vmul.f32 %v2269, %v2206
      %v2271 = vand.u32 2147483647, %v2206
      %vm2272 = vcmp.lt.f32.partialorder %v2271, 0.0004427343
      %v2273 = vsel %vm2272, %v2270, %v2267
      %v2274 = vadd.f32 %v2208, 1.0
      %v2275 = vlog2.pop %v2274
      %v2276 = vmul.f32 %v2275, 0.6931472
      %v2277 = vmul.f32 -0.5, %v2208
      %v2278 = vadd.f32 %v2277, 1.0
      %v2279 = vmul.f32 %v2278, %v2208
      %v2280 = vand.u32 2147483647, %v2208
      %vm2281 = vcmp.lt.f32.partialorder %v2280, 0.0004427343
      %v2282 = vsel %vm2281, %v2279, %v2276
      %v2283 = vadd.f32 %v2210, 1.0
      %v2284 = vlog2.pop %v2283
      %v2285 = vmul.f32 %v2284, 0.6931472
      %v2286 = vmul.f32 -0.5, %v2210
      %v2287 = vadd.f32 %v2286, 1.0
      %v2288 = vmul.f32 %v2287, %v2210
      %v2289 = vand.u32 2147483647, %v2210
      %vm2290 = vcmp.lt.f32.partialorder %v2289, 0.0004427343
      %v2291 = vsel %vm2290, %v2288, %v2285
      %v2292 = vadd.f32 %v2212, 1.0
      %v2293 = vlog2.pop %v2292
      %v2294 = vmul.f32 %v2293, 0.6931472
      %v2295 = vmul.f32 -0.5, %v2212
      %v2296 = vadd.f32 %v2295, 1.0
      %v2297 = vmul.f32 %v2296, %v2212
      %v2298 = vand.u32 2147483647, %v2212
      %vm2299 = vcmp.lt.f32.partialorder %v2298, 0.0004427343
      %v2300 = vsel %vm2299, %v2297, %v2294
      %v2301 = vadd.f32 %v2214, 1.0
      %v2302 = vlog2.pop %v2301
      %v2303 = vmul.f32 %v2302, 0.6931472
      %v2304 = vmul.f32 -0.5, %v2214
      %v2305 = vadd.f32 %v2304, 1.0
      %v2306 = vmul.f32 %v2305, %v2214
      %v2307 = vand.u32 2147483647, %v2214
      %vm2308 = vcmp.lt.f32.partialorder %v2307, 0.0004427343
      %v2309 = vsel %vm2308, %v2306, %v2303
      %v2310 = vadd.f32 %v2216, 1.0
      %v2311 = vlog2.pop %v2310
      %v2312 = vmul.f32 %v2311, 0.6931472
      %v2313 = vmul.f32 -0.5, %v2216
      %v2314 = vadd.f32 %v2313, 1.0
      %v2315 = vmul.f32 %v2314, %v2216
      %v2316 = vand.u32 2147483647, %v2216
      %vm2317 = vcmp.lt.f32.partialorder %v2316, 0.0004427343
      %v2318 = vsel %vm2317, %v2315, %v2312
      %v2319 = vadd.f32 %v2218, 1.0
      %v2320 = vlog2.pop %v2319
      %v2321 = vmul.f32 %v2320, 0.6931472
      %v2322 = vmul.f32 -0.5, %v2218
      %v2323 = vadd.f32 %v2322, 1.0
      %v2324 = vmul.f32 %v2323, %v2218
      %v2325 = vand.u32 2147483647, %v2218
      %vm2326 = vcmp.lt.f32.partialorder %v2325, 0.0004427343
      %v2327 = vsel %vm2326, %v2324, %v2321
      %v2328 = vadd.f32 %v2220, 1.0
      %v2329 = vlog2.pop %v2328
      %v2330 = vmul.f32 %v2329, 0.6931472
      %v2331 = vmul.f32 -0.5, %v2220
      %v2332 = vadd.f32 %v2331, 1.0
      %v2333 = vmul.f32 %v2332, %v2220
      %v2334 = vand.u32 2147483647, %v2220
      %vm2335 = vcmp.lt.f32.partialorder %v2334, 0.0004427343
      %v2336 = vsel %vm2335, %v2333, %v2330
      %v2337 = vadd.f32 %v2222, 1.0
      %v2338 = vlog2.pop %v2337
      %v2339 = vmul.f32 %v2338, 0.6931472
      %v2340 = vmul.f32 -0.5, %v2222
      %v2341 = vadd.f32 %v2340, 1.0
      %v2342 = vmul.f32 %v2341, %v2222
      %v2343 = vand.u32 2147483647, %v2222
      %vm2344 = vcmp.lt.f32.partialorder %v2343, 0.0004427343
      %v2345 = vsel %vm2344, %v2342, %v2339
      %v2346 = vadd.f32 %v2224, 1.0
      %v2347 = vlog2.pop %v2346
      %v2348 = vmul.f32 %v2347, 0.6931472
      %v2349 = vmul.f32 -0.5, %v2224
      %v2350 = vadd.f32 %v2349, 1.0
      %v2351 = vmul.f32 %v2350, %v2224
      %v2352 = vand.u32 2147483647, %v2224
      %vm2353 = vcmp.lt.f32.partialorder %v2352, 0.0004427343
      %v2354 = vsel %vm2353, %v2351, %v2348
      %v2355 = vadd.f32 %v2226, 1.0
      %v2356 = vlog2.pop %v2355
      %v2357 = vmul.f32 %v2356, 0.6931472
      %v2358 = vmul.f32 -0.5, %v2226
      %v2359 = vadd.f32 %v2358, 1.0
      %v2360 = vmul.f32 %v2359, %v2226
      %v2361 = vand.u32 2147483647, %v2226
      %vm2362 = vcmp.lt.f32.partialorder %v2361, 0.0004427343
      %v2363 = vsel %vm2362, %v2360, %v2357
      %v2364 = vadd.f32 %v2228, 1.0
      %v2365 = vlog2.pop %v2364
      %v2366 = vmul.f32 %v2365, 0.6931472
      %v2367 = vmul.f32 -0.5, %v2228
      %v2368 = vadd.f32 %v2367, 1.0
      %v2369 = vmul.f32 %v2368, %v2228
      %v2370 = vand.u32 2147483647, %v2228
      %vm2371 = vcmp.lt.f32.partialorder %v2370, 0.0004427343
      %v2372 = vsel %vm2371, %v2369, %v2366
      %v2373 = vmul.f32 %v2237, 0.01
      %v2374 = vmul.f32 %v2246, 0.01
      %v2375 = vmul.f32 %v2255, 0.01
      %v2376 = vmul.f32 %v2264, 0.01
      %v2377 = vmul.f32 %v2273, 0.01
      %v2378 = vmul.f32 %v2282, 0.01
      %v2379 = vmul.f32 %v2291, 0.01
      %v2380 = vmul.f32 %v2300, 0.01
      %v2381 = vmul.f32 %v2309, 0.01
      %v2382 = vmul.f32 %v2318, 0.01
      %v2383 = vmul.f32 %v2327, 0.01
      %v2384 = vmul.f32 %v2336, 0.01
      %v2385 = vmul.f32 %v2345, 0.01
      %v2386 = vmul.f32 %v2354, 0.01
      %v2387 = vmul.f32 %v2363, 0.01
      %v2388 = vmul.f32 %v2372, 0.01
      %v2389 = vsel %vm2181, %v2087, %v2373
      %v2390 = vsel %vm2182, %v2092, %v2374
      %v2391 = vsel %vm2183, %v2097, %v2375
      %v2392 = vsel %vm2184, %v2102, %v2376
      %v2393 = vsel %vm2185, %v2107, %v2377
      %v2394 = vsel %vm2186, %v2112, %v2378
      %v2395 = vsel %vm2187, %v2117, %v2379
      %v2396 = vsel %vm2188, %v2122, %v2380
      %v2397 = vsel %vm2189, %v2127, %v2381
      %v2398 = vsel %vm2190, %v2132, %v2382
      %v2399 = vsel %vm2191, %v2137, %v2383
      %v2400 = vsel %vm2192, %v2142, %v2384
      %v2401 = vsel %vm2193, %v2147, %v2385
      %v2402 = vsel %vm2194, %v2152, %v2386
      %v2403 = vsel %vm2195, %v2157, %v2387
      %v2404 = vsel %vm2196, %v2162, %v2388
      %v2405 = vld [vmem:[%s10] sm:$0xff]
      %v2406 = vld [vmem:[%s10 + $0x8] sm:$0xff]
      %v2407 = vld [vmem:[%s10 + $0x10] sm:$0xff]
      %v2408 = vld [vmem:[%s10 + $0x18] sm:$0xff]
      %v2409 = vld [vmem:[%s10 + $0x20] sm:$0xff]
      %v2410 = vld [vmem:[%s10 + $0x28] sm:$0xff]
      %v2411 = vld [vmem:[%s10 + $0x30] sm:$0xff]
      %v2412 = vld [vmem:[%s10 + $0x38] sm:$0xff]
      %v2413 = vld [vmem:[%s11] sm:$0x1]
      %v2415 = vlaneseq
      %v2416 = vshrl.u32 %v2415, 7
      %v2417 = vsub.s32 0, %v2416
      %v2418 = vrot.slane %v2413, %v2417
      %v2421 = vsel %vm894, %v2389, 0
      %v2424 = vsel %vm894, %v2390, 0
      %v2427 = vsel %vm894, %v2391, 0
      %v2430 = vsel %vm894, %v2392, 0
      %v2433 = vsel %vm894, %v2393, 0
      %v2436 = vsel %vm894, %v2394, 0
      %v2439 = vsel %vm894, %v2395, 0
      %v2442 = vsel %vm894, %v2396, 0
      %v2445 = vsel %vm894, %v2397, 0
      %v2448 = vsel %vm894, %v2398, 0
      %v2451 = vsel %vm894, %v2399, 0
      %v2454 = vsel %vm894, %v2400, 0
      %v2457 = vsel %vm894, %v2401, 0
      %v2460 = vsel %vm894, %v2402, 0
      %v2463 = vsel %vm894, %v2403, 0
      %v2466 = vsel %vm894, %v2404, 0
      %2468 = vmatprep.subr.mxu0 0.0
      %2469 = vmatpush1.msra.mxu0 %v2405
      %2470 = vmatprep.subr.mxu0 0.0
      %2471 = vmatpush1.msra.mxu0 %v2406
      %2472 = vmatprep.subr.mxu0 0.0
      %2473 = vmatpush1.msra.mxu0 %v2407
      %2474 = vmatprep.subr.mxu0 0.0
      %2475 = vmatpush1.msra.mxu0 %v2408
      %2476 = vmatprep.subr.mxu0 0.0
      %2477 = vmatpush1.msra.mxu0 %v2409
      %2478 = vmatprep.subr.mxu0 0.0
      %2479 = vmatpush1.msra.mxu0 %v2410
      %2480 = vmatprep.subr.mxu0 0.0
      %2481 = vmatpush1.msra.mxu0 %v2411
      %2482 = vmatprep.subr.mxu0 0.0
      %2483 = vmatpush1.msra.mxu0 %v2412
      %2484 = vmatprep.subr.mxu0 0.0
      %2485 = vmatpush1.msra.mxu0 0.0
      %2486 = vmatprep.subr.mxu0 0.0
      %2487 = vmatpush1.msra.mxu0 0.0
      %2488 = vmatprep.subr.mxu0 0.0
      %2489 = vmatpush1.msra.mxu0 0.0
      %2490 = vmatprep.subr.mxu0 0.0
      %2491 = vmatpush1.msra.mxu0 0.0
      %2492 = vmatprep.subr.mxu0 0.0
      %2493 = vmatpush1.msra.mxu0 0.0
      %2494 = vmatprep.subr.mxu0 0.0
      %2495 = vmatpush1.msra.mxu0 0.0
      %2496 = vmatprep.subr.mxu0 0.0
      %2497 = vmatpush1.msra.mxu0 0.0
      %2498 = vmatprep.subr.mxu0 0.0
      %2499 = vmatpush1.msra.mxu0 0.0
      %2500 = vmatprep.subr.mxu0 0.0
      %2501 = vmatpush1.msra.mxu0 0.0
      %2502 = vmatprep.subr.mxu0 0.0
      %2503 = vmatpush1.msra.mxu0 0.0
      %2504 = vmatprep.subr.mxu0 0.0
      %2505 = vmatpush1.msra.mxu0 0.0
      %2506 = vmatprep.subr.mxu0 0.0
      %2507 = vmatpush1.msra.mxu0 0.0
      %2508 = vmatprep.subr.mxu0 0.0
      %2509 = vmatpush1.msra.mxu0 0.0
      %2510 = vmatprep.subr.mxu0 0.0
      %2511 = vmatpush1.msra.mxu0 0.0
      %2512 = vmatprep.subr.mxu0 0.0
      %2513 = vmatpush1.msra.mxu0 0.0
      %2514 = vmatprep.subr.mxu0 0.0
      %2515 = vmatpush1.msra.mxu0 0.0
      %2516 = vmatprep.subr.mxu0 0.0
      %2517 = vmatpush1.msra.mxu0 0.0
      %2518 = vmatprep.subr.mxu0 0.0
      %2519 = vmatpush1.msra.mxu0 0.0
      %2520 = vmatprep.subr.mxu0 0.0
      %2521 = vmatpush1.msra.mxu0 0.0
      %2522 = vmatprep.subr.mxu0 0.0
      %2523 = vmatpush1.msra.mxu0 0.0
      %2524 = vmatprep.subr.mxu0 0.0
      %2525 = vmatpush1.msra.mxu0 0.0
      %2526 = vmatprep.subr.mxu0 0.0
      %2527 = vmatpush1.msra.mxu0 0.0
      %2528 = vmatprep.subr.mxu0 0.0
      %2529 = vmatpush1.msra.mxu0 0.0
      %2530 = vmatprep.subr.mxu0 0.0
      %2531 = vmatpush1.msra.mxu0 0.0
      %2532 = vmatprep.mubr.f32.mxu0 0.0
      %2533 = vmatmul.mubr.f32.gmra.mrb[0].mxu0 %v2421
      %v2534 = vpop.f32.mrb[0].mxu0
      %v2535 = vadd.f32 %v2418, %v2534
      %v2536 = vpop.f32.mrb[0].mxu0
      %2537 = vmatprep.mubr.f32.mxu0 0.0
      %2538 = vmatmul.mubr.f32.gmra.mrb[0].mxu0 %v2424
      %v2539 = vpop.f32.mrb[0].mxu0
      %v2540 = vadd.f32 %v2418, %v2539
      %v2541 = vpop.f32.mrb[0].mxu0
      %2542 = vmatprep.mubr.f32.mxu0 0.0
      %2543 = vmatmul.mubr.f32.gmra.mrb[0].mxu0 %v2427
      %v2544 = vpop.f32.mrb[0].mxu0
      %v2545 = vadd.f32 %v2418, %v2544
      %v2546 = vpop.f32.mrb[0].mxu0
      %2547 = vmatprep.mubr.f32.mxu0 0.0
      %2548 = vmatmul.mubr.f32.gmra.mrb[0].mxu0 %v2430
      %v2549 = vpop.f32.mrb[0].mxu0
      %v2550 = vadd.f32 %v2418, %v2549
      %v2551 = vpop.f32.mrb[0].mxu0
      %2552 = vmatprep.mubr.f32.mxu0 0.0
      %2553 = vmatmul.mubr.f32.gmra.mrb[0].mxu0 %v2433
      %v2554 = vpop.f32.mrb[0].mxu0
      %v2555 = vadd.f32 %v2418, %v2554
      %v2556 = vpop.f32.mrb[0].mxu0
      %2557 = vmatprep.mubr.f32.mxu0 0.0
      %2558 = vmatmul.mubr.f32.gmra.mrb[0].mxu0 %v2436
      %v2559 = vpop.f32.mrb[0].mxu0
      %v2560 = vadd.f32 %v2418, %v2559
      %v2561 = vpop.f32.mrb[0].mxu0
      %2562 = vmatprep.mubr.f32.mxu0 0.0
      %2563 = vmatmul.mubr.f32.gmra.mrb[0].mxu0 %v2439
      %v2564 = vpop.f32.mrb[0].mxu0
      %v2565 = vadd.f32 %v2418, %v2564
      %v2566 = vpop.f32.mrb[0].mxu0
      %2567 = vmatprep.mubr.f32.mxu0 0.0
      %2568 = vmatmul.mubr.f32.gmra.mrb[0].mxu0 %v2442
      %v2569 = vpop.f32.mrb[0].mxu0
      %v2570 = vadd.f32 %v2418, %v2569
      %v2571 = vpop.f32.mrb[0].mxu0
      %2572 = vmatprep.mubr.f32.mxu0 0.0
      %2573 = vmatmul.mubr.f32.gmra.mrb[0].mxu0 %v2445
      %v2574 = vpop.f32.mrb[0].mxu0
      %v2575 = vadd.f32 %v2418, %v2574
      %v2576 = vpop.f32.mrb[0].mxu0
      %2577 = vmatprep.mubr.f32.mxu0 0.0
      %2578 = vmatmul.mubr.f32.gmra.mrb[0].mxu0 %v2448
      %v2579 = vpop.f32.mrb[0].mxu0
      %v2580 = vadd.f32 %v2418, %v2579
      %v2581 = vpop.f32.mrb[0].mxu0
      %2582 = vmatprep.mubr.f32.mxu0 0.0
      %2583 = vmatmul.mubr.f32.gmra.mrb[0].mxu0 %v2451
      %v2584 = vpop.f32.mrb[0].mxu0
      %v2585 = vadd.f32 %v2418, %v2584
      %v2586 = vpop.f32.mrb[0].mxu0
      %2587 = vmatprep.mubr.f32.mxu0 0.0
      %2588 = vmatmul.mubr.f32.gmra.mrb[0].mxu0 %v2454
      %v2589 = vpop.f32.mrb[0].mxu0
      %v2590 = vadd.f32 %v2418, %v2589
      %v2591 = vpop.f32.mrb[0].mxu0
      %2592 = vmatprep.mubr.f32.mxu0 0.0
      %2593 = vmatmul.mubr.f32.gmra.mrb[0].mxu0 %v2457
      %v2594 = vpop.f32.mrb[0].mxu0
      %v2595 = vadd.f32 %v2418, %v2594
      %v2596 = vpop.f32.mrb[0].mxu0
      %2597 = vmatprep.mubr.f32.mxu0 0.0
      %2598 = vmatmul.mubr.f32.gmra.mrb[0].mxu0 %v2460
      %v2599 = vpop.f32.mrb[0].mxu0
      %v2600 = vadd.f32 %v2418, %v2599
      %v2601 = vpop.f32.mrb[0].mxu0
      %2602 = vmatprep.mubr.f32.mxu0 0.0
      %2603 = vmatmul.mubr.f32.gmra.mrb[0].mxu0 %v2463
      %v2604 = vpop.f32.mrb[0].mxu0
      %v2605 = vadd.f32 %v2418, %v2604
      %v2606 = vpop.f32.mrb[0].mxu0
      %2607 = vmatprep.mubr.f32.mxu0 0.0
      %2608 = vmatmul.mubr.f32.gmra.mrb[0].mxu0 %v2466
      %v2609 = vpop.f32.mrb[0].mxu0
      %v2610 = vadd.f32 %v2418, %v2609
      %v2611 = vpop.f32.mrb[0].mxu0
      %2612 = vdwg.mxu0
      %vm2613 = vcmask 72704
      %2614 = vst.msk [vmem:[%s415] sm:$0xff] %vm2613, %v2535
      %2615 = vst.msk [vmem:[%s415 + $0x8] sm:$0xff] %vm2613, %v2540
      %2616 = vst.msk [vmem:[%s415 + $0x10] sm:$0xff] %vm2613, %v2545
      %2617 = vst.msk [vmem:[%s415 + $0x18] sm:$0xff] %vm2613, %v2550
      %2618 = vst.msk [vmem:[%s415 + $0x20] sm:$0xff] %vm2613, %v2555
      %2619 = vst.msk [vmem:[%s415 + $0x28] sm:$0xff] %vm2613, %v2560
      %2620 = vst.msk [vmem:[%s415 + $0x30] sm:$0xff] %vm2613, %v2565
      %2621 = vst.msk [vmem:[%s415 + $0x38] sm:$0xff] %vm2613, %v2570
      %2622 = vst.msk [vmem:[%s415 + $0x40] sm:$0xff] %vm2613, %v2575
      %2623 = vst.msk [vmem:[%s415 + $0x48] sm:$0xff] %vm2613, %v2580
      %2624 = vst.msk [vmem:[%s415 + $0x50] sm:$0xff] %vm2613, %v2585
      %2625 = vst.msk [vmem:[%s415 + $0x58] sm:$0xff] %vm2613, %v2590
      %2626 = vst.msk [vmem:[%s415 + $0x60] sm:$0xff] %vm2613, %v2595
      %2627 = vst.msk [vmem:[%s415 + $0x68] sm:$0xff] %vm2613, %v2600
      %2628 = vst.msk [vmem:[%s415 + $0x70] sm:$0xff] %vm2613, %v2605
      %2629 = vst.msk [vmem:[%s415 + $0x78] sm:$0xff] %vm2613, %v2610
      %v2630 = vld [vmem:[%s409 + $0x80] sm:$0xff]
      %v2631 = vld [vmem:[%s409 + $0x88] sm:$0xff]
      %v2632 = vld [vmem:[%s409 + $0x90] sm:$0xff]
      %v2633 = vld [vmem:[%s409 + $0x98] sm:$0xff]
      %v2634 = vld [vmem:[%s409 + $0xa0] sm:$0xff]
      %v2635 = vld [vmem:[%s409 + $0xa8] sm:$0xff]
      %v2636 = vld [vmem:[%s409 + $0xb0] sm:$0xff]
      %v2637 = vld [vmem:[%s409 + $0xb8] sm:$0xff]
      %v2638 = vld [vmem:[%s409 + $0xc0] sm:$0xff]
      %v2639 = vld [vmem:[%s409 + $0xc8] sm:$0xff]
      %v2640 = vld [vmem:[%s409 + $0xd0] sm:$0xff]
      %v2641 = vld [vmem:[%s409 + $0xd8] sm:$0xff]
      %v2642 = vld [vmem:[%s409 + $0xe0] sm:$0xff]
      %v2643 = vld [vmem:[%s409 + $0xe8] sm:$0xff]
      %v2644 = vld [vmem:[%s409 + $0xf0] sm:$0xff]
      %v2645 = vld [vmem:[%s409 + $0xf8] sm:$0xff]
      %v2646 = vld [vmem:[%s1] sm:$0x7]
      %v2647 = vld [vmem:[%s2] sm:$0x1]
      %v2649 = vlaneseq
      %v2650 = vshrl.u32 %v2649, 7
      %v2651 = vsub.s32 0, %v2650
      %v2652 = vrot.slane %v2647, %v2651
      %v2655 = vsel %vm441, %v2630, 0
      %v2658 = vsel %vm441, %v2631, 0
      %v2661 = vsel %vm441, %v2632, 0
      %v2664 = vsel %vm441, %v2633, 0
      %v2667 = vsel %vm441, %v2634, 0
      %v2670 = vsel %vm441, %v2635, 0
      %v2673 = vsel %vm441, %v2636, 0
      %v2676 = vsel %vm441, %v2637, 0
      %v2679 = vsel %vm441, %v2638, 0
      %v2682 = vsel %vm441, %v2639, 0
      %v2685 = vsel %vm441, %v2640, 0
      %v2688 = vsel %vm441, %v2641, 0
      %v2691 = vsel %vm441, %v2642, 0
      %v2694 = vsel %vm441, %v2643, 0
      %v2697 = vsel %vm441, %v2644, 0
      %v2700 = vsel %vm441, %v2645, 0
      %v2703 = vsel %vm490, %v2646, 0
      %2705 = vmatprep.subr.mxu0 0.0
      %2706 = vmatpush1.msra.mxu0 %v2703
      %2707 = vmatprep.subr.mxu0 0.0
      %2708 = vmatpush1.msra.mxu0 0.0
      %2709 = vmatprep.subr.mxu0 0.0
      %2710 = vmatpush1.msra.mxu0 0.0
      %2711 = vmatprep.subr.mxu0 0.0
      %2712 = vmatpush1.msra.mxu0 0.0
      %2713 = vmatprep.subr.mxu0 0.0
      %2714 = vmatpush1.msra.mxu0 0.0
      %2715 = vmatprep.subr.mxu0 0.0
      %2716 = vmatpush1.msra.mxu0 0.0
      %2717 = vmatprep.subr.mxu0 0.0
      %2718 = vmatpush1.msra.mxu0 0.0
      %2719 = vmatprep.subr.mxu0 0.0
      %2720 = vmatpush1.msra.mxu0 0.0
      %2721 = vmatprep.subr.mxu0 0.0
      %2722 = vmatpush1.msra.mxu0 0.0
      %2723 = vmatprep.subr.mxu0 0.0
      %2724 = vmatpush1.msra.mxu0 0.0
      %2725 = vmatprep.subr.mxu0 0.0
      %2726 = vmatpush1.msra.mxu0 0.0
      %2727 = vmatprep.subr.mxu0 0.0
      %2728 = vmatpush1.msra.mxu0 0.0
      %2729 = vmatprep.subr.mxu0 0.0
      %2730 = vmatpush1.msra.mxu0 0.0
      %2731 = vmatprep.subr.mxu0 0.0
      %2732 = vmatpush1.msra.mxu0 0.0
      %2733 = vmatprep.subr.mxu0 0.0
      %2734 = vmatpush1.msra.mxu0 0.0
      %2735 = vmatprep.subr.mxu0 0.0
      %2736 = vmatpush1.msra.mxu0 0.0
      %2737 = vmatprep.subr.mxu0 0.0
      %2738 = vmatpush1.msra.mxu0 0.0
      %2739 = vmatprep.subr.mxu0 0.0
      %2740 = vmatpush1.msra.mxu0 0.0
      %2741 = vmatprep.subr.mxu0 0.0
      %2742 = vmatpush1.msra.mxu0 0.0
      %2743 = vmatprep.subr.mxu0 0.0
      %2744 = vmatpush1.msra.mxu0 0.0
      %2745 = vmatprep.subr.mxu0 0.0
      %2746 = vmatpush1.msra.mxu0 0.0
      %2747 = vmatprep.subr.mxu0 0.0
      %2748 = vmatpush1.msra.mxu0 0.0
      %2749 = vmatprep.subr.mxu0 0.0
      %2750 = vmatpush1.msra.mxu0 0.0
      %2751 = vmatprep.subr.mxu0 0.0
      %2752 = vmatpush1.msra.mxu0 0.0
      %2753 = vmatprep.subr.mxu0 0.0
      %2754 = vmatpush1.msra.mxu0 0.0
      %2755 = vmatprep.subr.mxu0 0.0
      %2756 = vmatpush1.msra.mxu0 0.0
      %2757 = vmatprep.subr.mxu0 0.0
      %2758 = vmatpush1.msra.mxu0 0.0
      %2759 = vmatprep.subr.mxu0 0.0
      %2760 = vmatpush1.msra.mxu0 0.0
      %2761 = vmatprep.subr.mxu0 0.0
      %2762 = vmatpush1.msra.mxu0 0.0
      %2763 = vmatprep.subr.mxu0 0.0
      %2764 = vmatpush1.msra.mxu0 0.0
      %2765 = vmatprep.subr.mxu0 0.0
      %2766 = vmatpush1.msra.mxu0 0.0
      %2767 = vmatprep.subr.mxu0 0.0
      %2768 = vmatpush1.msra.mxu0 0.0
      %2769 = vmatprep.mubr.f32.mxu0 0.0
      %2770 = vmatmul.mubr.f32.gmra.mrb[0].mxu0 %v2655
      %v2771 = vpop.f32.mrb[0].mxu0
      %v2772 = vadd.f32 %v2652, %v2771
      %v2773 = vpop.f32.mrb[0].mxu0
      %2774 = vmatprep.mubr.f32.mxu0 0.0
      %2775 = vmatmul.mubr.f32.gmra.mrb[0].mxu0 %v2658
      %v2776 = vpop.f32.mrb[0].mxu0
      %v2777 = vadd.f32 %v2652, %v2776
      %v2778 = vpop.f32.mrb[0].mxu0
      %2779 = vmatprep.mubr.f32.mxu0 0.0
      %2780 = vmatmul.mubr.f32.gmra.mrb[0].mxu0 %v2661
      %v2781 = vpop.f32.mrb[0].mxu0
      %v2782 = vadd.f32 %v2652, %v2781
      %v2783 = vpop.f32.mrb[0].mxu0
      %2784 = vmatprep.mubr.f32.mxu0 0.0
      %2785 = vmatmul.mubr.f32.gmra.mrb[0].mxu0 %v2664
      %v2786 = vpop.f32.mrb[0].mxu0
      %v2787 = vadd.f32 %v2652, %v2786
      %v2788 = vpop.f32.mrb[0].mxu0
      %2789 = vmatprep.mubr.f32.mxu0 0.0
      %2790 = vmatmul.mubr.f32.gmra.mrb[0].mxu0 %v2667
      %v2791 = vpop.f32.mrb[0].mxu0
      %v2792 = vadd.f32 %v2652, %v2791
      %v2793 = vpop.f32.mrb[0].mxu0
      %2794 = vmatprep.mubr.f32.mxu0 0.0
      %2795 = vmatmul.mubr.f32.gmra.mrb[0].mxu0 %v2670
      %v2796 = vpop.f32.mrb[0].mxu0
      %v2797 = vadd.f32 %v2652, %v2796
      %v2798 = vpop.f32.mrb[0].mxu0
      %2799 = vmatprep.mubr.f32.mxu0 0.0
      %2800 = vmatmul.mubr.f32.gmra.mrb[0].mxu0 %v2673
      %v2801 = vpop.f32.mrb[0].mxu0
      %v2802 = vadd.f32 %v2652, %v2801
      %v2803 = vpop.f32.mrb[0].mxu0
      %2804 = vmatprep.mubr.f32.mxu0 0.0
      %2805 = vmatmul.mubr.f32.gmra.mrb[0].mxu0 %v2676
      %v2806 = vpop.f32.mrb[0].mxu0
      %v2807 = vadd.f32 %v2652, %v2806
      %v2808 = vpop.f32.mrb[0].mxu0
      %2809 = vmatprep.mubr.f32.mxu0 0.0
      %2810 = vmatmul.mubr.f32.gmra.mrb[0].mxu0 %v2679
      %v2811 = vpop.f32.mrb[0].mxu0
      %v2812 = vadd.f32 %v2652, %v2811
      %v2813 = vpop.f32.mrb[0].mxu0
      %2814 = vmatprep.mubr.f32.mxu0 0.0
      %2815 = vmatmul.mubr.f32.gmra.mrb[0].mxu0 %v2682
      %v2816 = vpop.f32.mrb[0].mxu0
      %v2817 = vadd.f32 %v2652, %v2816
      %v2818 = vpop.f32.mrb[0].mxu0
      %2819 = vmatprep.mubr.f32.mxu0 0.0
      %2820 = vmatmul.mubr.f32.gmra.mrb[0].mxu0 %v2685
      %v2821 = vpop.f32.mrb[0].mxu0
      %v2822 = vadd.f32 %v2652, %v2821
      %v2823 = vpop.f32.mrb[0].mxu0
      %2824 = vmatprep.mubr.f32.mxu0 0.0
      %2825 = vmatmul.mubr.f32.gmra.mrb[0].mxu0 %v2688
      %v2826 = vpop.f32.mrb[0].mxu0
      %v2827 = vadd.f32 %v2652, %v2826
      %v2828 = vpop.f32.mrb[0].mxu0
      %2829 = vmatprep.mubr.f32.mxu0 0.0
      %2830 = vmatmul.mubr.f32.gmra.mrb[0].mxu0 %v2691
      %v2831 = vpop.f32.mrb[0].mxu0
      %v2832 = vadd.f32 %v2652, %v2831
      %v2833 = vpop.f32.mrb[0].mxu0
      %2834 = vmatprep.mubr.f32.mxu0 0.0
      %2835 = vmatmul.mubr.f32.gmra.mrb[0].mxu0 %v2694
      %v2836 = vpop.f32.mrb[0].mxu0
      %v2837 = vadd.f32 %v2652, %v2836
      %v2838 = vpop.f32.mrb[0].mxu0
      %2839 = vmatprep.mubr.f32.mxu0 0.0
      %2840 = vmatmul.mubr.f32.gmra.mrb[0].mxu0 %v2697
      %v2841 = vpop.f32.mrb[0].mxu0
      %v2842 = vadd.f32 %v2652, %v2841
      %v2843 = vpop.f32.mrb[0].mxu0
      %2844 = vmatprep.mubr.f32.mxu0 0.0
      %2845 = vmatmul.mubr.f32.gmra.mrb[0].mxu0 %v2700
      %v2846 = vpop.f32.mrb[0].mxu0
      %v2847 = vadd.f32 %v2652, %v2846
      %v2848 = vpop.f32.mrb[0].mxu0
      %2849 = vdwg.mxu0
      %v2850 = vmul.f32 %v2772, 100.0
      %v2851 = vmul.f32 %v2777, 100.0
      %v2852 = vmul.f32 %v2782, 100.0
      %v2853 = vmul.f32 %v2787, 100.0
      %v2854 = vmul.f32 %v2792, 100.0
      %v2855 = vmul.f32 %v2797, 100.0
      %v2856 = vmul.f32 %v2802, 100.0
      %v2857 = vmul.f32 %v2807, 100.0
      %v2858 = vmul.f32 %v2812, 100.0
      %v2859 = vmul.f32 %v2817, 100.0
      %v2860 = vmul.f32 %v2822, 100.0
      %v2861 = vmul.f32 %v2827, 100.0
      %v2862 = vmul.f32 %v2832, 100.0
      %v2863 = vmul.f32 %v2837, 100.0
      %v2864 = vmul.f32 %v2842, 100.0
      %v2865 = vmul.f32 %v2847, 100.0
      %vm2866 = vcmp.gt.f32.partialorder %v2850, 20.0
      %vm2867 = vcmp.gt.f32.partialorder %v2851, 20.0
      %vm2868 = vcmp.gt.f32.partialorder %v2852, 20.0
      %vm2869 = vcmp.gt.f32.partialorder %v2853, 20.0
      %vm2870 = vcmp.gt.f32.partialorder %v2854, 20.0
      %vm2871 = vcmp.gt.f32.partialorder %v2855, 20.0
      %vm2872 = vcmp.gt.f32.partialorder %v2856, 20.0
      %vm2873 = vcmp.gt.f32.partialorder %v2857, 20.0
      %vm2874 = vcmp.gt.f32.partialorder %v2858, 20.0
      %vm2875 = vcmp.gt.f32.partialorder %v2859, 20.0
      %vm2876 = vcmp.gt.f32.partialorder %v2860, 20.0
      %vm2877 = vcmp.gt.f32.partialorder %v2861, 20.0
      %vm2878 = vcmp.gt.f32.partialorder %v2862, 20.0
      %vm2879 = vcmp.gt.f32.partialorder %v2863, 20.0
      %vm2880 = vcmp.gt.f32.partialorder %v2864, 20.0
      %vm2881 = vcmp.gt.f32.partialorder %v2865, 20.0
      %v2882 = vmul.f32 %v2850, 1.442695
      %v2883 = vpow.pop %v2882
      %v2884 = vmul.f32 %v2851, 1.442695
      %v2885 = vpow.pop %v2884
      %v2886 = vmul.f32 %v2852, 1.442695
      %v2887 = vpow.pop %v2886
      %v2888 = vmul.f32 %v2853, 1.442695
      %v2889 = vpow.pop %v2888
      %v2890 = vmul.f32 %v2854, 1.442695
      %v2891 = vpow.pop %v2890
      %v2892 = vmul.f32 %v2855, 1.442695
      %v2893 = vpow.pop %v2892
      %v2894 = vmul.f32 %v2856, 1.442695
      %v2895 = vpow.pop %v2894
      %v2896 = vmul.f32 %v2857, 1.442695
      %v2897 = vpow.pop %v2896
      %v2898 = vmul.f32 %v2858, 1.442695
      %v2899 = vpow.pop %v2898
      %v2900 = vmul.f32 %v2859, 1.442695
      %v2901 = vpow.pop %v2900
      %v2902 = vmul.f32 %v2860, 1.442695
      %v2903 = vpow.pop %v2902
      %v2904 = vmul.f32 %v2861, 1.442695
      %v2905 = vpow.pop %v2904
      %v2906 = vmul.f32 %v2862, 1.442695
      %v2907 = vpow.pop %v2906
      %v2908 = vmul.f32 %v2863, 1.442695
      %v2909 = vpow.pop %v2908
      %v2910 = vmul.f32 %v2864, 1.442695
      %v2911 = vpow.pop %v2910
      %v2912 = vmul.f32 %v2865, 1.442695
      %v2913 = vpow.pop %v2912
      %v2914 = vadd.f32 %v2883, 1.0
      %v2915 = vlog2.pop %v2914
      %v2916 = vmul.f32 %v2915, 0.6931472
      %v2917 = vmul.f32 -0.5, %v2883
      %v2918 = vadd.f32 %v2917, 1.0
      %v2919 = vmul.f32 %v2918, %v2883
      %v2920 = vand.u32 2147483647, %v2883
      %vm2921 = vcmp.lt.f32.partialorder %v2920, 0.0004427343
      %v2922 = vsel %vm2921, %v2919, %v2916
      %v2923 = vadd.f32 %v2885, 1.0
      %v2924 = vlog2.pop %v2923
      %v2925 = vmul.f32 %v2924, 0.6931472
      %v2926 = vmul.f32 -0.5, %v2885
      %v2927 = vadd.f32 %v2926, 1.0
      %v2928 = vmul.f32 %v2927, %v2885
      %v2929 = vand.u32 2147483647, %v2885
      %vm2930 = vcmp.lt.f32.partialorder %v2929, 0.0004427343
      %v2931 = vsel %vm2930, %v2928, %v2925
      %v2932 = vadd.f32 %v2887, 1.0
      %v2933 = vlog2.pop %v2932
      %v2934 = vmul.f32 %v2933, 0.6931472
      %v2935 = vmul.f32 -0.5, %v2887
      %v2936 = vadd.f32 %v2935, 1.0
      %v2937 = vmul.f32 %v2936, %v2887
      %v2938 = vand.u32 2147483647, %v2887
      %vm2939 = vcmp.lt.f32.partialorder %v2938, 0.0004427343
      %v2940 = vsel %vm2939, %v2937, %v2934
      %v2941 = vadd.f32 %v2889, 1.0
      %v2942 = vlog2.pop %v2941
      %v2943 = vmul.f32 %v2942, 0.6931472
      %v2944 = vmul.f32 -0.5, %v2889
      %v2945 = vadd.f32 %v2944, 1.0
      %v2946 = vmul.f32 %v2945, %v2889
      %v2947 = vand.u32 2147483647, %v2889
      %vm2948 = vcmp.lt.f32.partialorder %v2947, 0.0004427343
      %v2949 = vsel %vm2948, %v2946, %v2943
      %v2950 = vadd.f32 %v2891, 1.0
      %v2951 = vlog2.pop %v2950
      %v2952 = vmul.f32 %v2951, 0.6931472
      %v2953 = vmul.f32 -0.5, %v2891
      %v2954 = vadd.f32 %v2953, 1.0
      %v2955 = vmul.f32 %v2954, %v2891
      %v2956 = vand.u32 2147483647, %v2891
      %vm2957 = vcmp.lt.f32.partialorder %v2956, 0.0004427343
      %v2958 = vsel %vm2957, %v2955, %v2952
      %v2959 = vadd.f32 %v2893, 1.0
      %v2960 = vlog2.pop %v2959
      %v2961 = vmul.f32 %v2960, 0.6931472
      %v2962 = vmul.f32 -0.5, %v2893
      %v2963 = vadd.f32 %v2962, 1.0
      %v2964 = vmul.f32 %v2963, %v2893
      %v2965 = vand.u32 2147483647, %v2893
      %vm2966 = vcmp.lt.f32.partialorder %v2965, 0.0004427343
      %v2967 = vsel %vm2966, %v2964, %v2961
      %v2968 = vadd.f32 %v2895, 1.0
      %v2969 = vlog2.pop %v2968
      %v2970 = vmul.f32 %v2969, 0.6931472
      %v2971 = vmul.f32 -0.5, %v2895
      %v2972 = vadd.f32 %v2971, 1.0
      %v2973 = vmul.f32 %v2972, %v2895
      %v2974 = vand.u32 2147483647, %v2895
      %vm2975 = vcmp.lt.f32.partialorder %v2974, 0.0004427343
      %v2976 = vsel %vm2975, %v2973, %v2970
      %v2977 = vadd.f32 %v2897, 1.0
      %v2978 = vlog2.pop %v2977
      %v2979 = vmul.f32 %v2978, 0.6931472
      %v2980 = vmul.f32 -0.5, %v2897
      %v2981 = vadd.f32 %v2980, 1.0
      %v2982 = vmul.f32 %v2981, %v2897
      %v2983 = vand.u32 2147483647, %v2897
      %vm2984 = vcmp.lt.f32.partialorder %v2983, 0.0004427343
      %v2985 = vsel %vm2984, %v2982, %v2979
      %v2986 = vadd.f32 %v2899, 1.0
      %v2987 = vlog2.pop %v2986
      %v2988 = vmul.f32 %v2987, 0.6931472
      %v2989 = vmul.f32 -0.5, %v2899
      %v2990 = vadd.f32 %v2989, 1.0
      %v2991 = vmul.f32 %v2990, %v2899
      %v2992 = vand.u32 2147483647, %v2899
      %vm2993 = vcmp.lt.f32.partialorder %v2992, 0.0004427343
      %v2994 = vsel %vm2993, %v2991, %v2988
      %v2995 = vadd.f32 %v2901, 1.0
      %v2996 = vlog2.pop %v2995
      %v2997 = vmul.f32 %v2996, 0.6931472
      %v2998 = vmul.f32 -0.5, %v2901
      %v2999 = vadd.f32 %v2998, 1.0
      %v3000 = vmul.f32 %v2999, %v2901
      %v3001 = vand.u32 2147483647, %v2901
      %vm3002 = vcmp.lt.f32.partialorder %v3001, 0.0004427343
      %v3003 = vsel %vm3002, %v3000, %v2997
      %v3004 = vadd.f32 %v2903, 1.0
      %v3005 = vlog2.pop %v3004
      %v3006 = vmul.f32 %v3005, 0.6931472
      %v3007 = vmul.f32 -0.5, %v2903
      %v3008 = vadd.f32 %v3007, 1.0
      %v3009 = vmul.f32 %v3008, %v2903
      %v3010 = vand.u32 2147483647, %v2903
      %vm3011 = vcmp.lt.f32.partialorder %v3010, 0.0004427343
      %v3012 = vsel %vm3011, %v3009, %v3006
      %v3013 = vadd.f32 %v2905, 1.0
      %v3014 = vlog2.pop %v3013
      %v3015 = vmul.f32 %v3014, 0.6931472
      %v3016 = vmul.f32 -0.5, %v2905
      %v3017 = vadd.f32 %v3016, 1.0
      %v3018 = vmul.f32 %v3017, %v2905
      %v3019 = vand.u32 2147483647, %v2905
      %vm3020 = vcmp.lt.f32.partialorder %v3019, 0.0004427343
      %v3021 = vsel %vm3020, %v3018, %v3015
      %v3022 = vadd.f32 %v2907, 1.0
      %v3023 = vlog2.pop %v3022
      %v3024 = vmul.f32 %v3023, 0.6931472
      %v3025 = vmul.f32 -0.5, %v2907
      %v3026 = vadd.f32 %v3025, 1.0
      %v3027 = vmul.f32 %v3026, %v2907
      %v3028 = vand.u32 2147483647, %v2907
      %vm3029 = vcmp.lt.f32.partialorder %v3028, 0.0004427343
      %v3030 = vsel %vm3029, %v3027, %v3024
      %v3031 = vadd.f32 %v2909, 1.0
      %v3032 = vlog2.pop %v3031
      %v3033 = vmul.f32 %v3032, 0.6931472
      %v3034 = vmul.f32 -0.5, %v2909
      %v3035 = vadd.f32 %v3034, 1.0
      %v3036 = vmul.f32 %v3035, %v2909
      %v3037 = vand.u32 2147483647, %v2909
      %vm3038 = vcmp.lt.f32.partialorder %v3037, 0.0004427343
      %v3039 = vsel %vm3038, %v3036, %v3033
      %v3040 = vadd.f32 %v2911, 1.0
      %v3041 = vlog2.pop %v3040
      %v3042 = vmul.f32 %v3041, 0.6931472
      %v3043 = vmul.f32 -0.5, %v2911
      %v3044 = vadd.f32 %v3043, 1.0
      %v3045 = vmul.f32 %v3044, %v2911
      %v3046 = vand.u32 2147483647, %v2911
      %vm3047 = vcmp.lt.f32.partialorder %v3046, 0.0004427343
      %v3048 = vsel %vm3047, %v3045, %v3042
      %v3049 = vadd.f32 %v2913, 1.0
      %v3050 = vlog2.pop %v3049
      %v3051 = vmul.f32 %v3050, 0.6931472
      %v3052 = vmul.f32 -0.5, %v2913
      %v3053 = vadd.f32 %v3052, 1.0
      %v3054 = vmul.f32 %v3053, %v2913
      %v3055 = vand.u32 2147483647, %v2913
      %vm3056 = vcmp.lt.f32.partialorder %v3055, 0.0004427343
      %v3057 = vsel %vm3056, %v3054, %v3051
      %v3058 = vmul.f32 %v2922, 0.01
      %v3059 = vmul.f32 %v2931, 0.01
      %v3060 = vmul.f32 %v2940, 0.01
      %v3061 = vmul.f32 %v2949, 0.01
      %v3062 = vmul.f32 %v2958, 0.01
      %v3063 = vmul.f32 %v2967, 0.01
      %v3064 = vmul.f32 %v2976, 0.01
      %v3065 = vmul.f32 %v2985, 0.01
      %v3066 = vmul.f32 %v2994, 0.01
      %v3067 = vmul.f32 %v3003, 0.01
      %v3068 = vmul.f32 %v3012, 0.01
      %v3069 = vmul.f32 %v3021, 0.01
      %v3070 = vmul.f32 %v3030, 0.01
      %v3071 = vmul.f32 %v3039, 0.01
      %v3072 = vmul.f32 %v3048, 0.01
      %v3073 = vmul.f32 %v3057, 0.01
      %v3074 = vsel %vm2866, %v2772, %v3058
      %v3075 = vsel %vm2867, %v2777, %v3059
      %v3076 = vsel %vm2868, %v2782, %v3060
      %v3077 = vsel %vm2869, %v2787, %v3061
      %v3078 = vsel %vm2870, %v2792, %v3062
      %v3079 = vsel %vm2871, %v2797, %v3063
      %v3080 = vsel %vm2872, %v2802, %v3064
      %v3081 = vsel %vm2873, %v2807, %v3065
      %v3082 = vsel %vm2874, %v2812, %v3066
      %v3083 = vsel %vm2875, %v2817, %v3067
      %v3084 = vsel %vm2876, %v2822, %v3068
      %v3085 = vsel %vm2877, %v2827, %v3069
      %v3086 = vsel %vm2878, %v2832, %v3070
      %v3087 = vsel %vm2879, %v2837, %v3071
      %v3088 = vsel %vm2880, %v2842, %v3072
      %v3089 = vsel %vm2881, %v2847, %v3073
      %v3090 = vld [vmem:[%s3] sm:$0xff]
      %v3091 = vld [vmem:[%s3 + $0x8] sm:$0xff]
      %v3092 = vld [vmem:[%s3 + $0x10] sm:$0xff]
      %v3093 = vld [vmem:[%s3 + $0x18] sm:$0xff]
      %v3094 = vld [vmem:[%s3 + $0x20] sm:$0xff]
      %v3095 = vld [vmem:[%s3 + $0x28] sm:$0xff]
      %v3096 = vld [vmem:[%s3 + $0x30] sm:$0xff]
      %v3097 = vld [vmem:[%s3 + $0x38] sm:$0xff]
      %v3098 = vld [vmem:[%s4] sm:$0x1]
      %v3100 = vlaneseq
      %v3101 = vshrl.u32 %v3100, 7
      %v3102 = vsub.s32 0, %v3101
      %v3103 = vrot.slane %v3098, %v3102
      %v3106 = vsel %vm894, %v3074, 0
      %v3109 = vsel %vm894, %v3075, 0
      %v3112 = vsel %vm894, %v3076, 0
      %v3115 = vsel %vm894, %v3077, 0
      %v3118 = vsel %vm894, %v3078, 0
      %v3121 = vsel %vm894, %v3079, 0
      %v3124 = vsel %vm894, %v3080, 0
      %v3127 = vsel %vm894, %v3081, 0
      %v3130 = vsel %vm894, %v3082, 0
      %v3133 = vsel %vm894, %v3083, 0
      %v3136 = vsel %vm894, %v3084, 0
      %v3139 = vsel %vm894, %v3085, 0
      %v3142 = vsel %vm894, %v3086, 0
      %v3145 = vsel %vm894, %v3087, 0
      %v3148 = vsel %vm894, %v3088, 0
      %v3151 = vsel %vm894, %v3089, 0
      %3153 = vmatprep.subr.mxu0 0.0
      %3154 = vmatpush1.msra.mxu0 %v3090
      %3155 = vmatprep.subr.mxu0 0.0
      %3156 = vmatpush1.msra.mxu0 %v3091
      %3157 = vmatprep.subr.mxu0 0.0
      %3158 = vmatpush1.msra.mxu0 %v3092
      %3159 = vmatprep.subr.mxu0 0.0
      %3160 = vmatpush1.msra.mxu0 %v3093
      %3161 = vmatprep.subr.mxu0 0.0
      %3162 = vmatpush1.msra.mxu0 %v3094
      %3163 = vmatprep.subr.mxu0 0.0
      %3164 = vmatpush1.msra.mxu0 %v3095
      %3165 = vmatprep.subr.mxu0 0.0
      %3166 = vmatpush1.msra.mxu0 %v3096
      %3167 = vmatprep.subr.mxu0 0.0
      %3168 = vmatpush1.msra.mxu0 %v3097
      %3169 = vmatprep.subr.mxu0 0.0
      %3170 = vmatpush1.msra.mxu0 0.0
      %3171 = vmatprep.subr.mxu0 0.0
      %3172 = vmatpush1.msra.mxu0 0.0
      %3173 = vmatprep.subr.mxu0 0.0
      %3174 = vmatpush1.msra.mxu0 0.0
      %3175 = vmatprep.subr.mxu0 0.0
      %3176 = vmatpush1.msra.mxu0 0.0
      %3177 = vmatprep.subr.mxu0 0.0
      %3178 = vmatpush1.msra.mxu0 0.0
      %3179 = vmatprep.subr.mxu0 0.0
      %3180 = vmatpush1.msra.mxu0 0.0
      %3181 = vmatprep.subr.mxu0 0.0
      %3182 = vmatpush1.msra.mxu0 0.0
      %3183 = vmatprep.subr.mxu0 0.0
      %3184 = vmatpush1.msra.mxu0 0.0
      %3185 = vmatprep.subr.mxu0 0.0
      %3186 = vmatpush1.msra.mxu0 0.0
      %3187 = vmatprep.subr.mxu0 0.0
      %3188 = vmatpush1.msra.mxu0 0.0
      %3189 = vmatprep.subr.mxu0 0.0
      %3190 = vmatpush1.msra.mxu0 0.0
      %3191 = vmatprep.subr.mxu0 0.0
      %3192 = vmatpush1.msra.mxu0 0.0
      %3193 = vmatprep.subr.mxu0 0.0
      %3194 = vmatpush1.msra.mxu0 0.0
      %3195 = vmatprep.subr.mxu0 0.0
      %3196 = vmatpush1.msra.mxu0 0.0
      %3197 = vmatprep.subr.mxu0 0.0
      %3198 = vmatpush1.msra.mxu0 0.0
      %3199 = vmatprep.subr.mxu0 0.0
      %3200 = vmatpush1.msra.mxu0 0.0
      %3201 = vmatprep.subr.mxu0 0.0
      %3202 = vmatpush1.msra.mxu0 0.0
      %3203 = vmatprep.subr.mxu0 0.0
      %3204 = vmatpush1.msra.mxu0 0.0
      %3205 = vmatprep.subr.mxu0 0.0
      %3206 = vmatpush1.msra.mxu0 0.0
      %3207 = vmatprep.subr.mxu0 0.0
      %3208 = vmatpush1.msra.mxu0 0.0
      %3209 = vmatprep.subr.mxu0 0.0
      %3210 = vmatpush1.msra.mxu0 0.0
      %3211 = vmatprep.subr.mxu0 0.0
      %3212 = vmatpush1.msra.mxu0 0.0
      %3213 = vmatprep.subr.mxu0 0.0
      %3214 = vmatpush1.msra.mxu0 0.0
      %3215 = vmatprep.subr.mxu0 0.0
      %3216 = vmatpush1.msra.mxu0 0.0
      %3217 = vmatprep.mubr.f32.mxu0 0.0
      %3218 = vmatmul.mubr.f32.gmra.mrb[0].mxu0 %v3106
      %v3219 = vpop.f32.mrb[0].mxu0
      %v3220 = vadd.f32 %v3103, %v3219
      %v3221 = vpop.f32.mrb[0].mxu0
      %3222 = vmatprep.mubr.f32.mxu0 0.0
      %3223 = vmatmul.mubr.f32.gmra.mrb[0].mxu0 %v3109
      %v3224 = vpop.f32.mrb[0].mxu0
      %v3225 = vadd.f32 %v3103, %v3224
      %v3226 = vpop.f32.mrb[0].mxu0
      %3227 = vmatprep.mubr.f32.mxu0 0.0
      %3228 = vmatmul.mubr.f32.gmra.mrb[0].mxu0 %v3112
      %v3229 = vpop.f32.mrb[0].mxu0
      %v3230 = vadd.f32 %v3103, %v3229
      %v3231 = vpop.f32.mrb[0].mxu0
      %3232 = vmatprep.mubr.f32.mxu0 0.0
      %3233 = vmatmul.mubr.f32.gmra.mrb[0].mxu0 %v3115
      %v3234 = vpop.f32.mrb[0].mxu0
      %v3235 = vadd.f32 %v3103, %v3234
      %v3236 = vpop.f32.mrb[0].mxu0
      %3237 = vmatprep.mubr.f32.mxu0 0.0
      %3238 = vmatmul.mubr.f32.gmra.mrb[0].mxu0 %v3118
      %v3239 = vpop.f32.mrb[0].mxu0
      %v3240 = vadd.f32 %v3103, %v3239
      %v3241 = vpop.f32.mrb[0].mxu0
      %3242 = vmatprep.mubr.f32.mxu0 0.0
      %3243 = vmatmul.mubr.f32.gmra.mrb[0].mxu0 %v3121
      %v3244 = vpop.f32.mrb[0].mxu0
      %v3245 = vadd.f32 %v3103, %v3244
      %v3246 = vpop.f32.mrb[0].mxu0
      %3247 = vmatprep.mubr.f32.mxu0 0.0
      %3248 = vmatmul.mubr.f32.gmra.mrb[0].mxu0 %v3124
      %v3249 = vpop.f32.mrb[0].mxu0
      %v3250 = vadd.f32 %v3103, %v3249
      %v3251 = vpop.f32.mrb[0].mxu0
      %3252 = vmatprep.mubr.f32.mxu0 0.0
      %3253 = vmatmul.mubr.f32.gmra.mrb[0].mxu0 %v3127
      %v3254 = vpop.f32.mrb[0].mxu0
      %v3255 = vadd.f32 %v3103, %v3254
      %v3256 = vpop.f32.mrb[0].mxu0
      %3257 = vmatprep.mubr.f32.mxu0 0.0
      %3258 = vmatmul.mubr.f32.gmra.mrb[0].mxu0 %v3130
      %v3259 = vpop.f32.mrb[0].mxu0
      %v3260 = vadd.f32 %v3103, %v3259
      %v3261 = vpop.f32.mrb[0].mxu0
      %3262 = vmatprep.mubr.f32.mxu0 0.0
      %3263 = vmatmul.mubr.f32.gmra.mrb[0].mxu0 %v3133
      %v3264 = vpop.f32.mrb[0].mxu0
      %v3265 = vadd.f32 %v3103, %v3264
      %v3266 = vpop.f32.mrb[0].mxu0
      %3267 = vmatprep.mubr.f32.mxu0 0.0
      %3268 = vmatmul.mubr.f32.gmra.mrb[0].mxu0 %v3136
      %v3269 = vpop.f32.mrb[0].mxu0
      %v3270 = vadd.f32 %v3103, %v3269
      %v3271 = vpop.f32.mrb[0].mxu0
      %3272 = vmatprep.mubr.f32.mxu0 0.0
      %3273 = vmatmul.mubr.f32.gmra.mrb[0].mxu0 %v3139
      %v3274 = vpop.f32.mrb[0].mxu0
      %v3275 = vadd.f32 %v3103, %v3274
      %v3276 = vpop.f32.mrb[0].mxu0
      %3277 = vmatprep.mubr.f32.mxu0 0.0
      %3278 = vmatmul.mubr.f32.gmra.mrb[0].mxu0 %v3142
      %v3279 = vpop.f32.mrb[0].mxu0
      %v3280 = vadd.f32 %v3103, %v3279
      %v3281 = vpop.f32.mrb[0].mxu0
      %3282 = vmatprep.mubr.f32.mxu0 0.0
      %3283 = vmatmul.mubr.f32.gmra.mrb[0].mxu0 %v3145
      %v3284 = vpop.f32.mrb[0].mxu0
      %v3285 = vadd.f32 %v3103, %v3284
      %v3286 = vpop.f32.mrb[0].mxu0
      %3287 = vmatprep.mubr.f32.mxu0 0.0
      %3288 = vmatmul.mubr.f32.gmra.mrb[0].mxu0 %v3148
      %v3289 = vpop.f32.mrb[0].mxu0
      %v3290 = vadd.f32 %v3103, %v3289
      %v3291 = vpop.f32.mrb[0].mxu0
      %3292 = vmatprep.mubr.f32.mxu0 0.0
      %3293 = vmatmul.mubr.f32.gmra.mrb[0].mxu0 %v3151
      %v3294 = vpop.f32.mrb[0].mxu0
      %v3295 = vadd.f32 %v3103, %v3294
      %v3296 = vpop.f32.mrb[0].mxu0
      %3297 = vdwg.mxu0
      %v3298 = vmul.f32 %v3220, 100.0
      %v3299 = vmul.f32 %v3225, 100.0
      %v3300 = vmul.f32 %v3230, 100.0
      %v3301 = vmul.f32 %v3235, 100.0
      %v3302 = vmul.f32 %v3240, 100.0
      %v3303 = vmul.f32 %v3245, 100.0
      %v3304 = vmul.f32 %v3250, 100.0
      %v3305 = vmul.f32 %v3255, 100.0
      %v3306 = vmul.f32 %v3260, 100.0
      %v3307 = vmul.f32 %v3265, 100.0
      %v3308 = vmul.f32 %v3270, 100.0
      %v3309 = vmul.f32 %v3275, 100.0
      %v3310 = vmul.f32 %v3280, 100.0
      %v3311 = vmul.f32 %v3285, 100.0
      %v3312 = vmul.f32 %v3290, 100.0
      %v3313 = vmul.f32 %v3295, 100.0
      %vm3314 = vcmp.gt.f32.partialorder %v3298, 20.0
      %vm3315 = vcmp.gt.f32.partialorder %v3299, 20.0
      %vm3316 = vcmp.gt.f32.partialorder %v3300, 20.0
      %vm3317 = vcmp.gt.f32.partialorder %v3301, 20.0
      %vm3318 = vcmp.gt.f32.partialorder %v3302, 20.0
      %vm3319 = vcmp.gt.f32.partialorder %v3303, 20.0
      %vm3320 = vcmp.gt.f32.partialorder %v3304, 20.0
      %vm3321 = vcmp.gt.f32.partialorder %v3305, 20.0
      %vm3322 = vcmp.gt.f32.partialorder %v3306, 20.0
      %vm3323 = vcmp.gt.f32.partialorder %v3307, 20.0
      %vm3324 = vcmp.gt.f32.partialorder %v3308, 20.0
      %vm3325 = vcmp.gt.f32.partialorder %v3309, 20.0
      %vm3326 = vcmp.gt.f32.partialorder %v3310, 20.0
      %vm3327 = vcmp.gt.f32.partialorder %v3311, 20.0
      %vm3328 = vcmp.gt.f32.partialorder %v3312, 20.0
      %vm3329 = vcmp.gt.f32.partialorder %v3313, 20.0
      %v3330 = vmul.f32 %v3298, 1.442695
      %v3331 = vpow.pop %v3330
      %v3332 = vmul.f32 %v3299, 1.442695
      %v3333 = vpow.pop %v3332
      %v3334 = vmul.f32 %v3300, 1.442695
      %v3335 = vpow.pop %v3334
      %v3336 = vmul.f32 %v3301, 1.442695
      %v3337 = vpow.pop %v3336
      %v3338 = vmul.f32 %v3302, 1.442695
      %v3339 = vpow.pop %v3338
      %v3340 = vmul.f32 %v3303, 1.442695
      %v3341 = vpow.pop %v3340
      %v3342 = vmul.f32 %v3304, 1.442695
      %v3343 = vpow.pop %v3342
      %v3344 = vmul.f32 %v3305, 1.442695
      %v3345 = vpow.pop %v3344
      %v3346 = vmul.f32 %v3306, 1.442695
      %v3347 = vpow.pop %v3346
      %v3348 = vmul.f32 %v3307, 1.442695
      %v3349 = vpow.pop %v3348
      %v3350 = vmul.f32 %v3308, 1.442695
      %v3351 = vpow.pop %v3350
      %v3352 = vmul.f32 %v3309, 1.442695
      %v3353 = vpow.pop %v3352
      %v3354 = vmul.f32 %v3310, 1.442695
      %v3355 = vpow.pop %v3354
      %v3356 = vmul.f32 %v3311, 1.442695
      %v3357 = vpow.pop %v3356
      %v3358 = vmul.f32 %v3312, 1.442695
      %v3359 = vpow.pop %v3358
      %v3360 = vmul.f32 %v3313, 1.442695
      %v3361 = vpow.pop %v3360
      %v3362 = vadd.f32 %v3331, 1.0
      %v3363 = vlog2.pop %v3362
      %v3364 = vmul.f32 %v3363, 0.6931472
      %v3365 = vmul.f32 -0.5, %v3331
      %v3366 = vadd.f32 %v3365, 1.0
      %v3367 = vmul.f32 %v3366, %v3331
      %v3368 = vand.u32 2147483647, %v3331
      %vm3369 = vcmp.lt.f32.partialorder %v3368, 0.0004427343
      %v3370 = vsel %vm3369, %v3367, %v3364
      %v3371 = vadd.f32 %v3333, 1.0
      %v3372 = vlog2.pop %v3371
      %v3373 = vmul.f32 %v3372, 0.6931472
      %v3374 = vmul.f32 -0.5, %v3333
      %v3375 = vadd.f32 %v3374, 1.0
      %v3376 = vmul.f32 %v3375, %v3333
      %v3377 = vand.u32 2147483647, %v3333
      %vm3378 = vcmp.lt.f32.partialorder %v3377, 0.0004427343
      %v3379 = vsel %vm3378, %v3376, %v3373
      %v3380 = vadd.f32 %v3335, 1.0
      %v3381 = vlog2.pop %v3380
      %v3382 = vmul.f32 %v3381, 0.6931472
      %v3383 = vmul.f32 -0.5, %v3335
      %v3384 = vadd.f32 %v3383, 1.0
      %v3385 = vmul.f32 %v3384, %v3335
      %v3386 = vand.u32 2147483647, %v3335
      %vm3387 = vcmp.lt.f32.partialorder %v3386, 0.0004427343
      %v3388 = vsel %vm3387, %v3385, %v3382
      %v3389 = vadd.f32 %v3337, 1.0
      %v3390 = vlog2.pop %v3389
      %v3391 = vmul.f32 %v3390, 0.6931472
      %v3392 = vmul.f32 -0.5, %v3337
      %v3393 = vadd.f32 %v3392, 1.0
      %v3394 = vmul.f32 %v3393, %v3337
      %v3395 = vand.u32 2147483647, %v3337
      %vm3396 = vcmp.lt.f32.partialorder %v3395, 0.0004427343
      %v3397 = vsel %vm3396, %v3394, %v3391
      %v3398 = vadd.f32 %v3339, 1.0
      %v3399 = vlog2.pop %v3398
      %v3400 = vmul.f32 %v3399, 0.6931472
      %v3401 = vmul.f32 -0.5, %v3339
      %v3402 = vadd.f32 %v3401, 1.0
      %v3403 = vmul.f32 %v3402, %v3339
      %v3404 = vand.u32 2147483647, %v3339
      %vm3405 = vcmp.lt.f32.partialorder %v3404, 0.0004427343
      %v3406 = vsel %vm3405, %v3403, %v3400
      %v3407 = vadd.f32 %v3341, 1.0
      %v3408 = vlog2.pop %v3407
      %v3409 = vmul.f32 %v3408, 0.6931472
      %v3410 = vmul.f32 -0.5, %v3341
      %v3411 = vadd.f32 %v3410, 1.0
      %v3412 = vmul.f32 %v3411, %v3341
      %v3413 = vand.u32 2147483647, %v3341
      %vm3414 = vcmp.lt.f32.partialorder %v3413, 0.0004427343
      %v3415 = vsel %vm3414, %v3412, %v3409
      %v3416 = vadd.f32 %v3343, 1.0
      %v3417 = vlog2.pop %v3416
      %v3418 = vmul.f32 %v3417, 0.6931472
      %v3419 = vmul.f32 -0.5, %v3343
      %v3420 = vadd.f32 %v3419, 1.0
      %v3421 = vmul.f32 %v3420, %v3343
      %v3422 = vand.u32 2147483647, %v3343
      %vm3423 = vcmp.lt.f32.partialorder %v3422, 0.0004427343
      %v3424 = vsel %vm3423, %v3421, %v3418
      %v3425 = vadd.f32 %v3345, 1.0
      %v3426 = vlog2.pop %v3425
      %v3427 = vmul.f32 %v3426, 0.6931472
      %v3428 = vmul.f32 -0.5, %v3345
      %v3429 = vadd.f32 %v3428, 1.0
      %v3430 = vmul.f32 %v3429, %v3345
      %v3431 = vand.u32 2147483647, %v3345
      %vm3432 = vcmp.lt.f32.partialorder %v3431, 0.0004427343
      %v3433 = vsel %vm3432, %v3430, %v3427
      %v3434 = vadd.f32 %v3347, 1.0
      %v3435 = vlog2.pop %v3434
      %v3436 = vmul.f32 %v3435, 0.6931472
      %v3437 = vmul.f32 -0.5, %v3347
      %v3438 = vadd.f32 %v3437, 1.0
      %v3439 = vmul.f32 %v3438, %v3347
      %v3440 = vand.u32 2147483647, %v3347
      %vm3441 = vcmp.lt.f32.partialorder %v3440, 0.0004427343
      %v3442 = vsel %vm3441, %v3439, %v3436
      %v3443 = vadd.f32 %v3349, 1.0
      %v3444 = vlog2.pop %v3443
      %v3445 = vmul.f32 %v3444, 0.6931472
      %v3446 = vmul.f32 -0.5, %v3349
      %v3447 = vadd.f32 %v3446, 1.0
      %v3448 = vmul.f32 %v3447, %v3349
      %v3449 = vand.u32 2147483647, %v3349
      %vm3450 = vcmp.lt.f32.partialorder %v3449, 0.0004427343
      %v3451 = vsel %vm3450, %v3448, %v3445
      %v3452 = vadd.f32 %v3351, 1.0
      %v3453 = vlog2.pop %v3452
      %v3454 = vmul.f32 %v3453, 0.6931472
      %v3455 = vmul.f32 -0.5, %v3351
      %v3456 = vadd.f32 %v3455, 1.0
      %v3457 = vmul.f32 %v3456, %v3351
      %v3458 = vand.u32 2147483647, %v3351
      %vm3459 = vcmp.lt.f32.partialorder %v3458, 0.0004427343
      %v3460 = vsel %vm3459, %v3457, %v3454
      %v3461 = vadd.f32 %v3353, 1.0
      %v3462 = vlog2.pop %v3461
      %v3463 = vmul.f32 %v3462, 0.6931472
      %v3464 = vmul.f32 -0.5, %v3353
      %v3465 = vadd.f32 %v3464, 1.0
      %v3466 = vmul.f32 %v3465, %v3353
      %v3467 = vand.u32 2147483647, %v3353
      %vm3468 = vcmp.lt.f32.partialorder %v3467, 0.0004427343
      %v3469 = vsel %vm3468, %v3466, %v3463
      %v3470 = vadd.f32 %v3355, 1.0
      %v3471 = vlog2.pop %v3470
      %v3472 = vmul.f32 %v3471, 0.6931472
      %v3473 = vmul.f32 -0.5, %v3355
      %v3474 = vadd.f32 %v3473, 1.0
      %v3475 = vmul.f32 %v3474, %v3355
      %v3476 = vand.u32 2147483647, %v3355
      %vm3477 = vcmp.lt.f32.partialorder %v3476, 0.0004427343
      %v3478 = vsel %vm3477, %v3475, %v3472
      %v3479 = vadd.f32 %v3357, 1.0
      %v3480 = vlog2.pop %v3479
      %v3481 = vmul.f32 %v3480, 0.6931472
      %v3482 = vmul.f32 -0.5, %v3357
      %v3483 = vadd.f32 %v3482, 1.0
      %v3484 = vmul.f32 %v3483, %v3357
      %v3485 = vand.u32 2147483647, %v3357
      %vm3486 = vcmp.lt.f32.partialorder %v3485, 0.0004427343
      %v3487 = vsel %vm3486, %v3484, %v3481
      %v3488 = vadd.f32 %v3359, 1.0
      %v3489 = vlog2.pop %v3488
      %v3490 = vmul.f32 %v3489, 0.6931472
      %v3491 = vmul.f32 -0.5, %v3359
      %v3492 = vadd.f32 %v3491, 1.0
      %v3493 = vmul.f32 %v3492, %v3359
      %v3494 = vand.u32 2147483647, %v3359
      %vm3495 = vcmp.lt.f32.partialorder %v3494, 0.0004427343
      %v3496 = vsel %vm3495, %v3493, %v3490
      %v3497 = vadd.f32 %v3361, 1.0
      %v3498 = vlog2.pop %v3497
      %v3499 = vmul.f32 %v3498, 0.6931472
      %v3500 = vmul.f32 -0.5, %v3361
      %v3501 = vadd.f32 %v3500, 1.0
      %v3502 = vmul.f32 %v3501, %v3361
      %v3503 = vand.u32 2147483647, %v3361
      %vm3504 = vcmp.lt.f32.partialorder %v3503, 0.0004427343
      %v3505 = vsel %vm3504, %v3502, %v3499
      %v3506 = vmul.f32 %v3370, 0.01
      %v3507 = vmul.f32 %v3379, 0.01
      %v3508 = vmul.f32 %v3388, 0.01
      %v3509 = vmul.f32 %v3397, 0.01
      %v3510 = vmul.f32 %v3406, 0.01
      %v3511 = vmul.f32 %v3415, 0.01
      %v3512 = vmul.f32 %v3424, 0.01
      %v3513 = vmul.f32 %v3433, 0.01
      %v3514 = vmul.f32 %v3442, 0.01
      %v3515 = vmul.f32 %v3451, 0.01
      %v3516 = vmul.f32 %v3460, 0.01
      %v3517 = vmul.f32 %v3469, 0.01
      %v3518 = vmul.f32 %v3478, 0.01
      %v3519 = vmul.f32 %v3487, 0.01
      %v3520 = vmul.f32 %v3496, 0.01
      %v3521 = vmul.f32 %v3505, 0.01
      %v3522 = vsel %vm3314, %v3220, %v3506
      %v3523 = vsel %vm3315, %v3225, %v3507
      %v3524 = vsel %vm3316, %v3230, %v3508
      %v3525 = vsel %vm3317, %v3235, %v3509
      %v3526 = vsel %vm3318, %v3240, %v3510
      %v3527 = vsel %vm3319, %v3245, %v3511
      %v3528 = vsel %vm3320, %v3250, %v3512
      %v3529 = vsel %vm3321, %v3255, %v3513
      %v3530 = vsel %vm3322, %v3260, %v3514
      %v3531 = vsel %vm3323, %v3265, %v3515
      %v3532 = vsel %vm3324, %v3270, %v3516
      %v3533 = vsel %vm3325, %v3275, %v3517
      %v3534 = vsel %vm3326, %v3280, %v3518
      %v3535 = vsel %vm3327, %v3285, %v3519
      %v3536 = vsel %vm3328, %v3290, %v3520
      %v3537 = vsel %vm3329, %v3295, %v3521
      %v3538 = vld [vmem:[%s5] sm:$0xff]
      %v3539 = vld [vmem:[%s5 + $0x8] sm:$0xff]
      %v3540 = vld [vmem:[%s5 + $0x10] sm:$0xff]
      %v3541 = vld [vmem:[%s5 + $0x18] sm:$0xff]
      %v3542 = vld [vmem:[%s5 + $0x20] sm:$0xff]
      %v3543 = vld [vmem:[%s5 + $0x28] sm:$0xff]
      %v3544 = vld [vmem:[%s5 + $0x30] sm:$0xff]
      %v3545 = vld [vmem:[%s5 + $0x38] sm:$0xff]
      %v3546 = vld [vmem:[%s6] sm:$0x7]
      %v3548 = vsel %vm490, %v3546, 0
      %3550 = vmatprep.subr.mxu0 0.0
      %3551 = vmatpush1.msra.mxu0 %v3548
      %3552 = vmatprep.subr.mxu0 0.0
      %3553 = vmatpush1.msra.mxu0 0.0
      %3554 = vmatprep.subr.mxu0 0.0
      %3555 = vmatpush1.msra.mxu0 0.0
      %3556 = vmatprep.subr.mxu0 0.0
      %3557 = vmatpush1.msra.mxu0 0.0
      %3558 = vmatprep.subr.mxu0 0.0
      %3559 = vmatpush1.msra.mxu0 0.0
      %3560 = vmatprep.subr.mxu0 0.0
      %3561 = vmatpush1.msra.mxu0 0.0
      %3562 = vmatprep.subr.mxu0 0.0
      %3563 = vmatpush1.msra.mxu0 0.0
      %3564 = vmatprep.subr.mxu0 0.0
      %3565 = vmatpush1.msra.mxu0 0.0
      %3566 = vmatprep.subr.mxu0 0.0
      %3567 = vmatpush1.msra.mxu0 0.0
      %3568 = vmatprep.subr.mxu0 0.0
      %3569 = vmatpush1.msra.mxu0 0.0
      %3570 = vmatprep.subr.mxu0 0.0
      %3571 = vmatpush1.msra.mxu0 0.0
      %3572 = vmatprep.subr.mxu0 0.0
      %3573 = vmatpush1.msra.mxu0 0.0
      %3574 = vmatprep.subr.mxu0 0.0
      %3575 = vmatpush1.msra.mxu0 0.0
      %3576 = vmatprep.subr.mxu0 0.0
      %3577 = vmatpush1.msra.mxu0 0.0
      %3578 = vmatprep.subr.mxu0 0.0
      %3579 = vmatpush1.msra.mxu0 0.0
      %3580 = vmatprep.subr.mxu0 0.0
      %3581 = vmatpush1.msra.mxu0 0.0
      %3582 = vmatprep.subr.mxu0 0.0
      %3583 = vmatpush1.msra.mxu0 0.0
      %3584 = vmatprep.subr.mxu0 0.0
      %3585 = vmatpush1.msra.mxu0 0.0
      %3586 = vmatprep.subr.mxu0 0.0
      %3587 = vmatpush1.msra.mxu0 0.0
      %3588 = vmatprep.subr.mxu0 0.0
      %3589 = vmatpush1.msra.mxu0 0.0
      %3590 = vmatprep.subr.mxu0 0.0
      %3591 = vmatpush1.msra.mxu0 0.0
      %3592 = vmatprep.subr.mxu0 0.0
      %3593 = vmatpush1.msra.mxu0 0.0
      %3594 = vmatprep.subr.mxu0 0.0
      %3595 = vmatpush1.msra.mxu0 0.0
      %3596 = vmatprep.subr.mxu0 0.0
      %3597 = vmatpush1.msra.mxu0 0.0
      %3598 = vmatprep.subr.mxu0 0.0
      %3599 = vmatpush1.msra.mxu0 0.0
      %3600 = vmatprep.subr.mxu0 0.0
      %3601 = vmatpush1.msra.mxu0 0.0
      %3602 = vmatprep.subr.mxu0 0.0
      %3603 = vmatpush1.msra.mxu0 0.0
      %3604 = vmatprep.subr.mxu0 0.0
      %3605 = vmatpush1.msra.mxu0 0.0
      %3606 = vmatprep.subr.mxu0 0.0
      %3607 = vmatpush1.msra.mxu0 0.0
      %3608 = vmatprep.subr.mxu0 0.0
      %3609 = vmatpush1.msra.mxu0 0.0
      %3610 = vmatprep.subr.mxu0 0.0
      %3611 = vmatpush1.msra.mxu0 0.0
      %3612 = vmatprep.subr.mxu0 0.0
      %3613 = vmatpush1.msra.mxu0 0.0
      %3614 = vmatprep.mubr.f32.mxu0 0.0
      %3615 = vmatmul.mubr.f32.gmra.mrb[0].mxu0 %v2655
      %v3616 = vpop.f32.mrb[0].mxu0
      %v3617 = vadd.f32 0.0, %v3616
      %v3618 = vpop.f32.mrb[0].mxu0
      %3619 = vmatprep.mubr.f32.mxu0 0.0
      %3620 = vmatmul.mubr.f32.gmra.mrb[0].mxu0 %v2658
      %v3621 = vpop.f32.mrb[0].mxu0
      %v3622 = vadd.f32 0.0, %v3621
      %v3623 = vpop.f32.mrb[0].mxu0
      %3624 = vmatprep.mubr.f32.mxu0 0.0
      %3625 = vmatmul.mubr.f32.gmra.mrb[0].mxu0 %v2661
      %v3626 = vpop.f32.mrb[0].mxu0
      %v3627 = vadd.f32 0.0, %v3626
      %v3628 = vpop.f32.mrb[0].mxu0
      %3629 = vmatprep.mubr.f32.mxu0 0.0
      %3630 = vmatmul.mubr.f32.gmra.mrb[0].mxu0 %v2664
      %v3631 = vpop.f32.mrb[0].mxu0
      %v3632 = vadd.f32 0.0, %v3631
      %v3633 = vpop.f32.mrb[0].mxu0
      %3634 = vmatprep.mubr.f32.mxu0 0.0
      %3635 = vmatmul.mubr.f32.gmra.mrb[0].mxu0 %v2667
      %v3636 = vpop.f32.mrb[0].mxu0
      %v3637 = vadd.f32 0.0, %v3636
      %v3638 = vpop.f32.mrb[0].mxu0
      %3639 = vmatprep.mubr.f32.mxu0 0.0
      %3640 = vmatmul.mubr.f32.gmra.mrb[0].mxu0 %v2670
      %v3641 = vpop.f32.mrb[0].mxu0
      %v3642 = vadd.f32 0.0, %v3641
      %v3643 = vpop.f32.mrb[0].mxu0
      %3644 = vmatprep.mubr.f32.mxu0 0.0
      %3645 = vmatmul.mubr.f32.gmra.mrb[0].mxu0 %v2673
      %v3646 = vpop.f32.mrb[0].mxu0
      %v3647 = vadd.f32 0.0, %v3646
      %v3648 = vpop.f32.mrb[0].mxu0
      %3649 = vmatprep.mubr.f32.mxu0 0.0
      %3650 = vmatmul.mubr.f32.gmra.mrb[0].mxu0 %v2676
      %v3651 = vpop.f32.mrb[0].mxu0
      %v3652 = vadd.f32 0.0, %v3651
      %v3653 = vpop.f32.mrb[0].mxu0
      %3654 = vmatprep.mubr.f32.mxu0 0.0
      %3655 = vmatmul.mubr.f32.gmra.mrb[0].mxu0 %v2679
      %v3656 = vpop.f32.mrb[0].mxu0
      %v3657 = vadd.f32 0.0, %v3656
      %v3658 = vpop.f32.mrb[0].mxu0
      %3659 = vmatprep.mubr.f32.mxu0 0.0
      %3660 = vmatmul.mubr.f32.gmra.mrb[0].mxu0 %v2682
      %v3661 = vpop.f32.mrb[0].mxu0
      %v3662 = vadd.f32 0.0, %v3661
      %v3663 = vpop.f32.mrb[0].mxu0
      %3664 = vmatprep.mubr.f32.mxu0 0.0
      %3665 = vmatmul.mubr.f32.gmra.mrb[0].mxu0 %v2685
      %v3666 = vpop.f32.mrb[0].mxu0
      %v3667 = vadd.f32 0.0, %v3666
      %v3668 = vpop.f32.mrb[0].mxu0
      %3669 = vmatprep.mubr.f32.mxu0 0.0
      %3670 = vmatmul.mubr.f32.gmra.mrb[0].mxu0 %v2688
      %v3671 = vpop.f32.mrb[0].mxu0
      %v3672 = vadd.f32 0.0, %v3671
      %v3673 = vpop.f32.mrb[0].mxu0
      %3674 = vmatprep.mubr.f32.mxu0 0.0
      %3675 = vmatmul.mubr.f32.gmra.mrb[0].mxu0 %v2691
      %v3676 = vpop.f32.mrb[0].mxu0
      %v3677 = vadd.f32 0.0, %v3676
      %v3678 = vpop.f32.mrb[0].mxu0
      %3679 = vmatprep.mubr.f32.mxu0 0.0
      %3680 = vmatmul.mubr.f32.gmra.mrb[0].mxu0 %v2694
      %v3681 = vpop.f32.mrb[0].mxu0
      %v3682 = vadd.f32 0.0, %v3681
      %v3683 = vpop.f32.mrb[0].mxu0
      %3684 = vmatprep.mubr.f32.mxu0 0.0
      %3685 = vmatmul.mubr.f32.gmra.mrb[0].mxu0 %v2697
      %v3686 = vpop.f32.mrb[0].mxu0
      %v3687 = vadd.f32 0.0, %v3686
      %v3688 = vpop.f32.mrb[0].mxu0
      %3689 = vmatprep.mubr.f32.mxu0 0.0
      %3690 = vmatmul.mubr.f32.gmra.mrb[0].mxu0 %v2700
      %v3691 = vpop.f32.mrb[0].mxu0
      %v3692 = vadd.f32 0.0, %v3691
      %v3693 = vpop.f32.mrb[0].mxu0
      %3694 = vdwg.mxu0
      %v3696 = vsel %vm894, %v3522, 0
      %v3699 = vsel %vm894, %v3523, 0
      %v3702 = vsel %vm894, %v3524, 0
      %v3705 = vsel %vm894, %v3525, 0
      %v3708 = vsel %vm894, %v3526, 0
      %v3711 = vsel %vm894, %v3527, 0
      %v3714 = vsel %vm894, %v3528, 0
      %v3717 = vsel %vm894, %v3529, 0
      %v3720 = vsel %vm894, %v3530, 0
      %v3723 = vsel %vm894, %v3531, 0
      %v3726 = vsel %vm894, %v3532, 0
      %v3729 = vsel %vm894, %v3533, 0
      %v3732 = vsel %vm894, %v3534, 0
      %v3735 = vsel %vm894, %v3535, 0
      %v3738 = vsel %vm894, %v3536, 0
      %v3741 = vsel %vm894, %v3537, 0
      %3743 = vmatprep.subr.mxu0 0.0
      %3744 = vmatpush1.msra.mxu0 %v3538
      %3745 = vmatprep.subr.mxu0 0.0
      %3746 = vmatpush1.msra.mxu0 %v3539
      %3747 = vmatprep.subr.mxu0 0.0
      %3748 = vmatpush1.msra.mxu0 %v3540
      %3749 = vmatprep.subr.mxu0 0.0
      %3750 = vmatpush1.msra.mxu0 %v3541
      %3751 = vmatprep.subr.mxu0 0.0
      %3752 = vmatpush1.msra.mxu0 %v3542
      %3753 = vmatprep.subr.mxu0 0.0
      %3754 = vmatpush1.msra.mxu0 %v3543
      %3755 = vmatprep.subr.mxu0 0.0
      %3756 = vmatpush1.msra.mxu0 %v3544
      %3757 = vmatprep.subr.mxu0 0.0
      %3758 = vmatpush1.msra.mxu0 %v3545
      %3759 = vmatprep.subr.mxu0 0.0
      %3760 = vmatpush1.msra.mxu0 0.0
      %3761 = vmatprep.subr.mxu0 0.0
      %3762 = vmatpush1.msra.mxu0 0.0
      %3763 = vmatprep.subr.mxu0 0.0
      %3764 = vmatpush1.msra.mxu0 0.0
      %3765 = vmatprep.subr.mxu0 0.0
      %3766 = vmatpush1.msra.mxu0 0.0
      %3767 = vmatprep.subr.mxu0 0.0
      %3768 = vmatpush1.msra.mxu0 0.0
      %3769 = vmatprep.subr.mxu0 0.0
      %3770 = vmatpush1.msra.mxu0 0.0
      %3771 = vmatprep.subr.mxu0 0.0
      %3772 = vmatpush1.msra.mxu0 0.0
      %3773 = vmatprep.subr.mxu0 0.0
      %3774 = vmatpush1.msra.mxu0 0.0
      %3775 = vmatprep.subr.mxu0 0.0
      %3776 = vmatpush1.msra.mxu0 0.0
      %3777 = vmatprep.subr.mxu0 0.0
      %3778 = vmatpush1.msra.mxu0 0.0
      %3779 = vmatprep.subr.mxu0 0.0
      %3780 = vmatpush1.msra.mxu0 0.0
      %3781 = vmatprep.subr.mxu0 0.0
      %3782 = vmatpush1.msra.mxu0 0.0
      %3783 = vmatprep.subr.mxu0 0.0
      %3784 = vmatpush1.msra.mxu0 0.0
      %3785 = vmatprep.subr.mxu0 0.0
      %3786 = vmatpush1.msra.mxu0 0.0
      %3787 = vmatprep.subr.mxu0 0.0
      %3788 = vmatpush1.msra.mxu0 0.0
      %3789 = vmatprep.subr.mxu0 0.0
      %3790 = vmatpush1.msra.mxu0 0.0
      %3791 = vmatprep.subr.mxu0 0.0
      %3792 = vmatpush1.msra.mxu0 0.0
      %3793 = vmatprep.subr.mxu0 0.0
      %3794 = vmatpush1.msra.mxu0 0.0
      %3795 = vmatprep.subr.mxu0 0.0
      %3796 = vmatpush1.msra.mxu0 0.0
      %3797 = vmatprep.subr.mxu0 0.0
      %3798 = vmatpush1.msra.mxu0 0.0
      %3799 = vmatprep.subr.mxu0 0.0
      %3800 = vmatpush1.msra.mxu0 0.0
      %3801 = vmatprep.subr.mxu0 0.0
      %3802 = vmatpush1.msra.mxu0 0.0
      %3803 = vmatprep.subr.mxu0 0.0
      %3804 = vmatpush1.msra.mxu0 0.0
      %3805 = vmatprep.subr.mxu0 0.0
      %3806 = vmatpush1.msra.mxu0 0.0
      %3807 = vmatprep.mubr.f32.mxu0 0.0
      %3808 = vmatmul.mubr.f32.gmra.mrb[0].mxu0 %v3696
      %v3809 = vpop.f32.mrb[0].mxu0
      %v3810 = vadd.f32 %v3617, %v3809
      %v3811 = vpop.f32.mrb[0].mxu0
      %3812 = vmatprep.mubr.f32.mxu0 0.0
      %3813 = vmatmul.mubr.f32.gmra.mrb[0].mxu0 %v3699
      %v3814 = vpop.f32.mrb[0].mxu0
      %v3815 = vadd.f32 %v3622, %v3814
      %v3816 = vpop.f32.mrb[0].mxu0
      %3817 = vmatprep.mubr.f32.mxu0 0.0
      %3818 = vmatmul.mubr.f32.gmra.mrb[0].mxu0 %v3702
      %v3819 = vpop.f32.mrb[0].mxu0
      %v3820 = vadd.f32 %v3627, %v3819
      %v3821 = vpop.f32.mrb[0].mxu0
      %3822 = vmatprep.mubr.f32.mxu0 0.0
      %3823 = vmatmul.mubr.f32.gmra.mrb[0].mxu0 %v3705
      %v3824 = vpop.f32.mrb[0].mxu0
      %v3825 = vadd.f32 %v3632, %v3824
      %v3826 = vpop.f32.mrb[0].mxu0
      %3827 = vmatprep.mubr.f32.mxu0 0.0
      %3828 = vmatmul.mubr.f32.gmra.mrb[0].mxu0 %v3708
      %v3829 = vpop.f32.mrb[0].mxu0
      %v3830 = vadd.f32 %v3637, %v3829
      %v3831 = vpop.f32.mrb[0].mxu0
      %3832 = vmatprep.mubr.f32.mxu0 0.0
      %3833 = vmatmul.mubr.f32.gmra.mrb[0].mxu0 %v3711
      %v3834 = vpop.f32.mrb[0].mxu0
      %v3835 = vadd.f32 %v3642, %v3834
      %v3836 = vpop.f32.mrb[0].mxu0
      %3837 = vmatprep.mubr.f32.mxu0 0.0
      %3838 = vmatmul.mubr.f32.gmra.mrb[0].mxu0 %v3714
      %v3839 = vpop.f32.mrb[0].mxu0
      %v3840 = vadd.f32 %v3647, %v3839
      %v3841 = vpop.f32.mrb[0].mxu0
      %3842 = vmatprep.mubr.f32.mxu0 0.0
      %3843 = vmatmul.mubr.f32.gmra.mrb[0].mxu0 %v3717
      %v3844 = vpop.f32.mrb[0].mxu0
      %v3845 = vadd.f32 %v3652, %v3844
      %v3846 = vpop.f32.mrb[0].mxu0
      %3847 = vmatprep.mubr.f32.mxu0 0.0
      %3848 = vmatmul.mubr.f32.gmra.mrb[0].mxu0 %v3720
      %v3849 = vpop.f32.mrb[0].mxu0
      %v3850 = vadd.f32 %v3657, %v3849
      %v3851 = vpop.f32.mrb[0].mxu0
      %3852 = vmatprep.mubr.f32.mxu0 0.0
      %3853 = vmatmul.mubr.f32.gmra.mrb[0].mxu0 %v3723
      %v3854 = vpop.f32.mrb[0].mxu0
      %v3855 = vadd.f32 %v3662, %v3854
      %v3856 = vpop.f32.mrb[0].mxu0
      %3857 = vmatprep.mubr.f32.mxu0 0.0
      %3858 = vmatmul.mubr.f32.gmra.mrb[0].mxu0 %v3726
      %v3859 = vpop.f32.mrb[0].mxu0
      %v3860 = vadd.f32 %v3667, %v3859
      %v3861 = vpop.f32.mrb[0].mxu0
      %3862 = vmatprep.mubr.f32.mxu0 0.0
      %3863 = vmatmul.mubr.f32.gmra.mrb[0].mxu0 %v3729
      %v3864 = vpop.f32.mrb[0].mxu0
      %v3865 = vadd.f32 %v3672, %v3864
      %v3866 = vpop.f32.mrb[0].mxu0
      %3867 = vmatprep.mubr.f32.mxu0 0.0
      %3868 = vmatmul.mubr.f32.gmra.mrb[0].mxu0 %v3732
      %v3869 = vpop.f32.mrb[0].mxu0
      %v3870 = vadd.f32 %v3677, %v3869
      %v3871 = vpop.f32.mrb[0].mxu0
      %3872 = vmatprep.mubr.f32.mxu0 0.0
      %3873 = vmatmul.mubr.f32.gmra.mrb[0].mxu0 %v3735
      %v3874 = vpop.f32.mrb[0].mxu0
      %v3875 = vadd.f32 %v3682, %v3874
      %v3876 = vpop.f32.mrb[0].mxu0
      %3877 = vmatprep.mubr.f32.mxu0 0.0
      %3878 = vmatmul.mubr.f32.gmra.mrb[0].mxu0 %v3738
      %v3879 = vpop.f32.mrb[0].mxu0
      %v3880 = vadd.f32 %v3687, %v3879
      %v3881 = vpop.f32.mrb[0].mxu0
      %3882 = vmatprep.mubr.f32.mxu0 0.0
      %3883 = vmatmul.mubr.f32.gmra.mrb[0].mxu0 %v3741
      %v3884 = vpop.f32.mrb[0].mxu0
      %v3885 = vadd.f32 %v3692, %v3884
      %v3886 = vpop.f32.mrb[0].mxu0
      %3887 = vdwg.mxu0
      %v3888 = vmul.f32 %v3810, 0.70710677
      %v3889 = vmul.f32 %v3815, 0.70710677
      %v3890 = vmul.f32 %v3820, 0.70710677
      %v3891 = vmul.f32 %v3825, 0.70710677
      %v3892 = vmul.f32 %v3830, 0.70710677
      %v3893 = vmul.f32 %v3835, 0.70710677
      %v3894 = vmul.f32 %v3840, 0.70710677
      %v3895 = vmul.f32 %v3845, 0.70710677
      %v3896 = vmul.f32 %v3850, 0.70710677
      %v3897 = vmul.f32 %v3855, 0.70710677
      %v3898 = vmul.f32 %v3860, 0.70710677
      %v3899 = vmul.f32 %v3865, 0.70710677
      %v3900 = vmul.f32 %v3870, 0.70710677
      %v3901 = vmul.f32 %v3875, 0.70710677
      %v3902 = vmul.f32 %v3880, 0.70710677
      %v3903 = vmul.f32 %v3885, 0.70710677
      %v3904 = vld [vmem:[%s7] sm:$0x1]
      %v3906 = vlaneseq
      %v3907 = vshrl.u32 %v3906, 7
      %v3908 = vsub.s32 0, %v3907
      %v3909 = vrot.slane %v3904, %v3908
      %v3911 = vadd.f32 %v3888, %v3909
      %v3912 = vadd.f32 %v3889, %v3909
      %v3913 = vadd.f32 %v3890, %v3909
      %v3914 = vadd.f32 %v3891, %v3909
      %v3915 = vadd.f32 %v3892, %v3909
      %v3916 = vadd.f32 %v3893, %v3909
      %v3917 = vadd.f32 %v3894, %v3909
      %v3918 = vadd.f32 %v3895, %v3909
      %v3919 = vadd.f32 %v3896, %v3909
      %v3920 = vadd.f32 %v3897, %v3909
      %v3921 = vadd.f32 %v3898, %v3909
      %v3922 = vadd.f32 %v3899, %v3909
      %v3923 = vadd.f32 %v3900, %v3909
      %v3924 = vadd.f32 %v3901, %v3909
      %v3925 = vadd.f32 %v3902, %v3909
      %v3926 = vadd.f32 %v3903, %v3909
      %v3927 = vmul.f32 %v3911, 100.0
      %v3928 = vmul.f32 %v3912, 100.0
      %v3929 = vmul.f32 %v3913, 100.0
      %v3930 = vmul.f32 %v3914, 100.0
      %v3931 = vmul.f32 %v3915, 100.0
      %v3932 = vmul.f32 %v3916, 100.0
      %v3933 = vmul.f32 %v3917, 100.0
      %v3934 = vmul.f32 %v3918, 100.0
      %v3935 = vmul.f32 %v3919, 100.0
      %v3936 = vmul.f32 %v3920, 100.0
      %v3937 = vmul.f32 %v3921, 100.0
      %v3938 = vmul.f32 %v3922, 100.0
      %v3939 = vmul.f32 %v3923, 100.0
      %v3940 = vmul.f32 %v3924, 100.0
      %v3941 = vmul.f32 %v3925, 100.0
      %v3942 = vmul.f32 %v3926, 100.0
      %vm3943 = vcmp.gt.f32.partialorder %v3927, 20.0
      %vm3944 = vcmp.gt.f32.partialorder %v3928, 20.0
      %vm3945 = vcmp.gt.f32.partialorder %v3929, 20.0
      %vm3946 = vcmp.gt.f32.partialorder %v3930, 20.0
      %vm3947 = vcmp.gt.f32.partialorder %v3931, 20.0
      %vm3948 = vcmp.gt.f32.partialorder %v3932, 20.0
      %vm3949 = vcmp.gt.f32.partialorder %v3933, 20.0
      %vm3950 = vcmp.gt.f32.partialorder %v3934, 20.0
      %vm3951 = vcmp.gt.f32.partialorder %v3935, 20.0
      %vm3952 = vcmp.gt.f32.partialorder %v3936, 20.0
      %vm3953 = vcmp.gt.f32.partialorder %v3937, 20.0
      %vm3954 = vcmp.gt.f32.partialorder %v3938, 20.0
      %vm3955 = vcmp.gt.f32.partialorder %v3939, 20.0
      %vm3956 = vcmp.gt.f32.partialorder %v3940, 20.0
      %vm3957 = vcmp.gt.f32.partialorder %v3941, 20.0
      %vm3958 = vcmp.gt.f32.partialorder %v3942, 20.0
      %v3959 = vmul.f32 %v3927, 1.442695
      %v3960 = vpow.pop %v3959
      %v3961 = vmul.f32 %v3928, 1.442695
      %v3962 = vpow.pop %v3961
      %v3963 = vmul.f32 %v3929, 1.442695
      %v3964 = vpow.pop %v3963
      %v3965 = vmul.f32 %v3930, 1.442695
      %v3966 = vpow.pop %v3965
      %v3967 = vmul.f32 %v3931, 1.442695
      %v3968 = vpow.pop %v3967
      %v3969 = vmul.f32 %v3932, 1.442695
      %v3970 = vpow.pop %v3969
      %v3971 = vmul.f32 %v3933, 1.442695
      %v3972 = vpow.pop %v3971
      %v3973 = vmul.f32 %v3934, 1.442695
      %v3974 = vpow.pop %v3973
      %v3975 = vmul.f32 %v3935, 1.442695
      %v3976 = vpow.pop %v3975
      %v3977 = vmul.f32 %v3936, 1.442695
      %v3978 = vpow.pop %v3977
      %v3979 = vmul.f32 %v3937, 1.442695
      %v3980 = vpow.pop %v3979
      %v3981 = vmul.f32 %v3938, 1.442695
      %v3982 = vpow.pop %v3981
      %v3983 = vmul.f32 %v3939, 1.442695
      %v3984 = vpow.pop %v3983
      %v3985 = vmul.f32 %v3940, 1.442695
      %v3986 = vpow.pop %v3985
      %v3987 = vmul.f32 %v3941, 1.442695
      %v3988 = vpow.pop %v3987
      %v3989 = vmul.f32 %v3942, 1.442695
      %v3990 = vpow.pop %v3989
      %v3991 = vadd.f32 %v3960, 1.0
      %v3992 = vlog2.pop %v3991
      %v3993 = vmul.f32 %v3992, 0.6931472
      %v3994 = vmul.f32 -0.5, %v3960
      %v3995 = vadd.f32 %v3994, 1.0
      %v3996 = vmul.f32 %v3995, %v3960
      %v3997 = vand.u32 2147483647, %v3960
      %vm3998 = vcmp.lt.f32.partialorder %v3997, 0.0004427343
      %v3999 = vsel %vm3998, %v3996, %v3993
      %v4000 = vadd.f32 %v3962, 1.0
      %v4001 = vlog2.pop %v4000
      %v4002 = vmul.f32 %v4001, 0.6931472
      %v4003 = vmul.f32 -0.5, %v3962
      %v4004 = vadd.f32 %v4003, 1.0
      %v4005 = vmul.f32 %v4004, %v3962
      %v4006 = vand.u32 2147483647, %v3962
      %vm4007 = vcmp.lt.f32.partialorder %v4006, 0.0004427343
      %v4008 = vsel %vm4007, %v4005, %v4002
      %v4009 = vadd.f32 %v3964, 1.0
      %v4010 = vlog2.pop %v4009
      %v4011 = vmul.f32 %v4010, 0.6931472
      %v4012 = vmul.f32 -0.5, %v3964
      %v4013 = vadd.f32 %v4012, 1.0
      %v4014 = vmul.f32 %v4013, %v3964
      %v4015 = vand.u32 2147483647, %v3964
      %vm4016 = vcmp.lt.f32.partialorder %v4015, 0.0004427343
      %v4017 = vsel %vm4016, %v4014, %v4011
      %v4018 = vadd.f32 %v3966, 1.0
      %v4019 = vlog2.pop %v4018
      %v4020 = vmul.f32 %v4019, 0.6931472
      %v4021 = vmul.f32 -0.5, %v3966
      %v4022 = vadd.f32 %v4021, 1.0
      %v4023 = vmul.f32 %v4022, %v3966
      %v4024 = vand.u32 2147483647, %v3966
      %vm4025 = vcmp.lt.f32.partialorder %v4024, 0.0004427343
      %v4026 = vsel %vm4025, %v4023, %v4020
      %v4027 = vadd.f32 %v3968, 1.0
      %v4028 = vlog2.pop %v4027
      %v4029 = vmul.f32 %v4028, 0.6931472
      %v4030 = vmul.f32 -0.5, %v3968
      %v4031 = vadd.f32 %v4030, 1.0
      %v4032 = vmul.f32 %v4031, %v3968
      %v4033 = vand.u32 2147483647, %v3968
      %vm4034 = vcmp.lt.f32.partialorder %v4033, 0.0004427343
      %v4035 = vsel %vm4034, %v4032, %v4029
      %v4036 = vadd.f32 %v3970, 1.0
      %v4037 = vlog2.pop %v4036
      %v4038 = vmul.f32 %v4037, 0.6931472
      %v4039 = vmul.f32 -0.5, %v3970
      %v4040 = vadd.f32 %v4039, 1.0
      %v4041 = vmul.f32 %v4040, %v3970
      %v4042 = vand.u32 2147483647, %v3970
      %vm4043 = vcmp.lt.f32.partialorder %v4042, 0.0004427343
      %v4044 = vsel %vm4043, %v4041, %v4038
      %v4045 = vadd.f32 %v3972, 1.0
      %v4046 = vlog2.pop %v4045
      %v4047 = vmul.f32 %v4046, 0.6931472
      %v4048 = vmul.f32 -0.5, %v3972
      %v4049 = vadd.f32 %v4048, 1.0
      %v4050 = vmul.f32 %v4049, %v3972
      %v4051 = vand.u32 2147483647, %v3972
      %vm4052 = vcmp.lt.f32.partialorder %v4051, 0.0004427343
      %v4053 = vsel %vm4052, %v4050, %v4047
      %v4054 = vadd.f32 %v3974, 1.0
      %v4055 = vlog2.pop %v4054
      %v4056 = vmul.f32 %v4055, 0.6931472
      %v4057 = vmul.f32 -0.5, %v3974
      %v4058 = vadd.f32 %v4057, 1.0
      %v4059 = vmul.f32 %v4058, %v3974
      %v4060 = vand.u32 2147483647, %v3974
      %vm4061 = vcmp.lt.f32.partialorder %v4060, 0.0004427343
      %v4062 = vsel %vm4061, %v4059, %v4056
      %v4063 = vadd.f32 %v3976, 1.0
      %v4064 = vlog2.pop %v4063
      %v4065 = vmul.f32 %v4064, 0.6931472
      %v4066 = vmul.f32 -0.5, %v3976
      %v4067 = vadd.f32 %v4066, 1.0
      %v4068 = vmul.f32 %v4067, %v3976
      %v4069 = vand.u32 2147483647, %v3976
      %vm4070 = vcmp.lt.f32.partialorder %v4069, 0.0004427343
      %v4071 = vsel %vm4070, %v4068, %v4065
      %v4072 = vadd.f32 %v3978, 1.0
      %v4073 = vlog2.pop %v4072
      %v4074 = vmul.f32 %v4073, 0.6931472
      %v4075 = vmul.f32 -0.5, %v3978
      %v4076 = vadd.f32 %v4075, 1.0
      %v4077 = vmul.f32 %v4076, %v3978
      %v4078 = vand.u32 2147483647, %v3978
      %vm4079 = vcmp.lt.f32.partialorder %v4078, 0.0004427343
      %v4080 = vsel %vm4079, %v4077, %v4074
      %v4081 = vadd.f32 %v3980, 1.0
      %v4082 = vlog2.pop %v4081
      %v4083 = vmul.f32 %v4082, 0.6931472
      %v4084 = vmul.f32 -0.5, %v3980
      %v4085 = vadd.f32 %v4084, 1.0
      %v4086 = vmul.f32 %v4085, %v3980
      %v4087 = vand.u32 2147483647, %v3980
      %vm4088 = vcmp.lt.f32.partialorder %v4087, 0.0004427343
      %v4089 = vsel %vm4088, %v4086, %v4083
      %v4090 = vadd.f32 %v3982, 1.0
      %v4091 = vlog2.pop %v4090
      %v4092 = vmul.f32 %v4091, 0.6931472
      %v4093 = vmul.f32 -0.5, %v3982
      %v4094 = vadd.f32 %v4093, 1.0
      %v4095 = vmul.f32 %v4094, %v3982
      %v4096 = vand.u32 2147483647, %v3982
      %vm4097 = vcmp.lt.f32.partialorder %v4096, 0.0004427343
      %v4098 = vsel %vm4097, %v4095, %v4092
      %v4099 = vadd.f32 %v3984, 1.0
      %v4100 = vlog2.pop %v4099
      %v4101 = vmul.f32 %v4100, 0.6931472
      %v4102 = vmul.f32 -0.5, %v3984
      %v4103 = vadd.f32 %v4102, 1.0
      %v4104 = vmul.f32 %v4103, %v3984
      %v4105 = vand.u32 2147483647, %v3984
      %vm4106 = vcmp.lt.f32.partialorder %v4105, 0.0004427343
      %v4107 = vsel %vm4106, %v4104, %v4101
      %v4108 = vadd.f32 %v3986, 1.0
      %v4109 = vlog2.pop %v4108
      %v4110 = vmul.f32 %v4109, 0.6931472
      %v4111 = vmul.f32 -0.5, %v3986
      %v4112 = vadd.f32 %v4111, 1.0
      %v4113 = vmul.f32 %v4112, %v3986
      %v4114 = vand.u32 2147483647, %v3986
      %vm4115 = vcmp.lt.f32.partialorder %v4114, 0.0004427343
      %v4116 = vsel %vm4115, %v4113, %v4110
      %v4117 = vadd.f32 %v3988, 1.0
      %v4118 = vlog2.pop %v4117
      %v4119 = vmul.f32 %v4118, 0.6931472
      %v4120 = vmul.f32 -0.5, %v3988
      %v4121 = vadd.f32 %v4120, 1.0
      %v4122 = vmul.f32 %v4121, %v3988
      %v4123 = vand.u32 2147483647, %v3988
      %vm4124 = vcmp.lt.f32.partialorder %v4123, 0.0004427343
      %v4125 = vsel %vm4124, %v4122, %v4119
      %v4126 = vadd.f32 %v3990, 1.0
      %v4127 = vlog2.pop %v4126
      %v4128 = vmul.f32 %v4127, 0.6931472
      %v4129 = vmul.f32 -0.5, %v3990
      %v4130 = vadd.f32 %v4129, 1.0
      %v4131 = vmul.f32 %v4130, %v3990
      %v4132 = vand.u32 2147483647, %v3990
      %vm4133 = vcmp.lt.f32.partialorder %v4132, 0.0004427343
      %v4134 = vsel %vm4133, %v4131, %v4128
      %v4135 = vmul.f32 %v3999, 0.01
      %v4136 = vmul.f32 %v4008, 0.01
      %v4137 = vmul.f32 %v4017, 0.01
      %v4138 = vmul.f32 %v4026, 0.01
      %v4139 = vmul.f32 %v4035, 0.01
      %v4140 = vmul.f32 %v4044, 0.01
      %v4141 = vmul.f32 %v4053, 0.01
      %v4142 = vmul.f32 %v4062, 0.01
      %v4143 = vmul.f32 %v4071, 0.01
      %v4144 = vmul.f32 %v4080, 0.01
      %v4145 = vmul.f32 %v4089, 0.01
      %v4146 = vmul.f32 %v4098, 0.01
      %v4147 = vmul.f32 %v4107, 0.01
      %v4148 = vmul.f32 %v4116, 0.01
      %v4149 = vmul.f32 %v4125, 0.01
      %v4150 = vmul.f32 %v4134, 0.01
      %v4151 = vsel %vm3943, %v3911, %v4135
      %v4152 = vsel %vm3944, %v3912, %v4136
      %v4153 = vsel %vm3945, %v3913, %v4137
      %v4154 = vsel %vm3946, %v3914, %v4138
      %v4155 = vsel %vm3947, %v3915, %v4139
      %v4156 = vsel %vm3948, %v3916, %v4140
      %v4157 = vsel %vm3949, %v3917, %v4141
      %v4158 = vsel %vm3950, %v3918, %v4142
      %v4159 = vsel %vm3951, %v3919, %v4143
      %v4160 = vsel %vm3952, %v3920, %v4144
      %v4161 = vsel %vm3953, %v3921, %v4145
      %v4162 = vsel %vm3954, %v3922, %v4146
      %v4163 = vsel %vm3955, %v3923, %v4147
      %v4164 = vsel %vm3956, %v3924, %v4148
      %v4165 = vsel %vm3957, %v3925, %v4149
      %v4166 = vsel %vm3958, %v3926, %v4150
      %v4167 = vld [vmem:[%s8] sm:$0xff]
      %v4168 = vld [vmem:[%s8 + $0x8] sm:$0xff]
      %v4169 = vld [vmem:[%s8 + $0x10] sm:$0xff]
      %v4170 = vld [vmem:[%s8 + $0x18] sm:$0xff]
      %v4171 = vld [vmem:[%s8 + $0x20] sm:$0xff]
      %v4172 = vld [vmem:[%s8 + $0x28] sm:$0xff]
      %v4173 = vld [vmem:[%s8 + $0x30] sm:$0xff]
      %v4174 = vld [vmem:[%s8 + $0x38] sm:$0xff]
      %v4175 = vld [vmem:[%s9] sm:$0x1]
      %v4177 = vlaneseq
      %v4178 = vshrl.u32 %v4177, 7
      %v4179 = vsub.s32 0, %v4178
      %v4180 = vrot.slane %v4175, %v4179
      %v4183 = vsel %vm894, %v4151, 0
      %v4186 = vsel %vm894, %v4152, 0
      %v4189 = vsel %vm894, %v4153, 0
      %v4192 = vsel %vm894, %v4154, 0
      %v4195 = vsel %vm894, %v4155, 0
      %v4198 = vsel %vm894, %v4156, 0
      %v4201 = vsel %vm894, %v4157, 0
      %v4204 = vsel %vm894, %v4158, 0
      %v4207 = vsel %vm894, %v4159, 0
      %v4210 = vsel %vm894, %v4160, 0
      %v4213 = vsel %vm894, %v4161, 0
      %v4216 = vsel %vm894, %v4162, 0
      %v4219 = vsel %vm894, %v4163, 0
      %v4222 = vsel %vm894, %v4164, 0
      %v4225 = vsel %vm894, %v4165, 0
      %v4228 = vsel %vm894, %v4166, 0
      %4230 = vmatprep.subr.mxu0 0.0
      %4231 = vmatpush1.msra.mxu0 %v4167
      %4232 = vmatprep.subr.mxu0 0.0
      %4233 = vmatpush1.msra.mxu0 %v4168
      %4234 = vmatprep.subr.mxu0 0.0
      %4235 = vmatpush1.msra.mxu0 %v4169
      %4236 = vmatprep.subr.mxu0 0.0
      %4237 = vmatpush1.msra.mxu0 %v4170
      %4238 = vmatprep.subr.mxu0 0.0
      %4239 = vmatpush1.msra.mxu0 %v4171
      %4240 = vmatprep.subr.mxu0 0.0
      %4241 = vmatpush1.msra.mxu0 %v4172
      %4242 = vmatprep.subr.mxu0 0.0
      %4243 = vmatpush1.msra.mxu0 %v4173
      %4244 = vmatprep.subr.mxu0 0.0
      %4245 = vmatpush1.msra.mxu0 %v4174
      %4246 = vmatprep.subr.mxu0 0.0
      %4247 = vmatpush1.msra.mxu0 0.0
      %4248 = vmatprep.subr.mxu0 0.0
      %4249 = vmatpush1.msra.mxu0 0.0
      %4250 = vmatprep.subr.mxu0 0.0
      %4251 = vmatpush1.msra.mxu0 0.0
      %4252 = vmatprep.subr.mxu0 0.0
      %4253 = vmatpush1.msra.mxu0 0.0
      %4254 = vmatprep.subr.mxu0 0.0
      %4255 = vmatpush1.msra.mxu0 0.0
      %4256 = vmatprep.subr.mxu0 0.0
      %4257 = vmatpush1.msra.mxu0 0.0
      %4258 = vmatprep.subr.mxu0 0.0
      %4259 = vmatpush1.msra.mxu0 0.0
      %4260 = vmatprep.subr.mxu0 0.0
      %4261 = vmatpush1.msra.mxu0 0.0
      %4262 = vmatprep.subr.mxu0 0.0
      %4263 = vmatpush1.msra.mxu0 0.0
      %4264 = vmatprep.subr.mxu0 0.0
      %4265 = vmatpush1.msra.mxu0 0.0
      %4266 = vmatprep.subr.mxu0 0.0
      %4267 = vmatpush1.msra.mxu0 0.0
      %4268 = vmatprep.subr.mxu0 0.0
      %4269 = vmatpush1.msra.mxu0 0.0
      %4270 = vmatprep.subr.mxu0 0.0
      %4271 = vmatpush1.msra.mxu0 0.0
      %4272 = vmatprep.subr.mxu0 0.0
      %4273 = vmatpush1.msra.mxu0 0.0
      %4274 = vmatprep.subr.mxu0 0.0
      %4275 = vmatpush1.msra.mxu0 0.0
      %4276 = vmatprep.subr.mxu0 0.0
      %4277 = vmatpush1.msra.mxu0 0.0
      %4278 = vmatprep.subr.mxu0 0.0
      %4279 = vmatpush1.msra.mxu0 0.0
      %4280 = vmatprep.subr.mxu0 0.0
      %4281 = vmatpush1.msra.mxu0 0.0
      %4282 = vmatprep.subr.mxu0 0.0
      %4283 = vmatpush1.msra.mxu0 0.0
      %4284 = vmatprep.subr.mxu0 0.0
      %4285 = vmatpush1.msra.mxu0 0.0
      %4286 = vmatprep.subr.mxu0 0.0
      %4287 = vmatpush1.msra.mxu0 0.0
      %4288 = vmatprep.subr.mxu0 0.0
      %4289 = vmatpush1.msra.mxu0 0.0
      %4290 = vmatprep.subr.mxu0 0.0
      %4291 = vmatpush1.msra.mxu0 0.0
      %4292 = vmatprep.subr.mxu0 0.0
      %4293 = vmatpush1.msra.mxu0 0.0
      %4294 = vmatprep.mubr.f32.mxu0 0.0
      %4295 = vmatmul.mubr.f32.gmra.mrb[0].mxu0 %v4183
      %v4296 = vpop.f32.mrb[0].mxu0
      %v4297 = vadd.f32 %v4180, %v4296
      %v4298 = vpop.f32.mrb[0].mxu0
      %4299 = vmatprep.mubr.f32.mxu0 0.0
      %4300 = vmatmul.mubr.f32.gmra.mrb[0].mxu0 %v4186
      %v4301 = vpop.f32.mrb[0].mxu0
      %v4302 = vadd.f32 %v4180, %v4301
      %v4303 = vpop.f32.mrb[0].mxu0
      %4304 = vmatprep.mubr.f32.mxu0 0.0
      %4305 = vmatmul.mubr.f32.gmra.mrb[0].mxu0 %v4189
      %v4306 = vpop.f32.mrb[0].mxu0
      %v4307 = vadd.f32 %v4180, %v4306
      %v4308 = vpop.f32.mrb[0].mxu0
      %4309 = vmatprep.mubr.f32.mxu0 0.0
      %4310 = vmatmul.mubr.f32.gmra.mrb[0].mxu0 %v4192
      %v4311 = vpop.f32.mrb[0].mxu0
      %v4312 = vadd.f32 %v4180, %v4311
      %v4313 = vpop.f32.mrb[0].mxu0
      %4314 = vmatprep.mubr.f32.mxu0 0.0
      %4315 = vmatmul.mubr.f32.gmra.mrb[0].mxu0 %v4195
      %v4316 = vpop.f32.mrb[0].mxu0
      %v4317 = vadd.f32 %v4180, %v4316
      %v4318 = vpop.f32.mrb[0].mxu0
      %4319 = vmatprep.mubr.f32.mxu0 0.0
      %4320 = vmatmul.mubr.f32.gmra.mrb[0].mxu0 %v4198
      %v4321 = vpop.f32.mrb[0].mxu0
      %v4322 = vadd.f32 %v4180, %v4321
      %v4323 = vpop.f32.mrb[0].mxu0
      %4324 = vmatprep.mubr.f32.mxu0 0.0
      %4325 = vmatmul.mubr.f32.gmra.mrb[0].mxu0 %v4201
      %v4326 = vpop.f32.mrb[0].mxu0
      %v4327 = vadd.f32 %v4180, %v4326
      %v4328 = vpop.f32.mrb[0].mxu0
      %4329 = vmatprep.mubr.f32.mxu0 0.0
      %4330 = vmatmul.mubr.f32.gmra.mrb[0].mxu0 %v4204
      %v4331 = vpop.f32.mrb[0].mxu0
      %v4332 = vadd.f32 %v4180, %v4331
      %v4333 = vpop.f32.mrb[0].mxu0
      %4334 = vmatprep.mubr.f32.mxu0 0.0
      %4335 = vmatmul.mubr.f32.gmra.mrb[0].mxu0 %v4207
      %v4336 = vpop.f32.mrb[0].mxu0
      %v4337 = vadd.f32 %v4180, %v4336
      %v4338 = vpop.f32.mrb[0].mxu0
      %4339 = vmatprep.mubr.f32.mxu0 0.0
      %4340 = vmatmul.mubr.f32.gmra.mrb[0].mxu0 %v4210
      %v4341 = vpop.f32.mrb[0].mxu0
      %v4342 = vadd.f32 %v4180, %v4341
      %v4343 = vpop.f32.mrb[0].mxu0
      %4344 = vmatprep.mubr.f32.mxu0 0.0
      %4345 = vmatmul.mubr.f32.gmra.mrb[0].mxu0 %v4213
      %v4346 = vpop.f32.mrb[0].mxu0
      %v4347 = vadd.f32 %v4180, %v4346
      %v4348 = vpop.f32.mrb[0].mxu0
      %4349 = vmatprep.mubr.f32.mxu0 0.0
      %4350 = vmatmul.mubr.f32.gmra.mrb[0].mxu0 %v4216
      %v4351 = vpop.f32.mrb[0].mxu0
      %v4352 = vadd.f32 %v4180, %v4351
      %v4353 = vpop.f32.mrb[0].mxu0
      %4354 = vmatprep.mubr.f32.mxu0 0.0
      %4355 = vmatmul.mubr.f32.gmra.mrb[0].mxu0 %v4219
      %v4356 = vpop.f32.mrb[0].mxu0
      %v4357 = vadd.f32 %v4180, %v4356
      %v4358 = vpop.f32.mrb[0].mxu0
      %4359 = vmatprep.mubr.f32.mxu0 0.0
      %4360 = vmatmul.mubr.f32.gmra.mrb[0].mxu0 %v4222
      %v4361 = vpop.f32.mrb[0].mxu0
      %v4362 = vadd.f32 %v4180, %v4361
      %v4363 = vpop.f32.mrb[0].mxu0
      %4364 = vmatprep.mubr.f32.mxu0 0.0
      %4365 = vmatmul.mubr.f32.gmra.mrb[0].mxu0 %v4225
      %v4366 = vpop.f32.mrb[0].mxu0
      %v4367 = vadd.f32 %v4180, %v4366
      %v4368 = vpop.f32.mrb[0].mxu0
      %4369 = vmatprep.mubr.f32.mxu0 0.0
      %4370 = vmatmul.mubr.f32.gmra.mrb[0].mxu0 %v4228
      %v4371 = vpop.f32.mrb[0].mxu0
      %v4372 = vadd.f32 %v4180, %v4371
      %v4373 = vpop.f32.mrb[0].mxu0
      %4374 = vdwg.mxu0
      %v4375 = vmul.f32 %v4297, 100.0
      %v4376 = vmul.f32 %v4302, 100.0
      %v4377 = vmul.f32 %v4307, 100.0
      %v4378 = vmul.f32 %v4312, 100.0
      %v4379 = vmul.f32 %v4317, 100.0
      %v4380 = vmul.f32 %v4322, 100.0
      %v4381 = vmul.f32 %v4327, 100.0
      %v4382 = vmul.f32 %v4332, 100.0
      %v4383 = vmul.f32 %v4337, 100.0
      %v4384 = vmul.f32 %v4342, 100.0
      %v4385 = vmul.f32 %v4347, 100.0
      %v4386 = vmul.f32 %v4352, 100.0
      %v4387 = vmul.f32 %v4357, 100.0
      %v4388 = vmul.f32 %v4362, 100.0
      %v4389 = vmul.f32 %v4367, 100.0
      %v4390 = vmul.f32 %v4372, 100.0
      %vm4391 = vcmp.gt.f32.partialorder %v4375, 20.0
      %vm4392 = vcmp.gt.f32.partialorder %v4376, 20.0
      %vm4393 = vcmp.gt.f32.partialorder %v4377, 20.0
      %vm4394 = vcmp.gt.f32.partialorder %v4378, 20.0
      %vm4395 = vcmp.gt.f32.partialorder %v4379, 20.0
      %vm4396 = vcmp.gt.f32.partialorder %v4380, 20.0
      %vm4397 = vcmp.gt.f32.partialorder %v4381, 20.0
      %vm4398 = vcmp.gt.f32.partialorder %v4382, 20.0
      %vm4399 = vcmp.gt.f32.partialorder %v4383, 20.0
      %vm4400 = vcmp.gt.f32.partialorder %v4384, 20.0
      %vm4401 = vcmp.gt.f32.partialorder %v4385, 20.0
      %vm4402 = vcmp.gt.f32.partialorder %v4386, 20.0
      %vm4403 = vcmp.gt.f32.partialorder %v4387, 20.0
      %vm4404 = vcmp.gt.f32.partialorder %v4388, 20.0
      %vm4405 = vcmp.gt.f32.partialorder %v4389, 20.0
      %vm4406 = vcmp.gt.f32.partialorder %v4390, 20.0
      %v4407 = vmul.f32 %v4375, 1.442695
      %v4408 = vpow.pop %v4407
      %v4409 = vmul.f32 %v4376, 1.442695
      %v4410 = vpow.pop %v4409
      %v4411 = vmul.f32 %v4377, 1.442695
      %v4412 = vpow.pop %v4411
      %v4413 = vmul.f32 %v4378, 1.442695
      %v4414 = vpow.pop %v4413
      %v4415 = vmul.f32 %v4379, 1.442695
      %v4416 = vpow.pop %v4415
      %v4417 = vmul.f32 %v4380, 1.442695
      %v4418 = vpow.pop %v4417
      %v4419 = vmul.f32 %v4381, 1.442695
      %v4420 = vpow.pop %v4419
      %v4421 = vmul.f32 %v4382, 1.442695
      %v4422 = vpow.pop %v4421
      %v4423 = vmul.f32 %v4383, 1.442695
      %v4424 = vpow.pop %v4423
      %v4425 = vmul.f32 %v4384, 1.442695
      %v4426 = vpow.pop %v4425
      %v4427 = vmul.f32 %v4385, 1.442695
      %v4428 = vpow.pop %v4427
      %v4429 = vmul.f32 %v4386, 1.442695
      %v4430 = vpow.pop %v4429
      %v4431 = vmul.f32 %v4387, 1.442695
      %v4432 = vpow.pop %v4431
      %v4433 = vmul.f32 %v4388, 1.442695
      %v4434 = vpow.pop %v4433
      %v4435 = vmul.f32 %v4389, 1.442695
      %v4436 = vpow.pop %v4435
      %v4437 = vmul.f32 %v4390, 1.442695
      %v4438 = vpow.pop %v4437
      %v4439 = vadd.f32 %v4408, 1.0
      %v4440 = vlog2.pop %v4439
      %v4441 = vmul.f32 %v4440, 0.6931472
      %v4442 = vmul.f32 -0.5, %v4408
      %v4443 = vadd.f32 %v4442, 1.0
      %v4444 = vmul.f32 %v4443, %v4408
      %v4445 = vand.u32 2147483647, %v4408
      %vm4446 = vcmp.lt.f32.partialorder %v4445, 0.0004427343
      %v4447 = vsel %vm4446, %v4444, %v4441
      %v4448 = vadd.f32 %v4410, 1.0
      %v4449 = vlog2.pop %v4448
      %v4450 = vmul.f32 %v4449, 0.6931472
      %v4451 = vmul.f32 -0.5, %v4410
      %v4452 = vadd.f32 %v4451, 1.0
      %v4453 = vmul.f32 %v4452, %v4410
      %v4454 = vand.u32 2147483647, %v4410
      %vm4455 = vcmp.lt.f32.partialorder %v4454, 0.0004427343
      %v4456 = vsel %vm4455, %v4453, %v4450
      %v4457 = vadd.f32 %v4412, 1.0
      %v4458 = vlog2.pop %v4457
      %v4459 = vmul.f32 %v4458, 0.6931472
      %v4460 = vmul.f32 -0.5, %v4412
      %v4461 = vadd.f32 %v4460, 1.0
      %v4462 = vmul.f32 %v4461, %v4412
      %v4463 = vand.u32 2147483647, %v4412
      %vm4464 = vcmp.lt.f32.partialorder %v4463, 0.0004427343
      %v4465 = vsel %vm4464, %v4462, %v4459
      %v4466 = vadd.f32 %v4414, 1.0
      %v4467 = vlog2.pop %v4466
      %v4468 = vmul.f32 %v4467, 0.6931472
      %v4469 = vmul.f32 -0.5, %v4414
      %v4470 = vadd.f32 %v4469, 1.0
      %v4471 = vmul.f32 %v4470, %v4414
      %v4472 = vand.u32 2147483647, %v4414
      %vm4473 = vcmp.lt.f32.partialorder %v4472, 0.0004427343
      %v4474 = vsel %vm4473, %v4471, %v4468
      %v4475 = vadd.f32 %v4416, 1.0
      %v4476 = vlog2.pop %v4475
      %v4477 = vmul.f32 %v4476, 0.6931472
      %v4478 = vmul.f32 -0.5, %v4416
      %v4479 = vadd.f32 %v4478, 1.0
      %v4480 = vmul.f32 %v4479, %v4416
      %v4481 = vand.u32 2147483647, %v4416
      %vm4482 = vcmp.lt.f32.partialorder %v4481, 0.0004427343
      %v4483 = vsel %vm4482, %v4480, %v4477
      %v4484 = vadd.f32 %v4418, 1.0
      %v4485 = vlog2.pop %v4484
      %v4486 = vmul.f32 %v4485, 0.6931472
      %v4487 = vmul.f32 -0.5, %v4418
      %v4488 = vadd.f32 %v4487, 1.0
      %v4489 = vmul.f32 %v4488, %v4418
      %v4490 = vand.u32 2147483647, %v4418
      %vm4491 = vcmp.lt.f32.partialorder %v4490, 0.0004427343
      %v4492 = vsel %vm4491, %v4489, %v4486
      %v4493 = vadd.f32 %v4420, 1.0
      %v4494 = vlog2.pop %v4493
      %v4495 = vmul.f32 %v4494, 0.6931472
      %v4496 = vmul.f32 -0.5, %v4420
      %v4497 = vadd.f32 %v4496, 1.0
      %v4498 = vmul.f32 %v4497, %v4420
      %v4499 = vand.u32 2147483647, %v4420
      %vm4500 = vcmp.lt.f32.partialorder %v4499, 0.0004427343
      %v4501 = vsel %vm4500, %v4498, %v4495
      %v4502 = vadd.f32 %v4422, 1.0
      %v4503 = vlog2.pop %v4502
      %v4504 = vmul.f32 %v4503, 0.6931472
      %v4505 = vmul.f32 -0.5, %v4422
      %v4506 = vadd.f32 %v4505, 1.0
      %v4507 = vmul.f32 %v4506, %v4422
      %v4508 = vand.u32 2147483647, %v4422
      %vm4509 = vcmp.lt.f32.partialorder %v4508, 0.0004427343
      %v4510 = vsel %vm4509, %v4507, %v4504
      %v4511 = vadd.f32 %v4424, 1.0
      %v4512 = vlog2.pop %v4511
      %v4513 = vmul.f32 %v4512, 0.6931472
      %v4514 = vmul.f32 -0.5, %v4424
      %v4515 = vadd.f32 %v4514, 1.0
      %v4516 = vmul.f32 %v4515, %v4424
      %v4517 = vand.u32 2147483647, %v4424
      %vm4518 = vcmp.lt.f32.partialorder %v4517, 0.0004427343
      %v4519 = vsel %vm4518, %v4516, %v4513
      %v4520 = vadd.f32 %v4426, 1.0
      %v4521 = vlog2.pop %v4520
      %v4522 = vmul.f32 %v4521, 0.6931472
      %v4523 = vmul.f32 -0.5, %v4426
      %v4524 = vadd.f32 %v4523, 1.0
      %v4525 = vmul.f32 %v4524, %v4426
      %v4526 = vand.u32 2147483647, %v4426
      %vm4527 = vcmp.lt.f32.partialorder %v4526, 0.0004427343
      %v4528 = vsel %vm4527, %v4525, %v4522
      %v4529 = vadd.f32 %v4428, 1.0
      %v4530 = vlog2.pop %v4529
      %v4531 = vmul.f32 %v4530, 0.6931472
      %v4532 = vmul.f32 -0.5, %v4428
      %v4533 = vadd.f32 %v4532, 1.0
      %v4534 = vmul.f32 %v4533, %v4428
      %v4535 = vand.u32 2147483647, %v4428
      %vm4536 = vcmp.lt.f32.partialorder %v4535, 0.0004427343
      %v4537 = vsel %vm4536, %v4534, %v4531
      %v4538 = vadd.f32 %v4430, 1.0
      %v4539 = vlog2.pop %v4538
      %v4540 = vmul.f32 %v4539, 0.6931472
      %v4541 = vmul.f32 -0.5, %v4430
      %v4542 = vadd.f32 %v4541, 1.0
      %v4543 = vmul.f32 %v4542, %v4430
      %v4544 = vand.u32 2147483647, %v4430
      %vm4545 = vcmp.lt.f32.partialorder %v4544, 0.0004427343
      %v4546 = vsel %vm4545, %v4543, %v4540
      %v4547 = vadd.f32 %v4432, 1.0
      %v4548 = vlog2.pop %v4547
      %v4549 = vmul.f32 %v4548, 0.6931472
      %v4550 = vmul.f32 -0.5, %v4432
      %v4551 = vadd.f32 %v4550, 1.0
      %v4552 = vmul.f32 %v4551, %v4432
      %v4553 = vand.u32 2147483647, %v4432
      %vm4554 = vcmp.lt.f32.partialorder %v4553, 0.0004427343
      %v4555 = vsel %vm4554, %v4552, %v4549
      %v4556 = vadd.f32 %v4434, 1.0
      %v4557 = vlog2.pop %v4556
      %v4558 = vmul.f32 %v4557, 0.6931472
      %v4559 = vmul.f32 -0.5, %v4434
      %v4560 = vadd.f32 %v4559, 1.0
      %v4561 = vmul.f32 %v4560, %v4434
      %v4562 = vand.u32 2147483647, %v4434
      %vm4563 = vcmp.lt.f32.partialorder %v4562, 0.0004427343
      %v4564 = vsel %vm4563, %v4561, %v4558
      %v4565 = vadd.f32 %v4436, 1.0
      %v4566 = vlog2.pop %v4565
      %v4567 = vmul.f32 %v4566, 0.6931472
      %v4568 = vmul.f32 -0.5, %v4436
      %v4569 = vadd.f32 %v4568, 1.0
      %v4570 = vmul.f32 %v4569, %v4436
      %v4571 = vand.u32 2147483647, %v4436
      %vm4572 = vcmp.lt.f32.partialorder %v4571, 0.0004427343
      %v4573 = vsel %vm4572, %v4570, %v4567
      %v4574 = vadd.f32 %v4438, 1.0
      %v4575 = vlog2.pop %v4574
      %v4576 = vmul.f32 %v4575, 0.6931472
      %v4577 = vmul.f32 -0.5, %v4438
      %v4578 = vadd.f32 %v4577, 1.0
      %v4579 = vmul.f32 %v4578, %v4438
      %v4580 = vand.u32 2147483647, %v4438
      %vm4581 = vcmp.lt.f32.partialorder %v4580, 0.0004427343
      %v4582 = vsel %vm4581, %v4579, %v4576
      %v4583 = vmul.f32 %v4447, 0.01
      %v4584 = vmul.f32 %v4456, 0.01
      %v4585 = vmul.f32 %v4465, 0.01
      %v4586 = vmul.f32 %v4474, 0.01
      %v4587 = vmul.f32 %v4483, 0.01
      %v4588 = vmul.f32 %v4492, 0.01
      %v4589 = vmul.f32 %v4501, 0.01
      %v4590 = vmul.f32 %v4510, 0.01
      %v4591 = vmul.f32 %v4519, 0.01
      %v4592 = vmul.f32 %v4528, 0.01
      %v4593 = vmul.f32 %v4537, 0.01
      %v4594 = vmul.f32 %v4546, 0.01
      %v4595 = vmul.f32 %v4555, 0.01
      %v4596 = vmul.f32 %v4564, 0.01
      %v4597 = vmul.f32 %v4573, 0.01
      %v4598 = vmul.f32 %v4582, 0.01
      %v4599 = vsel %vm4391, %v4297, %v4583
      %v4600 = vsel %vm4392, %v4302, %v4584
      %v4601 = vsel %vm4393, %v4307, %v4585
      %v4602 = vsel %vm4394, %v4312, %v4586
      %v4603 = vsel %vm4395, %v4317, %v4587
      %v4604 = vsel %vm4396, %v4322, %v4588
      %v4605 = vsel %vm4397, %v4327, %v4589
      %v4606 = vsel %vm4398, %v4332, %v4590
      %v4607 = vsel %vm4399, %v4337, %v4591
      %v4608 = vsel %vm4400, %v4342, %v4592
      %v4609 = vsel %vm4401, %v4347, %v4593
      %v4610 = vsel %vm4402, %v4352, %v4594
      %v4611 = vsel %vm4403, %v4357, %v4595
      %v4612 = vsel %vm4404, %v4362, %v4596
      %v4613 = vsel %vm4405, %v4367, %v4597
      %v4614 = vsel %vm4406, %v4372, %v4598
      %v4615 = vld [vmem:[%s10] sm:$0xff]
      %v4616 = vld [vmem:[%s10 + $0x8] sm:$0xff]
      %v4617 = vld [vmem:[%s10 + $0x10] sm:$0xff]
      %v4618 = vld [vmem:[%s10 + $0x18] sm:$0xff]
      %v4619 = vld [vmem:[%s10 + $0x20] sm:$0xff]
      %v4620 = vld [vmem:[%s10 + $0x28] sm:$0xff]
      %v4621 = vld [vmem:[%s10 + $0x30] sm:$0xff]
      %v4622 = vld [vmem:[%s10 + $0x38] sm:$0xff]
      %v4623 = vld [vmem:[%s11] sm:$0x1]
      %v4625 = vlaneseq
      %v4626 = vshrl.u32 %v4625, 7
      %v4627 = vsub.s32 0, %v4626
      %v4628 = vrot.slane %v4623, %v4627
      %v4631 = vsel %vm894, %v4599, 0
      %v4634 = vsel %vm894, %v4600, 0
      %v4637 = vsel %vm894, %v4601, 0
      %v4640 = vsel %vm894, %v4602, 0
      %v4643 = vsel %vm894, %v4603, 0
      %v4646 = vsel %vm894, %v4604, 0
      %v4649 = vsel %vm894, %v4605, 0
      %v4652 = vsel %vm894, %v4606, 0
      %v4655 = vsel %vm894, %v4607, 0
      %v4658 = vsel %vm894, %v4608, 0
      %v4661 = vsel %vm894, %v4609, 0
      %v4664 = vsel %vm894, %v4610, 0
      %v4667 = vsel %vm894, %v4611, 0
      %v4670 = vsel %vm894, %v4612, 0
      %v4673 = vsel %vm894, %v4613, 0
      %v4676 = vsel %vm894, %v4614, 0
      %4678 = vmatprep.subr.mxu0 0.0
      %4679 = vmatpush1.msra.mxu0 %v4615
      %4680 = vmatprep.subr.mxu0 0.0
      %4681 = vmatpush1.msra.mxu0 %v4616
      %4682 = vmatprep.subr.mxu0 0.0
      %4683 = vmatpush1.msra.mxu0 %v4617
      %4684 = vmatprep.subr.mxu0 0.0
      %4685 = vmatpush1.msra.mxu0 %v4618
      %4686 = vmatprep.subr.mxu0 0.0
      %4687 = vmatpush1.msra.mxu0 %v4619
      %4688 = vmatprep.subr.mxu0 0.0
      %4689 = vmatpush1.msra.mxu0 %v4620
      %4690 = vmatprep.subr.mxu0 0.0
      %4691 = vmatpush1.msra.mxu0 %v4621
      %4692 = vmatprep.subr.mxu0 0.0
      %4693 = vmatpush1.msra.mxu0 %v4622
      %4694 = vmatprep.subr.mxu0 0.0
      %4695 = vmatpush1.msra.mxu0 0.0
      %4696 = vmatprep.subr.mxu0 0.0
      %4697 = vmatpush1.msra.mxu0 0.0
      %4698 = vmatprep.subr.mxu0 0.0
      %4699 = vmatpush1.msra.mxu0 0.0
      %4700 = vmatprep.subr.mxu0 0.0
      %4701 = vmatpush1.msra.mxu0 0.0
      %4702 = vmatprep.subr.mxu0 0.0
      %4703 = vmatpush1.msra.mxu0 0.0
      %4704 = vmatprep.subr.mxu0 0.0
      %4705 = vmatpush1.msra.mxu0 0.0
      %4706 = vmatprep.subr.mxu0 0.0
      %4707 = vmatpush1.msra.mxu0 0.0
      %4708 = vmatprep.subr.mxu0 0.0
      %4709 = vmatpush1.msra.mxu0 0.0
      %4710 = vmatprep.subr.mxu0 0.0
      %4711 = vmatpush1.msra.mxu0 0.0
      %4712 = vmatprep.subr.mxu0 0.0
      %4713 = vmatpush1.msra.mxu0 0.0
      %4714 = vmatprep.subr.mxu0 0.0
      %4715 = vmatpush1.msra.mxu0 0.0
      %4716 = vmatprep.subr.mxu0 0.0
      %4717 = vmatpush1.msra.mxu0 0.0
      %4718 = vmatprep.subr.mxu0 0.0
      %4719 = vmatpush1.msra.mxu0 0.0
      %4720 = vmatprep.subr.mxu0 0.0
      %4721 = vmatpush1.msra.mxu0 0.0
      %4722 = vmatprep.subr.mxu0 0.0
      %4723 = vmatpush1.msra.mxu0 0.0
      %4724 = vmatprep.subr.mxu0 0.0
      %4725 = vmatpush1.msra.mxu0 0.0
      %4726 = vmatprep.subr.mxu0 0.0
      %4727 = vmatpush1.msra.mxu0 0.0
      %4728 = vmatprep.subr.mxu0 0.0
      %4729 = vmatpush1.msra.mxu0 0.0
      %4730 = vmatprep.subr.mxu0 0.0
      %4731 = vmatpush1.msra.mxu0 0.0
      %4732 = vmatprep.subr.mxu0 0.0
      %4733 = vmatpush1.msra.mxu0 0.0
      %4734 = vmatprep.subr.mxu0 0.0
      %4735 = vmatpush1.msra.mxu0 0.0
      %4736 = vmatprep.subr.mxu0 0.0
      %4737 = vmatpush1.msra.mxu0 0.0
      %4738 = vmatprep.subr.mxu0 0.0
      %4739 = vmatpush1.msra.mxu0 0.0
      %4740 = vmatprep.subr.mxu0 0.0
      %4741 = vmatpush1.msra.mxu0 0.0
      %4742 = vmatprep.mubr.f32.mxu0 0.0
      %4743 = vmatmul.mubr.f32.gmra.mrb[0].mxu0 %v4631
      %v4744 = vpop.f32.mrb[0].mxu0
      %v4745 = vadd.f32 %v4628, %v4744
      %v4746 = vpop.f32.mrb[0].mxu0
      %4747 = vmatprep.mubr.f32.mxu0 0.0
      %4748 = vmatmul.mubr.f32.gmra.mrb[0].mxu0 %v4634
      %v4749 = vpop.f32.mrb[0].mxu0
      %v4750 = vadd.f32 %v4628, %v4749
      %v4751 = vpop.f32.mrb[0].mxu0
      %4752 = vmatprep.mubr.f32.mxu0 0.0
      %4753 = vmatmul.mubr.f32.gmra.mrb[0].mxu0 %v4637
      %v4754 = vpop.f32.mrb[0].mxu0
      %v4755 = vadd.f32 %v4628, %v4754
      %v4756 = vpop.f32.mrb[0].mxu0
      %4757 = vmatprep.mubr.f32.mxu0 0.0
      %4758 = vmatmul.mubr.f32.gmra.mrb[0].mxu0 %v4640
      %v4759 = vpop.f32.mrb[0].mxu0
      %v4760 = vadd.f32 %v4628, %v4759
      %v4761 = vpop.f32.mrb[0].mxu0
      %4762 = vmatprep.mubr.f32.mxu0 0.0
      %4763 = vmatmul.mubr.f32.gmra.mrb[0].mxu0 %v4643
      %v4764 = vpop.f32.mrb[0].mxu0
      %v4765 = vadd.f32 %v4628, %v4764
      %v4766 = vpop.f32.mrb[0].mxu0
      %4767 = vmatprep.mubr.f32.mxu0 0.0
      %4768 = vmatmul.mubr.f32.gmra.mrb[0].mxu0 %v4646
      %v4769 = vpop.f32.mrb[0].mxu0
      %v4770 = vadd.f32 %v4628, %v4769
      %v4771 = vpop.f32.mrb[0].mxu0
      %4772 = vmatprep.mubr.f32.mxu0 0.0
      %4773 = vmatmul.mubr.f32.gmra.mrb[0].mxu0 %v4649
      %v4774 = vpop.f32.mrb[0].mxu0
      %v4775 = vadd.f32 %v4628, %v4774
      %v4776 = vpop.f32.mrb[0].mxu0
      %4777 = vmatprep.mubr.f32.mxu0 0.0
      %4778 = vmatmul.mubr.f32.gmra.mrb[0].mxu0 %v4652
      %v4779 = vpop.f32.mrb[0].mxu0
      %v4780 = vadd.f32 %v4628, %v4779
      %v4781 = vpop.f32.mrb[0].mxu0
      %4782 = vmatprep.mubr.f32.mxu0 0.0
      %4783 = vmatmul.mubr.f32.gmra.mrb[0].mxu0 %v4655
      %v4784 = vpop.f32.mrb[0].mxu0
      %v4785 = vadd.f32 %v4628, %v4784
      %v4786 = vpop.f32.mrb[0].mxu0
      %4787 = vmatprep.mubr.f32.mxu0 0.0
      %4788 = vmatmul.mubr.f32.gmra.mrb[0].mxu0 %v4658
      %v4789 = vpop.f32.mrb[0].mxu0
      %v4790 = vadd.f32 %v4628, %v4789
      %v4791 = vpop.f32.mrb[0].mxu0
      %4792 = vmatprep.mubr.f32.mxu0 0.0
      %4793 = vmatmul.mubr.f32.gmra.mrb[0].mxu0 %v4661
      %v4794 = vpop.f32.mrb[0].mxu0
      %v4795 = vadd.f32 %v4628, %v4794
      %v4796 = vpop.f32.mrb[0].mxu0
      %4797 = vmatprep.mubr.f32.mxu0 0.0
      %4798 = vmatmul.mubr.f32.gmra.mrb[0].mxu0 %v4664
      %v4799 = vpop.f32.mrb[0].mxu0
      %v4800 = vadd.f32 %v4628, %v4799
      %v4801 = vpop.f32.mrb[0].mxu0
      %4802 = vmatprep.mubr.f32.mxu0 0.0
      %4803 = vmatmul.mubr.f32.gmra.mrb[0].mxu0 %v4667
      %v4804 = vpop.f32.mrb[0].mxu0
      %v4805 = vadd.f32 %v4628, %v4804
      %v4806 = vpop.f32.mrb[0].mxu0
      %4807 = vmatprep.mubr.f32.mxu0 0.0
      %4808 = vmatmul.mubr.f32.gmra.mrb[0].mxu0 %v4670
      %v4809 = vpop.f32.mrb[0].mxu0
      %v4810 = vadd.f32 %v4628, %v4809
      %v4811 = vpop.f32.mrb[0].mxu0
      %4812 = vmatprep.mubr.f32.mxu0 0.0
      %4813 = vmatmul.mubr.f32.gmra.mrb[0].mxu0 %v4673
      %v4814 = vpop.f32.mrb[0].mxu0
      %v4815 = vadd.f32 %v4628, %v4814
      %v4816 = vpop.f32.mrb[0].mxu0
      %4817 = vmatprep.mubr.f32.mxu0 0.0
      %4818 = vmatmul.mubr.f32.gmra.mrb[0].mxu0 %v4676
      %v4819 = vpop.f32.mrb[0].mxu0
      %v4820 = vadd.f32 %v4628, %v4819
      %v4821 = vpop.f32.mrb[0].mxu0
      %4822 = vdwg.mxu0
      %4823 = vst.msk [vmem:[%s415 + $0x80] sm:$0xff] %vm2613, %v4745
      %4824 = vst.msk [vmem:[%s415 + $0x88] sm:$0xff] %vm2613, %v4750
      %4825 = vst.msk [vmem:[%s415 + $0x90] sm:$0xff] %vm2613, %v4755
      %4826 = vst.msk [vmem:[%s415 + $0x98] sm:$0xff] %vm2613, %v4760
      %4827 = vst.msk [vmem:[%s415 + $0xa0] sm:$0xff] %vm2613, %v4765
      %4828 = vst.msk [vmem:[%s415 + $0xa8] sm:$0xff] %vm2613, %v4770
      %4829 = vst.msk [vmem:[%s415 + $0xb0] sm:$0xff] %vm2613, %v4775
      %4830 = vst.msk [vmem:[%s415 + $0xb8] sm:$0xff] %vm2613, %v4780
      %4831 = vst.msk [vmem:[%s415 + $0xc0] sm:$0xff] %vm2613, %v4785
      %4832 = vst.msk [vmem:[%s415 + $0xc8] sm:$0xff] %vm2613, %v4790
      %4833 = vst.msk [vmem:[%s415 + $0xd0] sm:$0xff] %vm2613, %v4795
      %4834 = vst.msk [vmem:[%s415 + $0xd8] sm:$0xff] %vm2613, %v4800
      %4835 = vst.msk [vmem:[%s415 + $0xe0] sm:$0xff] %vm2613, %v4805
      %4836 = vst.msk [vmem:[%s415 + $0xe8] sm:$0xff] %vm2613, %v4810
      %4837 = vst.msk [vmem:[%s415 + $0xf0] sm:$0xff] %vm2613, %v4815
      %4838 = vst.msk [vmem:[%s415 + $0xf8] sm:$0xff] %vm2613, %v4820
      %v4839 = vld [vmem:[%s409 + $0x100] sm:$0xff]
      %v4840 = vld [vmem:[%s409 + $0x108] sm:$0xff]
      %v4841 = vld [vmem:[%s409 + $0x110] sm:$0xff]
      %v4842 = vld [vmem:[%s409 + $0x118] sm:$0xff]
      %v4843 = vld [vmem:[%s409 + $0x120] sm:$0xff]
      %v4844 = vld [vmem:[%s409 + $0x128] sm:$0xff]
      %v4845 = vld [vmem:[%s409 + $0x130] sm:$0xff]
      %v4846 = vld [vmem:[%s409 + $0x138] sm:$0xff]
      %v4847 = vld [vmem:[%s409 + $0x140] sm:$0xff]
      %v4848 = vld [vmem:[%s409 + $0x148] sm:$0xff]
      %v4849 = vld [vmem:[%s409 + $0x150] sm:$0xff]
      %v4850 = vld [vmem:[%s409 + $0x158] sm:$0xff]
      %v4851 = vld [vmem:[%s409 + $0x160] sm:$0xff]
      %v4852 = vld [vmem:[%s409 + $0x168] sm:$0xff]
      %v4853 = vld [vmem:[%s409 + $0x170] sm:$0xff]
      %v4854 = vld [vmem:[%s409 + $0x178] sm:$0xff]
      %v4855 = vld [vmem:[%s1] sm:$0x7]
      %v4856 = vld [vmem:[%s2] sm:$0x1]
      %v4858 = vlaneseq
      %v4859 = vshrl.u32 %v4858, 7
      %v4860 = vsub.s32 0, %v4859
      %v4861 = vrot.slane %v4856, %v4860
      %v4864 = vsel %vm441, %v4839, 0
      %v4867 = vsel %vm441, %v4840, 0
      %v4870 = vsel %vm441, %v4841, 0
      %v4873 = vsel %vm441, %v4842, 0
      %v4876 = vsel %vm441, %v4843, 0
      %v4879 = vsel %vm441, %v4844, 0
      %v4882 = vsel %vm441, %v4845, 0
      %v4885 = vsel %vm441, %v4846, 0
      %v4888 = vsel %vm441, %v4847, 0
      %v4891 = vsel %vm441, %v4848, 0
      %v4894 = vsel %vm441, %v4849, 0
      %v4897 = vsel %vm441, %v4850, 0
      %v4900 = vsel %vm441, %v4851, 0
      %v4903 = vsel %vm441, %v4852, 0
      %v4906 = vsel %vm441, %v4853, 0
      %v4909 = vsel %vm441, %v4854, 0
      %v4912 = vsel %vm490, %v4855, 0
      %4914 = vmatprep.subr.mxu0 0.0
      %4915 = vmatpush1.msra.mxu0 %v4912
      %4916 = vmatprep.subr.mxu0 0.0
      %4917 = vmatpush1.msra.mxu0 0.0
      %4918 = vmatprep.subr.mxu0 0.0
      %4919 = vmatpush1.msra.mxu0 0.0
      %4920 = vmatprep.subr.mxu0 0.0
      %4921 = vmatpush1.msra.mxu0 0.0
      %4922 = vmatprep.subr.mxu0 0.0
      %4923 = vmatpush1.msra.mxu0 0.0
      %4924 = vmatprep.subr.mxu0 0.0
      %4925 = vmatpush1.msra.mxu0 0.0
      %4926 = vmatprep.subr.mxu0 0.0
      %4927 = vmatpush1.msra.mxu0 0.0
      %4928 = vmatprep.subr.mxu0 0.0
      %4929 = vmatpush1.msra.mxu0 0.0
      %4930 = vmatprep.subr.mxu0 0.0
      %4931 = vmatpush1.msra.mxu0 0.0
      %4932 = vmatprep.subr.mxu0 0.0
      %4933 = vmatpush1.msra.mxu0 0.0
      %4934 = vmatprep.subr.mxu0 0.0
      %4935 = vmatpush1.msra.mxu0 0.0
      %4936 = vmatprep.subr.mxu0 0.0
      %4937 = vmatpush1.msra.mxu0 0.0
      %4938 = vmatprep.subr.mxu0 0.0
      %4939 = vmatpush1.msra.mxu0 0.0
      %4940 = vmatprep.subr.mxu0 0.0
      %4941 = vmatpush1.msra.mxu0 0.0
      %4942 = vmatprep.subr.mxu0 0.0
      %4943 = vmatpush1.msra.mxu0 0.0
      %4944 = vmatprep.subr.mxu0 0.0
      %4945 = vmatpush1.msra.mxu0 0.0
      %4946 = vmatprep.subr.mxu0 0.0
      %4947 = vmatpush1.msra.mxu0 0.0
      %4948 = vmatprep.subr.mxu0 0.0
      %4949 = vmatpush1.msra.mxu0 0.0
      %4950 = vmatprep.subr.mxu0 0.0
      %4951 = vmatpush1.msra.mxu0 0.0
      %4952 = vmatprep.subr.mxu0 0.0
      %4953 = vmatpush1.msra.mxu0 0.0
      %4954 = vmatprep.subr.mxu0 0.0
      %4955 = vmatpush1.msra.mxu0 0.0
      %4956 = vmatprep.subr.mxu0 0.0
      %4957 = vmatpush1.msra.mxu0 0.0
      %4958 = vmatprep.subr.mxu0 0.0
      %4959 = vmatpush1.msra.mxu0 0.0
      %4960 = vmatprep.subr.mxu0 0.0
      %4961 = vmatpush1.msra.mxu0 0.0
      %4962 = vmatprep.subr.mxu0 0.0
      %4963 = vmatpush1.msra.mxu0 0.0
      %4964 = vmatprep.subr.mxu0 0.0
      %4965 = vmatpush1.msra.mxu0 0.0
      %4966 = vmatprep.subr.mxu0 0.0
      %4967 = vmatpush1.msra.mxu0 0.0
      %4968 = vmatprep.subr.mxu0 0.0
      %4969 = vmatpush1.msra.mxu0 0.0
      %4970 = vmatprep.subr.mxu0 0.0
      %4971 = vmatpush1.msra.mxu0 0.0
      %4972 = vmatprep.subr.mxu0 0.0
      %4973 = vmatpush1.msra.mxu0 0.0
      %4974 = vmatprep.subr.mxu0 0.0
      %4975 = vmatpush1.msra.mxu0 0.0
      %4976 = vmatprep.subr.mxu0 0.0
      %4977 = vmatpush1.msra.mxu0 0.0
      %4978 = vmatprep.mubr.f32.mxu0 0.0
      %4979 = vmatmul.mubr.f32.gmra.mrb[0].mxu0 %v4864
      %v4980 = vpop.f32.mrb[0].mxu0
      %v4981 = vadd.f32 %v4861, %v4980
      %v4982 = vpop.f32.mrb[0].mxu0
      %4983 = vmatprep.mubr.f32.mxu0 0.0
      %4984 = vmatmul.mubr.f32.gmra.mrb[0].mxu0 %v4867
      %v4985 = vpop.f32.mrb[0].mxu0
      %v4986 = vadd.f32 %v4861, %v4985
      %v4987 = vpop.f32.mrb[0].mxu0
      %4988 = vmatprep.mubr.f32.mxu0 0.0
      %4989 = vmatmul.mubr.f32.gmra.mrb[0].mxu0 %v4870
      %v4990 = vpop.f32.mrb[0].mxu0
      %v4991 = vadd.f32 %v4861, %v4990
      %v4992 = vpop.f32.mrb[0].mxu0
      %4993 = vmatprep.mubr.f32.mxu0 0.0
      %4994 = vmatmul.mubr.f32.gmra.mrb[0].mxu0 %v4873
      %v4995 = vpop.f32.mrb[0].mxu0
      %v4996 = vadd.f32 %v4861, %v4995
      %v4997 = vpop.f32.mrb[0].mxu0
      %4998 = vmatprep.mubr.f32.mxu0 0.0
      %4999 = vmatmul.mubr.f32.gmra.mrb[0].mxu0 %v4876
      %v5000 = vpop.f32.mrb[0].mxu0
      %v5001 = vadd.f32 %v4861, %v5000
      %v5002 = vpop.f32.mrb[0].mxu0
      %5003 = vmatprep.mubr.f32.mxu0 0.0
      %5004 = vmatmul.mubr.f32.gmra.mrb[0].mxu0 %v4879
      %v5005 = vpop.f32.mrb[0].mxu0
      %v5006 = vadd.f32 %v4861, %v5005
      %v5007 = vpop.f32.mrb[0].mxu0
      %5008 = vmatprep.mubr.f32.mxu0 0.0
      %5009 = vmatmul.mubr.f32.gmra.mrb[0].mxu0 %v4882
      %v5010 = vpop.f32.mrb[0].mxu0
      %v5011 = vadd.f32 %v4861, %v5010
      %v5012 = vpop.f32.mrb[0].mxu0
      %5013 = vmatprep.mubr.f32.mxu0 0.0
      %5014 = vmatmul.mubr.f32.gmra.mrb[0].mxu0 %v4885
      %v5015 = vpop.f32.mrb[0].mxu0
      %v5016 = vadd.f32 %v4861, %v5015
      %v5017 = vpop.f32.mrb[0].mxu0
      %5018 = vmatprep.mubr.f32.mxu0 0.0
      %5019 = vmatmul.mubr.f32.gmra.mrb[0].mxu0 %v4888
      %v5020 = vpop.f32.mrb[0].mxu0
      %v5021 = vadd.f32 %v4861, %v5020
      %v5022 = vpop.f32.mrb[0].mxu0
      %5023 = vmatprep.mubr.f32.mxu0 0.0
      %5024 = vmatmul.mubr.f32.gmra.mrb[0].mxu0 %v4891
      %v5025 = vpop.f32.mrb[0].mxu0
      %v5026 = vadd.f32 %v4861, %v5025
      %v5027 = vpop.f32.mrb[0].mxu0
      %5028 = vmatprep.mubr.f32.mxu0 0.0
      %5029 = vmatmul.mubr.f32.gmra.mrb[0].mxu0 %v4894
      %v5030 = vpop.f32.mrb[0].mxu0
      %v5031 = vadd.f32 %v4861, %v5030
      %v5032 = vpop.f32.mrb[0].mxu0
      %5033 = vmatprep.mubr.f32.mxu0 0.0
      %5034 = vmatmul.mubr.f32.gmra.mrb[0].mxu0 %v4897
      %v5035 = vpop.f32.mrb[0].mxu0
      %v5036 = vadd.f32 %v4861, %v5035
      %v5037 = vpop.f32.mrb[0].mxu0
      %5038 = vmatprep.mubr.f32.mxu0 0.0
      %5039 = vmatmul.mubr.f32.gmra.mrb[0].mxu0 %v4900
      %v5040 = vpop.f32.mrb[0].mxu0
      %v5041 = vadd.f32 %v4861, %v5040
      %v5042 = vpop.f32.mrb[0].mxu0
      %5043 = vmatprep.mubr.f32.mxu0 0.0
      %5044 = vmatmul.mubr.f32.gmra.mrb[0].mxu0 %v4903
      %v5045 = vpop.f32.mrb[0].mxu0
      %v5046 = vadd.f32 %v4861, %v5045
      %v5047 = vpop.f32.mrb[0].mxu0
      %5048 = vmatprep.mubr.f32.mxu0 0.0
      %5049 = vmatmul.mubr.f32.gmra.mrb[0].mxu0 %v4906
      %v5050 = vpop.f32.mrb[0].mxu0
      %v5051 = vadd.f32 %v4861, %v5050
      %v5052 = vpop.f32.mrb[0].mxu0
      %5053 = vmatprep.mubr.f32.mxu0 0.0
      %5054 = vmatmul.mubr.f32.gmra.mrb[0].mxu0 %v4909
      %v5055 = vpop.f32.mrb[0].mxu0
      %v5056 = vadd.f32 %v4861, %v5055
      %v5057 = vpop.f32.mrb[0].mxu0
      %5058 = vdwg.mxu0
      %v5059 = vmul.f32 %v4981, 100.0
      %v5060 = vmul.f32 %v4986, 100.0
      %v5061 = vmul.f32 %v4991, 100.0
      %v5062 = vmul.f32 %v4996, 100.0
      %v5063 = vmul.f32 %v5001, 100.0
      %v5064 = vmul.f32 %v5006, 100.0
      %v5065 = vmul.f32 %v5011, 100.0
      %v5066 = vmul.f32 %v5016, 100.0
      %v5067 = vmul.f32 %v5021, 100.0
      %v5068 = vmul.f32 %v5026, 100.0
      %v5069 = vmul.f32 %v5031, 100.0
      %v5070 = vmul.f32 %v5036, 100.0
      %v5071 = vmul.f32 %v5041, 100.0
      %v5072 = vmul.f32 %v5046, 100.0
      %v5073 = vmul.f32 %v5051, 100.0
      %v5074 = vmul.f32 %v5056, 100.0
      %vm5075 = vcmp.gt.f32.partialorder %v5059, 20.0
      %vm5076 = vcmp.gt.f32.partialorder %v5060, 20.0
      %vm5077 = vcmp.gt.f32.partialorder %v5061, 20.0
      %vm5078 = vcmp.gt.f32.partialorder %v5062, 20.0
      %vm5079 = vcmp.gt.f32.partialorder %v5063, 20.0
      %vm5080 = vcmp.gt.f32.partialorder %v5064, 20.0
      %vm5081 = vcmp.gt.f32.partialorder %v5065, 20.0
      %vm5082 = vcmp.gt.f32.partialorder %v5066, 20.0
      %vm5083 = vcmp.gt.f32.partialorder %v5067, 20.0
      %vm5084 = vcmp.gt.f32.partialorder %v5068, 20.0
      %vm5085 = vcmp.gt.f32.partialorder %v5069, 20.0
      %vm5086 = vcmp.gt.f32.partialorder %v5070, 20.0
      %vm5087 = vcmp.gt.f32.partialorder %v5071, 20.0
      %vm5088 = vcmp.gt.f32.partialorder %v5072, 20.0
      %vm5089 = vcmp.gt.f32.partialorder %v5073, 20.0
      %vm5090 = vcmp.gt.f32.partialorder %v5074, 20.0
      %v5091 = vmul.f32 %v5059, 1.442695
      %v5092 = vpow.pop %v5091
      %v5093 = vmul.f32 %v5060, 1.442695
      %v5094 = vpow.pop %v5093
      %v5095 = vmul.f32 %v5061, 1.442695
      %v5096 = vpow.pop %v5095
      %v5097 = vmul.f32 %v5062, 1.442695
      %v5098 = vpow.pop %v5097
      %v5099 = vmul.f32 %v5063, 1.442695
      %v5100 = vpow.pop %v5099
      %v5101 = vmul.f32 %v5064, 1.442695
      %v5102 = vpow.pop %v5101
      %v5103 = vmul.f32 %v5065, 1.442695
      %v5104 = vpow.pop %v5103
      %v5105 = vmul.f32 %v5066, 1.442695
      %v5106 = vpow.pop %v5105
      %v5107 = vmul.f32 %v5067, 1.442695
      %v5108 = vpow.pop %v5107
      %v5109 = vmul.f32 %v5068, 1.442695
      %v5110 = vpow.pop %v5109
      %v5111 = vmul.f32 %v5069, 1.442695
      %v5112 = vpow.pop %v5111
      %v5113 = vmul.f32 %v5070, 1.442695
      %v5114 = vpow.pop %v5113
      %v5115 = vmul.f32 %v5071, 1.442695
      %v5116 = vpow.pop %v5115
      %v5117 = vmul.f32 %v5072, 1.442695
      %v5118 = vpow.pop %v5117
      %v5119 = vmul.f32 %v5073, 1.442695
      %v5120 = vpow.pop %v5119
      %v5121 = vmul.f32 %v5074, 1.442695
      %v5122 = vpow.pop %v5121
      %v5123 = vadd.f32 %v5092, 1.0
      %v5124 = vlog2.pop %v5123
      %v5125 = vmul.f32 %v5124, 0.6931472
      %v5126 = vmul.f32 -0.5, %v5092
      %v5127 = vadd.f32 %v5126, 1.0
      %v5128 = vmul.f32 %v5127, %v5092
      %v5129 = vand.u32 2147483647, %v5092
      %vm5130 = vcmp.lt.f32.partialorder %v5129, 0.0004427343
      %v5131 = vsel %vm5130, %v5128, %v5125
      %v5132 = vadd.f32 %v5094, 1.0
      %v5133 = vlog2.pop %v5132
      %v5134 = vmul.f32 %v5133, 0.6931472
      %v5135 = vmul.f32 -0.5, %v5094
      %v5136 = vadd.f32 %v5135, 1.0
      %v5137 = vmul.f32 %v5136, %v5094
      %v5138 = vand.u32 2147483647, %v5094
      %vm5139 = vcmp.lt.f32.partialorder %v5138, 0.0004427343
      %v5140 = vsel %vm5139, %v5137, %v5134
      %v5141 = vadd.f32 %v5096, 1.0
      %v5142 = vlog2.pop %v5141
      %v5143 = vmul.f32 %v5142, 0.6931472
      %v5144 = vmul.f32 -0.5, %v5096
      %v5145 = vadd.f32 %v5144, 1.0
      %v5146 = vmul.f32 %v5145, %v5096
      %v5147 = vand.u32 2147483647, %v5096
      %vm5148 = vcmp.lt.f32.partialorder %v5147, 0.0004427343
      %v5149 = vsel %vm5148, %v5146, %v5143
      %v5150 = vadd.f32 %v5098, 1.0
      %v5151 = vlog2.pop %v5150
      %v5152 = vmul.f32 %v5151, 0.6931472
      %v5153 = vmul.f32 -0.5, %v5098
      %v5154 = vadd.f32 %v5153, 1.0
      %v5155 = vmul.f32 %v5154, %v5098
      %v5156 = vand.u32 2147483647, %v5098
      %vm5157 = vcmp.lt.f32.partialorder %v5156, 0.0004427343
      %v5158 = vsel %vm5157, %v5155, %v5152
      %v5159 = vadd.f32 %v5100, 1.0
      %v5160 = vlog2.pop %v5159
      %v5161 = vmul.f32 %v5160, 0.6931472
      %v5162 = vmul.f32 -0.5, %v5100
      %v5163 = vadd.f32 %v5162, 1.0
      %v5164 = vmul.f32 %v5163, %v5100
      %v5165 = vand.u32 2147483647, %v5100
      %vm5166 = vcmp.lt.f32.partialorder %v5165, 0.0004427343
      %v5167 = vsel %vm5166, %v5164, %v5161
      %v5168 = vadd.f32 %v5102, 1.0
      %v5169 = vlog2.pop %v5168
      %v5170 = vmul.f32 %v5169, 0.6931472
      %v5171 = vmul.f32 -0.5, %v5102
      %v5172 = vadd.f32 %v5171, 1.0
      %v5173 = vmul.f32 %v5172, %v5102
      %v5174 = vand.u32 2147483647, %v5102
      %vm5175 = vcmp.lt.f32.partialorder %v5174, 0.0004427343
      %v5176 = vsel %vm5175, %v5173, %v5170
      %v5177 = vadd.f32 %v5104, 1.0
      %v5178 = vlog2.pop %v5177
      %v5179 = vmul.f32 %v5178, 0.6931472
      %v5180 = vmul.f32 -0.5, %v5104
      %v5181 = vadd.f32 %v5180, 1.0
      %v5182 = vmul.f32 %v5181, %v5104
      %v5183 = vand.u32 2147483647, %v5104
      %vm5184 = vcmp.lt.f32.partialorder %v5183, 0.0004427343
      %v5185 = vsel %vm5184, %v5182, %v5179
      %v5186 = vadd.f32 %v5106, 1.0
      %v5187 = vlog2.pop %v5186
      %v5188 = vmul.f32 %v5187, 0.6931472
      %v5189 = vmul.f32 -0.5, %v5106
      %v5190 = vadd.f32 %v5189, 1.0
      %v5191 = vmul.f32 %v5190, %v5106
      %v5192 = vand.u32 2147483647, %v5106
      %vm5193 = vcmp.lt.f32.partialorder %v5192, 0.0004427343
      %v5194 = vsel %vm5193, %v5191, %v5188
      %v5195 = vadd.f32 %v5108, 1.0
      %v5196 = vlog2.pop %v5195
      %v5197 = vmul.f32 %v5196, 0.6931472
      %v5198 = vmul.f32 -0.5, %v5108
      %v5199 = vadd.f32 %v5198, 1.0
      %v5200 = vmul.f32 %v5199, %v5108
      %v5201 = vand.u32 2147483647, %v5108
      %vm5202 = vcmp.lt.f32.partialorder %v5201, 0.0004427343
      %v5203 = vsel %vm5202, %v5200, %v5197
      %v5204 = vadd.f32 %v5110, 1.0
      %v5205 = vlog2.pop %v5204
      %v5206 = vmul.f32 %v5205, 0.6931472
      %v5207 = vmul.f32 -0.5, %v5110
      %v5208 = vadd.f32 %v5207, 1.0
      %v5209 = vmul.f32 %v5208, %v5110
      %v5210 = vand.u32 2147483647, %v5110
      %vm5211 = vcmp.lt.f32.partialorder %v5210, 0.0004427343
      %v5212 = vsel %vm5211, %v5209, %v5206
      %v5213 = vadd.f32 %v5112, 1.0
      %v5214 = vlog2.pop %v5213
      %v5215 = vmul.f32 %v5214, 0.6931472
      %v5216 = vmul.f32 -0.5, %v5112
      %v5217 = vadd.f32 %v5216, 1.0
      %v5218 = vmul.f32 %v5217, %v5112
      %v5219 = vand.u32 2147483647, %v5112
      %vm5220 = vcmp.lt.f32.partialorder %v5219, 0.0004427343
      %v5221 = vsel %vm5220, %v5218, %v5215
      %v5222 = vadd.f32 %v5114, 1.0
      %v5223 = vlog2.pop %v5222
      %v5224 = vmul.f32 %v5223, 0.6931472
      %v5225 = vmul.f32 -0.5, %v5114
      %v5226 = vadd.f32 %v5225, 1.0
      %v5227 = vmul.f32 %v5226, %v5114
      %v5228 = vand.u32 2147483647, %v5114
      %vm5229 = vcmp.lt.f32.partialorder %v5228, 0.0004427343
      %v5230 = vsel %vm5229, %v5227, %v5224
      %v5231 = vadd.f32 %v5116, 1.0
      %v5232 = vlog2.pop %v5231
      %v5233 = vmul.f32 %v5232, 0.6931472
      %v5234 = vmul.f32 -0.5, %v5116
      %v5235 = vadd.f32 %v5234, 1.0
      %v5236 = vmul.f32 %v5235, %v5116
      %v5237 = vand.u32 2147483647, %v5116
      %vm5238 = vcmp.lt.f32.partialorder %v5237, 0.0004427343
      %v5239 = vsel %vm5238, %v5236, %v5233
      %v5240 = vadd.f32 %v5118, 1.0
      %v5241 = vlog2.pop %v5240
      %v5242 = vmul.f32 %v5241, 0.6931472
      %v5243 = vmul.f32 -0.5, %v5118
      %v5244 = vadd.f32 %v5243, 1.0
      %v5245 = vmul.f32 %v5244, %v5118
      %v5246 = vand.u32 2147483647, %v5118
      %vm5247 = vcmp.lt.f32.partialorder %v5246, 0.0004427343
      %v5248 = vsel %vm5247, %v5245, %v5242
      %v5249 = vadd.f32 %v5120, 1.0
      %v5250 = vlog2.pop %v5249
      %v5251 = vmul.f32 %v5250, 0.6931472
      %v5252 = vmul.f32 -0.5, %v5120
      %v5253 = vadd.f32 %v5252, 1.0
      %v5254 = vmul.f32 %v5253, %v5120
      %v5255 = vand.u32 2147483647, %v5120
      %vm5256 = vcmp.lt.f32.partialorder %v5255, 0.0004427343
      %v5257 = vsel %vm5256, %v5254, %v5251
      %v5258 = vadd.f32 %v5122, 1.0
      %v5259 = vlog2.pop %v5258
      %v5260 = vmul.f32 %v5259, 0.6931472
      %v5261 = vmul.f32 -0.5, %v5122
      %v5262 = vadd.f32 %v5261, 1.0
      %v5263 = vmul.f32 %v5262, %v5122
      %v5264 = vand.u32 2147483647, %v5122
      %vm5265 = vcmp.lt.f32.partialorder %v5264, 0.0004427343
      %v5266 = vsel %vm5265, %v5263, %v5260
      %v5267 = vmul.f32 %v5131, 0.01
      %v5268 = vmul.f32 %v5140, 0.01
      %v5269 = vmul.f32 %v5149, 0.01
      %v5270 = vmul.f32 %v5158, 0.01
      %v5271 = vmul.f32 %v5167, 0.01
      %v5272 = vmul.f32 %v5176, 0.01
      %v5273 = vmul.f32 %v5185, 0.01
      %v5274 = vmul.f32 %v5194, 0.01
      %v5275 = vmul.f32 %v5203, 0.01
      %v5276 = vmul.f32 %v5212, 0.01
      %v5277 = vmul.f32 %v5221, 0.01
      %v5278 = vmul.f32 %v5230, 0.01
      %v5279 = vmul.f32 %v5239, 0.01
      %v5280 = vmul.f32 %v5248, 0.01
      %v5281 = vmul.f32 %v5257, 0.01
      %v5282 = vmul.f32 %v5266, 0.01
      %v5283 = vsel %vm5075, %v4981, %v5267
      %v5284 = vsel %vm5076, %v4986, %v5268
      %v5285 = vsel %vm5077, %v4991, %v5269
      %v5286 = vsel %vm5078, %v4996, %v5270
      %v5287 = vsel %vm5079, %v5001, %v5271
      %v5288 = vsel %vm5080, %v5006, %v5272
      %v5289 = vsel %vm5081, %v5011, %v5273
      %v5290 = vsel %vm5082, %v5016, %v5274
      %v5291 = vsel %vm5083, %v5021, %v5275
      %v5292 = vsel %vm5084, %v5026, %v5276
      %v5293 = vsel %vm5085, %v5031, %v5277
      %v5294 = vsel %vm5086, %v5036, %v5278
      %v5295 = vsel %vm5087, %v5041, %v5279
      %v5296 = vsel %vm5088, %v5046, %v5280
      %v5297 = vsel %vm5089, %v5051, %v5281
      %v5298 = vsel %vm5090, %v5056, %v5282
      %v5299 = vld [vmem:[%s3] sm:$0xff]
      %v5300 = vld [vmem:[%s3 + $0x8] sm:$0xff]
      %v5301 = vld [vmem:[%s3 + $0x10] sm:$0xff]
      %v5302 = vld [vmem:[%s3 + $0x18] sm:$0xff]
      %v5303 = vld [vmem:[%s3 + $0x20] sm:$0xff]
      %v5304 = vld [vmem:[%s3 + $0x28] sm:$0xff]
      %v5305 = vld [vmem:[%s3 + $0x30] sm:$0xff]
      %v5306 = vld [vmem:[%s3 + $0x38] sm:$0xff]
      %v5307 = vld [vmem:[%s4] sm:$0x1]
      %v5309 = vlaneseq
      %v5310 = vshrl.u32 %v5309, 7
      %v5311 = vsub.s32 0, %v5310
      %v5312 = vrot.slane %v5307, %v5311
      %v5315 = vsel %vm894, %v5283, 0
      %v5318 = vsel %vm894, %v5284, 0
      %v5321 = vsel %vm894, %v5285, 0
      %v5324 = vsel %vm894, %v5286, 0
      %v5327 = vsel %vm894, %v5287, 0
      %v5330 = vsel %vm894, %v5288, 0
      %v5333 = vsel %vm894, %v5289, 0
      %v5336 = vsel %vm894, %v5290, 0
      %v5339 = vsel %vm894, %v5291, 0
      %v5342 = vsel %vm894, %v5292, 0
      %v5345 = vsel %vm894, %v5293, 0
      %v5348 = vsel %vm894, %v5294, 0
      %v5351 = vsel %vm894, %v5295, 0
      %v5354 = vsel %vm894, %v5296, 0
      %v5357 = vsel %vm894, %v5297, 0
      %v5360 = vsel %vm894, %v5298, 0
      %5362 = vmatprep.subr.mxu0 0.0
      %5363 = vmatpush1.msra.mxu0 %v5299
      %5364 = vmatprep.subr.mxu0 0.0
      %5365 = vmatpush1.msra.mxu0 %v5300
      %5366 = vmatprep.subr.mxu0 0.0
      %5367 = vmatpush1.msra.mxu0 %v5301
      %5368 = vmatprep.subr.mxu0 0.0
      %5369 = vmatpush1.msra.mxu0 %v5302
      %5370 = vmatprep.subr.mxu0 0.0
      %5371 = vmatpush1.msra.mxu0 %v5303
      %5372 = vmatprep.subr.mxu0 0.0
      %5373 = vmatpush1.msra.mxu0 %v5304
      %5374 = vmatprep.subr.mxu0 0.0
      %5375 = vmatpush1.msra.mxu0 %v5305
      %5376 = vmatprep.subr.mxu0 0.0
      %5377 = vmatpush1.msra.mxu0 %v5306
      %5378 = vmatprep.subr.mxu0 0.0
      %5379 = vmatpush1.msra.mxu0 0.0
      %5380 = vmatprep.subr.mxu0 0.0
      %5381 = vmatpush1.msra.mxu0 0.0
      %5382 = vmatprep.subr.mxu0 0.0
      %5383 = vmatpush1.msra.mxu0 0.0
      %5384 = vmatprep.subr.mxu0 0.0
      %5385 = vmatpush1.msra.mxu0 0.0
      %5386 = vmatprep.subr.mxu0 0.0
      %5387 = vmatpush1.msra.mxu0 0.0
      %5388 = vmatprep.subr.mxu0 0.0
      %5389 = vmatpush1.msra.mxu0 0.0
      %5390 = vmatprep.subr.mxu0 0.0
      %5391 = vmatpush1.msra.mxu0 0.0
      %5392 = vmatprep.subr.mxu0 0.0
      %5393 = vmatpush1.msra.mxu0 0.0
      %5394 = vmatprep.subr.mxu0 0.0
      %5395 = vmatpush1.msra.mxu0 0.0
      %5396 = vmatprep.subr.mxu0 0.0
      %5397 = vmatpush1.msra.mxu0 0.0
      %5398 = vmatprep.subr.mxu0 0.0
      %5399 = vmatpush1.msra.mxu0 0.0
      %5400 = vmatprep.subr.mxu0 0.0
      %5401 = vmatpush1.msra.mxu0 0.0
      %5402 = vmatprep.subr.mxu0 0.0
      %5403 = vmatpush1.msra.mxu0 0.0
      %5404 = vmatprep.subr.mxu0 0.0
      %5405 = vmatpush1.msra.mxu0 0.0
      %5406 = vmatprep.subr.mxu0 0.0
      %5407 = vmatpush1.msra.mxu0 0.0
      %5408 = vmatprep.subr.mxu0 0.0
      %5409 = vmatpush1.msra.mxu0 0.0
      %5410 = vmatprep.subr.mxu0 0.0
      %5411 = vmatpush1.msra.mxu0 0.0
      %5412 = vmatprep.subr.mxu0 0.0
      %5413 = vmatpush1.msra.mxu0 0.0
      %5414 = vmatprep.subr.mxu0 0.0
      %5415 = vmatpush1.msra.mxu0 0.0
      %5416 = vmatprep.subr.mxu0 0.0
      %5417 = vmatpush1.msra.mxu0 0.0
      %5418 = vmatprep.subr.mxu0 0.0
      %5419 = vmatpush1.msra.mxu0 0.0
      %5420 = vmatprep.subr.mxu0 0.0
      %5421 = vmatpush1.msra.mxu0 0.0
      %5422 = vmatprep.subr.mxu0 0.0
      %5423 = vmatpush1.msra.mxu0 0.0
      %5424 = vmatprep.subr.mxu0 0.0
      %5425 = vmatpush1.msra.mxu0 0.0
      %5426 = vmatprep.mubr.f32.mxu0 0.0
      %5427 = vmatmul.mubr.f32.gmra.mrb[0].mxu0 %v5315
      %v5428 = vpop.f32.mrb[0].mxu0
      %v5429 = vadd.f32 %v5312, %v5428
      %v5430 = vpop.f32.mrb[0].mxu0
      %5431 = vmatprep.mubr.f32.mxu0 0.0
      %5432 = vmatmul.mubr.f32.gmra.mrb[0].mxu0 %v5318
      %v5433 = vpop.f32.mrb[0].mxu0
      %v5434 = vadd.f32 %v5312, %v5433
      %v5435 = vpop.f32.mrb[0].mxu0
      %5436 = vmatprep.mubr.f32.mxu0 0.0
      %5437 = vmatmul.mubr.f32.gmra.mrb[0].mxu0 %v5321
      %v5438 = vpop.f32.mrb[0].mxu0
      %v5439 = vadd.f32 %v5312, %v5438
      %v5440 = vpop.f32.mrb[0].mxu0
      %5441 = vmatprep.mubr.f32.mxu0 0.0
      %5442 = vmatmul.mubr.f32.gmra.mrb[0].mxu0 %v5324
      %v5443 = vpop.f32.mrb[0].mxu0
      %v5444 = vadd.f32 %v5312, %v5443
      %v5445 = vpop.f32.mrb[0].mxu0
      %5446 = vmatprep.mubr.f32.mxu0 0.0
      %5447 = vmatmul.mubr.f32.gmra.mrb[0].mxu0 %v5327
      %v5448 = vpop.f32.mrb[0].mxu0
      %v5449 = vadd.f32 %v5312, %v5448
      %v5450 = vpop.f32.mrb[0].mxu0
      %5451 = vmatprep.mubr.f32.mxu0 0.0
      %5452 = vmatmul.mubr.f32.gmra.mrb[0].mxu0 %v5330
      %v5453 = vpop.f32.mrb[0].mxu0
      %v5454 = vadd.f32 %v5312, %v5453
      %v5455 = vpop.f32.mrb[0].mxu0
      %5456 = vmatprep.mubr.f32.mxu0 0.0
      %5457 = vmatmul.mubr.f32.gmra.mrb[0].mxu0 %v5333
      %v5458 = vpop.f32.mrb[0].mxu0
      %v5459 = vadd.f32 %v5312, %v5458
      %v5460 = vpop.f32.mrb[0].mxu0
      %5461 = vmatprep.mubr.f32.mxu0 0.0
      %5462 = vmatmul.mubr.f32.gmra.mrb[0].mxu0 %v5336
      %v5463 = vpop.f32.mrb[0].mxu0
      %v5464 = vadd.f32 %v5312, %v5463
      %v5465 = vpop.f32.mrb[0].mxu0
      %5466 = vmatprep.mubr.f32.mxu0 0.0
      %5467 = vmatmul.mubr.f32.gmra.mrb[0].mxu0 %v5339
      %v5468 = vpop.f32.mrb[0].mxu0
      %v5469 = vadd.f32 %v5312, %v5468
      %v5470 = vpop.f32.mrb[0].mxu0
      %5471 = vmatprep.mubr.f32.mxu0 0.0
      %5472 = vmatmul.mubr.f32.gmra.mrb[0].mxu0 %v5342
      %v5473 = vpop.f32.mrb[0].mxu0
      %v5474 = vadd.f32 %v5312, %v5473
      %v5475 = vpop.f32.mrb[0].mxu0
      %5476 = vmatprep.mubr.f32.mxu0 0.0
      %5477 = vmatmul.mubr.f32.gmra.mrb[0].mxu0 %v5345
      %v5478 = vpop.f32.mrb[0].mxu0
      %v5479 = vadd.f32 %v5312, %v5478
      %v5480 = vpop.f32.mrb[0].mxu0
      %5481 = vmatprep.mubr.f32.mxu0 0.0
      %5482 = vmatmul.mubr.f32.gmra.mrb[0].mxu0 %v5348
      %v5483 = vpop.f32.mrb[0].mxu0
      %v5484 = vadd.f32 %v5312, %v5483
      %v5485 = vpop.f32.mrb[0].mxu0
      %5486 = vmatprep.mubr.f32.mxu0 0.0
      %5487 = vmatmul.mubr.f32.gmra.mrb[0].mxu0 %v5351
      %v5488 = vpop.f32.mrb[0].mxu0
      %v5489 = vadd.f32 %v5312, %v5488
      %v5490 = vpop.f32.mrb[0].mxu0
      %5491 = vmatprep.mubr.f32.mxu0 0.0
      %5492 = vmatmul.mubr.f32.gmra.mrb[0].mxu0 %v5354
      %v5493 = vpop.f32.mrb[0].mxu0
      %v5494 = vadd.f32 %v5312, %v5493
      %v5495 = vpop.f32.mrb[0].mxu0
      %5496 = vmatprep.mubr.f32.mxu0 0.0
      %5497 = vmatmul.mubr.f32.gmra.mrb[0].mxu0 %v5357
      %v5498 = vpop.f32.mrb[0].mxu0
      %v5499 = vadd.f32 %v5312, %v5498
      %v5500 = vpop.f32.mrb[0].mxu0
      %5501 = vmatprep.mubr.f32.mxu0 0.0
      %5502 = vmatmul.mubr.f32.gmra.mrb[0].mxu0 %v5360
      %v5503 = vpop.f32.mrb[0].mxu0
      %v5504 = vadd.f32 %v5312, %v5503
      %v5505 = vpop.f32.mrb[0].mxu0
      %5506 = vdwg.mxu0
      %v5507 = vmul.f32 %v5429, 100.0
      %v5508 = vmul.f32 %v5434, 100.0
      %v5509 = vmul.f32 %v5439, 100.0
      %v5510 = vmul.f32 %v5444, 100.0
      %v5511 = vmul.f32 %v5449, 100.0
      %v5512 = vmul.f32 %v5454, 100.0
      %v5513 = vmul.f32 %v5459, 100.0
      %v5514 = vmul.f32 %v5464, 100.0
      %v5515 = vmul.f32 %v5469, 100.0
      %v5516 = vmul.f32 %v5474, 100.0
      %v5517 = vmul.f32 %v5479, 100.0
      %v5518 = vmul.f32 %v5484, 100.0
      %v5519 = vmul.f32 %v5489, 100.0
      %v5520 = vmul.f32 %v5494, 100.0
      %v5521 = vmul.f32 %v5499, 100.0
      %v5522 = vmul.f32 %v5504, 100.0
      %vm5523 = vcmp.gt.f32.partialorder %v5507, 20.0
      %vm5524 = vcmp.gt.f32.partialorder %v5508, 20.0
      %vm5525 = vcmp.gt.f32.partialorder %v5509, 20.0
      %vm5526 = vcmp.gt.f32.partialorder %v5510, 20.0
      %vm5527 = vcmp.gt.f32.partialorder %v5511, 20.0
      %vm5528 = vcmp.gt.f32.partialorder %v5512, 20.0
      %vm5529 = vcmp.gt.f32.partialorder %v5513, 20.0
      %vm5530 = vcmp.gt.f32.partialorder %v5514, 20.0
      %vm5531 = vcmp.gt.f32.partialorder %v5515, 20.0
      %vm5532 = vcmp.gt.f32.partialorder %v5516, 20.0
      %vm5533 = vcmp.gt.f32.partialorder %v5517, 20.0
      %vm5534 = vcmp.gt.f32.partialorder %v5518, 20.0
      %vm5535 = vcmp.gt.f32.partialorder %v5519, 20.0
      %vm5536 = vcmp.gt.f32.partialorder %v5520, 20.0
      %vm5537 = vcmp.gt.f32.partialorder %v5521, 20.0
      %vm5538 = vcmp.gt.f32.partialorder %v5522, 20.0
      %v5539 = vmul.f32 %v5507, 1.442695
      %v5540 = vpow.pop %v5539
      %v5541 = vmul.f32 %v5508, 1.442695
      %v5542 = vpow.pop %v5541
      %v5543 = vmul.f32 %v5509, 1.442695
      %v5544 = vpow.pop %v5543
      %v5545 = vmul.f32 %v5510, 1.442695
      %v5546 = vpow.pop %v5545
      %v5547 = vmul.f32 %v5511, 1.442695
      %v5548 = vpow.pop %v5547
      %v5549 = vmul.f32 %v5512, 1.442695
      %v5550 = vpow.pop %v5549
      %v5551 = vmul.f32 %v5513, 1.442695
      %v5552 = vpow.pop %v5551
      %v5553 = vmul.f32 %v5514, 1.442695
      %v5554 = vpow.pop %v5553
      %v5555 = vmul.f32 %v5515, 1.442695
      %v5556 = vpow.pop %v5555
      %v5557 = vmul.f32 %v5516, 1.442695
      %v5558 = vpow.pop %v5557
      %v5559 = vmul.f32 %v5517, 1.442695
      %v5560 = vpow.pop %v5559
      %v5561 = vmul.f32 %v5518, 1.442695
      %v5562 = vpow.pop %v5561
      %v5563 = vmul.f32 %v5519, 1.442695
      %v5564 = vpow.pop %v5563
      %v5565 = vmul.f32 %v5520, 1.442695
      %v5566 = vpow.pop %v5565
      %v5567 = vmul.f32 %v5521, 1.442695
      %v5568 = vpow.pop %v5567
      %v5569 = vmul.f32 %v5522, 1.442695
      %v5570 = vpow.pop %v5569
      %v5571 = vadd.f32 %v5540, 1.0
      %v5572 = vlog2.pop %v5571
      %v5573 = vmul.f32 %v5572, 0.6931472
      %v5574 = vmul.f32 -0.5, %v5540
      %v5575 = vadd.f32 %v5574, 1.0
      %v5576 = vmul.f32 %v5575, %v5540
      %v5577 = vand.u32 2147483647, %v5540
      %vm5578 = vcmp.lt.f32.partialorder %v5577, 0.0004427343
      %v5579 = vsel %vm5578, %v5576, %v5573
      %v5580 = vadd.f32 %v5542, 1.0
      %v5581 = vlog2.pop %v5580
      %v5582 = vmul.f32 %v5581, 0.6931472
      %v5583 = vmul.f32 -0.5, %v5542
      %v5584 = vadd.f32 %v5583, 1.0
      %v5585 = vmul.f32 %v5584, %v5542
      %v5586 = vand.u32 2147483647, %v5542
      %vm5587 = vcmp.lt.f32.partialorder %v5586, 0.0004427343
      %v5588 = vsel %vm5587, %v5585, %v5582
      %v5589 = vadd.f32 %v5544, 1.0
      %v5590 = vlog2.pop %v5589
      %v5591 = vmul.f32 %v5590, 0.6931472
      %v5592 = vmul.f32 -0.5, %v5544
      %v5593 = vadd.f32 %v5592, 1.0
      %v5594 = vmul.f32 %v5593, %v5544
      %v5595 = vand.u32 2147483647, %v5544
      %vm5596 = vcmp.lt.f32.partialorder %v5595, 0.0004427343
      %v5597 = vsel %vm5596, %v5594, %v5591
      %v5598 = vadd.f32 %v5546, 1.0
      %v5599 = vlog2.pop %v5598
      %v5600 = vmul.f32 %v5599, 0.6931472
      %v5601 = vmul.f32 -0.5, %v5546
      %v5602 = vadd.f32 %v5601, 1.0
      %v5603 = vmul.f32 %v5602, %v5546
      %v5604 = vand.u32 2147483647, %v5546
      %vm5605 = vcmp.lt.f32.partialorder %v5604, 0.0004427343
      %v5606 = vsel %vm5605, %v5603, %v5600
      %v5607 = vadd.f32 %v5548, 1.0
      %v5608 = vlog2.pop %v5607
      %v5609 = vmul.f32 %v5608, 0.6931472
      %v5610 = vmul.f32 -0.5, %v5548
      %v5611 = vadd.f32 %v5610, 1.0
      %v5612 = vmul.f32 %v5611, %v5548
      %v5613 = vand.u32 2147483647, %v5548
      %vm5614 = vcmp.lt.f32.partialorder %v5613, 0.0004427343
      %v5615 = vsel %vm5614, %v5612, %v5609
      %v5616 = vadd.f32 %v5550, 1.0
      %v5617 = vlog2.pop %v5616
      %v5618 = vmul.f32 %v5617, 0.6931472
      %v5619 = vmul.f32 -0.5, %v5550
      %v5620 = vadd.f32 %v5619, 1.0
      %v5621 = vmul.f32 %v5620, %v5550
      %v5622 = vand.u32 2147483647, %v5550
      %vm5623 = vcmp.lt.f32.partialorder %v5622, 0.0004427343
      %v5624 = vsel %vm5623, %v5621, %v5618
      %v5625 = vadd.f32 %v5552, 1.0
      %v5626 = vlog2.pop %v5625
      %v5627 = vmul.f32 %v5626, 0.6931472
      %v5628 = vmul.f32 -0.5, %v5552
      %v5629 = vadd.f32 %v5628, 1.0
      %v5630 = vmul.f32 %v5629, %v5552
      %v5631 = vand.u32 2147483647, %v5552
      %vm5632 = vcmp.lt.f32.partialorder %v5631, 0.0004427343
      %v5633 = vsel %vm5632, %v5630, %v5627
      %v5634 = vadd.f32 %v5554, 1.0
      %v5635 = vlog2.pop %v5634
      %v5636 = vmul.f32 %v5635, 0.6931472
      %v5637 = vmul.f32 -0.5, %v5554
      %v5638 = vadd.f32 %v5637, 1.0
      %v5639 = vmul.f32 %v5638, %v5554
      %v5640 = vand.u32 2147483647, %v5554
      %vm5641 = vcmp.lt.f32.partialorder %v5640, 0.0004427343
      %v5642 = vsel %vm5641, %v5639, %v5636
      %v5643 = vadd.f32 %v5556, 1.0
      %v5644 = vlog2.pop %v5643
      %v5645 = vmul.f32 %v5644, 0.6931472
      %v5646 = vmul.f32 -0.5, %v5556
      %v5647 = vadd.f32 %v5646, 1.0
      %v5648 = vmul.f32 %v5647, %v5556
      %v5649 = vand.u32 2147483647, %v5556
      %vm5650 = vcmp.lt.f32.partialorder %v5649, 0.0004427343
      %v5651 = vsel %vm5650, %v5648, %v5645
      %v5652 = vadd.f32 %v5558, 1.0
      %v5653 = vlog2.pop %v5652
      %v5654 = vmul.f32 %v5653, 0.6931472
      %v5655 = vmul.f32 -0.5, %v5558
      %v5656 = vadd.f32 %v5655, 1.0
      %v5657 = vmul.f32 %v5656, %v5558
      %v5658 = vand.u32 2147483647, %v5558
      %vm5659 = vcmp.lt.f32.partialorder %v5658, 0.0004427343
      %v5660 = vsel %vm5659, %v5657, %v5654
      %v5661 = vadd.f32 %v5560, 1.0
      %v5662 = vlog2.pop %v5661
      %v5663 = vmul.f32 %v5662, 0.6931472
      %v5664 = vmul.f32 -0.5, %v5560
      %v5665 = vadd.f32 %v5664, 1.0
      %v5666 = vmul.f32 %v5665, %v5560
      %v5667 = vand.u32 2147483647, %v5560
      %vm5668 = vcmp.lt.f32.partialorder %v5667, 0.0004427343
      %v5669 = vsel %vm5668, %v5666, %v5663
      %v5670 = vadd.f32 %v5562, 1.0
      %v5671 = vlog2.pop %v5670
      %v5672 = vmul.f32 %v5671, 0.6931472
      %v5673 = vmul.f32 -0.5, %v5562
      %v5674 = vadd.f32 %v5673, 1.0
      %v5675 = vmul.f32 %v5674, %v5562
      %v5676 = vand.u32 2147483647, %v5562
      %vm5677 = vcmp.lt.f32.partialorder %v5676, 0.0004427343
      %v5678 = vsel %vm5677, %v5675, %v5672
      %v5679 = vadd.f32 %v5564, 1.0
      %v5680 = vlog2.pop %v5679
      %v5681 = vmul.f32 %v5680, 0.6931472
      %v5682 = vmul.f32 -0.5, %v5564
      %v5683 = vadd.f32 %v5682, 1.0
      %v5684 = vmul.f32 %v5683, %v5564
      %v5685 = vand.u32 2147483647, %v5564
      %vm5686 = vcmp.lt.f32.partialorder %v5685, 0.0004427343
      %v5687 = vsel %vm5686, %v5684, %v5681
      %v5688 = vadd.f32 %v5566, 1.0
      %v5689 = vlog2.pop %v5688
      %v5690 = vmul.f32 %v5689, 0.6931472
      %v5691 = vmul.f32 -0.5, %v5566
      %v5692 = vadd.f32 %v5691, 1.0
      %v5693 = vmul.f32 %v5692, %v5566
      %v5694 = vand.u32 2147483647, %v5566
      %vm5695 = vcmp.lt.f32.partialorder %v5694, 0.0004427343
      %v5696 = vsel %vm5695, %v5693, %v5690
      %v5697 = vadd.f32 %v5568, 1.0
      %v5698 = vlog2.pop %v5697
      %v5699 = vmul.f32 %v5698, 0.6931472
      %v5700 = vmul.f32 -0.5, %v5568
      %v5701 = vadd.f32 %v5700, 1.0
      %v5702 = vmul.f32 %v5701, %v5568
      %v5703 = vand.u32 2147483647, %v5568
      %vm5704 = vcmp.lt.f32.partialorder %v5703, 0.0004427343
      %v5705 = vsel %vm5704, %v5702, %v5699
      %v5706 = vadd.f32 %v5570, 1.0
      %v5707 = vlog2.pop %v5706
      %v5708 = vmul.f32 %v5707, 0.6931472
      %v5709 = vmul.f32 -0.5, %v5570
      %v5710 = vadd.f32 %v5709, 1.0
      %v5711 = vmul.f32 %v5710, %v5570
      %v5712 = vand.u32 2147483647, %v5570
      %vm5713 = vcmp.lt.f32.partialorder %v5712, 0.0004427343
      %v5714 = vsel %vm5713, %v5711, %v5708
      %v5715 = vmul.f32 %v5579, 0.01
      %v5716 = vmul.f32 %v5588, 0.01
      %v5717 = vmul.f32 %v5597, 0.01
      %v5718 = vmul.f32 %v5606, 0.01
      %v5719 = vmul.f32 %v5615, 0.01
      %v5720 = vmul.f32 %v5624, 0.01
      %v5721 = vmul.f32 %v5633, 0.01
      %v5722 = vmul.f32 %v5642, 0.01
      %v5723 = vmul.f32 %v5651, 0.01
      %v5724 = vmul.f32 %v5660, 0.01
      %v5725 = vmul.f32 %v5669, 0.01
      %v5726 = vmul.f32 %v5678, 0.01
      %v5727 = vmul.f32 %v5687, 0.01
      %v5728 = vmul.f32 %v5696, 0.01
      %v5729 = vmul.f32 %v5705, 0.01
      %v5730 = vmul.f32 %v5714, 0.01
      %v5731 = vsel %vm5523, %v5429, %v5715
      %v5732 = vsel %vm5524, %v5434, %v5716
      %v5733 = vsel %vm5525, %v5439, %v5717
      %v5734 = vsel %vm5526, %v5444, %v5718
      %v5735 = vsel %vm5527, %v5449, %v5719
      %v5736 = vsel %vm5528, %v5454, %v5720
      %v5737 = vsel %vm5529, %v5459, %v5721
      %v5738 = vsel %vm5530, %v5464, %v5722
      %v5739 = vsel %vm5531, %v5469, %v5723
      %v5740 = vsel %vm5532, %v5474, %v5724
      %v5741 = vsel %vm5533, %v5479, %v5725
      %v5742 = vsel %vm5534, %v5484, %v5726
      %v5743 = vsel %vm5535, %v5489, %v5727
      %v5744 = vsel %vm5536, %v5494, %v5728
      %v5745 = vsel %vm5537, %v5499, %v5729
      %v5746 = vsel %vm5538, %v5504, %v5730
      %v5747 = vld [vmem:[%s5] sm:$0xff]
      %v5748 = vld [vmem:[%s5 + $0x8] sm:$0xff]
      %v5749 = vld [vmem:[%s5 + $0x10] sm:$0xff]
      %v5750 = vld [vmem:[%s5 + $0x18] sm:$0xff]
      %v5751 = vld [vmem:[%s5 + $0x20] sm:$0xff]
      %v5752 = vld [vmem:[%s5 + $0x28] sm:$0xff]
      %v5753 = vld [vmem:[%s5 + $0x30] sm:$0xff]
      %v5754 = vld [vmem:[%s5 + $0x38] sm:$0xff]
      %v5755 = vld [vmem:[%s6] sm:$0x7]
      %v5757 = vsel %vm490, %v5755, 0
      %5759 = vmatprep.subr.mxu0 0.0
      %5760 = vmatpush1.msra.mxu0 %v5757
      %5761 = vmatprep.subr.mxu0 0.0
      %5762 = vmatpush1.msra.mxu0 0.0
      %5763 = vmatprep.subr.mxu0 0.0
      %5764 = vmatpush1.msra.mxu0 0.0
      %5765 = vmatprep.subr.mxu0 0.0
      %5766 = vmatpush1.msra.mxu0 0.0
      %5767 = vmatprep.subr.mxu0 0.0
      %5768 = vmatpush1.msra.mxu0 0.0
      %5769 = vmatprep.subr.mxu0 0.0
      %5770 = vmatpush1.msra.mxu0 0.0
      %5771 = vmatprep.subr.mxu0 0.0
      %5772 = vmatpush1.msra.mxu0 0.0
      %5773 = vmatprep.subr.mxu0 0.0
      %5774 = vmatpush1.msra.mxu0 0.0
      %5775 = vmatprep.subr.mxu0 0.0
      %5776 = vmatpush1.msra.mxu0 0.0
      %5777 = vmatprep.subr.mxu0 0.0
      %5778 = vmatpush1.msra.mxu0 0.0
      %5779 = vmatprep.subr.mxu0 0.0
      %5780 = vmatpush1.msra.mxu0 0.0
      %5781 = vmatprep.subr.mxu0 0.0
      %5782 = vmatpush1.msra.mxu0 0.0
      %5783 = vmatprep.subr.mxu0 0.0
      %5784 = vmatpush1.msra.mxu0 0.0
      %5785 = vmatprep.subr.mxu0 0.0
      %5786 = vmatpush1.msra.mxu0 0.0
      %5787 = vmatprep.subr.mxu0 0.0
      %5788 = vmatpush1.msra.mxu0 0.0
      %5789 = vmatprep.subr.mxu0 0.0
      %5790 = vmatpush1.msra.mxu0 0.0
      %5791 = vmatprep.subr.mxu0 0.0
      %5792 = vmatpush1.msra.mxu0 0.0
      %5793 = vmatprep.subr.mxu0 0.0
      %5794 = vmatpush1.msra.mxu0 0.0
      %5795 = vmatprep.subr.mxu0 0.0
      %5796 = vmatpush1.msra.mxu0 0.0
      %5797 = vmatprep.subr.mxu0 0.0
      %5798 = vmatpush1.msra.mxu0 0.0
      %5799 = vmatprep.subr.mxu0 0.0
      %5800 = vmatpush1.msra.mxu0 0.0
      %5801 = vmatprep.subr.mxu0 0.0
      %5802 = vmatpush1.msra.mxu0 0.0
      %5803 = vmatprep.subr.mxu0 0.0
      %5804 = vmatpush1.msra.mxu0 0.0
      %5805 = vmatprep.subr.mxu0 0.0
      %5806 = vmatpush1.msra.mxu0 0.0
      %5807 = vmatprep.subr.mxu0 0.0
      %5808 = vmatpush1.msra.mxu0 0.0
      %5809 = vmatprep.subr.mxu0 0.0
      %5810 = vmatpush1.msra.mxu0 0.0
      %5811 = vmatprep.subr.mxu0 0.0
      %5812 = vmatpush1.msra.mxu0 0.0
      %5813 = vmatprep.subr.mxu0 0.0
      %5814 = vmatpush1.msra.mxu0 0.0
      %5815 = vmatprep.subr.mxu0 0.0
      %5816 = vmatpush1.msra.mxu0 0.0
      %5817 = vmatprep.subr.mxu0 0.0
      %5818 = vmatpush1.msra.mxu0 0.0
      %5819 = vmatprep.subr.mxu0 0.0
      %5820 = vmatpush1.msra.mxu0 0.0
      %5821 = vmatprep.subr.mxu0 0.0
      %5822 = vmatpush1.msra.mxu0 0.0
      %5823 = vmatprep.mubr.f32.mxu0 0.0
      %5824 = vmatmul.mubr.f32.gmra.mrb[0].mxu0 %v4864
      %v5825 = vpop.f32.mrb[0].mxu0
      %v5826 = vadd.f32 0.0, %v5825
      %v5827 = vpop.f32.mrb[0].mxu0
      %5828 = vmatprep.mubr.f32.mxu0 0.0
      %5829 = vmatmul.mubr.f32.gmra.mrb[0].mxu0 %v4867
      %v5830 = vpop.f32.mrb[0].mxu0
      %v5831 = vadd.f32 0.0, %v5830
      %v5832 = vpop.f32.mrb[0].mxu0
      %5833 = vmatprep.mubr.f32.mxu0 0.0
      %5834 = vmatmul.mubr.f32.gmra.mrb[0].mxu0 %v4870
      %v5835 = vpop.f32.mrb[0].mxu0
      %v5836 = vadd.f32 0.0, %v5835
      %v5837 = vpop.f32.mrb[0].mxu0
      %5838 = vmatprep.mubr.f32.mxu0 0.0
      %5839 = vmatmul.mubr.f32.gmra.mrb[0].mxu0 %v4873
      %v5840 = vpop.f32.mrb[0].mxu0
      %v5841 = vadd.f32 0.0, %v5840
      %v5842 = vpop.f32.mrb[0].mxu0
      %5843 = vmatprep.mubr.f32.mxu0 0.0
      %5844 = vmatmul.mubr.f32.gmra.mrb[0].mxu0 %v4876
      %v5845 = vpop.f32.mrb[0].mxu0
      %v5846 = vadd.f32 0.0, %v5845
      %v5847 = vpop.f32.mrb[0].mxu0
      %5848 = vmatprep.mubr.f32.mxu0 0.0
      %5849 = vmatmul.mubr.f32.gmra.mrb[0].mxu0 %v4879
      %v5850 = vpop.f32.mrb[0].mxu0
      %v5851 = vadd.f32 0.0, %v5850
      %v5852 = vpop.f32.mrb[0].mxu0
      %5853 = vmatprep.mubr.f32.mxu0 0.0
      %5854 = vmatmul.mubr.f32.gmra.mrb[0].mxu0 %v4882
      %v5855 = vpop.f32.mrb[0].mxu0
      %v5856 = vadd.f32 0.0, %v5855
      %v5857 = vpop.f32.mrb[0].mxu0
      %5858 = vmatprep.mubr.f32.mxu0 0.0
      %5859 = vmatmul.mubr.f32.gmra.mrb[0].mxu0 %v4885
      %v5860 = vpop.f32.mrb[0].mxu0
      %v5861 = vadd.f32 0.0, %v5860
      %v5862 = vpop.f32.mrb[0].mxu0
      %5863 = vmatprep.mubr.f32.mxu0 0.0
      %5864 = vmatmul.mubr.f32.gmra.mrb[0].mxu0 %v4888
      %v5865 = vpop.f32.mrb[0].mxu0
      %v5866 = vadd.f32 0.0, %v5865
      %v5867 = vpop.f32.mrb[0].mxu0
      %5868 = vmatprep.mubr.f32.mxu0 0.0
      %5869 = vmatmul.mubr.f32.gmra.mrb[0].mxu0 %v4891
      %v5870 = vpop.f32.mrb[0].mxu0
      %v5871 = vadd.f32 0.0, %v5870
      %v5872 = vpop.f32.mrb[0].mxu0
      %5873 = vmatprep.mubr.f32.mxu0 0.0
      %5874 = vmatmul.mubr.f32.gmra.mrb[0].mxu0 %v4894
      %v5875 = vpop.f32.mrb[0].mxu0
      %v5876 = vadd.f32 0.0, %v5875
      %v5877 = vpop.f32.mrb[0].mxu0
      %5878 = vmatprep.mubr.f32.mxu0 0.0
      %5879 = vmatmul.mubr.f32.gmra.mrb[0].mxu0 %v4897
      %v5880 = vpop.f32.mrb[0].mxu0
      %v5881 = vadd.f32 0.0, %v5880
      %v5882 = vpop.f32.mrb[0].mxu0
      %5883 = vmatprep.mubr.f32.mxu0 0.0
      %5884 = vmatmul.mubr.f32.gmra.mrb[0].mxu0 %v4900
      %v5885 = vpop.f32.mrb[0].mxu0
      %v5886 = vadd.f32 0.0, %v5885
      %v5887 = vpop.f32.mrb[0].mxu0
      %5888 = vmatprep.mubr.f32.mxu0 0.0
      %5889 = vmatmul.mubr.f32.gmra.mrb[0].mxu0 %v4903
      %v5890 = vpop.f32.mrb[0].mxu0
      %v5891 = vadd.f32 0.0, %v5890
      %v5892 = vpop.f32.mrb[0].mxu0
      %5893 = vmatprep.mubr.f32.mxu0 0.0
      %5894 = vmatmul.mubr.f32.gmra.mrb[0].mxu0 %v4906
      %v5895 = vpop.f32.mrb[0].mxu0
      %v5896 = vadd.f32 0.0, %v5895
      %v5897 = vpop.f32.mrb[0].mxu0
      %5898 = vmatprep.mubr.f32.mxu0 0.0
      %5899 = vmatmul.mubr.f32.gmra.mrb[0].mxu0 %v4909
      %v5900 = vpop.f32.mrb[0].mxu0
      %v5901 = vadd.f32 0.0, %v5900
      %v5902 = vpop.f32.mrb[0].mxu0
      %5903 = vdwg.mxu0
      %v5905 = vsel %vm894, %v5731, 0
      %v5908 = vsel %vm894, %v5732, 0
      %v5911 = vsel %vm894, %v5733, 0
      %v5914 = vsel %vm894, %v5734, 0
      %v5917 = vsel %vm894, %v5735, 0
      %v5920 = vsel %vm894, %v5736, 0
      %v5923 = vsel %vm894, %v5737, 0
      %v5926 = vsel %vm894, %v5738, 0
      %v5929 = vsel %vm894, %v5739, 0
      %v5932 = vsel %vm894, %v5740, 0
      %v5935 = vsel %vm894, %v5741, 0
      %v5938 = vsel %vm894, %v5742, 0
      %v5941 = vsel %vm894, %v5743, 0
      %v5944 = vsel %vm894, %v5744, 0
      %v5947 = vsel %vm894, %v5745, 0
      %v5950 = vsel %vm894, %v5746, 0
      %5952 = vmatprep.subr.mxu0 0.0
      %5953 = vmatpush1.msra.mxu0 %v5747
      %5954 = vmatprep.subr.mxu0 0.0
      %5955 = vmatpush1.msra.mxu0 %v5748
      %5956 = vmatprep.subr.mxu0 0.0
      %5957 = vmatpush1.msra.mxu0 %v5749
      %5958 = vmatprep.subr.mxu0 0.0
      %5959 = vmatpush1.msra.mxu0 %v5750
      %5960 = vmatprep.subr.mxu0 0.0
      %5961 = vmatpush1.msra.mxu0 %v5751
      %5962 = vmatprep.subr.mxu0 0.0
      %5963 = vmatpush1.msra.mxu0 %v5752
      %5964 = vmatprep.subr.mxu0 0.0
      %5965 = vmatpush1.msra.mxu0 %v5753
      %5966 = vmatprep.subr.mxu0 0.0
      %5967 = vmatpush1.msra.mxu0 %v5754
      %5968 = vmatprep.subr.mxu0 0.0
      %5969 = vmatpush1.msra.mxu0 0.0
      %5970 = vmatprep.subr.mxu0 0.0
      %5971 = vmatpush1.msra.mxu0 0.0
      %5972 = vmatprep.subr.mxu0 0.0
      %5973 = vmatpush1.msra.mxu0 0.0
      %5974 = vmatprep.subr.mxu0 0.0
      %5975 = vmatpush1.msra.mxu0 0.0
      %5976 = vmatprep.subr.mxu0 0.0
      %5977 = vmatpush1.msra.mxu0 0.0
      %5978 = vmatprep.subr.mxu0 0.0
      %5979 = vmatpush1.msra.mxu0 0.0
      %5980 = vmatprep.subr.mxu0 0.0
      %5981 = vmatpush1.msra.mxu0 0.0
      %5982 = vmatprep.subr.mxu0 0.0
      %5983 = vmatpush1.msra.mxu0 0.0
      %5984 = vmatprep.subr.mxu0 0.0
      %5985 = vmatpush1.msra.mxu0 0.0
      %5986 = vmatprep.subr.mxu0 0.0
      %5987 = vmatpush1.msra.mxu0 0.0
      %5988 = vmatprep.subr.mxu0 0.0
      %5989 = vmatpush1.msra.mxu0 0.0
      %5990 = vmatprep.subr.mxu0 0.0
      %5991 = vmatpush1.msra.mxu0 0.0
      %5992 = vmatprep.subr.mxu0 0.0
      %5993 = vmatpush1.msra.mxu0 0.0
      %5994 = vmatprep.subr.mxu0 0.0
      %5995 = vmatpush1.msra.mxu0 0.0
      %5996 = vmatprep.subr.mxu0 0.0
      %5997 = vmatpush1.msra.mxu0 0.0
      %5998 = vmatprep.subr.mxu0 0.0
      %5999 = vmatpush1.msra.mxu0 0.0
      %6000 = vmatprep.subr.mxu0 0.0
      %6001 = vmatpush1.msra.mxu0 0.0
      %6002 = vmatprep.subr.mxu0 0.0
      %6003 = vmatpush1.msra.mxu0 0.0
      %6004 = vmatprep.subr.mxu0 0.0
      %6005 = vmatpush1.msra.mxu0 0.0
      %6006 = vmatprep.subr.mxu0 0.0
      %6007 = vmatpush1.msra.mxu0 0.0
      %6008 = vmatprep.subr.mxu0 0.0
      %6009 = vmatpush1.msra.mxu0 0.0
      %6010 = vmatprep.subr.mxu0 0.0
      %6011 = vmatpush1.msra.mxu0 0.0
      %6012 = vmatprep.subr.mxu0 0.0
      %6013 = vmatpush1.msra.mxu0 0.0
      %6014 = vmatprep.subr.mxu0 0.0
      %6015 = vmatpush1.msra.mxu0 0.0
      %6016 = vmatprep.mubr.f32.mxu0 0.0
      %6017 = vmatmul.mubr.f32.gmra.mrb[0].mxu0 %v5905
      %v6018 = vpop.f32.mrb[0].mxu0
      %v6019 = vadd.f32 %v5826, %v6018
      %v6020 = vpop.f32.mrb[0].mxu0
      %6021 = vmatprep.mubr.f32.mxu0 0.0
      %6022 = vmatmul.mubr.f32.gmra.mrb[0].mxu0 %v5908
      %v6023 = vpop.f32.mrb[0].mxu0
      %v6024 = vadd.f32 %v5831, %v6023
      %v6025 = vpop.f32.mrb[0].mxu0
      %6026 = vmatprep.mubr.f32.mxu0 0.0
      %6027 = vmatmul.mubr.f32.gmra.mrb[0].mxu0 %v5911
      %v6028 = vpop.f32.mrb[0].mxu0
      %v6029 = vadd.f32 %v5836, %v6028
      %v6030 = vpop.f32.mrb[0].mxu0
      %6031 = vmatprep.mubr.f32.mxu0 0.0
      %6032 = vmatmul.mubr.f32.gmra.mrb[0].mxu0 %v5914
      %v6033 = vpop.f32.mrb[0].mxu0
      %v6034 = vadd.f32 %v5841, %v6033
      %v6035 = vpop.f32.mrb[0].mxu0
      %6036 = vmatprep.mubr.f32.mxu0 0.0
      %6037 = vmatmul.mubr.f32.gmra.mrb[0].mxu0 %v5917
      %v6038 = vpop.f32.mrb[0].mxu0
      %v6039 = vadd.f32 %v5846, %v6038
      %v6040 = vpop.f32.mrb[0].mxu0
      %6041 = vmatprep.mubr.f32.mxu0 0.0
      %6042 = vmatmul.mubr.f32.gmra.mrb[0].mxu0 %v5920
      %v6043 = vpop.f32.mrb[0].mxu0
      %v6044 = vadd.f32 %v5851, %v6043
      %v6045 = vpop.f32.mrb[0].mxu0
      %6046 = vmatprep.mubr.f32.mxu0 0.0
      %6047 = vmatmul.mubr.f32.gmra.mrb[0].mxu0 %v5923
      %v6048 = vpop.f32.mrb[0].mxu0
      %v6049 = vadd.f32 %v5856, %v6048
      %v6050 = vpop.f32.mrb[0].mxu0
      %6051 = vmatprep.mubr.f32.mxu0 0.0
      %6052 = vmatmul.mubr.f32.gmra.mrb[0].mxu0 %v5926
      %v6053 = vpop.f32.mrb[0].mxu0
      %v6054 = vadd.f32 %v5861, %v6053
      %v6055 = vpop.f32.mrb[0].mxu0
      %6056 = vmatprep.mubr.f32.mxu0 0.0
      %6057 = vmatmul.mubr.f32.gmra.mrb[0].mxu0 %v5929
      %v6058 = vpop.f32.mrb[0].mxu0
      %v6059 = vadd.f32 %v5866, %v6058
      %v6060 = vpop.f32.mrb[0].mxu0
      %6061 = vmatprep.mubr.f32.mxu0 0.0
      %6062 = vmatmul.mubr.f32.gmra.mrb[0].mxu0 %v5932
      %v6063 = vpop.f32.mrb[0].mxu0
      %v6064 = vadd.f32 %v5871, %v6063
      %v6065 = vpop.f32.mrb[0].mxu0
      %6066 = vmatprep.mubr.f32.mxu0 0.0
      %6067 = vmatmul.mubr.f32.gmra.mrb[0].mxu0 %v5935
      %v6068 = vpop.f32.mrb[0].mxu0
      %v6069 = vadd.f32 %v5876, %v6068
      %v6070 = vpop.f32.mrb[0].mxu0
      %6071 = vmatprep.mubr.f32.mxu0 0.0
      %6072 = vmatmul.mubr.f32.gmra.mrb[0].mxu0 %v5938
      %v6073 = vpop.f32.mrb[0].mxu0
      %v6074 = vadd.f32 %v5881, %v6073
      %v6075 = vpop.f32.mrb[0].mxu0
      %6076 = vmatprep.mubr.f32.mxu0 0.0
      %6077 = vmatmul.mubr.f32.gmra.mrb[0].mxu0 %v5941
      %v6078 = vpop.f32.mrb[0].mxu0
      %v6079 = vadd.f32 %v5886, %v6078
      %v6080 = vpop.f32.mrb[0].mxu0
      %6081 = vmatprep.mubr.f32.mxu0 0.0
      %6082 = vmatmul.mubr.f32.gmra.mrb[0].mxu0 %v5944
      %v6083 = vpop.f32.mrb[0].mxu0
      %v6084 = vadd.f32 %v5891, %v6083
      %v6085 = vpop.f32.mrb[0].mxu0
      %6086 = vmatprep.mubr.f32.mxu0 0.0
      %6087 = vmatmul.mubr.f32.gmra.mrb[0].mxu0 %v5947
      %v6088 = vpop.f32.mrb[0].mxu0
      %v6089 = vadd.f32 %v5896, %v6088
      %v6090 = vpop.f32.mrb[0].mxu0
      %6091 = vmatprep.mubr.f32.mxu0 0.0
      %6092 = vmatmul.mubr.f32.gmra.mrb[0].mxu0 %v5950
      %v6093 = vpop.f32.mrb[0].mxu0
      %v6094 = vadd.f32 %v5901, %v6093
      %v6095 = vpop.f32.mrb[0].mxu0
      %6096 = vdwg.mxu0
      %v6097 = vmul.f32 %v6019, 0.70710677
      %v6098 = vmul.f32 %v6024, 0.70710677
      %v6099 = vmul.f32 %v6029, 0.70710677
      %v6100 = vmul.f32 %v6034, 0.70710677
      %v6101 = vmul.f32 %v6039, 0.70710677
      %v6102 = vmul.f32 %v6044, 0.70710677
      %v6103 = vmul.f32 %v6049, 0.70710677
      %v6104 = vmul.f32 %v6054, 0.70710677
      %v6105 = vmul.f32 %v6059, 0.70710677
      %v6106 = vmul.f32 %v6064, 0.70710677
      %v6107 = vmul.f32 %v6069, 0.70710677
      %v6108 = vmul.f32 %v6074, 0.70710677
      %v6109 = vmul.f32 %v6079, 0.70710677
      %v6110 = vmul.f32 %v6084, 0.70710677
      %v6111 = vmul.f32 %v6089, 0.70710677
      %v6112 = vmul.f32 %v6094, 0.70710677
      %v6113 = vld [vmem:[%s7] sm:$0x1]
      %v6115 = vlaneseq
      %v6116 = vshrl.u32 %v6115, 7
      %v6117 = vsub.s32 0, %v6116
      %v6118 = vrot.slane %v6113, %v6117
      %v6120 = vadd.f32 %v6097, %v6118
      %v6121 = vadd.f32 %v6098, %v6118
      %v6122 = vadd.f32 %v6099, %v6118
      %v6123 = vadd.f32 %v6100, %v6118
      %v6124 = vadd.f32 %v6101, %v6118
      %v6125 = vadd.f32 %v6102, %v6118
      %v6126 = vadd.f32 %v6103, %v6118
      %v6127 = vadd.f32 %v6104, %v6118
      %v6128 = vadd.f32 %v6105, %v6118
      %v6129 = vadd.f32 %v6106, %v6118
      %v6130 = vadd.f32 %v6107, %v6118
      %v6131 = vadd.f32 %v6108, %v6118
      %v6132 = vadd.f32 %v6109, %v6118
      %v6133 = vadd.f32 %v6110, %v6118
      %v6134 = vadd.f32 %v6111, %v6118
      %v6135 = vadd.f32 %v6112, %v6118
      %v6136 = vmul.f32 %v6120, 100.0
      %v6137 = vmul.f32 %v6121, 100.0
      %v6138 = vmul.f32 %v6122, 100.0
      %v6139 = vmul.f32 %v6123, 100.0
      %v6140 = vmul.f32 %v6124, 100.0
      %v6141 = vmul.f32 %v6125, 100.0
      %v6142 = vmul.f32 %v6126, 100.0
      %v6143 = vmul.f32 %v6127, 100.0
      %v6144 = vmul.f32 %v6128, 100.0
      %v6145 = vmul.f32 %v6129, 100.0
      %v6146 = vmul.f32 %v6130, 100.0
      %v6147 = vmul.f32 %v6131, 100.0
      %v6148 = vmul.f32 %v6132, 100.0
      %v6149 = vmul.f32 %v6133, 100.0
      %v6150 = vmul.f32 %v6134, 100.0
      %v6151 = vmul.f32 %v6135, 100.0
      %vm6152 = vcmp.gt.f32.partialorder %v6136, 20.0
      %vm6153 = vcmp.gt.f32.partialorder %v6137, 20.0
      %vm6154 = vcmp.gt.f32.partialorder %v6138, 20.0
      %vm6155 = vcmp.gt.f32.partialorder %v6139, 20.0
      %vm6156 = vcmp.gt.f32.partialorder %v6140, 20.0
      %vm6157 = vcmp.gt.f32.partialorder %v6141, 20.0
      %vm6158 = vcmp.gt.f32.partialorder %v6142, 20.0
      %vm6159 = vcmp.gt.f32.partialorder %v6143, 20.0
      %vm6160 = vcmp.gt.f32.partialorder %v6144, 20.0
      %vm6161 = vcmp.gt.f32.partialorder %v6145, 20.0
      %vm6162 = vcmp.gt.f32.partialorder %v6146, 20.0
      %vm6163 = vcmp.gt.f32.partialorder %v6147, 20.0
      %vm6164 = vcmp.gt.f32.partialorder %v6148, 20.0
      %vm6165 = vcmp.gt.f32.partialorder %v6149, 20.0
      %vm6166 = vcmp.gt.f32.partialorder %v6150, 20.0
      %vm6167 = vcmp.gt.f32.partialorder %v6151, 20.0
      %v6168 = vmul.f32 %v6136, 1.442695
      %v6169 = vpow.pop %v6168
      %v6170 = vmul.f32 %v6137, 1.442695
      %v6171 = vpow.pop %v6170
      %v6172 = vmul.f32 %v6138, 1.442695
      %v6173 = vpow.pop %v6172
      %v6174 = vmul.f32 %v6139, 1.442695
      %v6175 = vpow.pop %v6174
      %v6176 = vmul.f32 %v6140, 1.442695
      %v6177 = vpow.pop %v6176
      %v6178 = vmul.f32 %v6141, 1.442695
      %v6179 = vpow.pop %v6178
      %v6180 = vmul.f32 %v6142, 1.442695
      %v6181 = vpow.pop %v6180
      %v6182 = vmul.f32 %v6143, 1.442695
      %v6183 = vpow.pop %v6182
      %v6184 = vmul.f32 %v6144, 1.442695
      %v6185 = vpow.pop %v6184
      %v6186 = vmul.f32 %v6145, 1.442695
      %v6187 = vpow.pop %v6186
      %v6188 = vmul.f32 %v6146, 1.442695
      %v6189 = vpow.pop %v6188
      %v6190 = vmul.f32 %v6147, 1.442695
      %v6191 = vpow.pop %v6190
      %v6192 = vmul.f32 %v6148, 1.442695
      %v6193 = vpow.pop %v6192
      %v6194 = vmul.f32 %v6149, 1.442695
      %v6195 = vpow.pop %v6194
      %v6196 = vmul.f32 %v6150, 1.442695
      %v6197 = vpow.pop %v6196
      %v6198 = vmul.f32 %v6151, 1.442695
      %v6199 = vpow.pop %v6198
      %v6200 = vadd.f32 %v6169, 1.0
      %v6201 = vlog2.pop %v6200
      %v6202 = vmul.f32 %v6201, 0.6931472
      %v6203 = vmul.f32 -0.5, %v6169
      %v6204 = vadd.f32 %v6203, 1.0
      %v6205 = vmul.f32 %v6204, %v6169
      %v6206 = vand.u32 2147483647, %v6169
      %vm6207 = vcmp.lt.f32.partialorder %v6206, 0.0004427343
      %v6208 = vsel %vm6207, %v6205, %v6202
      %v6209 = vadd.f32 %v6171, 1.0
      %v6210 = vlog2.pop %v6209
      %v6211 = vmul.f32 %v6210, 0.6931472
      %v6212 = vmul.f32 -0.5, %v6171
      %v6213 = vadd.f32 %v6212, 1.0
      %v6214 = vmul.f32 %v6213, %v6171
      %v6215 = vand.u32 2147483647, %v6171
      %vm6216 = vcmp.lt.f32.partialorder %v6215, 0.0004427343
      %v6217 = vsel %vm6216, %v6214, %v6211
      %v6218 = vadd.f32 %v6173, 1.0
      %v6219 = vlog2.pop %v6218
      %v6220 = vmul.f32 %v6219, 0.6931472
      %v6221 = vmul.f32 -0.5, %v6173
      %v6222 = vadd.f32 %v6221, 1.0
      %v6223 = vmul.f32 %v6222, %v6173
      %v6224 = vand.u32 2147483647, %v6173
      %vm6225 = vcmp.lt.f32.partialorder %v6224, 0.0004427343
      %v6226 = vsel %vm6225, %v6223, %v6220
      %v6227 = vadd.f32 %v6175, 1.0
      %v6228 = vlog2.pop %v6227
      %v6229 = vmul.f32 %v6228, 0.6931472
      %v6230 = vmul.f32 -0.5, %v6175
      %v6231 = vadd.f32 %v6230, 1.0
      %v6232 = vmul.f32 %v6231, %v6175
      %v6233 = vand.u32 2147483647, %v6175
      %vm6234 = vcmp.lt.f32.partialorder %v6233, 0.0004427343
      %v6235 = vsel %vm6234, %v6232, %v6229
      %v6236 = vadd.f32 %v6177, 1.0
      %v6237 = vlog2.pop %v6236
      %v6238 = vmul.f32 %v6237, 0.6931472
      %v6239 = vmul.f32 -0.5, %v6177
      %v6240 = vadd.f32 %v6239, 1.0
      %v6241 = vmul.f32 %v6240, %v6177
      %v6242 = vand.u32 2147483647, %v6177
      %vm6243 = vcmp.lt.f32.partialorder %v6242, 0.0004427343
      %v6244 = vsel %vm6243, %v6241, %v6238
      %v6245 = vadd.f32 %v6179, 1.0
      %v6246 = vlog2.pop %v6245
      %v6247 = vmul.f32 %v6246, 0.6931472
      %v6248 = vmul.f32 -0.5, %v6179
      %v6249 = vadd.f32 %v6248, 1.0
      %v6250 = vmul.f32 %v6249, %v6179
      %v6251 = vand.u32 2147483647, %v6179
      %vm6252 = vcmp.lt.f32.partialorder %v6251, 0.0004427343
      %v6253 = vsel %vm6252, %v6250, %v6247
      %v6254 = vadd.f32 %v6181, 1.0
      %v6255 = vlog2.pop %v6254
      %v6256 = vmul.f32 %v6255, 0.6931472
      %v6257 = vmul.f32 -0.5, %v6181
      %v6258 = vadd.f32 %v6257, 1.0
      %v6259 = vmul.f32 %v6258, %v6181
      %v6260 = vand.u32 2147483647, %v6181
      %vm6261 = vcmp.lt.f32.partialorder %v6260, 0.0004427343
      %v6262 = vsel %vm6261, %v6259, %v6256
      %v6263 = vadd.f32 %v6183, 1.0
      %v6264 = vlog2.pop %v6263
      %v6265 = vmul.f32 %v6264, 0.6931472
      %v6266 = vmul.f32 -0.5, %v6183
      %v6267 = vadd.f32 %v6266, 1.0
      %v6268 = vmul.f32 %v6267, %v6183
      %v6269 = vand.u32 2147483647, %v6183
      %vm6270 = vcmp.lt.f32.partialorder %v6269, 0.0004427343
      %v6271 = vsel %vm6270, %v6268, %v6265
      %v6272 = vadd.f32 %v6185, 1.0
      %v6273 = vlog2.pop %v6272
      %v6274 = vmul.f32 %v6273, 0.6931472
      %v6275 = vmul.f32 -0.5, %v6185
      %v6276 = vadd.f32 %v6275, 1.0
      %v6277 = vmul.f32 %v6276, %v6185
      %v6278 = vand.u32 2147483647, %v6185
      %vm6279 = vcmp.lt.f32.partialorder %v6278, 0.0004427343
      %v6280 = vsel %vm6279, %v6277, %v6274
      %v6281 = vadd.f32 %v6187, 1.0
      %v6282 = vlog2.pop %v6281
      %v6283 = vmul.f32 %v6282, 0.6931472
      %v6284 = vmul.f32 -0.5, %v6187
      %v6285 = vadd.f32 %v6284, 1.0
      %v6286 = vmul.f32 %v6285, %v6187
      %v6287 = vand.u32 2147483647, %v6187
      %vm6288 = vcmp.lt.f32.partialorder %v6287, 0.0004427343
      %v6289 = vsel %vm6288, %v6286, %v6283
      %v6290 = vadd.f32 %v6189, 1.0
      %v6291 = vlog2.pop %v6290
      %v6292 = vmul.f32 %v6291, 0.6931472
      %v6293 = vmul.f32 -0.5, %v6189
      %v6294 = vadd.f32 %v6293, 1.0
      %v6295 = vmul.f32 %v6294, %v6189
      %v6296 = vand.u32 2147483647, %v6189
      %vm6297 = vcmp.lt.f32.partialorder %v6296, 0.0004427343
      %v6298 = vsel %vm6297, %v6295, %v6292
      %v6299 = vadd.f32 %v6191, 1.0
      %v6300 = vlog2.pop %v6299
      %v6301 = vmul.f32 %v6300, 0.6931472
      %v6302 = vmul.f32 -0.5, %v6191
      %v6303 = vadd.f32 %v6302, 1.0
      %v6304 = vmul.f32 %v6303, %v6191
      %v6305 = vand.u32 2147483647, %v6191
      %vm6306 = vcmp.lt.f32.partialorder %v6305, 0.0004427343
      %v6307 = vsel %vm6306, %v6304, %v6301
      %v6308 = vadd.f32 %v6193, 1.0
      %v6309 = vlog2.pop %v6308
      %v6310 = vmul.f32 %v6309, 0.6931472
      %v6311 = vmul.f32 -0.5, %v6193
      %v6312 = vadd.f32 %v6311, 1.0
      %v6313 = vmul.f32 %v6312, %v6193
      %v6314 = vand.u32 2147483647, %v6193
      %vm6315 = vcmp.lt.f32.partialorder %v6314, 0.0004427343
      %v6316 = vsel %vm6315, %v6313, %v6310
      %v6317 = vadd.f32 %v6195, 1.0
      %v6318 = vlog2.pop %v6317
      %v6319 = vmul.f32 %v6318, 0.6931472
      %v6320 = vmul.f32 -0.5, %v6195
      %v6321 = vadd.f32 %v6320, 1.0
      %v6322 = vmul.f32 %v6321, %v6195
      %v6323 = vand.u32 2147483647, %v6195
      %vm6324 = vcmp.lt.f32.partialorder %v6323, 0.0004427343
      %v6325 = vsel %vm6324, %v6322, %v6319
      %v6326 = vadd.f32 %v6197, 1.0
      %v6327 = vlog2.pop %v6326
      %v6328 = vmul.f32 %v6327, 0.6931472
      %v6329 = vmul.f32 -0.5, %v6197
      %v6330 = vadd.f32 %v6329, 1.0
      %v6331 = vmul.f32 %v6330, %v6197
      %v6332 = vand.u32 2147483647, %v6197
      %vm6333 = vcmp.lt.f32.partialorder %v6332, 0.0004427343
      %v6334 = vsel %vm6333, %v6331, %v6328
      %v6335 = vadd.f32 %v6199, 1.0
      %v6336 = vlog2.pop %v6335
      %v6337 = vmul.f32 %v6336, 0.6931472
      %v6338 = vmul.f32 -0.5, %v6199
      %v6339 = vadd.f32 %v6338, 1.0
      %v6340 = vmul.f32 %v6339, %v6199
      %v6341 = vand.u32 2147483647, %v6199
      %vm6342 = vcmp.lt.f32.partialorder %v6341, 0.0004427343
      %v6343 = vsel %vm6342, %v6340, %v6337
      %v6344 = vmul.f32 %v6208, 0.01
      %v6345 = vmul.f32 %v6217, 0.01
      %v6346 = vmul.f32 %v6226, 0.01
      %v6347 = vmul.f32 %v6235, 0.01
      %v6348 = vmul.f32 %v6244, 0.01
      %v6349 = vmul.f32 %v6253, 0.01
      %v6350 = vmul.f32 %v6262, 0.01
      %v6351 = vmul.f32 %v6271, 0.01
      %v6352 = vmul.f32 %v6280, 0.01
      %v6353 = vmul.f32 %v6289, 0.01
      %v6354 = vmul.f32 %v6298, 0.01
      %v6355 = vmul.f32 %v6307, 0.01
      %v6356 = vmul.f32 %v6316, 0.01
      %v6357 = vmul.f32 %v6325, 0.01
      %v6358 = vmul.f32 %v6334, 0.01
      %v6359 = vmul.f32 %v6343, 0.01
      %v6360 = vsel %vm6152, %v6120, %v6344
      %v6361 = vsel %vm6153, %v6121, %v6345
      %v6362 = vsel %vm6154, %v6122, %v6346
      %v6363 = vsel %vm6155, %v6123, %v6347
      %v6364 = vsel %vm6156, %v6124, %v6348
      %v6365 = vsel %vm6157, %v6125, %v6349
      %v6366 = vsel %vm6158, %v6126, %v6350
      %v6367 = vsel %vm6159, %v6127, %v6351
      %v6368 = vsel %vm6160, %v6128, %v6352
      %v6369 = vsel %vm6161, %v6129, %v6353
      %v6370 = vsel %vm6162, %v6130, %v6354
      %v6371 = vsel %vm6163, %v6131, %v6355
      %v6372 = vsel %vm6164, %v6132, %v6356
      %v6373 = vsel %vm6165, %v6133, %v6357
      %v6374 = vsel %vm6166, %v6134, %v6358
      %v6375 = vsel %vm6167, %v6135, %v6359
      %v6376 = vld [vmem:[%s8] sm:$0xff]
      %v6377 = vld [vmem:[%s8 + $0x8] sm:$0xff]
      %v6378 = vld [vmem:[%s8 + $0x10] sm:$0xff]
      %v6379 = vld [vmem:[%s8 + $0x18] sm:$0xff]
      %v6380 = vld [vmem:[%s8 + $0x20] sm:$0xff]
      %v6381 = vld [vmem:[%s8 + $0x28] sm:$0xff]
      %v6382 = vld [vmem:[%s8 + $0x30] sm:$0xff]
      %v6383 = vld [vmem:[%s8 + $0x38] sm:$0xff]
      %v6384 = vld [vmem:[%s9] sm:$0x1]
      %v6386 = vlaneseq
      %v6387 = vshrl.u32 %v6386, 7
      %v6388 = vsub.s32 0, %v6387
      %v6389 = vrot.slane %v6384, %v6388
      %v6392 = vsel %vm894, %v6360, 0
      %v6395 = vsel %vm894, %v6361, 0
      %v6398 = vsel %vm894, %v6362, 0
      %v6401 = vsel %vm894, %v6363, 0
      %v6404 = vsel %vm894, %v6364, 0
      %v6407 = vsel %vm894, %v6365, 0
      %v6410 = vsel %vm894, %v6366, 0
      %v6413 = vsel %vm894, %v6367, 0
      %v6416 = vsel %vm894, %v6368, 0
      %v6419 = vsel %vm894, %v6369, 0
      %v6422 = vsel %vm894, %v6370, 0
      %v6425 = vsel %vm894, %v6371, 0
      %v6428 = vsel %vm894, %v6372, 0
      %v6431 = vsel %vm894, %v6373, 0
      %v6434 = vsel %vm894, %v6374, 0
      %v6437 = vsel %vm894, %v6375, 0
      %6439 = vmatprep.subr.mxu0 0.0
      %6440 = vmatpush1.msra.mxu0 %v6376
      %6441 = vmatprep.subr.mxu0 0.0
      %6442 = vmatpush1.msra.mxu0 %v6377
      %6443 = vmatprep.subr.mxu0 0.0
      %6444 = vmatpush1.msra.mxu0 %v6378
      %6445 = vmatprep.subr.mxu0 0.0
      %6446 = vmatpush1.msra.mxu0 %v6379
      %6447 = vmatprep.subr.mxu0 0.0
      %6448 = vmatpush1.msra.mxu0 %v6380
      %6449 = vmatprep.subr.mxu0 0.0
      %6450 = vmatpush1.msra.mxu0 %v6381
      %6451 = vmatprep.subr.mxu0 0.0
      %6452 = vmatpush1.msra.mxu0 %v6382
      %6453 = vmatprep.subr.mxu0 0.0
      %6454 = vmatpush1.msra.mxu0 %v6383
      %6455 = vmatprep.subr.mxu0 0.0
      %6456 = vmatpush1.msra.mxu0 0.0
      %6457 = vmatprep.subr.mxu0 0.0
      %6458 = vmatpush1.msra.mxu0 0.0
      %6459 = vmatprep.subr.mxu0 0.0
      %6460 = vmatpush1.msra.mxu0 0.0
      %6461 = vmatprep.subr.mxu0 0.0
      %6462 = vmatpush1.msra.mxu0 0.0
      %6463 = vmatprep.subr.mxu0 0.0
      %6464 = vmatpush1.msra.mxu0 0.0
      %6465 = vmatprep.subr.mxu0 0.0
      %6466 = vmatpush1.msra.mxu0 0.0
      %6467 = vmatprep.subr.mxu0 0.0
      %6468 = vmatpush1.msra.mxu0 0.0
      %6469 = vmatprep.subr.mxu0 0.0
      %6470 = vmatpush1.msra.mxu0 0.0
      %6471 = vmatprep.subr.mxu0 0.0
      %6472 = vmatpush1.msra.mxu0 0.0
      %6473 = vmatprep.subr.mxu0 0.0
      %6474 = vmatpush1.msra.mxu0 0.0
      %6475 = vmatprep.subr.mxu0 0.0
      %6476 = vmatpush1.msra.mxu0 0.0
      %6477 = vmatprep.subr.mxu0 0.0
      %6478 = vmatpush1.msra.mxu0 0.0
      %6479 = vmatprep.subr.mxu0 0.0
      %6480 = vmatpush1.msra.mxu0 0.0
      %6481 = vmatprep.subr.mxu0 0.0
      %6482 = vmatpush1.msra.mxu0 0.0
      %6483 = vmatprep.subr.mxu0 0.0
      %6484 = vmatpush1.msra.mxu0 0.0
      %6485 = vmatprep.subr.mxu0 0.0
      %6486 = vmatpush1.msra.mxu0 0.0
      %6487 = vmatprep.subr.mxu0 0.0
      %6488 = vmatpush1.msra.mxu0 0.0
      %6489 = vmatprep.subr.mxu0 0.0
      %6490 = vmatpush1.msra.mxu0 0.0
      %6491 = vmatprep.subr.mxu0 0.0
      %6492 = vmatpush1.msra.mxu0 0.0
      %6493 = vmatprep.subr.mxu0 0.0
      %6494 = vmatpush1.msra.mxu0 0.0
      %6495 = vmatprep.subr.mxu0 0.0
      %6496 = vmatpush1.msra.mxu0 0.0
      %6497 = vmatprep.subr.mxu0 0.0
      %6498 = vmatpush1.msra.mxu0 0.0
      %6499 = vmatprep.subr.mxu0 0.0
      %6500 = vmatpush1.msra.mxu0 0.0
      %6501 = vmatprep.subr.mxu0 0.0
      %6502 = vmatpush1.msra.mxu0 0.0
      %6503 = vmatprep.mubr.f32.mxu0 0.0
      %6504 = vmatmul.mubr.f32.gmra.mrb[0].mxu0 %v6392
      %v6505 = vpop.f32.mrb[0].mxu0
      %v6506 = vadd.f32 %v6389, %v6505
      %v6507 = vpop.f32.mrb[0].mxu0
      %6508 = vmatprep.mubr.f32.mxu0 0.0
      %6509 = vmatmul.mubr.f32.gmra.mrb[0].mxu0 %v6395
      %v6510 = vpop.f32.mrb[0].mxu0
      %v6511 = vadd.f32 %v6389, %v6510
      %v6512 = vpop.f32.mrb[0].mxu0
      %6513 = vmatprep.mubr.f32.mxu0 0.0
      %6514 = vmatmul.mubr.f32.gmra.mrb[0].mxu0 %v6398
      %v6515 = vpop.f32.mrb[0].mxu0
      %v6516 = vadd.f32 %v6389, %v6515
      %v6517 = vpop.f32.mrb[0].mxu0
      %6518 = vmatprep.mubr.f32.mxu0 0.0
      %6519 = vmatmul.mubr.f32.gmra.mrb[0].mxu0 %v6401
      %v6520 = vpop.f32.mrb[0].mxu0
      %v6521 = vadd.f32 %v6389, %v6520
      %v6522 = vpop.f32.mrb[0].mxu0
      %6523 = vmatprep.mubr.f32.mxu0 0.0
      %6524 = vmatmul.mubr.f32.gmra.mrb[0].mxu0 %v6404
      %v6525 = vpop.f32.mrb[0].mxu0
      %v6526 = vadd.f32 %v6389, %v6525
      %v6527 = vpop.f32.mrb[0].mxu0
      %6528 = vmatprep.mubr.f32.mxu0 0.0
      %6529 = vmatmul.mubr.f32.gmra.mrb[0].mxu0 %v6407
      %v6530 = vpop.f32.mrb[0].mxu0
      %v6531 = vadd.f32 %v6389, %v6530
      %v6532 = vpop.f32.mrb[0].mxu0
      %6533 = vmatprep.mubr.f32.mxu0 0.0
      %6534 = vmatmul.mubr.f32.gmra.mrb[0].mxu0 %v6410
      %v6535 = vpop.f32.mrb[0].mxu0
      %v6536 = vadd.f32 %v6389, %v6535
      %v6537 = vpop.f32.mrb[0].mxu0
      %6538 = vmatprep.mubr.f32.mxu0 0.0
      %6539 = vmatmul.mubr.f32.gmra.mrb[0].mxu0 %v6413
      %v6540 = vpop.f32.mrb[0].mxu0
      %v6541 = vadd.f32 %v6389, %v6540
      %v6542 = vpop.f32.mrb[0].mxu0
      %6543 = vmatprep.mubr.f32.mxu0 0.0
      %6544 = vmatmul.mubr.f32.gmra.mrb[0].mxu0 %v6416
      %v6545 = vpop.f32.mrb[0].mxu0
      %v6546 = vadd.f32 %v6389, %v6545
      %v6547 = vpop.f32.mrb[0].mxu0
      %6548 = vmatprep.mubr.f32.mxu0 0.0
      %6549 = vmatmul.mubr.f32.gmra.mrb[0].mxu0 %v6419
      %v6550 = vpop.f32.mrb[0].mxu0
      %v6551 = vadd.f32 %v6389, %v6550
      %v6552 = vpop.f32.mrb[0].mxu0
      %6553 = vmatprep.mubr.f32.mxu0 0.0
      %6554 = vmatmul.mubr.f32.gmra.mrb[0].mxu0 %v6422
      %v6555 = vpop.f32.mrb[0].mxu0
      %v6556 = vadd.f32 %v6389, %v6555
      %v6557 = vpop.f32.mrb[0].mxu0
      %6558 = vmatprep.mubr.f32.mxu0 0.0
      %6559 = vmatmul.mubr.f32.gmra.mrb[0].mxu0 %v6425
      %v6560 = vpop.f32.mrb[0].mxu0
      %v6561 = vadd.f32 %v6389, %v6560
      %v6562 = vpop.f32.mrb[0].mxu0
      %6563 = vmatprep.mubr.f32.mxu0 0.0
      %6564 = vmatmul.mubr.f32.gmra.mrb[0].mxu0 %v6428
      %v6565 = vpop.f32.mrb[0].mxu0
      %v6566 = vadd.f32 %v6389, %v6565
      %v6567 = vpop.f32.mrb[0].mxu0
      %6568 = vmatprep.mubr.f32.mxu0 0.0
      %6569 = vmatmul.mubr.f32.gmra.mrb[0].mxu0 %v6431
      %v6570 = vpop.f32.mrb[0].mxu0
      %v6571 = vadd.f32 %v6389, %v6570
      %v6572 = vpop.f32.mrb[0].mxu0
      %6573 = vmatprep.mubr.f32.mxu0 0.0
      %6574 = vmatmul.mubr.f32.gmra.mrb[0].mxu0 %v6434
      %v6575 = vpop.f32.mrb[0].mxu0
      %v6576 = vadd.f32 %v6389, %v6575
      %v6577 = vpop.f32.mrb[0].mxu0
      %6578 = vmatprep.mubr.f32.mxu0 0.0
      %6579 = vmatmul.mubr.f32.gmra.mrb[0].mxu0 %v6437
      %v6580 = vpop.f32.mrb[0].mxu0
      %v6581 = vadd.f32 %v6389, %v6580
      %v6582 = vpop.f32.mrb[0].mxu0
      %6583 = vdwg.mxu0
      %v6584 = vmul.f32 %v6506, 100.0
      %v6585 = vmul.f32 %v6511, 100.0
      %v6586 = vmul.f32 %v6516, 100.0
      %v6587 = vmul.f32 %v6521, 100.0
      %v6588 = vmul.f32 %v6526, 100.0
      %v6589 = vmul.f32 %v6531, 100.0
      %v6590 = vmul.f32 %v6536, 100.0
      %v6591 = vmul.f32 %v6541, 100.0
      %v6592 = vmul.f32 %v6546, 100.0
      %v6593 = vmul.f32 %v6551, 100.0
      %v6594 = vmul.f32 %v6556, 100.0
      %v6595 = vmul.f32 %v6561, 100.0
      %v6596 = vmul.f32 %v6566, 100.0
      %v6597 = vmul.f32 %v6571, 100.0
      %v6598 = vmul.f32 %v6576, 100.0
      %v6599 = vmul.f32 %v6581, 100.0
      %vm6600 = vcmp.gt.f32.partialorder %v6584, 20.0
      %vm6601 = vcmp.gt.f32.partialorder %v6585, 20.0
      %vm6602 = vcmp.gt.f32.partialorder %v6586, 20.0
      %vm6603 = vcmp.gt.f32.partialorder %v6587, 20.0
      %vm6604 = vcmp.gt.f32.partialorder %v6588, 20.0
      %vm6605 = vcmp.gt.f32.partialorder %v6589, 20.0
      %vm6606 = vcmp.gt.f32.partialorder %v6590, 20.0
      %vm6607 = vcmp.gt.f32.partialorder %v6591, 20.0
      %vm6608 = vcmp.gt.f32.partialorder %v6592, 20.0
      %vm6609 = vcmp.gt.f32.partialorder %v6593, 20.0
      %vm6610 = vcmp.gt.f32.partialorder %v6594, 20.0
      %vm6611 = vcmp.gt.f32.partialorder %v6595, 20.0
      %vm6612 = vcmp.gt.f32.partialorder %v6596, 20.0
      %vm6613 = vcmp.gt.f32.partialorder %v6597, 20.0
      %vm6614 = vcmp.gt.f32.partialorder %v6598, 20.0
      %vm6615 = vcmp.gt.f32.partialorder %v6599, 20.0
      %v6616 = vmul.f32 %v6584, 1.442695
      %v6617 = vpow.pop %v6616
      %v6618 = vmul.f32 %v6585, 1.442695
      %v6619 = vpow.pop %v6618
      %v6620 = vmul.f32 %v6586, 1.442695
      %v6621 = vpow.pop %v6620
      %v6622 = vmul.f32 %v6587, 1.442695
      %v6623 = vpow.pop %v6622
      %v6624 = vmul.f32 %v6588, 1.442695
      %v6625 = vpow.pop %v6624
      %v6626 = vmul.f32 %v6589, 1.442695
      %v6627 = vpow.pop %v6626
      %v6628 = vmul.f32 %v6590, 1.442695
      %v6629 = vpow.pop %v6628
      %v6630 = vmul.f32 %v6591, 1.442695
      %v6631 = vpow.pop %v6630
      %v6632 = vmul.f32 %v6592, 1.442695
      %v6633 = vpow.pop %v6632
      %v6634 = vmul.f32 %v6593, 1.442695
      %v6635 = vpow.pop %v6634
      %v6636 = vmul.f32 %v6594, 1.442695
      %v6637 = vpow.pop %v6636
      %v6638 = vmul.f32 %v6595, 1.442695
      %v6639 = vpow.pop %v6638
      %v6640 = vmul.f32 %v6596, 1.442695
      %v6641 = vpow.pop %v6640
      %v6642 = vmul.f32 %v6597, 1.442695
      %v6643 = vpow.pop %v6642
      %v6644 = vmul.f32 %v6598, 1.442695
      %v6645 = vpow.pop %v6644
      %v6646 = vmul.f32 %v6599, 1.442695
      %v6647 = vpow.pop %v6646
      %v6648 = vadd.f32 %v6617, 1.0
      %v6649 = vlog2.pop %v6648
      %v6650 = vmul.f32 %v6649, 0.6931472
      %v6651 = vmul.f32 -0.5, %v6617
      %v6652 = vadd.f32 %v6651, 1.0
      %v6653 = vmul.f32 %v6652, %v6617
      %v6654 = vand.u32 2147483647, %v6617
      %vm6655 = vcmp.lt.f32.partialorder %v6654, 0.0004427343
      %v6656 = vsel %vm6655, %v6653, %v6650
      %v6657 = vadd.f32 %v6619, 1.0
      %v6658 = vlog2.pop %v6657
      %v6659 = vmul.f32 %v6658, 0.6931472
      %v6660 = vmul.f32 -0.5, %v6619
      %v6661 = vadd.f32 %v6660, 1.0
      %v6662 = vmul.f32 %v6661, %v6619
      %v6663 = vand.u32 2147483647, %v6619
      %vm6664 = vcmp.lt.f32.partialorder %v6663, 0.0004427343
      %v6665 = vsel %vm6664, %v6662, %v6659
      %v6666 = vadd.f32 %v6621, 1.0
      %v6667 = vlog2.pop %v6666
      %v6668 = vmul.f32 %v6667, 0.6931472
      %v6669 = vmul.f32 -0.5, %v6621
      %v6670 = vadd.f32 %v6669, 1.0
      %v6671 = vmul.f32 %v6670, %v6621
      %v6672 = vand.u32 2147483647, %v6621
      %vm6673 = vcmp.lt.f32.partialorder %v6672, 0.0004427343
      %v6674 = vsel %vm6673, %v6671, %v6668
      %v6675 = vadd.f32 %v6623, 1.0
      %v6676 = vlog2.pop %v6675
      %v6677 = vmul.f32 %v6676, 0.6931472
      %v6678 = vmul.f32 -0.5, %v6623
      %v6679 = vadd.f32 %v6678, 1.0
      %v6680 = vmul.f32 %v6679, %v6623
      %v6681 = vand.u32 2147483647, %v6623
      %vm6682 = vcmp.lt.f32.partialorder %v6681, 0.0004427343
      %v6683 = vsel %vm6682, %v6680, %v6677
      %v6684 = vadd.f32 %v6625, 1.0
      %v6685 = vlog2.pop %v6684
      %v6686 = vmul.f32 %v6685, 0.6931472
      %v6687 = vmul.f32 -0.5, %v6625
      %v6688 = vadd.f32 %v6687, 1.0
      %v6689 = vmul.f32 %v6688, %v6625
      %v6690 = vand.u32 2147483647, %v6625
      %vm6691 = vcmp.lt.f32.partialorder %v6690, 0.0004427343
      %v6692 = vsel %vm6691, %v6689, %v6686
      %v6693 = vadd.f32 %v6627, 1.0
      %v6694 = vlog2.pop %v6693
      %v6695 = vmul.f32 %v6694, 0.6931472
      %v6696 = vmul.f32 -0.5, %v6627
      %v6697 = vadd.f32 %v6696, 1.0
      %v6698 = vmul.f32 %v6697, %v6627
      %v6699 = vand.u32 2147483647, %v6627
      %vm6700 = vcmp.lt.f32.partialorder %v6699, 0.0004427343
      %v6701 = vsel %vm6700, %v6698, %v6695
      %v6702 = vadd.f32 %v6629, 1.0
      %v6703 = vlog2.pop %v6702
      %v6704 = vmul.f32 %v6703, 0.6931472
      %v6705 = vmul.f32 -0.5, %v6629
      %v6706 = vadd.f32 %v6705, 1.0
      %v6707 = vmul.f32 %v6706, %v6629
      %v6708 = vand.u32 2147483647, %v6629
      %vm6709 = vcmp.lt.f32.partialorder %v6708, 0.0004427343
      %v6710 = vsel %vm6709, %v6707, %v6704
      %v6711 = vadd.f32 %v6631, 1.0
      %v6712 = vlog2.pop %v6711
      %v6713 = vmul.f32 %v6712, 0.6931472
      %v6714 = vmul.f32 -0.5, %v6631
      %v6715 = vadd.f32 %v6714, 1.0
      %v6716 = vmul.f32 %v6715, %v6631
      %v6717 = vand.u32 2147483647, %v6631
      %vm6718 = vcmp.lt.f32.partialorder %v6717, 0.0004427343
      %v6719 = vsel %vm6718, %v6716, %v6713
      %v6720 = vadd.f32 %v6633, 1.0
      %v6721 = vlog2.pop %v6720
      %v6722 = vmul.f32 %v6721, 0.6931472
      %v6723 = vmul.f32 -0.5, %v6633
      %v6724 = vadd.f32 %v6723, 1.0
      %v6725 = vmul.f32 %v6724, %v6633
      %v6726 = vand.u32 2147483647, %v6633
      %vm6727 = vcmp.lt.f32.partialorder %v6726, 0.0004427343
      %v6728 = vsel %vm6727, %v6725, %v6722
      %v6729 = vadd.f32 %v6635, 1.0
      %v6730 = vlog2.pop %v6729
      %v6731 = vmul.f32 %v6730, 0.6931472
      %v6732 = vmul.f32 -0.5, %v6635
      %v6733 = vadd.f32 %v6732, 1.0
      %v6734 = vmul.f32 %v6733, %v6635
      %v6735 = vand.u32 2147483647, %v6635
      %vm6736 = vcmp.lt.f32.partialorder %v6735, 0.0004427343
      %v6737 = vsel %vm6736, %v6734, %v6731
      %v6738 = vadd.f32 %v6637, 1.0
      %v6739 = vlog2.pop %v6738
      %v6740 = vmul.f32 %v6739, 0.6931472
      %v6741 = vmul.f32 -0.5, %v6637
      %v6742 = vadd.f32 %v6741, 1.0
      %v6743 = vmul.f32 %v6742, %v6637
      %v6744 = vand.u32 2147483647, %v6637
      %vm6745 = vcmp.lt.f32.partialorder %v6744, 0.0004427343
      %v6746 = vsel %vm6745, %v6743, %v6740
      %v6747 = vadd.f32 %v6639, 1.0
      %v6748 = vlog2.pop %v6747
      %v6749 = vmul.f32 %v6748, 0.6931472
      %v6750 = vmul.f32 -0.5, %v6639
      %v6751 = vadd.f32 %v6750, 1.0
      %v6752 = vmul.f32 %v6751, %v6639
      %v6753 = vand.u32 2147483647, %v6639
      %vm6754 = vcmp.lt.f32.partialorder %v6753, 0.0004427343
      %v6755 = vsel %vm6754, %v6752, %v6749
      %v6756 = vadd.f32 %v6641, 1.0
      %v6757 = vlog2.pop %v6756
      %v6758 = vmul.f32 %v6757, 0.6931472
      %v6759 = vmul.f32 -0.5, %v6641
      %v6760 = vadd.f32 %v6759, 1.0
      %v6761 = vmul.f32 %v6760, %v6641
      %v6762 = vand.u32 2147483647, %v6641
      %vm6763 = vcmp.lt.f32.partialorder %v6762, 0.0004427343
      %v6764 = vsel %vm6763, %v6761, %v6758
      %v6765 = vadd.f32 %v6643, 1.0
      %v6766 = vlog2.pop %v6765
      %v6767 = vmul.f32 %v6766, 0.6931472
      %v6768 = vmul.f32 -0.5, %v6643
      %v6769 = vadd.f32 %v6768, 1.0
      %v6770 = vmul.f32 %v6769, %v6643
      %v6771 = vand.u32 2147483647, %v6643
      %vm6772 = vcmp.lt.f32.partialorder %v6771, 0.0004427343
      %v6773 = vsel %vm6772, %v6770, %v6767
      %v6774 = vadd.f32 %v6645, 1.0
      %v6775 = vlog2.pop %v6774
      %v6776 = vmul.f32 %v6775, 0.6931472
      %v6777 = vmul.f32 -0.5, %v6645
      %v6778 = vadd.f32 %v6777, 1.0
      %v6779 = vmul.f32 %v6778, %v6645
      %v6780 = vand.u32 2147483647, %v6645
      %vm6781 = vcmp.lt.f32.partialorder %v6780, 0.0004427343
      %v6782 = vsel %vm6781, %v6779, %v6776
      %v6783 = vadd.f32 %v6647, 1.0
      %v6784 = vlog2.pop %v6783
      %v6785 = vmul.f32 %v6784, 0.6931472
      %v6786 = vmul.f32 -0.5, %v6647
      %v6787 = vadd.f32 %v6786, 1.0
      %v6788 = vmul.f32 %v6787, %v6647
      %v6789 = vand.u32 2147483647, %v6647
      %vm6790 = vcmp.lt.f32.partialorder %v6789, 0.0004427343
      %v6791 = vsel %vm6790, %v6788, %v6785
      %v6792 = vmul.f32 %v6656, 0.01
      %v6793 = vmul.f32 %v6665, 0.01
      %v6794 = vmul.f32 %v6674, 0.01
      %v6795 = vmul.f32 %v6683, 0.01
      %v6796 = vmul.f32 %v6692, 0.01
      %v6797 = vmul.f32 %v6701, 0.01
      %v6798 = vmul.f32 %v6710, 0.01
      %v6799 = vmul.f32 %v6719, 0.01
      %v6800 = vmul.f32 %v6728, 0.01
      %v6801 = vmul.f32 %v6737, 0.01
      %v6802 = vmul.f32 %v6746, 0.01
      %v6803 = vmul.f32 %v6755, 0.01
      %v6804 = vmul.f32 %v6764, 0.01
      %v6805 = vmul.f32 %v6773, 0.01
      %v6806 = vmul.f32 %v6782, 0.01
      %v6807 = vmul.f32 %v6791, 0.01
      %v6808 = vsel %vm6600, %v6506, %v6792
      %v6809 = vsel %vm6601, %v6511, %v6793
      %v6810 = vsel %vm6602, %v6516, %v6794
      %v6811 = vsel %vm6603, %v6521, %v6795
      %v6812 = vsel %vm6604, %v6526, %v6796
      %v6813 = vsel %vm6605, %v6531, %v6797
      %v6814 = vsel %vm6606, %v6536, %v6798
      %v6815 = vsel %vm6607, %v6541, %v6799
      %v6816 = vsel %vm6608, %v6546, %v6800
      %v6817 = vsel %vm6609, %v6551, %v6801
      %v6818 = vsel %vm6610, %v6556, %v6802
      %v6819 = vsel %vm6611, %v6561, %v6803
      %v6820 = vsel %vm6612, %v6566, %v6804
      %v6821 = vsel %vm6613, %v6571, %v6805
      %v6822 = vsel %vm6614, %v6576, %v6806
      %v6823 = vsel %vm6615, %v6581, %v6807
      %v6824 = vld [vmem:[%s10] sm:$0xff]
      %v6825 = vld [vmem:[%s10 + $0x8] sm:$0xff]
      %v6826 = vld [vmem:[%s10 + $0x10] sm:$0xff]
      %v6827 = vld [vmem:[%s10 + $0x18] sm:$0xff]
      %v6828 = vld [vmem:[%s10 + $0x20] sm:$0xff]
      %v6829 = vld [vmem:[%s10 + $0x28] sm:$0xff]
      %v6830 = vld [vmem:[%s10 + $0x30] sm:$0xff]
      %v6831 = vld [vmem:[%s10 + $0x38] sm:$0xff]
      %v6832 = vld [vmem:[%s11] sm:$0x1]
      %v6834 = vlaneseq
      %v6835 = vshrl.u32 %v6834, 7
      %v6836 = vsub.s32 0, %v6835
      %v6837 = vrot.slane %v6832, %v6836
      %v6840 = vsel %vm894, %v6808, 0
      %v6843 = vsel %vm894, %v6809, 0
      %v6846 = vsel %vm894, %v6810, 0
      %v6849 = vsel %vm894, %v6811, 0
      %v6852 = vsel %vm894, %v6812, 0
      %v6855 = vsel %vm894, %v6813, 0
      %v6858 = vsel %vm894, %v6814, 0
      %v6861 = vsel %vm894, %v6815, 0
      %v6864 = vsel %vm894, %v6816, 0
      %v6867 = vsel %vm894, %v6817, 0
      %v6870 = vsel %vm894, %v6818, 0
      %v6873 = vsel %vm894, %v6819, 0
      %v6876 = vsel %vm894, %v6820, 0
      %v6879 = vsel %vm894, %v6821, 0
      %v6882 = vsel %vm894, %v6822, 0
      %v6885 = vsel %vm894, %v6823, 0
      %6887 = vmatprep.subr.mxu0 0.0
      %6888 = vmatpush1.msra.mxu0 %v6824
      %6889 = vmatprep.subr.mxu0 0.0
      %6890 = vmatpush1.msra.mxu0 %v6825
      %6891 = vmatprep.subr.mxu0 0.0
      %6892 = vmatpush1.msra.mxu0 %v6826
      %6893 = vmatprep.subr.mxu0 0.0
      %6894 = vmatpush1.msra.mxu0 %v6827
      %6895 = vmatprep.subr.mxu0 0.0
      %6896 = vmatpush1.msra.mxu0 %v6828
      %6897 = vmatprep.subr.mxu0 0.0
      %6898 = vmatpush1.msra.mxu0 %v6829
      %6899 = vmatprep.subr.mxu0 0.0
      %6900 = vmatpush1.msra.mxu0 %v6830
      %6901 = vmatprep.subr.mxu0 0.0
      %6902 = vmatpush1.msra.mxu0 %v6831
      %6903 = vmatprep.subr.mxu0 0.0
      %6904 = vmatpush1.msra.mxu0 0.0
      %6905 = vmatprep.subr.mxu0 0.0
      %6906 = vmatpush1.msra.mxu0 0.0
      %6907 = vmatprep.subr.mxu0 0.0
      %6908 = vmatpush1.msra.mxu0 0.0
      %6909 = vmatprep.subr.mxu0 0.0
      %6910 = vmatpush1.msra.mxu0 0.0
      %6911 = vmatprep.subr.mxu0 0.0
      %6912 = vmatpush1.msra.mxu0 0.0
      %6913 = vmatprep.subr.mxu0 0.0
      %6914 = vmatpush1.msra.mxu0 0.0
      %6915 = vmatprep.subr.mxu0 0.0
      %6916 = vmatpush1.msra.mxu0 0.0
      %6917 = vmatprep.subr.mxu0 0.0
      %6918 = vmatpush1.msra.mxu0 0.0
      %6919 = vmatprep.subr.mxu0 0.0
      %6920 = vmatpush1.msra.mxu0 0.0
      %6921 = vmatprep.subr.mxu0 0.0
      %6922 = vmatpush1.msra.mxu0 0.0
      %6923 = vmatprep.subr.mxu0 0.0
      %6924 = vmatpush1.msra.mxu0 0.0
      %6925 = vmatprep.subr.mxu0 0.0
      %6926 = vmatpush1.msra.mxu0 0.0
      %6927 = vmatprep.subr.mxu0 0.0
      %6928 = vmatpush1.msra.mxu0 0.0
      %6929 = vmatprep.subr.mxu0 0.0
      %6930 = vmatpush1.msra.mxu0 0.0
      %6931 = vmatprep.subr.mxu0 0.0
      %6932 = vmatpush1.msra.mxu0 0.0
      %6933 = vmatprep.subr.mxu0 0.0
      %6934 = vmatpush1.msra.mxu0 0.0
      %6935 = vmatprep.subr.mxu0 0.0
      %6936 = vmatpush1.msra.mxu0 0.0
      %6937 = vmatprep.subr.mxu0 0.0
      %6938 = vmatpush1.msra.mxu0 0.0
      %6939 = vmatprep.subr.mxu0 0.0
      %6940 = vmatpush1.msra.mxu0 0.0
      %6941 = vmatprep.subr.mxu0 0.0
      %6942 = vmatpush1.msra.mxu0 0.0
      %6943 = vmatprep.subr.mxu0 0.0
      %6944 = vmatpush1.msra.mxu0 0.0
      %6945 = vmatprep.subr.mxu0 0.0
      %6946 = vmatpush1.msra.mxu0 0.0
      %6947 = vmatprep.subr.mxu0 0.0
      %6948 = vmatpush1.msra.mxu0 0.0
      %6949 = vmatprep.subr.mxu0 0.0
      %6950 = vmatpush1.msra.mxu0 0.0
      %6951 = vmatprep.mubr.f32.mxu0 0.0
      %6952 = vmatmul.mubr.f32.gmra.mrb[0].mxu0 %v6840
      %v6953 = vpop.f32.mrb[0].mxu0
      %v6954 = vadd.f32 %v6837, %v6953
      %v6955 = vpop.f32.mrb[0].mxu0
      %6956 = vmatprep.mubr.f32.mxu0 0.0
      %6957 = vmatmul.mubr.f32.gmra.mrb[0].mxu0 %v6843
      %v6958 = vpop.f32.mrb[0].mxu0
      %v6959 = vadd.f32 %v6837, %v6958
      %v6960 = vpop.f32.mrb[0].mxu0
      %6961 = vmatprep.mubr.f32.mxu0 0.0
      %6962 = vmatmul.mubr.f32.gmra.mrb[0].mxu0 %v6846
      %v6963 = vpop.f32.mrb[0].mxu0
      %v6964 = vadd.f32 %v6837, %v6963
      %v6965 = vpop.f32.mrb[0].mxu0
      %6966 = vmatprep.mubr.f32.mxu0 0.0
      %6967 = vmatmul.mubr.f32.gmra.mrb[0].mxu0 %v6849
      %v6968 = vpop.f32.mrb[0].mxu0
      %v6969 = vadd.f32 %v6837, %v6968
      %v6970 = vpop.f32.mrb[0].mxu0
      %6971 = vmatprep.mubr.f32.mxu0 0.0
      %6972 = vmatmul.mubr.f32.gmra.mrb[0].mxu0 %v6852
      %v6973 = vpop.f32.mrb[0].mxu0
      %v6974 = vadd.f32 %v6837, %v6973
      %v6975 = vpop.f32.mrb[0].mxu0
      %6976 = vmatprep.mubr.f32.mxu0 0.0
      %6977 = vmatmul.mubr.f32.gmra.mrb[0].mxu0 %v6855
      %v6978 = vpop.f32.mrb[0].mxu0
      %v6979 = vadd.f32 %v6837, %v6978
      %v6980 = vpop.f32.mrb[0].mxu0
      %6981 = vmatprep.mubr.f32.mxu0 0.0
      %6982 = vmatmul.mubr.f32.gmra.mrb[0].mxu0 %v6858
      %v6983 = vpop.f32.mrb[0].mxu0
      %v6984 = vadd.f32 %v6837, %v6983
      %v6985 = vpop.f32.mrb[0].mxu0
      %6986 = vmatprep.mubr.f32.mxu0 0.0
      %6987 = vmatmul.mubr.f32.gmra.mrb[0].mxu0 %v6861
      %v6988 = vpop.f32.mrb[0].mxu0
      %v6989 = vadd.f32 %v6837, %v6988
      %v6990 = vpop.f32.mrb[0].mxu0
      %6991 = vmatprep.mubr.f32.mxu0 0.0
      %6992 = vmatmul.mubr.f32.gmra.mrb[0].mxu0 %v6864
      %v6993 = vpop.f32.mrb[0].mxu0
      %v6994 = vadd.f32 %v6837, %v6993
      %v6995 = vpop.f32.mrb[0].mxu0
      %6996 = vmatprep.mubr.f32.mxu0 0.0
      %6997 = vmatmul.mubr.f32.gmra.mrb[0].mxu0 %v6867
      %v6998 = vpop.f32.mrb[0].mxu0
      %v6999 = vadd.f32 %v6837, %v6998
      %v7000 = vpop.f32.mrb[0].mxu0
      %7001 = vmatprep.mubr.f32.mxu0 0.0
      %7002 = vmatmul.mubr.f32.gmra.mrb[0].mxu0 %v6870
      %v7003 = vpop.f32.mrb[0].mxu0
      %v7004 = vadd.f32 %v6837, %v7003
      %v7005 = vpop.f32.mrb[0].mxu0
      %7006 = vmatprep.mubr.f32.mxu0 0.0
      %7007 = vmatmul.mubr.f32.gmra.mrb[0].mxu0 %v6873
      %v7008 = vpop.f32.mrb[0].mxu0
      %v7009 = vadd.f32 %v6837, %v7008
      %v7010 = vpop.f32.mrb[0].mxu0
      %7011 = vmatprep.mubr.f32.mxu0 0.0
      %7012 = vmatmul.mubr.f32.gmra.mrb[0].mxu0 %v6876
      %v7013 = vpop.f32.mrb[0].mxu0
      %v7014 = vadd.f32 %v6837, %v7013
      %v7015 = vpop.f32.mrb[0].mxu0
      %7016 = vmatprep.mubr.f32.mxu0 0.0
      %7017 = vmatmul.mubr.f32.gmra.mrb[0].mxu0 %v6879
      %v7018 = vpop.f32.mrb[0].mxu0
      %v7019 = vadd.f32 %v6837, %v7018
      %v7020 = vpop.f32.mrb[0].mxu0
      %7021 = vmatprep.mubr.f32.mxu0 0.0
      %7022 = vmatmul.mubr.f32.gmra.mrb[0].mxu0 %v6882
      %v7023 = vpop.f32.mrb[0].mxu0
      %v7024 = vadd.f32 %v6837, %v7023
      %v7025 = vpop.f32.mrb[0].mxu0
      %7026 = vmatprep.mubr.f32.mxu0 0.0
      %7027 = vmatmul.mubr.f32.gmra.mrb[0].mxu0 %v6885
      %v7028 = vpop.f32.mrb[0].mxu0
      %v7029 = vadd.f32 %v6837, %v7028
      %v7030 = vpop.f32.mrb[0].mxu0
      %7031 = vdwg.mxu0
      %7032 = vst.msk [vmem:[%s415 + $0x100] sm:$0xff] %vm2613, %v6954
      %7033 = vst.msk [vmem:[%s415 + $0x108] sm:$0xff] %vm2613, %v6959
      %7034 = vst.msk [vmem:[%s415 + $0x110] sm:$0xff] %vm2613, %v6964
      %7035 = vst.msk [vmem:[%s415 + $0x118] sm:$0xff] %vm2613, %v6969
      %7036 = vst.msk [vmem:[%s415 + $0x120] sm:$0xff] %vm2613, %v6974
      %7037 = vst.msk [vmem:[%s415 + $0x128] sm:$0xff] %vm2613, %v6979
      %7038 = vst.msk [vmem:[%s415 + $0x130] sm:$0xff] %vm2613, %v6984
      %7039 = vst.msk [vmem:[%s415 + $0x138] sm:$0xff] %vm2613, %v6989
      %7040 = vst.msk [vmem:[%s415 + $0x140] sm:$0xff] %vm2613, %v6994
      %7041 = vst.msk [vmem:[%s415 + $0x148] sm:$0xff] %vm2613, %v6999
      %7042 = vst.msk [vmem:[%s415 + $0x150] sm:$0xff] %vm2613, %v7004
      %7043 = vst.msk [vmem:[%s415 + $0x158] sm:$0xff] %vm2613, %v7009
      %7044 = vst.msk [vmem:[%s415 + $0x160] sm:$0xff] %vm2613, %v7014
      %7045 = vst.msk [vmem:[%s415 + $0x168] sm:$0xff] %vm2613, %v7019
      %7046 = vst.msk [vmem:[%s415 + $0x170] sm:$0xff] %vm2613, %v7024
      %7047 = vst.msk [vmem:[%s415 + $0x178] sm:$0xff] %vm2613, %v7029
      %v7048 = vld [vmem:[%s409 + $0x180] sm:$0xff]
      %v7049 = vld [vmem:[%s409 + $0x188] sm:$0xff]
      %v7050 = vld [vmem:[%s409 + $0x190] sm:$0xff]
      %v7051 = vld [vmem:[%s409 + $0x198] sm:$0xff]
      %v7052 = vld [vmem:[%s409 + $0x1a0] sm:$0xff]
      %v7053 = vld [vmem:[%s409 + $0x1a8] sm:$0xff]
      %v7054 = vld [vmem:[%s409 + $0x1b0] sm:$0xff]
      %v7055 = vld [vmem:[%s409 + $0x1b8] sm:$0xff]
      %v7056 = vld [vmem:[%s409 + $0x1c0] sm:$0xff]
      %v7057 = vld [vmem:[%s409 + $0x1c8] sm:$0xff]
      %v7058 = vld [vmem:[%s409 + $0x1d0] sm:$0xff]
      %v7059 = vld [vmem:[%s409 + $0x1d8] sm:$0xff]
      %v7060 = vld [vmem:[%s409 + $0x1e0] sm:$0xff]
      %v7061 = vld [vmem:[%s409 + $0x1e8] sm:$0xff]
      %v7062 = vld [vmem:[%s409 + $0x1f0] sm:$0xff]
      %v7063 = vld [vmem:[%s409 + $0x1f8] sm:$0xff]
      %v7064 = vld [vmem:[%s1] sm:$0x7]
      %v7065 = vld [vmem:[%s2] sm:$0x1]
      %v7067 = vlaneseq
      %v7068 = vshrl.u32 %v7067, 7
      %v7069 = vsub.s32 0, %v7068
      %v7070 = vrot.slane %v7065, %v7069
      %v7073 = vsel %vm441, %v7048, 0
      %v7076 = vsel %vm441, %v7049, 0
      %v7079 = vsel %vm441, %v7050, 0
      %v7082 = vsel %vm441, %v7051, 0
      %v7085 = vsel %vm441, %v7052, 0
      %v7088 = vsel %vm441, %v7053, 0
      %v7091 = vsel %vm441, %v7054, 0
      %v7094 = vsel %vm441, %v7055, 0
      %v7097 = vsel %vm441, %v7056, 0
      %v7100 = vsel %vm441, %v7057, 0
      %v7103 = vsel %vm441, %v7058, 0
      %v7106 = vsel %vm441, %v7059, 0
      %v7109 = vsel %vm441, %v7060, 0
      %v7112 = vsel %vm441, %v7061, 0
      %v7115 = vsel %vm441, %v7062, 0
      %v7118 = vsel %vm441, %v7063, 0
      %v7121 = vsel %vm490, %v7064, 0
      %7123 = vmatprep.subr.mxu0 0.0
      %7124 = vmatpush1.msra.mxu0 %v7121
      %7125 = vmatprep.subr.mxu0 0.0
      %7126 = vmatpush1.msra.mxu0 0.0
      %7127 = vmatprep.subr.mxu0 0.0
      %7128 = vmatpush1.msra.mxu0 0.0
      %7129 = vmatprep.subr.mxu0 0.0
      %7130 = vmatpush1.msra.mxu0 0.0
      %7131 = vmatprep.subr.mxu0 0.0
      %7132 = vmatpush1.msra.mxu0 0.0
      %7133 = vmatprep.subr.mxu0 0.0
      %7134 = vmatpush1.msra.mxu0 0.0
      %7135 = vmatprep.subr.mxu0 0.0
      %7136 = vmatpush1.msra.mxu0 0.0
      %7137 = vmatprep.subr.mxu0 0.0
      %7138 = vmatpush1.msra.mxu0 0.0
      %7139 = vmatprep.subr.mxu0 0.0
      %7140 = vmatpush1.msra.mxu0 0.0
      %7141 = vmatprep.subr.mxu0 0.0
      %7142 = vmatpush1.msra.mxu0 0.0
      %7143 = vmatprep.subr.mxu0 0.0
      %7144 = vmatpush1.msra.mxu0 0.0
      %7145 = vmatprep.subr.mxu0 0.0
      %7146 = vmatpush1.msra.mxu0 0.0
      %7147 = vmatprep.subr.mxu0 0.0
      %7148 = vmatpush1.msra.mxu0 0.0
      %7149 = vmatprep.subr.mxu0 0.0
      %7150 = vmatpush1.msra.mxu0 0.0
      %7151 = vmatprep.subr.mxu0 0.0
      %7152 = vmatpush1.msra.mxu0 0.0
      %7153 = vmatprep.subr.mxu0 0.0
      %7154 = vmatpush1.msra.mxu0 0.0
      %7155 = vmatprep.subr.mxu0 0.0
      %7156 = vmatpush1.msra.mxu0 0.0
      %7157 = vmatprep.subr.mxu0 0.0
      %7158 = vmatpush1.msra.mxu0 0.0
      %7159 = vmatprep.subr.mxu0 0.0
      %7160 = vmatpush1.msra.mxu0 0.0
      %7161 = vmatprep.subr.mxu0 0.0
      %7162 = vmatpush1.msra.mxu0 0.0
      %7163 = vmatprep.subr.mxu0 0.0
      %7164 = vmatpush1.msra.mxu0 0.0
      %7165 = vmatprep.subr.mxu0 0.0
      %7166 = vmatpush1.msra.mxu0 0.0
      %7167 = vmatprep.subr.mxu0 0.0
      %7168 = vmatpush1.msra.mxu0 0.0
      %7169 = vmatprep.subr.mxu0 0.0
      %7170 = vmatpush1.msra.mxu0 0.0
      %7171 = vmatprep.subr.mxu0 0.0
      %7172 = vmatpush1.msra.mxu0 0.0
      %7173 = vmatprep.subr.mxu0 0.0
      %7174 = vmatpush1.msra.mxu0 0.0
      %7175 = vmatprep.subr.mxu0 0.0
      %7176 = vmatpush1.msra.mxu0 0.0
      %7177 = vmatprep.subr.mxu0 0.0
      %7178 = vmatpush1.msra.mxu0 0.0
      %7179 = vmatprep.subr.mxu0 0.0
      %7180 = vmatpush1.msra.mxu0 0.0
      %7181 = vmatprep.subr.mxu0 0.0
      %7182 = vmatpush1.msra.mxu0 0.0
      %7183 = vmatprep.subr.mxu0 0.0
      %7184 = vmatpush1.msra.mxu0 0.0
      %7185 = vmatprep.subr.mxu0 0.0
      %7186 = vmatpush1.msra.mxu0 0.0
      %7187 = vmatprep.mubr.f32.mxu0 0.0
      %7188 = vmatmul.mubr.f32.gmra.mrb[0].mxu0 %v7073
      %v7189 = vpop.f32.mrb[0].mxu0
      %v7190 = vadd.f32 %v7070, %v7189
      %v7191 = vpop.f32.mrb[0].mxu0
      %7192 = vmatprep.mubr.f32.mxu0 0.0
      %7193 = vmatmul.mubr.f32.gmra.mrb[0].mxu0 %v7076
      %v7194 = vpop.f32.mrb[0].mxu0
      %v7195 = vadd.f32 %v7070, %v7194
      %v7196 = vpop.f32.mrb[0].mxu0
      %7197 = vmatprep.mubr.f32.mxu0 0.0
      %7198 = vmatmul.mubr.f32.gmra.mrb[0].mxu0 %v7079
      %v7199 = vpop.f32.mrb[0].mxu0
      %v7200 = vadd.f32 %v7070, %v7199
      %v7201 = vpop.f32.mrb[0].mxu0
      %7202 = vmatprep.mubr.f32.mxu0 0.0
      %7203 = vmatmul.mubr.f32.gmra.mrb[0].mxu0 %v7082
      %v7204 = vpop.f32.mrb[0].mxu0
      %v7205 = vadd.f32 %v7070, %v7204
      %v7206 = vpop.f32.mrb[0].mxu0
      %7207 = vmatprep.mubr.f32.mxu0 0.0
      %7208 = vmatmul.mubr.f32.gmra.mrb[0].mxu0 %v7085
      %v7209 = vpop.f32.mrb[0].mxu0
      %v7210 = vadd.f32 %v7070, %v7209
      %v7211 = vpop.f32.mrb[0].mxu0
      %7212 = vmatprep.mubr.f32.mxu0 0.0
      %7213 = vmatmul.mubr.f32.gmra.mrb[0].mxu0 %v7088
      %v7214 = vpop.f32.mrb[0].mxu0
      %v7215 = vadd.f32 %v7070, %v7214
      %v7216 = vpop.f32.mrb[0].mxu0
      %7217 = vmatprep.mubr.f32.mxu0 0.0
      %7218 = vmatmul.mubr.f32.gmra.mrb[0].mxu0 %v7091
      %v7219 = vpop.f32.mrb[0].mxu0
      %v7220 = vadd.f32 %v7070, %v7219
      %v7221 = vpop.f32.mrb[0].mxu0
      %7222 = vmatprep.mubr.f32.mxu0 0.0
      %7223 = vmatmul.mubr.f32.gmra.mrb[0].mxu0 %v7094
      %v7224 = vpop.f32.mrb[0].mxu0
      %v7225 = vadd.f32 %v7070, %v7224
      %v7226 = vpop.f32.mrb[0].mxu0
      %7227 = vmatprep.mubr.f32.mxu0 0.0
      %7228 = vmatmul.mubr.f32.gmra.mrb[0].mxu0 %v7097
      %v7229 = vpop.f32.mrb[0].mxu0
      %v7230 = vadd.f32 %v7070, %v7229
      %v7231 = vpop.f32.mrb[0].mxu0
      %7232 = vmatprep.mubr.f32.mxu0 0.0
      %7233 = vmatmul.mubr.f32.gmra.mrb[0].mxu0 %v7100
      %v7234 = vpop.f32.mrb[0].mxu0
      %v7235 = vadd.f32 %v7070, %v7234
      %v7236 = vpop.f32.mrb[0].mxu0
      %7237 = vmatprep.mubr.f32.mxu0 0.0
      %7238 = vmatmul.mubr.f32.gmra.mrb[0].mxu0 %v7103
      %v7239 = vpop.f32.mrb[0].mxu0
      %v7240 = vadd.f32 %v7070, %v7239
      %v7241 = vpop.f32.mrb[0].mxu0
      %7242 = vmatprep.mubr.f32.mxu0 0.0
      %7243 = vmatmul.mubr.f32.gmra.mrb[0].mxu0 %v7106
      %v7244 = vpop.f32.mrb[0].mxu0
      %v7245 = vadd.f32 %v7070, %v7244
      %v7246 = vpop.f32.mrb[0].mxu0
      %7247 = vmatprep.mubr.f32.mxu0 0.0
      %7248 = vmatmul.mubr.f32.gmra.mrb[0].mxu0 %v7109
      %v7249 = vpop.f32.mrb[0].mxu0
      %v7250 = vadd.f32 %v7070, %v7249
      %v7251 = vpop.f32.mrb[0].mxu0
      %7252 = vmatprep.mubr.f32.mxu0 0.0
      %7253 = vmatmul.mubr.f32.gmra.mrb[0].mxu0 %v7112
      %v7254 = vpop.f32.mrb[0].mxu0
      %v7255 = vadd.f32 %v7070, %v7254
      %v7256 = vpop.f32.mrb[0].mxu0
      %7257 = vmatprep.mubr.f32.mxu0 0.0
      %7258 = vmatmul.mubr.f32.gmra.mrb[0].mxu0 %v7115
      %v7259 = vpop.f32.mrb[0].mxu0
      %v7260 = vadd.f32 %v7070, %v7259
      %v7261 = vpop.f32.mrb[0].mxu0
      %7262 = vmatprep.mubr.f32.mxu0 0.0
      %7263 = vmatmul.mubr.f32.gmra.mrb[0].mxu0 %v7118
      %v7264 = vpop.f32.mrb[0].mxu0
      %v7265 = vadd.f32 %v7070, %v7264
      %v7266 = vpop.f32.mrb[0].mxu0
      %7267 = vdwg.mxu0
      %v7268 = vmul.f32 %v7190, 100.0
      %v7269 = vmul.f32 %v7195, 100.0
      %v7270 = vmul.f32 %v7200, 100.0
      %v7271 = vmul.f32 %v7205, 100.0
      %v7272 = vmul.f32 %v7210, 100.0
      %v7273 = vmul.f32 %v7215, 100.0
      %v7274 = vmul.f32 %v7220, 100.0
      %v7275 = vmul.f32 %v7225, 100.0
      %v7276 = vmul.f32 %v7230, 100.0
      %v7277 = vmul.f32 %v7235, 100.0
      %v7278 = vmul.f32 %v7240, 100.0
      %v7279 = vmul.f32 %v7245, 100.0
      %v7280 = vmul.f32 %v7250, 100.0
      %v7281 = vmul.f32 %v7255, 100.0
      %v7282 = vmul.f32 %v7260, 100.0
      %v7283 = vmul.f32 %v7265, 100.0
      %vm7284 = vcmp.gt.f32.partialorder %v7268, 20.0
      %vm7285 = vcmp.gt.f32.partialorder %v7269, 20.0
      %vm7286 = vcmp.gt.f32.partialorder %v7270, 20.0
      %vm7287 = vcmp.gt.f32.partialorder %v7271, 20.0
      %vm7288 = vcmp.gt.f32.partialorder %v7272, 20.0
      %vm7289 = vcmp.gt.f32.partialorder %v7273, 20.0
      %vm7290 = vcmp.gt.f32.partialorder %v7274, 20.0
      %vm7291 = vcmp.gt.f32.partialorder %v7275, 20.0
      %vm7292 = vcmp.gt.f32.partialorder %v7276, 20.0
      %vm7293 = vcmp.gt.f32.partialorder %v7277, 20.0
      %vm7294 = vcmp.gt.f32.partialorder %v7278, 20.0
      %vm7295 = vcmp.gt.f32.partialorder %v7279, 20.0
      %vm7296 = vcmp.gt.f32.partialorder %v7280, 20.0
      %vm7297 = vcmp.gt.f32.partialorder %v7281, 20.0
      %vm7298 = vcmp.gt.f32.partialorder %v7282, 20.0
      %vm7299 = vcmp.gt.f32.partialorder %v7283, 20.0
      %v7300 = vmul.f32 %v7268, 1.442695
      %v7301 = vpow.pop %v7300
      %v7302 = vmul.f32 %v7269, 1.442695
      %v7303 = vpow.pop %v7302
      %v7304 = vmul.f32 %v7270, 1.442695
      %v7305 = vpow.pop %v7304
      %v7306 = vmul.f32 %v7271, 1.442695
      %v7307 = vpow.pop %v7306
      %v7308 = vmul.f32 %v7272, 1.442695
      %v7309 = vpow.pop %v7308
      %v7310 = vmul.f32 %v7273, 1.442695
      %v7311 = vpow.pop %v7310
      %v7312 = vmul.f32 %v7274, 1.442695
      %v7313 = vpow.pop %v7312
      %v7314 = vmul.f32 %v7275, 1.442695
      %v7315 = vpow.pop %v7314
      %v7316 = vmul.f32 %v7276, 1.442695
      %v7317 = vpow.pop %v7316
      %v7318 = vmul.f32 %v7277, 1.442695
      %v7319 = vpow.pop %v7318
      %v7320 = vmul.f32 %v7278, 1.442695
      %v7321 = vpow.pop %v7320
      %v7322 = vmul.f32 %v7279, 1.442695
      %v7323 = vpow.pop %v7322
      %v7324 = vmul.f32 %v7280, 1.442695
      %v7325 = vpow.pop %v7324
      %v7326 = vmul.f32 %v7281, 1.442695
      %v7327 = vpow.pop %v7326
      %v7328 = vmul.f32 %v7282, 1.442695
      %v7329 = vpow.pop %v7328
      %v7330 = vmul.f32 %v7283, 1.442695
      %v7331 = vpow.pop %v7330
      %v7332 = vadd.f32 %v7301, 1.0
      %v7333 = vlog2.pop %v7332
      %v7334 = vmul.f32 %v7333, 0.6931472
      %v7335 = vmul.f32 -0.5, %v7301
      %v7336 = vadd.f32 %v7335, 1.0
      %v7337 = vmul.f32 %v7336, %v7301
      %v7338 = vand.u32 2147483647, %v7301
      %vm7339 = vcmp.lt.f32.partialorder %v7338, 0.0004427343
      %v7340 = vsel %vm7339, %v7337, %v7334
      %v7341 = vadd.f32 %v7303, 1.0
      %v7342 = vlog2.pop %v7341
      %v7343 = vmul.f32 %v7342, 0.6931472
      %v7344 = vmul.f32 -0.5, %v7303
      %v7345 = vadd.f32 %v7344, 1.0
      %v7346 = vmul.f32 %v7345, %v7303
      %v7347 = vand.u32 2147483647, %v7303
      %vm7348 = vcmp.lt.f32.partialorder %v7347, 0.0004427343
      %v7349 = vsel %vm7348, %v7346, %v7343
      %v7350 = vadd.f32 %v7305, 1.0
      %v7351 = vlog2.pop %v7350
      %v7352 = vmul.f32 %v7351, 0.6931472
      %v7353 = vmul.f32 -0.5, %v7305
      %v7354 = vadd.f32 %v7353, 1.0
      %v7355 = vmul.f32 %v7354, %v7305
      %v7356 = vand.u32 2147483647, %v7305
      %vm7357 = vcmp.lt.f32.partialorder %v7356, 0.0004427343
      %v7358 = vsel %vm7357, %v7355, %v7352
      %v7359 = vadd.f32 %v7307, 1.0
      %v7360 = vlog2.pop %v7359
      %v7361 = vmul.f32 %v7360, 0.6931472
      %v7362 = vmul.f32 -0.5, %v7307
      %v7363 = vadd.f32 %v7362, 1.0
      %v7364 = vmul.f32 %v7363, %v7307
      %v7365 = vand.u32 2147483647, %v7307
      %vm7366 = vcmp.lt.f32.partialorder %v7365, 0.0004427343
      %v7367 = vsel %vm7366, %v7364, %v7361
      %v7368 = vadd.f32 %v7309, 1.0
      %v7369 = vlog2.pop %v7368
      %v7370 = vmul.f32 %v7369, 0.6931472
      %v7371 = vmul.f32 -0.5, %v7309
      %v7372 = vadd.f32 %v7371, 1.0
      %v7373 = vmul.f32 %v7372, %v7309
      %v7374 = vand.u32 2147483647, %v7309
      %vm7375 = vcmp.lt.f32.partialorder %v7374, 0.0004427343
      %v7376 = vsel %vm7375, %v7373, %v7370
      %v7377 = vadd.f32 %v7311, 1.0
      %v7378 = vlog2.pop %v7377
      %v7379 = vmul.f32 %v7378, 0.6931472
      %v7380 = vmul.f32 -0.5, %v7311
      %v7381 = vadd.f32 %v7380, 1.0
      %v7382 = vmul.f32 %v7381, %v7311
      %v7383 = vand.u32 2147483647, %v7311
      %vm7384 = vcmp.lt.f32.partialorder %v7383, 0.0004427343
      %v7385 = vsel %vm7384, %v7382, %v7379
      %v7386 = vadd.f32 %v7313, 1.0
      %v7387 = vlog2.pop %v7386
      %v7388 = vmul.f32 %v7387, 0.6931472
      %v7389 = vmul.f32 -0.5, %v7313
      %v7390 = vadd.f32 %v7389, 1.0
      %v7391 = vmul.f32 %v7390, %v7313
      %v7392 = vand.u32 2147483647, %v7313
      %vm7393 = vcmp.lt.f32.partialorder %v7392, 0.0004427343
      %v7394 = vsel %vm7393, %v7391, %v7388
      %v7395 = vadd.f32 %v7315, 1.0
      %v7396 = vlog2.pop %v7395
      %v7397 = vmul.f32 %v7396, 0.6931472
      %v7398 = vmul.f32 -0.5, %v7315
      %v7399 = vadd.f32 %v7398, 1.0
      %v7400 = vmul.f32 %v7399, %v7315
      %v7401 = vand.u32 2147483647, %v7315
      %vm7402 = vcmp.lt.f32.partialorder %v7401, 0.0004427343
      %v7403 = vsel %vm7402, %v7400, %v7397
      %v7404 = vadd.f32 %v7317, 1.0
      %v7405 = vlog2.pop %v7404
      %v7406 = vmul.f32 %v7405, 0.6931472
      %v7407 = vmul.f32 -0.5, %v7317
      %v7408 = vadd.f32 %v7407, 1.0
      %v7409 = vmul.f32 %v7408, %v7317
      %v7410 = vand.u32 2147483647, %v7317
      %vm7411 = vcmp.lt.f32.partialorder %v7410, 0.0004427343
      %v7412 = vsel %vm7411, %v7409, %v7406
      %v7413 = vadd.f32 %v7319, 1.0
      %v7414 = vlog2.pop %v7413
      %v7415 = vmul.f32 %v7414, 0.6931472
      %v7416 = vmul.f32 -0.5, %v7319
      %v7417 = vadd.f32 %v7416, 1.0
      %v7418 = vmul.f32 %v7417, %v7319
      %v7419 = vand.u32 2147483647, %v7319
      %vm7420 = vcmp.lt.f32.partialorder %v7419, 0.0004427343
      %v7421 = vsel %vm7420, %v7418, %v7415
      %v7422 = vadd.f32 %v7321, 1.0
      %v7423 = vlog2.pop %v7422
      %v7424 = vmul.f32 %v7423, 0.6931472
      %v7425 = vmul.f32 -0.5, %v7321
      %v7426 = vadd.f32 %v7425, 1.0
      %v7427 = vmul.f32 %v7426, %v7321
      %v7428 = vand.u32 2147483647, %v7321
      %vm7429 = vcmp.lt.f32.partialorder %v7428, 0.0004427343
      %v7430 = vsel %vm7429, %v7427, %v7424
      %v7431 = vadd.f32 %v7323, 1.0
      %v7432 = vlog2.pop %v7431
      %v7433 = vmul.f32 %v7432, 0.6931472
      %v7434 = vmul.f32 -0.5, %v7323
      %v7435 = vadd.f32 %v7434, 1.0
      %v7436 = vmul.f32 %v7435, %v7323
      %v7437 = vand.u32 2147483647, %v7323
      %vm7438 = vcmp.lt.f32.partialorder %v7437, 0.0004427343
      %v7439 = vsel %vm7438, %v7436, %v7433
      %v7440 = vadd.f32 %v7325, 1.0
      %v7441 = vlog2.pop %v7440
      %v7442 = vmul.f32 %v7441, 0.6931472
      %v7443 = vmul.f32 -0.5, %v7325
      %v7444 = vadd.f32 %v7443, 1.0
      %v7445 = vmul.f32 %v7444, %v7325
      %v7446 = vand.u32 2147483647, %v7325
      %vm7447 = vcmp.lt.f32.partialorder %v7446, 0.0004427343
      %v7448 = vsel %vm7447, %v7445, %v7442
      %v7449 = vadd.f32 %v7327, 1.0
      %v7450 = vlog2.pop %v7449
      %v7451 = vmul.f32 %v7450, 0.6931472
      %v7452 = vmul.f32 -0.5, %v7327
      %v7453 = vadd.f32 %v7452, 1.0
      %v7454 = vmul.f32 %v7453, %v7327
      %v7455 = vand.u32 2147483647, %v7327
      %vm7456 = vcmp.lt.f32.partialorder %v7455, 0.0004427343
      %v7457 = vsel %vm7456, %v7454, %v7451
      %v7458 = vadd.f32 %v7329, 1.0
      %v7459 = vlog2.pop %v7458
      %v7460 = vmul.f32 %v7459, 0.6931472
      %v7461 = vmul.f32 -0.5, %v7329
      %v7462 = vadd.f32 %v7461, 1.0
      %v7463 = vmul.f32 %v7462, %v7329
      %v7464 = vand.u32 2147483647, %v7329
      %vm7465 = vcmp.lt.f32.partialorder %v7464, 0.0004427343
      %v7466 = vsel %vm7465, %v7463, %v7460
      %v7467 = vadd.f32 %v7331, 1.0
      %v7468 = vlog2.pop %v7467
      %v7469 = vmul.f32 %v7468, 0.6931472
      %v7470 = vmul.f32 -0.5, %v7331
      %v7471 = vadd.f32 %v7470, 1.0
      %v7472 = vmul.f32 %v7471, %v7331
      %v7473 = vand.u32 2147483647, %v7331
      %vm7474 = vcmp.lt.f32.partialorder %v7473, 0.0004427343
      %v7475 = vsel %vm7474, %v7472, %v7469
      %v7476 = vmul.f32 %v7340, 0.01
      %v7477 = vmul.f32 %v7349, 0.01
      %v7478 = vmul.f32 %v7358, 0.01
      %v7479 = vmul.f32 %v7367, 0.01
      %v7480 = vmul.f32 %v7376, 0.01
      %v7481 = vmul.f32 %v7385, 0.01
      %v7482 = vmul.f32 %v7394, 0.01
      %v7483 = vmul.f32 %v7403, 0.01
      %v7484 = vmul.f32 %v7412, 0.01
      %v7485 = vmul.f32 %v7421, 0.01
      %v7486 = vmul.f32 %v7430, 0.01
      %v7487 = vmul.f32 %v7439, 0.01
      %v7488 = vmul.f32 %v7448, 0.01
      %v7489 = vmul.f32 %v7457, 0.01
      %v7490 = vmul.f32 %v7466, 0.01
      %v7491 = vmul.f32 %v7475, 0.01
      %v7492 = vsel %vm7284, %v7190, %v7476
      %v7493 = vsel %vm7285, %v7195, %v7477
      %v7494 = vsel %vm7286, %v7200, %v7478
      %v7495 = vsel %vm7287, %v7205, %v7479
      %v7496 = vsel %vm7288, %v7210, %v7480
      %v7497 = vsel %vm7289, %v7215, %v7481
      %v7498 = vsel %vm7290, %v7220, %v7482
      %v7499 = vsel %vm7291, %v7225, %v7483
      %v7500 = vsel %vm7292, %v7230, %v7484
      %v7501 = vsel %vm7293, %v7235, %v7485
      %v7502 = vsel %vm7294, %v7240, %v7486
      %v7503 = vsel %vm7295, %v7245, %v7487
      %v7504 = vsel %vm7296, %v7250, %v7488
      %v7505 = vsel %vm7297, %v7255, %v7489
      %v7506 = vsel %vm7298, %v7260, %v7490
      %v7507 = vsel %vm7299, %v7265, %v7491
      %v7508 = vld [vmem:[%s3] sm:$0xff]
      %v7509 = vld [vmem:[%s3 + $0x8] sm:$0xff]
      %v7510 = vld [vmem:[%s3 + $0x10] sm:$0xff]
      %v7511 = vld [vmem:[%s3 + $0x18] sm:$0xff]
      %v7512 = vld [vmem:[%s3 + $0x20] sm:$0xff]
      %v7513 = vld [vmem:[%s3 + $0x28] sm:$0xff]
      %v7514 = vld [vmem:[%s3 + $0x30] sm:$0xff]
      %v7515 = vld [vmem:[%s3 + $0x38] sm:$0xff]
      %v7516 = vld [vmem:[%s4] sm:$0x1]
      %v7518 = vlaneseq
      %v7519 = vshrl.u32 %v7518, 7
      %v7520 = vsub.s32 0, %v7519
      %v7521 = vrot.slane %v7516, %v7520
      %v7524 = vsel %vm894, %v7492, 0
      %v7527 = vsel %vm894, %v7493, 0
      %v7530 = vsel %vm894, %v7494, 0
      %v7533 = vsel %vm894, %v7495, 0
      %v7536 = vsel %vm894, %v7496, 0
      %v7539 = vsel %vm894, %v7497, 0
      %v7542 = vsel %vm894, %v7498, 0
      %v7545 = vsel %vm894, %v7499, 0
      %v7548 = vsel %vm894, %v7500, 0
      %v7551 = vsel %vm894, %v7501, 0
      %v7554 = vsel %vm894, %v7502, 0
      %v7557 = vsel %vm894, %v7503, 0
      %v7560 = vsel %vm894, %v7504, 0
      %v7563 = vsel %vm894, %v7505, 0
      %v7566 = vsel %vm894, %v7506, 0
      %v7569 = vsel %vm894, %v7507, 0
      %7571 = vmatprep.subr.mxu0 0.0
      %7572 = vmatpush1.msra.mxu0 %v7508
      %7573 = vmatprep.subr.mxu0 0.0
      %7574 = vmatpush1.msra.mxu0 %v7509
      %7575 = vmatprep.subr.mxu0 0.0
      %7576 = vmatpush1.msra.mxu0 %v7510
      %7577 = vmatprep.subr.mxu0 0.0
      %7578 = vmatpush1.msra.mxu0 %v7511
      %7579 = vmatprep.subr.mxu0 0.0
      %7580 = vmatpush1.msra.mxu0 %v7512
      %7581 = vmatprep.subr.mxu0 0.0
      %7582 = vmatpush1.msra.mxu0 %v7513
      %7583 = vmatprep.subr.mxu0 0.0
      %7584 = vmatpush1.msra.mxu0 %v7514
      %7585 = vmatprep.subr.mxu0 0.0
      %7586 = vmatpush1.msra.mxu0 %v7515
      %7587 = vmatprep.subr.mxu0 0.0
      %7588 = vmatpush1.msra.mxu0 0.0
      %7589 = vmatprep.subr.mxu0 0.0
      %7590 = vmatpush1.msra.mxu0 0.0
      %7591 = vmatprep.subr.mxu0 0.0
      %7592 = vmatpush1.msra.mxu0 0.0
      %7593 = vmatprep.subr.mxu0 0.0
      %7594 = vmatpush1.msra.mxu0 0.0
      %7595 = vmatprep.subr.mxu0 0.0
      %7596 = vmatpush1.msra.mxu0 0.0
      %7597 = vmatprep.subr.mxu0 0.0
      %7598 = vmatpush1.msra.mxu0 0.0
      %7599 = vmatprep.subr.mxu0 0.0
      %7600 = vmatpush1.msra.mxu0 0.0
      %7601 = vmatprep.subr.mxu0 0.0
      %7602 = vmatpush1.msra.mxu0 0.0
      %7603 = vmatprep.subr.mxu0 0.0
      %7604 = vmatpush1.msra.mxu0 0.0
      %7605 = vmatprep.subr.mxu0 0.0
      %7606 = vmatpush1.msra.mxu0 0.0
      %7607 = vmatprep.subr.mxu0 0.0
      %7608 = vmatpush1.msra.mxu0 0.0
      %7609 = vmatprep.subr.mxu0 0.0
      %7610 = vmatpush1.msra.mxu0 0.0
      %7611 = vmatprep.subr.mxu0 0.0
      %7612 = vmatpush1.msra.mxu0 0.0
      %7613 = vmatprep.subr.mxu0 0.0
      %7614 = vmatpush1.msra.mxu0 0.0
      %7615 = vmatprep.subr.mxu0 0.0
      %7616 = vmatpush1.msra.mxu0 0.0
      %7617 = vmatprep.subr.mxu0 0.0
      %7618 = vmatpush1.msra.mxu0 0.0
      %7619 = vmatprep.subr.mxu0 0.0
      %7620 = vmatpush1.msra.mxu0 0.0
      %7621 = vmatprep.subr.mxu0 0.0
      %7622 = vmatpush1.msra.mxu0 0.0
      %7623 = vmatprep.subr.mxu0 0.0
      %7624 = vmatpush1.msra.mxu0 0.0
      %7625 = vmatprep.subr.mxu0 0.0
      %7626 = vmatpush1.msra.mxu0 0.0
      %7627 = vmatprep.subr.mxu0 0.0
      %7628 = vmatpush1.msra.mxu0 0.0
      %7629 = vmatprep.subr.mxu0 0.0
      %7630 = vmatpush1.msra.mxu0 0.0
      %7631 = vmatprep.subr.mxu0 0.0
      %7632 = vmatpush1.msra.mxu0 0.0
      %7633 = vmatprep.subr.mxu0 0.0
      %7634 = vmatpush1.msra.mxu0 0.0
      %7635 = vmatprep.mubr.f32.mxu0 0.0
      %7636 = vmatmul.mubr.f32.gmra.mrb[0].mxu0 %v7524
      %v7637 = vpop.f32.mrb[0].mxu0
      %v7638 = vadd.f32 %v7521, %v7637
      %v7639 = vpop.f32.mrb[0].mxu0
      %7640 = vmatprep.mubr.f32.mxu0 0.0
      %7641 = vmatmul.mubr.f32.gmra.mrb[0].mxu0 %v7527
      %v7642 = vpop.f32.mrb[0].mxu0
      %v7643 = vadd.f32 %v7521, %v7642
      %v7644 = vpop.f32.mrb[0].mxu0
      %7645 = vmatprep.mubr.f32.mxu0 0.0
      %7646 = vmatmul.mubr.f32.gmra.mrb[0].mxu0 %v7530
      %v7647 = vpop.f32.mrb[0].mxu0
      %v7648 = vadd.f32 %v7521, %v7647
      %v7649 = vpop.f32.mrb[0].mxu0
      %7650 = vmatprep.mubr.f32.mxu0 0.0
      %7651 = vmatmul.mubr.f32.gmra.mrb[0].mxu0 %v7533
      %v7652 = vpop.f32.mrb[0].mxu0
      %v7653 = vadd.f32 %v7521, %v7652
      %v7654 = vpop.f32.mrb[0].mxu0
      %7655 = vmatprep.mubr.f32.mxu0 0.0
      %7656 = vmatmul.mubr.f32.gmra.mrb[0].mxu0 %v7536
      %v7657 = vpop.f32.mrb[0].mxu0
      %v7658 = vadd.f32 %v7521, %v7657
      %v7659 = vpop.f32.mrb[0].mxu0
      %7660 = vmatprep.mubr.f32.mxu0 0.0
      %7661 = vmatmul.mubr.f32.gmra.mrb[0].mxu0 %v7539
      %v7662 = vpop.f32.mrb[0].mxu0
      %v7663 = vadd.f32 %v7521, %v7662
      %v7664 = vpop.f32.mrb[0].mxu0
      %7665 = vmatprep.mubr.f32.mxu0 0.0
      %7666 = vmatmul.mubr.f32.gmra.mrb[0].mxu0 %v7542
      %v7667 = vpop.f32.mrb[0].mxu0
      %v7668 = vadd.f32 %v7521, %v7667
      %v7669 = vpop.f32.mrb[0].mxu0
      %7670 = vmatprep.mubr.f32.mxu0 0.0
      %7671 = vmatmul.mubr.f32.gmra.mrb[0].mxu0 %v7545
      %v7672 = vpop.f32.mrb[0].mxu0
      %v7673 = vadd.f32 %v7521, %v7672
      %v7674 = vpop.f32.mrb[0].mxu0
      %7675 = vmatprep.mubr.f32.mxu0 0.0
      %7676 = vmatmul.mubr.f32.gmra.mrb[0].mxu0 %v7548
      %v7677 = vpop.f32.mrb[0].mxu0
      %v7678 = vadd.f32 %v7521, %v7677
      %v7679 = vpop.f32.mrb[0].mxu0
      %7680 = vmatprep.mubr.f32.mxu0 0.0
      %7681 = vmatmul.mubr.f32.gmra.mrb[0].mxu0 %v7551
      %v7682 = vpop.f32.mrb[0].mxu0
      %v7683 = vadd.f32 %v7521, %v7682
      %v7684 = vpop.f32.mrb[0].mxu0
      %7685 = vmatprep.mubr.f32.mxu0 0.0
      %7686 = vmatmul.mubr.f32.gmra.mrb[0].mxu0 %v7554
      %v7687 = vpop.f32.mrb[0].mxu0
      %v7688 = vadd.f32 %v7521, %v7687
      %v7689 = vpop.f32.mrb[0].mxu0
      %7690 = vmatprep.mubr.f32.mxu0 0.0
      %7691 = vmatmul.mubr.f32.gmra.mrb[0].mxu0 %v7557
      %v7692 = vpop.f32.mrb[0].mxu0
      %v7693 = vadd.f32 %v7521, %v7692
      %v7694 = vpop.f32.mrb[0].mxu0
      %7695 = vmatprep.mubr.f32.mxu0 0.0
      %7696 = vmatmul.mubr.f32.gmra.mrb[0].mxu0 %v7560
      %v7697 = vpop.f32.mrb[0].mxu0
      %v7698 = vadd.f32 %v7521, %v7697
      %v7699 = vpop.f32.mrb[0].mxu0
      %7700 = vmatprep.mubr.f32.mxu0 0.0
      %7701 = vmatmul.mubr.f32.gmra.mrb[0].mxu0 %v7563
      %v7702 = vpop.f32.mrb[0].mxu0
      %v7703 = vadd.f32 %v7521, %v7702
      %v7704 = vpop.f32.mrb[0].mxu0
      %7705 = vmatprep.mubr.f32.mxu0 0.0
      %7706 = vmatmul.mubr.f32.gmra.mrb[0].mxu0 %v7566
      %v7707 = vpop.f32.mrb[0].mxu0
      %v7708 = vadd.f32 %v7521, %v7707
      %v7709 = vpop.f32.mrb[0].mxu0
      %7710 = vmatprep.mubr.f32.mxu0 0.0
      %7711 = vmatmul.mubr.f32.gmra.mrb[0].mxu0 %v7569
      %v7712 = vpop.f32.mrb[0].mxu0
      %v7713 = vadd.f32 %v7521, %v7712
      %v7714 = vpop.f32.mrb[0].mxu0
      %7715 = vdwg.mxu0
      %v7716 = vmul.f32 %v7638, 100.0
      %v7717 = vmul.f32 %v7643, 100.0
      %v7718 = vmul.f32 %v7648, 100.0
      %v7719 = vmul.f32 %v7653, 100.0
      %v7720 = vmul.f32 %v7658, 100.0
      %v7721 = vmul.f32 %v7663, 100.0
      %v7722 = vmul.f32 %v7668, 100.0
      %v7723 = vmul.f32 %v7673, 100.0
      %v7724 = vmul.f32 %v7678, 100.0
      %v7725 = vmul.f32 %v7683, 100.0
      %v7726 = vmul.f32 %v7688, 100.0
      %v7727 = vmul.f32 %v7693, 100.0
      %v7728 = vmul.f32 %v7698, 100.0
      %v7729 = vmul.f32 %v7703, 100.0
      %v7730 = vmul.f32 %v7708, 100.0
      %v7731 = vmul.f32 %v7713, 100.0
      %vm7732 = vcmp.gt.f32.partialorder %v7716, 20.0
      %vm7733 = vcmp.gt.f32.partialorder %v7717, 20.0
      %vm7734 = vcmp.gt.f32.partialorder %v7718, 20.0
      %vm7735 = vcmp.gt.f32.partialorder %v7719, 20.0
      %vm7736 = vcmp.gt.f32.partialorder %v7720, 20.0
      %vm7737 = vcmp.gt.f32.partialorder %v7721, 20.0
      %vm7738 = vcmp.gt.f32.partialorder %v7722, 20.0
      %vm7739 = vcmp.gt.f32.partialorder %v7723, 20.0
      %vm7740 = vcmp.gt.f32.partialorder %v7724, 20.0
      %vm7741 = vcmp.gt.f32.partialorder %v7725, 20.0
      %vm7742 = vcmp.gt.f32.partialorder %v7726, 20.0
      %vm7743 = vcmp.gt.f32.partialorder %v7727, 20.0
      %vm7744 = vcmp.gt.f32.partialorder %v7728, 20.0
      %vm7745 = vcmp.gt.f32.partialorder %v7729, 20.0
      %vm7746 = vcmp.gt.f32.partialorder %v7730, 20.0
      %vm7747 = vcmp.gt.f32.partialorder %v7731, 20.0
      %v7748 = vmul.f32 %v7716, 1.442695
      %v7749 = vpow.pop %v7748
      %v7750 = vmul.f32 %v7717, 1.442695
      %v7751 = vpow.pop %v7750
      %v7752 = vmul.f32 %v7718, 1.442695
      %v7753 = vpow.pop %v7752
      %v7754 = vmul.f32 %v7719, 1.442695
      %v7755 = vpow.pop %v7754
      %v7756 = vmul.f32 %v7720, 1.442695
      %v7757 = vpow.pop %v7756
      %v7758 = vmul.f32 %v7721, 1.442695
      %v7759 = vpow.pop %v7758
      %v7760 = vmul.f32 %v7722, 1.442695
      %v7761 = vpow.pop %v7760
      %v7762 = vmul.f32 %v7723, 1.442695
      %v7763 = vpow.pop %v7762
      %v7764 = vmul.f32 %v7724, 1.442695
      %v7765 = vpow.pop %v7764
      %v7766 = vmul.f32 %v7725, 1.442695
      %v7767 = vpow.pop %v7766
      %v7768 = vmul.f32 %v7726, 1.442695
      %v7769 = vpow.pop %v7768
      %v7770 = vmul.f32 %v7727, 1.442695
      %v7771 = vpow.pop %v7770
      %v7772 = vmul.f32 %v7728, 1.442695
      %v7773 = vpow.pop %v7772
      %v7774 = vmul.f32 %v7729, 1.442695
      %v7775 = vpow.pop %v7774
      %v7776 = vmul.f32 %v7730, 1.442695
      %v7777 = vpow.pop %v7776
      %v7778 = vmul.f32 %v7731, 1.442695
      %v7779 = vpow.pop %v7778
      %v7780 = vadd.f32 %v7749, 1.0
      %v7781 = vlog2.pop %v7780
      %v7782 = vmul.f32 %v7781, 0.6931472
      %v7783 = vmul.f32 -0.5, %v7749
      %v7784 = vadd.f32 %v7783, 1.0
      %v7785 = vmul.f32 %v7784, %v7749
      %v7786 = vand.u32 2147483647, %v7749
      %vm7787 = vcmp.lt.f32.partialorder %v7786, 0.0004427343
      %v7788 = vsel %vm7787, %v7785, %v7782
      %v7789 = vadd.f32 %v7751, 1.0
      %v7790 = vlog2.pop %v7789
      %v7791 = vmul.f32 %v7790, 0.6931472
      %v7792 = vmul.f32 -0.5, %v7751
      %v7793 = vadd.f32 %v7792, 1.0
      %v7794 = vmul.f32 %v7793, %v7751
      %v7795 = vand.u32 2147483647, %v7751
      %vm7796 = vcmp.lt.f32.partialorder %v7795, 0.0004427343
      %v7797 = vsel %vm7796, %v7794, %v7791
      %v7798 = vadd.f32 %v7753, 1.0
      %v7799 = vlog2.pop %v7798
      %v7800 = vmul.f32 %v7799, 0.6931472
      %v7801 = vmul.f32 -0.5, %v7753
      %v7802 = vadd.f32 %v7801, 1.0
      %v7803 = vmul.f32 %v7802, %v7753
      %v7804 = vand.u32 2147483647, %v7753
      %vm7805 = vcmp.lt.f32.partialorder %v7804, 0.0004427343
      %v7806 = vsel %vm7805, %v7803, %v7800
      %v7807 = vadd.f32 %v7755, 1.0
      %v7808 = vlog2.pop %v7807
      %v7809 = vmul.f32 %v7808, 0.6931472
      %v7810 = vmul.f32 -0.5, %v7755
      %v7811 = vadd.f32 %v7810, 1.0
      %v7812 = vmul.f32 %v7811, %v7755
      %v7813 = vand.u32 2147483647, %v7755
      %vm7814 = vcmp.lt.f32.partialorder %v7813, 0.0004427343
      %v7815 = vsel %vm7814, %v7812, %v7809
      %v7816 = vadd.f32 %v7757, 1.0
      %v7817 = vlog2.pop %v7816
      %v7818 = vmul.f32 %v7817, 0.6931472
      %v7819 = vmul.f32 -0.5, %v7757
      %v7820 = vadd.f32 %v7819, 1.0
      %v7821 = vmul.f32 %v7820, %v7757
      %v7822 = vand.u32 2147483647, %v7757
      %vm7823 = vcmp.lt.f32.partialorder %v7822, 0.0004427343
      %v7824 = vsel %vm7823, %v7821, %v7818
      %v7825 = vadd.f32 %v7759, 1.0
      %v7826 = vlog2.pop %v7825
      %v7827 = vmul.f32 %v7826, 0.6931472
      %v7828 = vmul.f32 -0.5, %v7759
      %v7829 = vadd.f32 %v7828, 1.0
      %v7830 = vmul.f32 %v7829, %v7759
      %v7831 = vand.u32 2147483647, %v7759
      %vm7832 = vcmp.lt.f32.partialorder %v7831, 0.0004427343
      %v7833 = vsel %vm7832, %v7830, %v7827
      %v7834 = vadd.f32 %v7761, 1.0
      %v7835 = vlog2.pop %v7834
      %v7836 = vmul.f32 %v7835, 0.6931472
      %v7837 = vmul.f32 -0.5, %v7761
      %v7838 = vadd.f32 %v7837, 1.0
      %v7839 = vmul.f32 %v7838, %v7761
      %v7840 = vand.u32 2147483647, %v7761
      %vm7841 = vcmp.lt.f32.partialorder %v7840, 0.0004427343
      %v7842 = vsel %vm7841, %v7839, %v7836
      %v7843 = vadd.f32 %v7763, 1.0
      %v7844 = vlog2.pop %v7843
      %v7845 = vmul.f32 %v7844, 0.6931472
      %v7846 = vmul.f32 -0.5, %v7763
      %v7847 = vadd.f32 %v7846, 1.0
      %v7848 = vmul.f32 %v7847, %v7763
      %v7849 = vand.u32 2147483647, %v7763
      %vm7850 = vcmp.lt.f32.partialorder %v7849, 0.0004427343
      %v7851 = vsel %vm7850, %v7848, %v7845
      %v7852 = vadd.f32 %v7765, 1.0
      %v7853 = vlog2.pop %v7852
      %v7854 = vmul.f32 %v7853, 0.6931472
      %v7855 = vmul.f32 -0.5, %v7765
      %v7856 = vadd.f32 %v7855, 1.0
      %v7857 = vmul.f32 %v7856, %v7765
      %v7858 = vand.u32 2147483647, %v7765
      %vm7859 = vcmp.lt.f32.partialorder %v7858, 0.0004427343
      %v7860 = vsel %vm7859, %v7857, %v7854
      %v7861 = vadd.f32 %v7767, 1.0
      %v7862 = vlog2.pop %v7861
      %v7863 = vmul.f32 %v7862, 0.6931472
      %v7864 = vmul.f32 -0.5, %v7767
      %v7865 = vadd.f32 %v7864, 1.0
      %v7866 = vmul.f32 %v7865, %v7767
      %v7867 = vand.u32 2147483647, %v7767
      %vm7868 = vcmp.lt.f32.partialorder %v7867, 0.0004427343
      %v7869 = vsel %vm7868, %v7866, %v7863
      %v7870 = vadd.f32 %v7769, 1.0
      %v7871 = vlog2.pop %v7870
      %v7872 = vmul.f32 %v7871, 0.6931472
      %v7873 = vmul.f32 -0.5, %v7769
      %v7874 = vadd.f32 %v7873, 1.0
      %v7875 = vmul.f32 %v7874, %v7769
      %v7876 = vand.u32 2147483647, %v7769
      %vm7877 = vcmp.lt.f32.partialorder %v7876, 0.0004427343
      %v7878 = vsel %vm7877, %v7875, %v7872
      %v7879 = vadd.f32 %v7771, 1.0
      %v7880 = vlog2.pop %v7879
      %v7881 = vmul.f32 %v7880, 0.6931472
      %v7882 = vmul.f32 -0.5, %v7771
      %v7883 = vadd.f32 %v7882, 1.0
      %v7884 = vmul.f32 %v7883, %v7771
      %v7885 = vand.u32 2147483647, %v7771
      %vm7886 = vcmp.lt.f32.partialorder %v7885, 0.0004427343
      %v7887 = vsel %vm7886, %v7884, %v7881
      %v7888 = vadd.f32 %v7773, 1.0
      %v7889 = vlog2.pop %v7888
      %v7890 = vmul.f32 %v7889, 0.6931472
      %v7891 = vmul.f32 -0.5, %v7773
      %v7892 = vadd.f32 %v7891, 1.0
      %v7893 = vmul.f32 %v7892, %v7773
      %v7894 = vand.u32 2147483647, %v7773
      %vm7895 = vcmp.lt.f32.partialorder %v7894, 0.0004427343
      %v7896 = vsel %vm7895, %v7893, %v7890
      %v7897 = vadd.f32 %v7775, 1.0
      %v7898 = vlog2.pop %v7897
      %v7899 = vmul.f32 %v7898, 0.6931472
      %v7900 = vmul.f32 -0.5, %v7775
      %v7901 = vadd.f32 %v7900, 1.0
      %v7902 = vmul.f32 %v7901, %v7775
      %v7903 = vand.u32 2147483647, %v7775
      %vm7904 = vcmp.lt.f32.partialorder %v7903, 0.0004427343
      %v7905 = vsel %vm7904, %v7902, %v7899
      %v7906 = vadd.f32 %v7777, 1.0
      %v7907 = vlog2.pop %v7906
      %v7908 = vmul.f32 %v7907, 0.6931472
      %v7909 = vmul.f32 -0.5, %v7777
      %v7910 = vadd.f32 %v7909, 1.0
      %v7911 = vmul.f32 %v7910, %v7777
      %v7912 = vand.u32 2147483647, %v7777
      %vm7913 = vcmp.lt.f32.partialorder %v7912, 0.0004427343
      %v7914 = vsel %vm7913, %v7911, %v7908
      %v7915 = vadd.f32 %v7779, 1.0
      %v7916 = vlog2.pop %v7915
      %v7917 = vmul.f32 %v7916, 0.6931472
      %v7918 = vmul.f32 -0.5, %v7779
      %v7919 = vadd.f32 %v7918, 1.0
      %v7920 = vmul.f32 %v7919, %v7779
      %v7921 = vand.u32 2147483647, %v7779
      %vm7922 = vcmp.lt.f32.partialorder %v7921, 0.0004427343
      %v7923 = vsel %vm7922, %v7920, %v7917
      %v7924 = vmul.f32 %v7788, 0.01
      %v7925 = vmul.f32 %v7797, 0.01
      %v7926 = vmul.f32 %v7806, 0.01
      %v7927 = vmul.f32 %v7815, 0.01
      %v7928 = vmul.f32 %v7824, 0.01
      %v7929 = vmul.f32 %v7833, 0.01
      %v7930 = vmul.f32 %v7842, 0.01
      %v7931 = vmul.f32 %v7851, 0.01
      %v7932 = vmul.f32 %v7860, 0.01
      %v7933 = vmul.f32 %v7869, 0.01
      %v7934 = vmul.f32 %v7878, 0.01
      %v7935 = vmul.f32 %v7887, 0.01
      %v7936 = vmul.f32 %v7896, 0.01
      %v7937 = vmul.f32 %v7905, 0.01
      %v7938 = vmul.f32 %v7914, 0.01
      %v7939 = vmul.f32 %v7923, 0.01
      %v7940 = vsel %vm7732, %v7638, %v7924
      %v7941 = vsel %vm7733, %v7643, %v7925
      %v7942 = vsel %vm7734, %v7648, %v7926
      %v7943 = vsel %vm7735, %v7653, %v7927
      %v7944 = vsel %vm7736, %v7658, %v7928
      %v7945 = vsel %vm7737, %v7663, %v7929
      %v7946 = vsel %vm7738, %v7668, %v7930
      %v7947 = vsel %vm7739, %v7673, %v7931
      %v7948 = vsel %vm7740, %v7678, %v7932
      %v7949 = vsel %vm7741, %v7683, %v7933
      %v7950 = vsel %vm7742, %v7688, %v7934
      %v7951 = vsel %vm7743, %v7693, %v7935
      %v7952 = vsel %vm7744, %v7698, %v7936
      %v7953 = vsel %vm7745, %v7703, %v7937
      %v7954 = vsel %vm7746, %v7708, %v7938
      %v7955 = vsel %vm7747, %v7713, %v7939
      %v7956 = vld [vmem:[%s5] sm:$0xff]
      %v7957 = vld [vmem:[%s5 + $0x8] sm:$0xff]
      %v7958 = vld [vmem:[%s5 + $0x10] sm:$0xff]
      %v7959 = vld [vmem:[%s5 + $0x18] sm:$0xff]
      %v7960 = vld [vmem:[%s5 + $0x20] sm:$0xff]
      %v7961 = vld [vmem:[%s5 + $0x28] sm:$0xff]
      %v7962 = vld [vmem:[%s5 + $0x30] sm:$0xff]
      %v7963 = vld [vmem:[%s5 + $0x38] sm:$0xff]
      %v7964 = vld [vmem:[%s6] sm:$0x7]
      %v7966 = vsel %vm490, %v7964, 0
      %7968 = vmatprep.subr.mxu0 0.0
      %7969 = vmatpush1.msra.mxu0 %v7966
      %7970 = vmatprep.subr.mxu0 0.0
      %7971 = vmatpush1.msra.mxu0 0.0
      %7972 = vmatprep.subr.mxu0 0.0
      %7973 = vmatpush1.msra.mxu0 0.0
      %7974 = vmatprep.subr.mxu0 0.0
      %7975 = vmatpush1.msra.mxu0 0.0
      %7976 = vmatprep.subr.mxu0 0.0
      %7977 = vmatpush1.msra.mxu0 0.0
      %7978 = vmatprep.subr.mxu0 0.0
      %7979 = vmatpush1.msra.mxu0 0.0
      %7980 = vmatprep.subr.mxu0 0.0
      %7981 = vmatpush1.msra.mxu0 0.0
      %7982 = vmatprep.subr.mxu0 0.0
      %7983 = vmatpush1.msra.mxu0 0.0
      %7984 = vmatprep.subr.mxu0 0.0
      %7985 = vmatpush1.msra.mxu0 0.0
      %7986 = vmatprep.subr.mxu0 0.0
      %7987 = vmatpush1.msra.mxu0 0.0
      %7988 = vmatprep.subr.mxu0 0.0
      %7989 = vmatpush1.msra.mxu0 0.0
      %7990 = vmatprep.subr.mxu0 0.0
      %7991 = vmatpush1.msra.mxu0 0.0
      %7992 = vmatprep.subr.mxu0 0.0
      %7993 = vmatpush1.msra.mxu0 0.0
      %7994 = vmatprep.subr.mxu0 0.0
      %7995 = vmatpush1.msra.mxu0 0.0
      %7996 = vmatprep.subr.mxu0 0.0
      %7997 = vmatpush1.msra.mxu0 0.0
      %7998 = vmatprep.subr.mxu0 0.0
      %7999 = vmatpush1.msra.mxu0 0.0
      %8000 = vmatprep.subr.mxu0 0.0
      %8001 = vmatpush1.msra.mxu0 0.0
      %8002 = vmatprep.subr.mxu0 0.0
      %8003 = vmatpush1.msra.mxu0 0.0
      %8004 = vmatprep.subr.mxu0 0.0
      %8005 = vmatpush1.msra.mxu0 0.0
      %8006 = vmatprep.subr.mxu0 0.0
      %8007 = vmatpush1.msra.mxu0 0.0
      %8008 = vmatprep.subr.mxu0 0.0
      %8009 = vmatpush1.msra.mxu0 0.0
      %8010 = vmatprep.subr.mxu0 0.0
      %8011 = vmatpush1.msra.mxu0 0.0
      %8012 = vmatprep.subr.mxu0 0.0
      %8013 = vmatpush1.msra.mxu0 0.0
      %8014 = vmatprep.subr.mxu0 0.0
      %8015 = vmatpush1.msra.mxu0 0.0
      %8016 = vmatprep.subr.mxu0 0.0
      %8017 = vmatpush1.msra.mxu0 0.0
      %8018 = vmatprep.subr.mxu0 0.0
      %8019 = vmatpush1.msra.mxu0 0.0
      %8020 = vmatprep.subr.mxu0 0.0
      %8021 = vmatpush1.msra.mxu0 0.0
      %8022 = vmatprep.subr.mxu0 0.0
      %8023 = vmatpush1.msra.mxu0 0.0
      %8024 = vmatprep.subr.mxu0 0.0
      %8025 = vmatpush1.msra.mxu0 0.0
      %8026 = vmatprep.subr.mxu0 0.0
      %8027 = vmatpush1.msra.mxu0 0.0
      %8028 = vmatprep.subr.mxu0 0.0
      %8029 = vmatpush1.msra.mxu0 0.0
      %8030 = vmatprep.subr.mxu0 0.0
      %8031 = vmatpush1.msra.mxu0 0.0
      %8032 = vmatprep.mubr.f32.mxu0 0.0
      %8033 = vmatmul.mubr.f32.gmra.mrb[0].mxu0 %v7073
      %v8034 = vpop.f32.mrb[0].mxu0
      %v8035 = vadd.f32 0.0, %v8034
      %v8036 = vpop.f32.mrb[0].mxu0
      %8037 = vmatprep.mubr.f32.mxu0 0.0
      %8038 = vmatmul.mubr.f32.gmra.mrb[0].mxu0 %v7076
      %v8039 = vpop.f32.mrb[0].mxu0
      %v8040 = vadd.f32 0.0, %v8039
      %v8041 = vpop.f32.mrb[0].mxu0
      %8042 = vmatprep.mubr.f32.mxu0 0.0
      %8043 = vmatmul.mubr.f32.gmra.mrb[0].mxu0 %v7079
      %v8044 = vpop.f32.mrb[0].mxu0
      %v8045 = vadd.f32 0.0, %v8044
      %v8046 = vpop.f32.mrb[0].mxu0
      %8047 = vmatprep.mubr.f32.mxu0 0.0
      %8048 = vmatmul.mubr.f32.gmra.mrb[0].mxu0 %v7082
      %v8049 = vpop.f32.mrb[0].mxu0
      %v8050 = vadd.f32 0.0, %v8049
      %v8051 = vpop.f32.mrb[0].mxu0
      %8052 = vmatprep.mubr.f32.mxu0 0.0
      %8053 = vmatmul.mubr.f32.gmra.mrb[0].mxu0 %v7085
      %v8054 = vpop.f32.mrb[0].mxu0
      %v8055 = vadd.f32 0.0, %v8054
      %v8056 = vpop.f32.mrb[0].mxu0
      %8057 = vmatprep.mubr.f32.mxu0 0.0
      %8058 = vmatmul.mubr.f32.gmra.mrb[0].mxu0 %v7088
      %v8059 = vpop.f32.mrb[0].mxu0
      %v8060 = vadd.f32 0.0, %v8059
      %v8061 = vpop.f32.mrb[0].mxu0
      %8062 = vmatprep.mubr.f32.mxu0 0.0
      %8063 = vmatmul.mubr.f32.gmra.mrb[0].mxu0 %v7091
      %v8064 = vpop.f32.mrb[0].mxu0
      %v8065 = vadd.f32 0.0, %v8064
      %v8066 = vpop.f32.mrb[0].mxu0
      %8067 = vmatprep.mubr.f32.mxu0 0.0
      %8068 = vmatmul.mubr.f32.gmra.mrb[0].mxu0 %v7094
      %v8069 = vpop.f32.mrb[0].mxu0
      %v8070 = vadd.f32 0.0, %v8069
      %v8071 = vpop.f32.mrb[0].mxu0
      %8072 = vmatprep.mubr.f32.mxu0 0.0
      %8073 = vmatmul.mubr.f32.gmra.mrb[0].mxu0 %v7097
      %v8074 = vpop.f32.mrb[0].mxu0
      %v8075 = vadd.f32 0.0, %v8074
      %v8076 = vpop.f32.mrb[0].mxu0
      %8077 = vmatprep.mubr.f32.mxu0 0.0
      %8078 = vmatmul.mubr.f32.gmra.mrb[0].mxu0 %v7100
      %v8079 = vpop.f32.mrb[0].mxu0
      %v8080 = vadd.f32 0.0, %v8079
      %v8081 = vpop.f32.mrb[0].mxu0
      %8082 = vmatprep.mubr.f32.mxu0 0.0
      %8083 = vmatmul.mubr.f32.gmra.mrb[0].mxu0 %v7103
      %v8084 = vpop.f32.mrb[0].mxu0
      %v8085 = vadd.f32 0.0, %v8084
      %v8086 = vpop.f32.mrb[0].mxu0
      %8087 = vmatprep.mubr.f32.mxu0 0.0
      %8088 = vmatmul.mubr.f32.gmra.mrb[0].mxu0 %v7106
      %v8089 = vpop.f32.mrb[0].mxu0
      %v8090 = vadd.f32 0.0, %v8089
      %v8091 = vpop.f32.mrb[0].mxu0
      %8092 = vmatprep.mubr.f32.mxu0 0.0
      %8093 = vmatmul.mubr.f32.gmra.mrb[0].mxu0 %v7109
      %v8094 = vpop.f32.mrb[0].mxu0
      %v8095 = vadd.f32 0.0, %v8094
      %v8096 = vpop.f32.mrb[0].mxu0
      %8097 = vmatprep.mubr.f32.mxu0 0.0
      %8098 = vmatmul.mubr.f32.gmra.mrb[0].mxu0 %v7112
      %v8099 = vpop.f32.mrb[0].mxu0
      %v8100 = vadd.f32 0.0, %v8099
      %v8101 = vpop.f32.mrb[0].mxu0
      %8102 = vmatprep.mubr.f32.mxu0 0.0
      %8103 = vmatmul.mubr.f32.gmra.mrb[0].mxu0 %v7115
      %v8104 = vpop.f32.mrb[0].mxu0
      %v8105 = vadd.f32 0.0, %v8104
      %v8106 = vpop.f32.mrb[0].mxu0
      %8107 = vmatprep.mubr.f32.mxu0 0.0
      %8108 = vmatmul.mubr.f32.gmra.mrb[0].mxu0 %v7118
      %v8109 = vpop.f32.mrb[0].mxu0
      %v8110 = vadd.f32 0.0, %v8109
      %v8111 = vpop.f32.mrb[0].mxu0
      %8112 = vdwg.mxu0
      %v8114 = vsel %vm894, %v7940, 0
      %v8117 = vsel %vm894, %v7941, 0
      %v8120 = vsel %vm894, %v7942, 0
      %v8123 = vsel %vm894, %v7943, 0
      %v8126 = vsel %vm894, %v7944, 0
      %v8129 = vsel %vm894, %v7945, 0
      %v8132 = vsel %vm894, %v7946, 0
      %v8135 = vsel %vm894, %v7947, 0
      %v8138 = vsel %vm894, %v7948, 0
      %v8141 = vsel %vm894, %v7949, 0
      %v8144 = vsel %vm894, %v7950, 0
      %v8147 = vsel %vm894, %v7951, 0
      %v8150 = vsel %vm894, %v7952, 0
      %v8153 = vsel %vm894, %v7953, 0
      %v8156 = vsel %vm894, %v7954, 0
      %v8159 = vsel %vm894, %v7955, 0
      %8161 = vmatprep.subr.mxu0 0.0
      %8162 = vmatpush1.msra.mxu0 %v7956
      %8163 = vmatprep.subr.mxu0 0.0
      %8164 = vmatpush1.msra.mxu0 %v7957
      %8165 = vmatprep.subr.mxu0 0.0
      %8166 = vmatpush1.msra.mxu0 %v7958
      %8167 = vmatprep.subr.mxu0 0.0
      %8168 = vmatpush1.msra.mxu0 %v7959
      %8169 = vmatprep.subr.mxu0 0.0
      %8170 = vmatpush1.msra.mxu0 %v7960
      %8171 = vmatprep.subr.mxu0 0.0
      %8172 = vmatpush1.msra.mxu0 %v7961
      %8173 = vmatprep.subr.mxu0 0.0
      %8174 = vmatpush1.msra.mxu0 %v7962
      %8175 = vmatprep.subr.mxu0 0.0
      %8176 = vmatpush1.msra.mxu0 %v7963
      %8177 = vmatprep.subr.mxu0 0.0
      %8178 = vmatpush1.msra.mxu0 0.0
      %8179 = vmatprep.subr.mxu0 0.0
      %8180 = vmatpush1.msra.mxu0 0.0
      %8181 = vmatprep.subr.mxu0 0.0
      %8182 = vmatpush1.msra.mxu0 0.0
      %8183 = vmatprep.subr.mxu0 0.0
      %8184 = vmatpush1.msra.mxu0 0.0
      %8185 = vmatprep.subr.mxu0 0.0
      %8186 = vmatpush1.msra.mxu0 0.0
      %8187 = vmatprep.subr.mxu0 0.0
      %8188 = vmatpush1.msra.mxu0 0.0
      %8189 = vmatprep.subr.mxu0 0.0
      %8190 = vmatpush1.msra.mxu0 0.0
      %8191 = vmatprep.subr.mxu0 0.0
      %8192 = vmatpush1.msra.mxu0 0.0
      %8193 = vmatprep.subr.mxu0 0.0
      %8194 = vmatpush1.msra.mxu0 0.0
      %8195 = vmatprep.subr.mxu0 0.0
      %8196 = vmatpush1.msra.mxu0 0.0
      %8197 = vmatprep.subr.mxu0 0.0
      %8198 = vmatpush1.msra.mxu0 0.0
      %8199 = vmatprep.subr.mxu0 0.0
      %8200 = vmatpush1.msra.mxu0 0.0
      %8201 = vmatprep.subr.mxu0 0.0
      %8202 = vmatpush1.msra.mxu0 0.0
      %8203 = vmatprep.subr.mxu0 0.0
      %8204 = vmatpush1.msra.mxu0 0.0
      %8205 = vmatprep.subr.mxu0 0.0
      %8206 = vmatpush1.msra.mxu0 0.0
      %8207 = vmatprep.subr.mxu0 0.0
      %8208 = vmatpush1.msra.mxu0 0.0
      %8209 = vmatprep.subr.mxu0 0.0
      %8210 = vmatpush1.msra.mxu0 0.0
      %8211 = vmatprep.subr.mxu0 0.0
      %8212 = vmatpush1.msra.mxu0 0.0
      %8213 = vmatprep.subr.mxu0 0.0
      %8214 = vmatpush1.msra.mxu0 0.0
      %8215 = vmatprep.subr.mxu0 0.0
      %8216 = vmatpush1.msra.mxu0 0.0
      %8217 = vmatprep.subr.mxu0 0.0
      %8218 = vmatpush1.msra.mxu0 0.0
      %8219 = vmatprep.subr.mxu0 0.0
      %8220 = vmatpush1.msra.mxu0 0.0
      %8221 = vmatprep.subr.mxu0 0.0
      %8222 = vmatpush1.msra.mxu0 0.0
      %8223 = vmatprep.subr.mxu0 0.0
      %8224 = vmatpush1.msra.mxu0 0.0
      %8225 = vmatprep.mubr.f32.mxu0 0.0
      %8226 = vmatmul.mubr.f32.gmra.mrb[0].mxu0 %v8114
      %v8227 = vpop.f32.mrb[0].mxu0
      %v8228 = vadd.f32 %v8035, %v8227
      %v8229 = vpop.f32.mrb[0].mxu0
      %8230 = vmatprep.mubr.f32.mxu0 0.0
      %8231 = vmatmul.mubr.f32.gmra.mrb[0].mxu0 %v8117
      %v8232 = vpop.f32.mrb[0].mxu0
      %v8233 = vadd.f32 %v8040, %v8232
      %v8234 = vpop.f32.mrb[0].mxu0
      %8235 = vmatprep.mubr.f32.mxu0 0.0
      %8236 = vmatmul.mubr.f32.gmra.mrb[0].mxu0 %v8120
      %v8237 = vpop.f32.mrb[0].mxu0
      %v8238 = vadd.f32 %v8045, %v8237
      %v8239 = vpop.f32.mrb[0].mxu0
      %8240 = vmatprep.mubr.f32.mxu0 0.0
      %8241 = vmatmul.mubr.f32.gmra.mrb[0].mxu0 %v8123
      %v8242 = vpop.f32.mrb[0].mxu0
      %v8243 = vadd.f32 %v8050, %v8242
      %v8244 = vpop.f32.mrb[0].mxu0
      %8245 = vmatprep.mubr.f32.mxu0 0.0
      %8246 = vmatmul.mubr.f32.gmra.mrb[0].mxu0 %v8126
      %v8247 = vpop.f32.mrb[0].mxu0
      %v8248 = vadd.f32 %v8055, %v8247
      %v8249 = vpop.f32.mrb[0].mxu0
      %8250 = vmatprep.mubr.f32.mxu0 0.0
      %8251 = vmatmul.mubr.f32.gmra.mrb[0].mxu0 %v8129
      %v8252 = vpop.f32.mrb[0].mxu0
      %v8253 = vadd.f32 %v8060, %v8252
      %v8254 = vpop.f32.mrb[0].mxu0
      %8255 = vmatprep.mubr.f32.mxu0 0.0
      %8256 = vmatmul.mubr.f32.gmra.mrb[0].mxu0 %v8132
      %v8257 = vpop.f32.mrb[0].mxu0
      %v8258 = vadd.f32 %v8065, %v8257
      %v8259 = vpop.f32.mrb[0].mxu0
      %8260 = vmatprep.mubr.f32.mxu0 0.0
      %8261 = vmatmul.mubr.f32.gmra.mrb[0].mxu0 %v8135
      %v8262 = vpop.f32.mrb[0].mxu0
      %v8263 = vadd.f32 %v8070, %v8262
      %v8264 = vpop.f32.mrb[0].mxu0
      %8265 = vmatprep.mubr.f32.mxu0 0.0
      %8266 = vmatmul.mubr.f32.gmra.mrb[0].mxu0 %v8138
      %v8267 = vpop.f32.mrb[0].mxu0
      %v8268 = vadd.f32 %v8075, %v8267
      %v8269 = vpop.f32.mrb[0].mxu0
      %8270 = vmatprep.mubr.f32.mxu0 0.0
      %8271 = vmatmul.mubr.f32.gmra.mrb[0].mxu0 %v8141
      %v8272 = vpop.f32.mrb[0].mxu0
      %v8273 = vadd.f32 %v8080, %v8272
      %v8274 = vpop.f32.mrb[0].mxu0
      %8275 = vmatprep.mubr.f32.mxu0 0.0
      %8276 = vmatmul.mubr.f32.gmra.mrb[0].mxu0 %v8144
      %v8277 = vpop.f32.mrb[0].mxu0
      %v8278 = vadd.f32 %v8085, %v8277
      %v8279 = vpop.f32.mrb[0].mxu0
      %8280 = vmatprep.mubr.f32.mxu0 0.0
      %8281 = vmatmul.mubr.f32.gmra.mrb[0].mxu0 %v8147
      %v8282 = vpop.f32.mrb[0].mxu0
      %v8283 = vadd.f32 %v8090, %v8282
      %v8284 = vpop.f32.mrb[0].mxu0
      %8285 = vmatprep.mubr.f32.mxu0 0.0
      %8286 = vmatmul.mubr.f32.gmra.mrb[0].mxu0 %v8150
      %v8287 = vpop.f32.mrb[0].mxu0
      %v8288 = vadd.f32 %v8095, %v8287
      %v8289 = vpop.f32.mrb[0].mxu0
      %8290 = vmatprep.mubr.f32.mxu0 0.0
      %8291 = vmatmul.mubr.f32.gmra.mrb[0].mxu0 %v8153
      %v8292 = vpop.f32.mrb[0].mxu0
      %v8293 = vadd.f32 %v8100, %v8292
      %v8294 = vpop.f32.mrb[0].mxu0
      %8295 = vmatprep.mubr.f32.mxu0 0.0
      %8296 = vmatmul.mubr.f32.gmra.mrb[0].mxu0 %v8156
      %v8297 = vpop.f32.mrb[0].mxu0
      %v8298 = vadd.f32 %v8105, %v8297
      %v8299 = vpop.f32.mrb[0].mxu0
      %8300 = vmatprep.mubr.f32.mxu0 0.0
      %8301 = vmatmul.mubr.f32.gmra.mrb[0].mxu0 %v8159
      %v8302 = vpop.f32.mrb[0].mxu0
      %v8303 = vadd.f32 %v8110, %v8302
      %v8304 = vpop.f32.mrb[0].mxu0
      %8305 = vdwg.mxu0
      %v8306 = vmul.f32 %v8228, 0.70710677
      %v8307 = vmul.f32 %v8233, 0.70710677
      %v8308 = vmul.f32 %v8238, 0.70710677
      %v8309 = vmul.f32 %v8243, 0.70710677
      %v8310 = vmul.f32 %v8248, 0.70710677
      %v8311 = vmul.f32 %v8253, 0.70710677
      %v8312 = vmul.f32 %v8258, 0.70710677
      %v8313 = vmul.f32 %v8263, 0.70710677
      %v8314 = vmul.f32 %v8268, 0.70710677
      %v8315 = vmul.f32 %v8273, 0.70710677
      %v8316 = vmul.f32 %v8278, 0.70710677
      %v8317 = vmul.f32 %v8283, 0.70710677
      %v8318 = vmul.f32 %v8288, 0.70710677
      %v8319 = vmul.f32 %v8293, 0.70710677
      %v8320 = vmul.f32 %v8298, 0.70710677
      %v8321 = vmul.f32 %v8303, 0.70710677
      %v8322 = vld [vmem:[%s7] sm:$0x1]
      %v8324 = vlaneseq
      %v8325 = vshrl.u32 %v8324, 7
      %v8326 = vsub.s32 0, %v8325
      %v8327 = vrot.slane %v8322, %v8326
      %v8329 = vadd.f32 %v8306, %v8327
      %v8330 = vadd.f32 %v8307, %v8327
      %v8331 = vadd.f32 %v8308, %v8327
      %v8332 = vadd.f32 %v8309, %v8327
      %v8333 = vadd.f32 %v8310, %v8327
      %v8334 = vadd.f32 %v8311, %v8327
      %v8335 = vadd.f32 %v8312, %v8327
      %v8336 = vadd.f32 %v8313, %v8327
      %v8337 = vadd.f32 %v8314, %v8327
      %v8338 = vadd.f32 %v8315, %v8327
      %v8339 = vadd.f32 %v8316, %v8327
      %v8340 = vadd.f32 %v8317, %v8327
      %v8341 = vadd.f32 %v8318, %v8327
      %v8342 = vadd.f32 %v8319, %v8327
      %v8343 = vadd.f32 %v8320, %v8327
      %v8344 = vadd.f32 %v8321, %v8327
      %v8345 = vmul.f32 %v8329, 100.0
      %v8346 = vmul.f32 %v8330, 100.0
      %v8347 = vmul.f32 %v8331, 100.0
      %v8348 = vmul.f32 %v8332, 100.0
      %v8349 = vmul.f32 %v8333, 100.0
      %v8350 = vmul.f32 %v8334, 100.0
      %v8351 = vmul.f32 %v8335, 100.0
      %v8352 = vmul.f32 %v8336, 100.0
      %v8353 = vmul.f32 %v8337, 100.0
      %v8354 = vmul.f32 %v8338, 100.0
      %v8355 = vmul.f32 %v8339, 100.0
      %v8356 = vmul.f32 %v8340, 100.0
      %v8357 = vmul.f32 %v8341, 100.0
      %v8358 = vmul.f32 %v8342, 100.0
      %v8359 = vmul.f32 %v8343, 100.0
      %v8360 = vmul.f32 %v8344, 100.0
      %vm8361 = vcmp.gt.f32.partialorder %v8345, 20.0
      %vm8362 = vcmp.gt.f32.partialorder %v8346, 20.0
      %vm8363 = vcmp.gt.f32.partialorder %v8347, 20.0
      %vm8364 = vcmp.gt.f32.partialorder %v8348, 20.0
      %vm8365 = vcmp.gt.f32.partialorder %v8349, 20.0
      %vm8366 = vcmp.gt.f32.partialorder %v8350, 20.0
      %vm8367 = vcmp.gt.f32.partialorder %v8351, 20.0
      %vm8368 = vcmp.gt.f32.partialorder %v8352, 20.0
      %vm8369 = vcmp.gt.f32.partialorder %v8353, 20.0
      %vm8370 = vcmp.gt.f32.partialorder %v8354, 20.0
      %vm8371 = vcmp.gt.f32.partialorder %v8355, 20.0
      %vm8372 = vcmp.gt.f32.partialorder %v8356, 20.0
      %vm8373 = vcmp.gt.f32.partialorder %v8357, 20.0
      %vm8374 = vcmp.gt.f32.partialorder %v8358, 20.0
      %vm8375 = vcmp.gt.f32.partialorder %v8359, 20.0
      %vm8376 = vcmp.gt.f32.partialorder %v8360, 20.0
      %v8377 = vmul.f32 %v8345, 1.442695
      %v8378 = vpow.pop %v8377
      %v8379 = vmul.f32 %v8346, 1.442695
      %v8380 = vpow.pop %v8379
      %v8381 = vmul.f32 %v8347, 1.442695
      %v8382 = vpow.pop %v8381
      %v8383 = vmul.f32 %v8348, 1.442695
      %v8384 = vpow.pop %v8383
      %v8385 = vmul.f32 %v8349, 1.442695
      %v8386 = vpow.pop %v8385
      %v8387 = vmul.f32 %v8350, 1.442695
      %v8388 = vpow.pop %v8387
      %v8389 = vmul.f32 %v8351, 1.442695
      %v8390 = vpow.pop %v8389
      %v8391 = vmul.f32 %v8352, 1.442695
      %v8392 = vpow.pop %v8391
      %v8393 = vmul.f32 %v8353, 1.442695
      %v8394 = vpow.pop %v8393
      %v8395 = vmul.f32 %v8354, 1.442695
      %v8396 = vpow.pop %v8395
      %v8397 = vmul.f32 %v8355, 1.442695
      %v8398 = vpow.pop %v8397
      %v8399 = vmul.f32 %v8356, 1.442695
      %v8400 = vpow.pop %v8399
      %v8401 = vmul.f32 %v8357, 1.442695
      %v8402 = vpow.pop %v8401
      %v8403 = vmul.f32 %v8358, 1.442695
      %v8404 = vpow.pop %v8403
      %v8405 = vmul.f32 %v8359, 1.442695
      %v8406 = vpow.pop %v8405
      %v8407 = vmul.f32 %v8360, 1.442695
      %v8408 = vpow.pop %v8407
      %v8409 = vadd.f32 %v8378, 1.0
      %v8410 = vlog2.pop %v8409
      %v8411 = vmul.f32 %v8410, 0.6931472
      %v8412 = vmul.f32 -0.5, %v8378
      %v8413 = vadd.f32 %v8412, 1.0
      %v8414 = vmul.f32 %v8413, %v8378
      %v8415 = vand.u32 2147483647, %v8378
      %vm8416 = vcmp.lt.f32.partialorder %v8415, 0.0004427343
      %v8417 = vsel %vm8416, %v8414, %v8411
      %v8418 = vadd.f32 %v8380, 1.0
      %v8419 = vlog2.pop %v8418
      %v8420 = vmul.f32 %v8419, 0.6931472
      %v8421 = vmul.f32 -0.5, %v8380
      %v8422 = vadd.f32 %v8421, 1.0
      %v8423 = vmul.f32 %v8422, %v8380
      %v8424 = vand.u32 2147483647, %v8380
      %vm8425 = vcmp.lt.f32.partialorder %v8424, 0.0004427343
      %v8426 = vsel %vm8425, %v8423, %v8420
      %v8427 = vadd.f32 %v8382, 1.0
      %v8428 = vlog2.pop %v8427
      %v8429 = vmul.f32 %v8428, 0.6931472
      %v8430 = vmul.f32 -0.5, %v8382
      %v8431 = vadd.f32 %v8430, 1.0
      %v8432 = vmul.f32 %v8431, %v8382
      %v8433 = vand.u32 2147483647, %v8382
      %vm8434 = vcmp.lt.f32.partialorder %v8433, 0.0004427343
      %v8435 = vsel %vm8434, %v8432, %v8429
      %v8436 = vadd.f32 %v8384, 1.0
      %v8437 = vlog2.pop %v8436
      %v8438 = vmul.f32 %v8437, 0.6931472
      %v8439 = vmul.f32 -0.5, %v8384
      %v8440 = vadd.f32 %v8439, 1.0
      %v8441 = vmul.f32 %v8440, %v8384
      %v8442 = vand.u32 2147483647, %v8384
      %vm8443 = vcmp.lt.f32.partialorder %v8442, 0.0004427343
      %v8444 = vsel %vm8443, %v8441, %v8438
      %v8445 = vadd.f32 %v8386, 1.0
      %v8446 = vlog2.pop %v8445
      %v8447 = vmul.f32 %v8446, 0.6931472
      %v8448 = vmul.f32 -0.5, %v8386
      %v8449 = vadd.f32 %v8448, 1.0
      %v8450 = vmul.f32 %v8449, %v8386
      %v8451 = vand.u32 2147483647, %v8386
      %vm8452 = vcmp.lt.f32.partialorder %v8451, 0.0004427343
      %v8453 = vsel %vm8452, %v8450, %v8447
      %v8454 = vadd.f32 %v8388, 1.0
      %v8455 = vlog2.pop %v8454
      %v8456 = vmul.f32 %v8455, 0.6931472
      %v8457 = vmul.f32 -0.5, %v8388
      %v8458 = vadd.f32 %v8457, 1.0
      %v8459 = vmul.f32 %v8458, %v8388
      %v8460 = vand.u32 2147483647, %v8388
      %vm8461 = vcmp.lt.f32.partialorder %v8460, 0.0004427343
      %v8462 = vsel %vm8461, %v8459, %v8456
      %v8463 = vadd.f32 %v8390, 1.0
      %v8464 = vlog2.pop %v8463
      %v8465 = vmul.f32 %v8464, 0.6931472
      %v8466 = vmul.f32 -0.5, %v8390
      %v8467 = vadd.f32 %v8466, 1.0
      %v8468 = vmul.f32 %v8467, %v8390
      %v8469 = vand.u32 2147483647, %v8390
      %vm8470 = vcmp.lt.f32.partialorder %v8469, 0.0004427343
      %v8471 = vsel %vm8470, %v8468, %v8465
      %v8472 = vadd.f32 %v8392, 1.0
      %v8473 = vlog2.pop %v8472
      %v8474 = vmul.f32 %v8473, 0.6931472
      %v8475 = vmul.f32 -0.5, %v8392
      %v8476 = vadd.f32 %v8475, 1.0
      %v8477 = vmul.f32 %v8476, %v8392
      %v8478 = vand.u32 2147483647, %v8392
      %vm8479 = vcmp.lt.f32.partialorder %v8478, 0.0004427343
      %v8480 = vsel %vm8479, %v8477, %v8474
      %v8481 = vadd.f32 %v8394, 1.0
      %v8482 = vlog2.pop %v8481
      %v8483 = vmul.f32 %v8482, 0.6931472
      %v8484 = vmul.f32 -0.5, %v8394
      %v8485 = vadd.f32 %v8484, 1.0
      %v8486 = vmul.f32 %v8485, %v8394
      %v8487 = vand.u32 2147483647, %v8394
      %vm8488 = vcmp.lt.f32.partialorder %v8487, 0.0004427343
      %v8489 = vsel %vm8488, %v8486, %v8483
      %v8490 = vadd.f32 %v8396, 1.0
      %v8491 = vlog2.pop %v8490
      %v8492 = vmul.f32 %v8491, 0.6931472
      %v8493 = vmul.f32 -0.5, %v8396
      %v8494 = vadd.f32 %v8493, 1.0
      %v8495 = vmul.f32 %v8494, %v8396
      %v8496 = vand.u32 2147483647, %v8396
      %vm8497 = vcmp.lt.f32.partialorder %v8496, 0.0004427343
      %v8498 = vsel %vm8497, %v8495, %v8492
      %v8499 = vadd.f32 %v8398, 1.0
      %v8500 = vlog2.pop %v8499
      %v8501 = vmul.f32 %v8500, 0.6931472
      %v8502 = vmul.f32 -0.5, %v8398
      %v8503 = vadd.f32 %v8502, 1.0
      %v8504 = vmul.f32 %v8503, %v8398
      %v8505 = vand.u32 2147483647, %v8398
      %vm8506 = vcmp.lt.f32.partialorder %v8505, 0.0004427343
      %v8507 = vsel %vm8506, %v8504, %v8501
      %v8508 = vadd.f32 %v8400, 1.0
      %v8509 = vlog2.pop %v8508
      %v8510 = vmul.f32 %v8509, 0.6931472
      %v8511 = vmul.f32 -0.5, %v8400
      %v8512 = vadd.f32 %v8511, 1.0
      %v8513 = vmul.f32 %v8512, %v8400
      %v8514 = vand.u32 2147483647, %v8400
      %vm8515 = vcmp.lt.f32.partialorder %v8514, 0.0004427343
      %v8516 = vsel %vm8515, %v8513, %v8510
      %v8517 = vadd.f32 %v8402, 1.0
      %v8518 = vlog2.pop %v8517
      %v8519 = vmul.f32 %v8518, 0.6931472
      %v8520 = vmul.f32 -0.5, %v8402
      %v8521 = vadd.f32 %v8520, 1.0
      %v8522 = vmul.f32 %v8521, %v8402
      %v8523 = vand.u32 2147483647, %v8402
      %vm8524 = vcmp.lt.f32.partialorder %v8523, 0.0004427343
      %v8525 = vsel %vm8524, %v8522, %v8519
      %v8526 = vadd.f32 %v8404, 1.0
      %v8527 = vlog2.pop %v8526
      %v8528 = vmul.f32 %v8527, 0.6931472
      %v8529 = vmul.f32 -0.5, %v8404
      %v8530 = vadd.f32 %v8529, 1.0
      %v8531 = vmul.f32 %v8530, %v8404
      %v8532 = vand.u32 2147483647, %v8404
      %vm8533 = vcmp.lt.f32.partialorder %v8532, 0.0004427343
      %v8534 = vsel %vm8533, %v8531, %v8528
      %v8535 = vadd.f32 %v8406, 1.0
      %v8536 = vlog2.pop %v8535
      %v8537 = vmul.f32 %v8536, 0.6931472
      %v8538 = vmul.f32 -0.5, %v8406
      %v8539 = vadd.f32 %v8538, 1.0
      %v8540 = vmul.f32 %v8539, %v8406
      %v8541 = vand.u32 2147483647, %v8406
      %vm8542 = vcmp.lt.f32.partialorder %v8541, 0.0004427343
      %v8543 = vsel %vm8542, %v8540, %v8537
      %v8544 = vadd.f32 %v8408, 1.0
      %v8545 = vlog2.pop %v8544
      %v8546 = vmul.f32 %v8545, 0.6931472
      %v8547 = vmul.f32 -0.5, %v8408
      %v8548 = vadd.f32 %v8547, 1.0
      %v8549 = vmul.f32 %v8548, %v8408
      %v8550 = vand.u32 2147483647, %v8408
      %vm8551 = vcmp.lt.f32.partialorder %v8550, 0.0004427343
      %v8552 = vsel %vm8551, %v8549, %v8546
      %v8553 = vmul.f32 %v8417, 0.01
      %v8554 = vmul.f32 %v8426, 0.01
      %v8555 = vmul.f32 %v8435, 0.01
      %v8556 = vmul.f32 %v8444, 0.01
      %v8557 = vmul.f32 %v8453, 0.01
      %v8558 = vmul.f32 %v8462, 0.01
      %v8559 = vmul.f32 %v8471, 0.01
      %v8560 = vmul.f32 %v8480, 0.01
      %v8561 = vmul.f32 %v8489, 0.01
      %v8562 = vmul.f32 %v8498, 0.01
      %v8563 = vmul.f32 %v8507, 0.01
      %v8564 = vmul.f32 %v8516, 0.01
      %v8565 = vmul.f32 %v8525, 0.01
      %v8566 = vmul.f32 %v8534, 0.01
      %v8567 = vmul.f32 %v8543, 0.01
      %v8568 = vmul.f32 %v8552, 0.01
      %v8569 = vsel %vm8361, %v8329, %v8553
      %v8570 = vsel %vm8362, %v8330, %v8554
      %v8571 = vsel %vm8363, %v8331, %v8555
      %v8572 = vsel %vm8364, %v8332, %v8556
      %v8573 = vsel %vm8365, %v8333, %v8557
      %v8574 = vsel %vm8366, %v8334, %v8558
      %v8575 = vsel %vm8367, %v8335, %v8559
      %v8576 = vsel %vm8368, %v8336, %v8560
      %v8577 = vsel %vm8369, %v8337, %v8561
      %v8578 = vsel %vm8370, %v8338, %v8562
      %v8579 = vsel %vm8371, %v8339, %v8563
      %v8580 = vsel %vm8372, %v8340, %v8564
      %v8581 = vsel %vm8373, %v8341, %v8565
      %v8582 = vsel %vm8374, %v8342, %v8566
      %v8583 = vsel %vm8375, %v8343, %v8567
      %v8584 = vsel %vm8376, %v8344, %v8568
      %v8585 = vld [vmem:[%s8] sm:$0xff]
      %v8586 = vld [vmem:[%s8 + $0x8] sm:$0xff]
      %v8587 = vld [vmem:[%s8 + $0x10] sm:$0xff]
      %v8588 = vld [vmem:[%s8 + $0x18] sm:$0xff]
      %v8589 = vld [vmem:[%s8 + $0x20] sm:$0xff]
      %v8590 = vld [vmem:[%s8 + $0x28] sm:$0xff]
      %v8591 = vld [vmem:[%s8 + $0x30] sm:$0xff]
      %v8592 = vld [vmem:[%s8 + $0x38] sm:$0xff]
      %v8593 = vld [vmem:[%s9] sm:$0x1]
      %v8595 = vlaneseq
      %v8596 = vshrl.u32 %v8595, 7
      %v8597 = vsub.s32 0, %v8596
      %v8598 = vrot.slane %v8593, %v8597
      %v8601 = vsel %vm894, %v8569, 0
      %v8604 = vsel %vm894, %v8570, 0
      %v8607 = vsel %vm894, %v8571, 0
      %v8610 = vsel %vm894, %v8572, 0
      %v8613 = vsel %vm894, %v8573, 0
      %v8616 = vsel %vm894, %v8574, 0
      %v8619 = vsel %vm894, %v8575, 0
      %v8622 = vsel %vm894, %v8576, 0
      %v8625 = vsel %vm894, %v8577, 0
      %v8628 = vsel %vm894, %v8578, 0
      %v8631 = vsel %vm894, %v8579, 0
      %v8634 = vsel %vm894, %v8580, 0
      %v8637 = vsel %vm894, %v8581, 0
      %v8640 = vsel %vm894, %v8582, 0
      %v8643 = vsel %vm894, %v8583, 0
      %v8646 = vsel %vm894, %v8584, 0
      %8648 = vmatprep.subr.mxu0 0.0
      %8649 = vmatpush1.msra.mxu0 %v8585
      %8650 = vmatprep.subr.mxu0 0.0
      %8651 = vmatpush1.msra.mxu0 %v8586
      %8652 = vmatprep.subr.mxu0 0.0
      %8653 = vmatpush1.msra.mxu0 %v8587
      %8654 = vmatprep.subr.mxu0 0.0
      %8655 = vmatpush1.msra.mxu0 %v8588
      %8656 = vmatprep.subr.mxu0 0.0
      %8657 = vmatpush1.msra.mxu0 %v8589
      %8658 = vmatprep.subr.mxu0 0.0
      %8659 = vmatpush1.msra.mxu0 %v8590
      %8660 = vmatprep.subr.mxu0 0.0
      %8661 = vmatpush1.msra.mxu0 %v8591
      %8662 = vmatprep.subr.mxu0 0.0
      %8663 = vmatpush1.msra.mxu0 %v8592
      %8664 = vmatprep.subr.mxu0 0.0
      %8665 = vmatpush1.msra.mxu0 0.0
      %8666 = vmatprep.subr.mxu0 0.0
      %8667 = vmatpush1.msra.mxu0 0.0
      %8668 = vmatprep.subr.mxu0 0.0
      %8669 = vmatpush1.msra.mxu0 0.0
      %8670 = vmatprep.subr.mxu0 0.0
      %8671 = vmatpush1.msra.mxu0 0.0
      %8672 = vmatprep.subr.mxu0 0.0
      %8673 = vmatpush1.msra.mxu0 0.0
      %8674 = vmatprep.subr.mxu0 0.0
      %8675 = vmatpush1.msra.mxu0 0.0
      %8676 = vmatprep.subr.mxu0 0.0
      %8677 = vmatpush1.msra.mxu0 0.0
      %8678 = vmatprep.subr.mxu0 0.0
      %8679 = vmatpush1.msra.mxu0 0.0
      %8680 = vmatprep.subr.mxu0 0.0
      %8681 = vmatpush1.msra.mxu0 0.0
      %8682 = vmatprep.subr.mxu0 0.0
      %8683 = vmatpush1.msra.mxu0 0.0
      %8684 = vmatprep.subr.mxu0 0.0
      %8685 = vmatpush1.msra.mxu0 0.0
      %8686 = vmatprep.subr.mxu0 0.0
      %8687 = vmatpush1.msra.mxu0 0.0
      %8688 = vmatprep.subr.mxu0 0.0
      %8689 = vmatpush1.msra.mxu0 0.0
      %8690 = vmatprep.subr.mxu0 0.0
      %8691 = vmatpush1.msra.mxu0 0.0
      %8692 = vmatprep.subr.mxu0 0.0
      %8693 = vmatpush1.msra.mxu0 0.0
      %8694 = vmatprep.subr.mxu0 0.0
      %8695 = vmatpush1.msra.mxu0 0.0
      %8696 = vmatprep.subr.mxu0 0.0
      %8697 = vmatpush1.msra.mxu0 0.0
      %8698 = vmatprep.subr.mxu0 0.0
      %8699 = vmatpush1.msra.mxu0 0.0
      %8700 = vmatprep.subr.mxu0 0.0
      %8701 = vmatpush1.msra.mxu0 0.0
      %8702 = vmatprep.subr.mxu0 0.0
      %8703 = vmatpush1.msra.mxu0 0.0
      %8704 = vmatprep.subr.mxu0 0.0
      %8705 = vmatpush1.msra.mxu0 0.0
      %8706 = vmatprep.subr.mxu0 0.0
      %8707 = vmatpush1.msra.mxu0 0.0
      %8708 = vmatprep.subr.mxu0 0.0
      %8709 = vmatpush1.msra.mxu0 0.0
      %8710 = vmatprep.subr.mxu0 0.0
      %8711 = vmatpush1.msra.mxu0 0.0
      %8712 = vmatprep.mubr.f32.mxu0 0.0
      %8713 = vmatmul.mubr.f32.gmra.mrb[0].mxu0 %v8601
      %v8714 = vpop.f32.mrb[0].mxu0
      %v8715 = vadd.f32 %v8598, %v8714
      %v8716 = vpop.f32.mrb[0].mxu0
      %8717 = vmatprep.mubr.f32.mxu0 0.0
      %8718 = vmatmul.mubr.f32.gmra.mrb[0].mxu0 %v8604
      %v8719 = vpop.f32.mrb[0].mxu0
      %v8720 = vadd.f32 %v8598, %v8719
      %v8721 = vpop.f32.mrb[0].mxu0
      %8722 = vmatprep.mubr.f32.mxu0 0.0
      %8723 = vmatmul.mubr.f32.gmra.mrb[0].mxu0 %v8607
      %v8724 = vpop.f32.mrb[0].mxu0
      %v8725 = vadd.f32 %v8598, %v8724
      %v8726 = vpop.f32.mrb[0].mxu0
      %8727 = vmatprep.mubr.f32.mxu0 0.0
      %8728 = vmatmul.mubr.f32.gmra.mrb[0].mxu0 %v8610
      %v8729 = vpop.f32.mrb[0].mxu0
      %v8730 = vadd.f32 %v8598, %v8729
      %v8731 = vpop.f32.mrb[0].mxu0
      %8732 = vmatprep.mubr.f32.mxu0 0.0
      %8733 = vmatmul.mubr.f32.gmra.mrb[0].mxu0 %v8613
      %v8734 = vpop.f32.mrb[0].mxu0
      %v8735 = vadd.f32 %v8598, %v8734
      %v8736 = vpop.f32.mrb[0].mxu0
      %8737 = vmatprep.mubr.f32.mxu0 0.0
      %8738 = vmatmul.mubr.f32.gmra.mrb[0].mxu0 %v8616
      %v8739 = vpop.f32.mrb[0].mxu0
      %v8740 = vadd.f32 %v8598, %v8739
      %v8741 = vpop.f32.mrb[0].mxu0
      %8742 = vmatprep.mubr.f32.mxu0 0.0
      %8743 = vmatmul.mubr.f32.gmra.mrb[0].mxu0 %v8619
      %v8744 = vpop.f32.mrb[0].mxu0
      %v8745 = vadd.f32 %v8598, %v8744
      %v8746 = vpop.f32.mrb[0].mxu0
      %8747 = vmatprep.mubr.f32.mxu0 0.0
      %8748 = vmatmul.mubr.f32.gmra.mrb[0].mxu0 %v8622
      %v8749 = vpop.f32.mrb[0].mxu0
      %v8750 = vadd.f32 %v8598, %v8749
      %v8751 = vpop.f32.mrb[0].mxu0
      %8752 = vmatprep.mubr.f32.mxu0 0.0
      %8753 = vmatmul.mubr.f32.gmra.mrb[0].mxu0 %v8625
      %v8754 = vpop.f32.mrb[0].mxu0
      %v8755 = vadd.f32 %v8598, %v8754
      %v8756 = vpop.f32.mrb[0].mxu0
      %8757 = vmatprep.mubr.f32.mxu0 0.0
      %8758 = vmatmul.mubr.f32.gmra.mrb[0].mxu0 %v8628
      %v8759 = vpop.f32.mrb[0].mxu0
      %v8760 = vadd.f32 %v8598, %v8759
      %v8761 = vpop.f32.mrb[0].mxu0
      %8762 = vmatprep.mubr.f32.mxu0 0.0
      %8763 = vmatmul.mubr.f32.gmra.mrb[0].mxu0 %v8631
      %v8764 = vpop.f32.mrb[0].mxu0
      %v8765 = vadd.f32 %v8598, %v8764
      %v8766 = vpop.f32.mrb[0].mxu0
      %8767 = vmatprep.mubr.f32.mxu0 0.0
      %8768 = vmatmul.mubr.f32.gmra.mrb[0].mxu0 %v8634
      %v8769 = vpop.f32.mrb[0].mxu0
      %v8770 = vadd.f32 %v8598, %v8769
      %v8771 = vpop.f32.mrb[0].mxu0
      %8772 = vmatprep.mubr.f32.mxu0 0.0
      %8773 = vmatmul.mubr.f32.gmra.mrb[0].mxu0 %v8637
      %v8774 = vpop.f32.mrb[0].mxu0
      %v8775 = vadd.f32 %v8598, %v8774
      %v8776 = vpop.f32.mrb[0].mxu0
      %8777 = vmatprep.mubr.f32.mxu0 0.0
      %8778 = vmatmul.mubr.f32.gmra.mrb[0].mxu0 %v8640
      %v8779 = vpop.f32.mrb[0].mxu0
      %v8780 = vadd.f32 %v8598, %v8779
      %v8781 = vpop.f32.mrb[0].mxu0
      %8782 = vmatprep.mubr.f32.mxu0 0.0
      %8783 = vmatmul.mubr.f32.gmra.mrb[0].mxu0 %v8643
      %v8784 = vpop.f32.mrb[0].mxu0
      %v8785 = vadd.f32 %v8598, %v8784
      %v8786 = vpop.f32.mrb[0].mxu0
      %8787 = vmatprep.mubr.f32.mxu0 0.0
      %8788 = vmatmul.mubr.f32.gmra.mrb[0].mxu0 %v8646
      %v8789 = vpop.f32.mrb[0].mxu0
      %v8790 = vadd.f32 %v8598, %v8789
      %v8791 = vpop.f32.mrb[0].mxu0
      %8792 = vdwg.mxu0
      %v8793 = vmul.f32 %v8715, 100.0
      %v8794 = vmul.f32 %v8720, 100.0
      %v8795 = vmul.f32 %v8725, 100.0
      %v8796 = vmul.f32 %v8730, 100.0
      %v8797 = vmul.f32 %v8735, 100.0
      %v8798 = vmul.f32 %v8740, 100.0
      %v8799 = vmul.f32 %v8745, 100.0
      %v8800 = vmul.f32 %v8750, 100.0
      %v8801 = vmul.f32 %v8755, 100.0
      %v8802 = vmul.f32 %v8760, 100.0
      %v8803 = vmul.f32 %v8765, 100.0
      %v8804 = vmul.f32 %v8770, 100.0
      %v8805 = vmul.f32 %v8775, 100.0
      %v8806 = vmul.f32 %v8780, 100.0
      %v8807 = vmul.f32 %v8785, 100.0
      %v8808 = vmul.f32 %v8790, 100.0
      %vm8809 = vcmp.gt.f32.partialorder %v8793, 20.0
      %vm8810 = vcmp.gt.f32.partialorder %v8794, 20.0
      %vm8811 = vcmp.gt.f32.partialorder %v8795, 20.0
      %vm8812 = vcmp.gt.f32.partialorder %v8796, 20.0
      %vm8813 = vcmp.gt.f32.partialorder %v8797, 20.0
      %vm8814 = vcmp.gt.f32.partialorder %v8798, 20.0
      %vm8815 = vcmp.gt.f32.partialorder %v8799, 20.0
      %vm8816 = vcmp.gt.f32.partialorder %v8800, 20.0
      %vm8817 = vcmp.gt.f32.partialorder %v8801, 20.0
      %vm8818 = vcmp.gt.f32.partialorder %v8802, 20.0
      %vm8819 = vcmp.gt.f32.partialorder %v8803, 20.0
      %vm8820 = vcmp.gt.f32.partialorder %v8804, 20.0
      %vm8821 = vcmp.gt.f32.partialorder %v8805, 20.0
      %vm8822 = vcmp.gt.f32.partialorder %v8806, 20.0
      %vm8823 = vcmp.gt.f32.partialorder %v8807, 20.0
      %vm8824 = vcmp.gt.f32.partialorder %v8808, 20.0
      %v8825 = vmul.f32 %v8793, 1.442695
      %v8826 = vpow.pop %v8825
      %v8827 = vmul.f32 %v8794, 1.442695
      %v8828 = vpow.pop %v8827
      %v8829 = vmul.f32 %v8795, 1.442695
      %v8830 = vpow.pop %v8829
      %v8831 = vmul.f32 %v8796, 1.442695
      %v8832 = vpow.pop %v8831
      %v8833 = vmul.f32 %v8797, 1.442695
      %v8834 = vpow.pop %v8833
      %v8835 = vmul.f32 %v8798, 1.442695
      %v8836 = vpow.pop %v8835
      %v8837 = vmul.f32 %v8799, 1.442695
      %v8838 = vpow.pop %v8837
      %v8839 = vmul.f32 %v8800, 1.442695
      %v8840 = vpow.pop %v8839
      %v8841 = vmul.f32 %v8801, 1.442695
      %v8842 = vpow.pop %v8841
      %v8843 = vmul.f32 %v8802, 1.442695
      %v8844 = vpow.pop %v8843
      %v8845 = vmul.f32 %v8803, 1.442695
      %v8846 = vpow.pop %v8845
      %v8847 = vmul.f32 %v8804, 1.442695
      %v8848 = vpow.pop %v8847
      %v8849 = vmul.f32 %v8805, 1.442695
      %v8850 = vpow.pop %v8849
      %v8851 = vmul.f32 %v8806, 1.442695
      %v8852 = vpow.pop %v8851
      %v8853 = vmul.f32 %v8807, 1.442695
      %v8854 = vpow.pop %v8853
      %v8855 = vmul.f32 %v8808, 1.442695
      %v8856 = vpow.pop %v8855
      %v8857 = vadd.f32 %v8826, 1.0
      %v8858 = vlog2.pop %v8857
      %v8859 = vmul.f32 %v8858, 0.6931472
      %v8860 = vmul.f32 -0.5, %v8826
      %v8861 = vadd.f32 %v8860, 1.0
      %v8862 = vmul.f32 %v8861, %v8826
      %v8863 = vand.u32 2147483647, %v8826
      %vm8864 = vcmp.lt.f32.partialorder %v8863, 0.0004427343
      %v8865 = vsel %vm8864, %v8862, %v8859
      %v8866 = vadd.f32 %v8828, 1.0
      %v8867 = vlog2.pop %v8866
      %v8868 = vmul.f32 %v8867, 0.6931472
      %v8869 = vmul.f32 -0.5, %v8828
      %v8870 = vadd.f32 %v8869, 1.0
      %v8871 = vmul.f32 %v8870, %v8828
      %v8872 = vand.u32 2147483647, %v8828
      %vm8873 = vcmp.lt.f32.partialorder %v8872, 0.0004427343
      %v8874 = vsel %vm8873, %v8871, %v8868
      %v8875 = vadd.f32 %v8830, 1.0
      %v8876 = vlog2.pop %v8875
      %v8877 = vmul.f32 %v8876, 0.6931472
      %v8878 = vmul.f32 -0.5, %v8830
      %v8879 = vadd.f32 %v8878, 1.0
      %v8880 = vmul.f32 %v8879, %v8830
      %v8881 = vand.u32 2147483647, %v8830
      %vm8882 = vcmp.lt.f32.partialorder %v8881, 0.0004427343
      %v8883 = vsel %vm8882, %v8880, %v8877
      %v8884 = vadd.f32 %v8832, 1.0
      %v8885 = vlog2.pop %v8884
      %v8886 = vmul.f32 %v8885, 0.6931472
      %v8887 = vmul.f32 -0.5, %v8832
      %v8888 = vadd.f32 %v8887, 1.0
      %v8889 = vmul.f32 %v8888, %v8832
      %v8890 = vand.u32 2147483647, %v8832
      %vm8891 = vcmp.lt.f32.partialorder %v8890, 0.0004427343
      %v8892 = vsel %vm8891, %v8889, %v8886
      %v8893 = vadd.f32 %v8834, 1.0
      %v8894 = vlog2.pop %v8893
      %v8895 = vmul.f32 %v8894, 0.6931472
      %v8896 = vmul.f32 -0.5, %v8834
      %v8897 = vadd.f32 %v8896, 1.0
      %v8898 = vmul.f32 %v8897, %v8834
      %v8899 = vand.u32 2147483647, %v8834
      %vm8900 = vcmp.lt.f32.partialorder %v8899, 0.0004427343
      %v8901 = vsel %vm8900, %v8898, %v8895
      %v8902 = vadd.f32 %v8836, 1.0
      %v8903 = vlog2.pop %v8902
      %v8904 = vmul.f32 %v8903, 0.6931472
      %v8905 = vmul.f32 -0.5, %v8836
      %v8906 = vadd.f32 %v8905, 1.0
      %v8907 = vmul.f32 %v8906, %v8836
      %v8908 = vand.u32 2147483647, %v8836
      %vm8909 = vcmp.lt.f32.partialorder %v8908, 0.0004427343
      %v8910 = vsel %vm8909, %v8907, %v8904
      %v8911 = vadd.f32 %v8838, 1.0
      %v8912 = vlog2.pop %v8911
      %v8913 = vmul.f32 %v8912, 0.6931472
      %v8914 = vmul.f32 -0.5, %v8838
      %v8915 = vadd.f32 %v8914, 1.0
      %v8916 = vmul.f32 %v8915, %v8838
      %v8917 = vand.u32 2147483647, %v8838
      %vm8918 = vcmp.lt.f32.partialorder %v8917, 0.0004427343
      %v8919 = vsel %vm8918, %v8916, %v8913
      %v8920 = vadd.f32 %v8840, 1.0
      %v8921 = vlog2.pop %v8920
      %v8922 = vmul.f32 %v8921, 0.6931472
      %v8923 = vmul.f32 -0.5, %v8840
      %v8924 = vadd.f32 %v8923, 1.0
      %v8925 = vmul.f32 %v8924, %v8840
      %v8926 = vand.u32 2147483647, %v8840
      %vm8927 = vcmp.lt.f32.partialorder %v8926, 0.0004427343
      %v8928 = vsel %vm8927, %v8925, %v8922
      %v8929 = vadd.f32 %v8842, 1.0
      %v8930 = vlog2.pop %v8929
      %v8931 = vmul.f32 %v8930, 0.6931472
      %v8932 = vmul.f32 -0.5, %v8842
      %v8933 = vadd.f32 %v8932, 1.0
      %v8934 = vmul.f32 %v8933, %v8842
      %v8935 = vand.u32 2147483647, %v8842
      %vm8936 = vcmp.lt.f32.partialorder %v8935, 0.0004427343
      %v8937 = vsel %vm8936, %v8934, %v8931
      %v8938 = vadd.f32 %v8844, 1.0
      %v8939 = vlog2.pop %v8938
      %v8940 = vmul.f32 %v8939, 0.6931472
      %v8941 = vmul.f32 -0.5, %v8844
      %v8942 = vadd.f32 %v8941, 1.0
      %v8943 = vmul.f32 %v8942, %v8844
      %v8944 = vand.u32 2147483647, %v8844
      %vm8945 = vcmp.lt.f32.partialorder %v8944, 0.0004427343
      %v8946 = vsel %vm8945, %v8943, %v8940
      %v8947 = vadd.f32 %v8846, 1.0
      %v8948 = vlog2.pop %v8947
      %v8949 = vmul.f32 %v8948, 0.6931472
      %v8950 = vmul.f32 -0.5, %v8846
      %v8951 = vadd.f32 %v8950, 1.0
      %v8952 = vmul.f32 %v8951, %v8846
      %v8953 = vand.u32 2147483647, %v8846
      %vm8954 = vcmp.lt.f32.partialorder %v8953, 0.0004427343
      %v8955 = vsel %vm8954, %v8952, %v8949
      %v8956 = vadd.f32 %v8848, 1.0
      %v8957 = vlog2.pop %v8956
      %v8958 = vmul.f32 %v8957, 0.6931472
      %v8959 = vmul.f32 -0.5, %v8848
      %v8960 = vadd.f32 %v8959, 1.0
      %v8961 = vmul.f32 %v8960, %v8848
      %v8962 = vand.u32 2147483647, %v8848
      %vm8963 = vcmp.lt.f32.partialorder %v8962, 0.0004427343
      %v8964 = vsel %vm8963, %v8961, %v8958
      %v8965 = vadd.f32 %v8850, 1.0
      %v8966 = vlog2.pop %v8965
      %v8967 = vmul.f32 %v8966, 0.6931472
      %v8968 = vmul.f32 -0.5, %v8850
      %v8969 = vadd.f32 %v8968, 1.0
      %v8970 = vmul.f32 %v8969, %v8850
      %v8971 = vand.u32 2147483647, %v8850
      %vm8972 = vcmp.lt.f32.partialorder %v8971, 0.0004427343
      %v8973 = vsel %vm8972, %v8970, %v8967
      %v8974 = vadd.f32 %v8852, 1.0
      %v8975 = vlog2.pop %v8974
      %v8976 = vmul.f32 %v8975, 0.6931472
      %v8977 = vmul.f32 -0.5, %v8852
      %v8978 = vadd.f32 %v8977, 1.0
      %v8979 = vmul.f32 %v8978, %v8852
      %v8980 = vand.u32 2147483647, %v8852
      %vm8981 = vcmp.lt.f32.partialorder %v8980, 0.0004427343
      %v8982 = vsel %vm8981, %v8979, %v8976
      %v8983 = vadd.f32 %v8854, 1.0
      %v8984 = vlog2.pop %v8983
      %v8985 = vmul.f32 %v8984, 0.6931472
      %v8986 = vmul.f32 -0.5, %v8854
      %v8987 = vadd.f32 %v8986, 1.0
      %v8988 = vmul.f32 %v8987, %v8854
      %v8989 = vand.u32 2147483647, %v8854
      %vm8990 = vcmp.lt.f32.partialorder %v8989, 0.0004427343
      %v8991 = vsel %vm8990, %v8988, %v8985
      %v8992 = vadd.f32 %v8856, 1.0
      %v8993 = vlog2.pop %v8992
      %v8994 = vmul.f32 %v8993, 0.6931472
      %v8995 = vmul.f32 -0.5, %v8856
      %v8996 = vadd.f32 %v8995, 1.0
      %v8997 = vmul.f32 %v8996, %v8856
      %v8998 = vand.u32 2147483647, %v8856
      %vm8999 = vcmp.lt.f32.partialorder %v8998, 0.0004427343
      %v9000 = vsel %vm8999, %v8997, %v8994
      %v9001 = vmul.f32 %v8865, 0.01
      %v9002 = vmul.f32 %v8874, 0.01
      %v9003 = vmul.f32 %v8883, 0.01
      %v9004 = vmul.f32 %v8892, 0.01
      %v9005 = vmul.f32 %v8901, 0.01
      %v9006 = vmul.f32 %v8910, 0.01
      %v9007 = vmul.f32 %v8919, 0.01
      %v9008 = vmul.f32 %v8928, 0.01
      %v9009 = vmul.f32 %v8937, 0.01
      %v9010 = vmul.f32 %v8946, 0.01
      %v9011 = vmul.f32 %v8955, 0.01
      %v9012 = vmul.f32 %v8964, 0.01
      %v9013 = vmul.f32 %v8973, 0.01
      %v9014 = vmul.f32 %v8982, 0.01
      %v9015 = vmul.f32 %v8991, 0.01
      %v9016 = vmul.f32 %v9000, 0.01
      %v9017 = vsel %vm8809, %v8715, %v9001
      %v9018 = vsel %vm8810, %v8720, %v9002
      %v9019 = vsel %vm8811, %v8725, %v9003
      %v9020 = vsel %vm8812, %v8730, %v9004
      %v9021 = vsel %vm8813, %v8735, %v9005
      %v9022 = vsel %vm8814, %v8740, %v9006
      %v9023 = vsel %vm8815, %v8745, %v9007
      %v9024 = vsel %vm8816, %v8750, %v9008
      %v9025 = vsel %vm8817, %v8755, %v9009
      %v9026 = vsel %vm8818, %v8760, %v9010
      %v9027 = vsel %vm8819, %v8765, %v9011
      %v9028 = vsel %vm8820, %v8770, %v9012
      %v9029 = vsel %vm8821, %v8775, %v9013
      %v9030 = vsel %vm8822, %v8780, %v9014
      %v9031 = vsel %vm8823, %v8785, %v9015
      %v9032 = vsel %vm8824, %v8790, %v9016
      %v9033 = vld [vmem:[%s10] sm:$0xff]
      %v9034 = vld [vmem:[%s10 + $0x8] sm:$0xff]
      %v9035 = vld [vmem:[%s10 + $0x10] sm:$0xff]
      %v9036 = vld [vmem:[%s10 + $0x18] sm:$0xff]
      %v9037 = vld [vmem:[%s10 + $0x20] sm:$0xff]
      %v9038 = vld [vmem:[%s10 + $0x28] sm:$0xff]
      %v9039 = vld [vmem:[%s10 + $0x30] sm:$0xff]
      %v9040 = vld [vmem:[%s10 + $0x38] sm:$0xff]
      %v9041 = vld [vmem:[%s11] sm:$0x1]
      %v9043 = vlaneseq
      %v9044 = vshrl.u32 %v9043, 7
      %v9045 = vsub.s32 0, %v9044
      %v9046 = vrot.slane %v9041, %v9045
      %v9049 = vsel %vm894, %v9017, 0
      %v9052 = vsel %vm894, %v9018, 0
      %v9055 = vsel %vm894, %v9019, 0
      %v9058 = vsel %vm894, %v9020, 0
      %v9061 = vsel %vm894, %v9021, 0
      %v9064 = vsel %vm894, %v9022, 0
      %v9067 = vsel %vm894, %v9023, 0
      %v9070 = vsel %vm894, %v9024, 0
      %v9073 = vsel %vm894, %v9025, 0
      %v9076 = vsel %vm894, %v9026, 0
      %v9079 = vsel %vm894, %v9027, 0
      %v9082 = vsel %vm894, %v9028, 0
      %v9085 = vsel %vm894, %v9029, 0
      %v9088 = vsel %vm894, %v9030, 0
      %v9091 = vsel %vm894, %v9031, 0
      %v9094 = vsel %vm894, %v9032, 0
      %9096 = vmatprep.subr.mxu0 0.0
      %9097 = vmatpush1.msra.mxu0 %v9033
      %9098 = vmatprep.subr.mxu0 0.0
      %9099 = vmatpush1.msra.mxu0 %v9034
      %9100 = vmatprep.subr.mxu0 0.0
      %9101 = vmatpush1.msra.mxu0 %v9035
      %9102 = vmatprep.subr.mxu0 0.0
      %9103 = vmatpush1.msra.mxu0 %v9036
      %9104 = vmatprep.subr.mxu0 0.0
      %9105 = vmatpush1.msra.mxu0 %v9037
      %9106 = vmatprep.subr.mxu0 0.0
      %9107 = vmatpush1.msra.mxu0 %v9038
      %9108 = vmatprep.subr.mxu0 0.0
      %9109 = vmatpush1.msra.mxu0 %v9039
      %9110 = vmatprep.subr.mxu0 0.0
      %9111 = vmatpush1.msra.mxu0 %v9040
      %9112 = vmatprep.subr.mxu0 0.0
      %9113 = vmatpush1.msra.mxu0 0.0
      %9114 = vmatprep.subr.mxu0 0.0
      %9115 = vmatpush1.msra.mxu0 0.0
      %9116 = vmatprep.subr.mxu0 0.0
      %9117 = vmatpush1.msra.mxu0 0.0
      %9118 = vmatprep.subr.mxu0 0.0
      %9119 = vmatpush1.msra.mxu0 0.0
      %9120 = vmatprep.subr.mxu0 0.0
      %9121 = vmatpush1.msra.mxu0 0.0
      %9122 = vmatprep.subr.mxu0 0.0
      %9123 = vmatpush1.msra.mxu0 0.0
      %9124 = vmatprep.subr.mxu0 0.0
      %9125 = vmatpush1.msra.mxu0 0.0
      %9126 = vmatprep.subr.mxu0 0.0
      %9127 = vmatpush1.msra.mxu0 0.0
      %9128 = vmatprep.subr.mxu0 0.0
      %9129 = vmatpush1.msra.mxu0 0.0
      %9130 = vmatprep.subr.mxu0 0.0
      %9131 = vmatpush1.msra.mxu0 0.0
      %9132 = vmatprep.subr.mxu0 0.0
      %9133 = vmatpush1.msra.mxu0 0.0
      %9134 = vmatprep.subr.mxu0 0.0
      %9135 = vmatpush1.msra.mxu0 0.0
      %9136 = vmatprep.subr.mxu0 0.0
      %9137 = vmatpush1.msra.mxu0 0.0
      %9138 = vmatprep.subr.mxu0 0.0
      %9139 = vmatpush1.msra.mxu0 0.0
      %9140 = vmatprep.subr.mxu0 0.0
      %9141 = vmatpush1.msra.mxu0 0.0
      %9142 = vmatprep.subr.mxu0 0.0
      %9143 = vmatpush1.msra.mxu0 0.0
      %9144 = vmatprep.subr.mxu0 0.0
      %9145 = vmatpush1.msra.mxu0 0.0
      %9146 = vmatprep.subr.mxu0 0.0
      %9147 = vmatpush1.msra.mxu0 0.0
      %9148 = vmatprep.subr.mxu0 0.0
      %9149 = vmatpush1.msra.mxu0 0.0
      %9150 = vmatprep.subr.mxu0 0.0
      %9151 = vmatpush1.msra.mxu0 0.0
      %9152 = vmatprep.subr.mxu0 0.0
      %9153 = vmatpush1.msra.mxu0 0.0
      %9154 = vmatprep.subr.mxu0 0.0
      %9155 = vmatpush1.msra.mxu0 0.0
      %9156 = vmatprep.subr.mxu0 0.0
      %9157 = vmatpush1.msra.mxu0 0.0
      %9158 = vmatprep.subr.mxu0 0.0
      %9159 = vmatpush1.msra.mxu0 0.0
      %9160 = vmatprep.mubr.f32.mxu0 0.0
      %9161 = vmatmul.mubr.f32.gmra.mrb[0].mxu0 %v9049
      %v9162 = vpop.f32.mrb[0].mxu0
      %v9163 = vadd.f32 %v9046, %v9162
      %v9164 = vpop.f32.mrb[0].mxu0
      %9165 = vmatprep.mubr.f32.mxu0 0.0
      %9166 = vmatmul.mubr.f32.gmra.mrb[0].mxu0 %v9052
      %v9167 = vpop.f32.mrb[0].mxu0
      %v9168 = vadd.f32 %v9046, %v9167
      %v9169 = vpop.f32.mrb[0].mxu0
      %9170 = vmatprep.mubr.f32.mxu0 0.0
      %9171 = vmatmul.mubr.f32.gmra.mrb[0].mxu0 %v9055
      %v9172 = vpop.f32.mrb[0].mxu0
      %v9173 = vadd.f32 %v9046, %v9172
      %v9174 = vpop.f32.mrb[0].mxu0
      %9175 = vmatprep.mubr.f32.mxu0 0.0
      %9176 = vmatmul.mubr.f32.gmra.mrb[0].mxu0 %v9058
      %v9177 = vpop.f32.mrb[0].mxu0
      %v9178 = vadd.f32 %v9046, %v9177
      %v9179 = vpop.f32.mrb[0].mxu0
      %9180 = vmatprep.mubr.f32.mxu0 0.0
      %9181 = vmatmul.mubr.f32.gmra.mrb[0].mxu0 %v9061
      %v9182 = vpop.f32.mrb[0].mxu0
      %v9183 = vadd.f32 %v9046, %v9182
      %v9184 = vpop.f32.mrb[0].mxu0
      %9185 = vmatprep.mubr.f32.mxu0 0.0
      %9186 = vmatmul.mubr.f32.gmra.mrb[0].mxu0 %v9064
      %v9187 = vpop.f32.mrb[0].mxu0
      %v9188 = vadd.f32 %v9046, %v9187
      %v9189 = vpop.f32.mrb[0].mxu0
      %9190 = vmatprep.mubr.f32.mxu0 0.0
      %9191 = vmatmul.mubr.f32.gmra.mrb[0].mxu0 %v9067
      %v9192 = vpop.f32.mrb[0].mxu0
      %v9193 = vadd.f32 %v9046, %v9192
      %v9194 = vpop.f32.mrb[0].mxu0
      %9195 = vmatprep.mubr.f32.mxu0 0.0
      %9196 = vmatmul.mubr.f32.gmra.mrb[0].mxu0 %v9070
      %v9197 = vpop.f32.mrb[0].mxu0
      %v9198 = vadd.f32 %v9046, %v9197
      %v9199 = vpop.f32.mrb[0].mxu0
      %9200 = vmatprep.mubr.f32.mxu0 0.0
      %9201 = vmatmul.mubr.f32.gmra.mrb[0].mxu0 %v9073
      %v9202 = vpop.f32.mrb[0].mxu0
      %v9203 = vadd.f32 %v9046, %v9202
      %v9204 = vpop.f32.mrb[0].mxu0
      %9205 = vmatprep.mubr.f32.mxu0 0.0
      %9206 = vmatmul.mubr.f32.gmra.mrb[0].mxu0 %v9076
      %v9207 = vpop.f32.mrb[0].mxu0
      %v9208 = vadd.f32 %v9046, %v9207
      %v9209 = vpop.f32.mrb[0].mxu0
      %9210 = vmatprep.mubr.f32.mxu0 0.0
      %9211 = vmatmul.mubr.f32.gmra.mrb[0].mxu0 %v9079
      %v9212 = vpop.f32.mrb[0].mxu0
      %v9213 = vadd.f32 %v9046, %v9212
      %v9214 = vpop.f32.mrb[0].mxu0
      %9215 = vmatprep.mubr.f32.mxu0 0.0
      %9216 = vmatmul.mubr.f32.gmra.mrb[0].mxu0 %v9082
      %v9217 = vpop.f32.mrb[0].mxu0
      %v9218 = vadd.f32 %v9046, %v9217
      %v9219 = vpop.f32.mrb[0].mxu0
      %9220 = vmatprep.mubr.f32.mxu0 0.0
      %9221 = vmatmul.mubr.f32.gmra.mrb[0].mxu0 %v9085
      %v9222 = vpop.f32.mrb[0].mxu0
      %v9223 = vadd.f32 %v9046, %v9222
      %v9224 = vpop.f32.mrb[0].mxu0
      %9225 = vmatprep.mubr.f32.mxu0 0.0
      %9226 = vmatmul.mubr.f32.gmra.mrb[0].mxu0 %v9088
      %v9227 = vpop.f32.mrb[0].mxu0
      %v9228 = vadd.f32 %v9046, %v9227
      %v9229 = vpop.f32.mrb[0].mxu0
      %9230 = vmatprep.mubr.f32.mxu0 0.0
      %9231 = vmatmul.mubr.f32.gmra.mrb[0].mxu0 %v9091
      %v9232 = vpop.f32.mrb[0].mxu0
      %v9233 = vadd.f32 %v9046, %v9232
      %v9234 = vpop.f32.mrb[0].mxu0
      %9235 = vmatprep.mubr.f32.mxu0 0.0
      %9236 = vmatmul.mubr.f32.gmra.mrb[0].mxu0 %v9094
      %v9237 = vpop.f32.mrb[0].mxu0
      %v9238 = vadd.f32 %v9046, %v9237
      %v9239 = vpop.f32.mrb[0].mxu0
      %9240 = vdwg.mxu0
      %9241 = vst.msk [vmem:[%s415 + $0x180] sm:$0xff] %vm2613, %v9163
      %9242 = vst.msk [vmem:[%s415 + $0x188] sm:$0xff] %vm2613, %v9168
      %9243 = vst.msk [vmem:[%s415 + $0x190] sm:$0xff] %vm2613, %v9173
      %9244 = vst.msk [vmem:[%s415 + $0x198] sm:$0xff] %vm2613, %v9178
      %9245 = vst.msk [vmem:[%s415 + $0x1a0] sm:$0xff] %vm2613, %v9183
      %9246 = vst.msk [vmem:[%s415 + $0x1a8] sm:$0xff] %vm2613, %v9188
      %9247 = vst.msk [vmem:[%s415 + $0x1b0] sm:$0xff] %vm2613, %v9193
      %9248 = vst.msk [vmem:[%s415 + $0x1b8] sm:$0xff] %vm2613, %v9198
      %9249 = vst.msk [vmem:[%s415 + $0x1c0] sm:$0xff] %vm2613, %v9203
      %9250 = vst.msk [vmem:[%s415 + $0x1c8] sm:$0xff] %vm2613, %v9208
      %9251 = vst.msk [vmem:[%s415 + $0x1d0] sm:$0xff] %vm2613, %v9213
      %9252 = vst.msk [vmem:[%s415 + $0x1d8] sm:$0xff] %vm2613, %v9218
      %9253 = vst.msk [vmem:[%s415 + $0x1e0] sm:$0xff] %vm2613, %v9223
      %9254 = vst.msk [vmem:[%s415 + $0x1e8] sm:$0xff] %vm2613, %v9228
      %9255 = vst.msk [vmem:[%s415 + $0x1f0] sm:$0xff] %vm2613, %v9233
      %9256 = vst.msk [vmem:[%s415 + $0x1f8] sm:$0xff] %vm2613, %v9238
      %s9257 = smul.u32 64, %s23
      %p9258 = scmp.lt.s32.totalorder %s9257, 127
      %s9259 = scalar_select %p9258, %s9257, 127
      %s9260 = smul.addr %s9259, 8
      %s9261 = scalar_lea.vmem %s12, %s9260
      // Predicated region
      $region69: #{tpu_custom_call.1} parent=67 // pred_check
        %p9262 = pneg %p298
      $region70: #{tpu_custom_call.1} parent=67 // pred_check_branch
        %9264 = sbr.rel (%p9262) target = $region72
      $region71: #{tpu_custom_call.1} parent=67 // pred_region
        %s9265 = smul.u32 64, %s23
      $region72: #{tpu_custom_call.1} parent=67 // pred_fallthru
        _
    $region68: #{tpu_custom_call.1} parent=5 // pred_fallthru
      _
    %p9266 = scmp.le.s32.totalorder 2, %s18
    // Predicated region
    $region73: #{tpu_custom_call.1} parent=5 // pred_check
      %p9267 = pneg %p9266
    $region74: #{tpu_custom_call.1} parent=5 // pred_check_branch
      %9269 = sbr.rel (%p9267) target = $region76
    $region75: #{tpu_custom_call.1} parent=5 // pred_region
      %s9270 = ssub.s32 %s18, 2
      // Predicated region
      $region77: #{tpu_custom_call.1} parent=75 // pred_check
        %p9271 = pneg %p304
      $region78: #{tpu_custom_call.1} parent=75 // pred_check_branch
        %9273 = sbr.rel (%p9271) target = $region80
      $region79: #{tpu_custom_call.1} parent=75 // pred_region
        %s9274 = smul.u32 64, %s24
        %p9275 = scmp.lt.s32.totalorder %s9274, 127
        %s9276 = scalar_select %p9275, %s9274, 127
        %s9277 = smul.addr %s9276, 8
        %s9278 = scalar_lea.vmem %s12, %s9277
      $region80: #{tpu_custom_call.1} parent=75 // pred_fallthru
        _
    $region76: #{tpu_custom_call.1} parent=5 // pred_fallthru
      _
  $region6: #{tpu_custom_call.1} parent=0 // loop_footer
    %s22 = sadd.s32 1, %s18
  $region7: #{tpu_custom_call.1} parent=0 // loop_footer_branch
    %17 = sbr.rel target = $region3
  $region8: #{tpu_custom_call.1} parent=0 // loop_exit
    _

</llo_original>
